<compile_context>
chip_gen: v6e
topology: v6e:2x2x1
jax: 0.10.0
libtpu: 0.0.40
codegen_flags: <defaults>
</compile_context>

<pallas_src>
import functools

import jax
import jax.numpy as jnp
import numpy as np
from jax.experimental import pallas as pl
from jax.experimental.pallas import tpu as pltpu

LEAKY_SLOPE = 0.1
C_PAD = 128          # lane-dense channel padding (full vreg / MXU N width)


def _round_up(x, m):
    return (x + m - 1) // m * m


def _leaky_relu(y):
    return jnp.where(y > 0, y, LEAKY_SLOPE * y)


def _conv_pass_kernel(x_ref, mask_ref,
                      w1_ref, b1_ref, w2_ref, b2_ref, w3_ref, b3_ref,
                      w4_ref, b4_ref, w5_ref, b5_ref,
                      out_ref, pad_a_ref, pad_b_ref,
                      *, Wp, M, L, p0):
    """Fused 5-layer ConvPassBlock for one batch element.

    All activations are lane-dense (rows, 128) f32 tiles living in a flattened,
    zero-padded spatial buffer (row index = L + (y_pad * Wp + x_pad)).
    """

    def conv3x3(src_ref, w_ref, b_ref):
        # 9 contiguous row-shifted slices -> one im2col tile -> one MXU push.
        taps = []
        for dy in range(3):
            for dx in range(3):
                off = L + dy * Wp + dx          # static python int
                taps.append(src_ref[pl.ds(off, M), :])
        patch = jnp.concatenate(taps, axis=1).astype(jnp.bfloat16)   # (M, 9*128)
        acc = jnp.dot(patch, w_ref[...], preferred_element_type=jnp.float32)
        return _leaky_relu(acc + b_ref[...])    # folded BN bias + LeakyReLU (f32)

    def conv1x1(act_f32, w_ref, b_ref):
        acc = jnp.dot(act_f32.astype(jnp.bfloat16), w_ref[...],
                      preferred_element_type=jnp.float32)
        return _leaky_relu(acc + b_ref[...])

    # Zero the padded scratch buffers once: borders must stay exactly zero so the
    # next 3x3 conv sees proper zero padding.
    pad_a_ref[...] = jnp.zeros_like(pad_a_ref)
    pad_b_ref[...] = jnp.zeros_like(pad_b_ref)

    mask = mask_ref[...]                        # (M, 1) f32: 1.0 at real pixels

    # layer 1 (3x3) + layer 2 (1x1)
    y1 = conv3x3(x_ref, w1_ref, b1_ref)
    y2 = conv1x1(y1, w2_ref, b2_ref)
    pad_a_ref[pl.ds(p0, M), :] = y2 * mask      # re-zero padding positions

    # layer 3 (3x3) + layer 4 (1x1)
    y3 = conv3x3(pad_a_ref, w3_ref, b3_ref)
    y4 = conv1x1(y3, w4_ref, b4_ref)
    pad_b_ref[pl.ds(p0, M), :] = y4 * mask

    # layer 5 (3x3) -> lane-dense (rows, 128) output slab
    y5 = conv3x3(pad_b_ref, w5_ref, b5_ref)
    out_ref[...] = jnp.zeros_like(out_ref)
    out_ref[pl.ds(p0, M), :] = y5.astype(out_ref.dtype)


def conv_pass_block_forward(x_nchw, folded_layers, c_pad=C_PAD):
    """x_nchw: (B, Cin, H, W) f32.
    folded_layers: list of 5 tuples (ksize, w, b) with BatchNorm already folded:
      ksize == 3 -> w is HWIO (3, 3, Ci, Co); ksize == 1 -> w is (Ci, Co); b is (Co,).
    Returns (B, C_out, H, W) f32."""
    B, Cin, H, W = x_nchw.shape
    Hp, Wp = H + 2, W + 2
    Cp = c_pad
    assert Cin <= Cp and all(b.shape[0] <= Cp for _, _, b in folded_layers)

    # Geometry of the flattened, zero-padded activation buffers.
    L = (-(Wp + 1)) % 8                        # leading rows so p0 is 8-aligned
    p0 = L + Wp + 1                            # row of output pixel (0, 0)
    M = _round_up((H - 1) * Wp + W, 8)         # rows computed per 3x3 stage
    N_rows = _round_up(max(L + 2 * Wp + 2 + M, L + Hp * Wp), 8)

    # Input: NCHW -> NHWC -> channel-pad to Cp -> spatial pad by 1 -> flatten rows.
    x = jnp.transpose(x_nchw, (0, 2, 3, 1))
    x = jnp.pad(x, ((0, 0), (1, 1), (1, 1), (0, Cp - Cin)))
    x = x.reshape(B, Hp * Wp, Cp)
    x = jnp.pad(x, ((0, 0), (L, N_rows - L - Hp * Wp), (0, 0))).astype(jnp.float32)

    # Validity mask over the M computed rows (1.0 exactly at real image pixels).
    q = np.arange(M)
    p = q + p0 - L
    row, col = p // Wp, p % Wp
    valid = (row >= 1) & (row <= H) & (col >= 1) & (col <= W)
    mask = jnp.asarray(valid.astype(np.float32)[:, None])          # (M, 1)

    # Pad + pack weights (bf16) and biases (f32, (1, Cp)).
    packed, w_specs = [], []
    for ksize, w, b in folded_layers:
        if ksize == 3:
            ww = jnp.zeros((3, 3, Cp, Cp), jnp.float32)
            ww = ww.at[:, :, :w.shape[2], :w.shape[3]].set(w)
            ww = ww.reshape(9 * Cp, Cp)        # tap-major (dy, dx) rows of Cp
        else:
            ww = jnp.zeros((Cp, Cp), jnp.float32)
            ww = ww.at[:w.shape[0], :w.shape[1]].set(w)
        bb = jnp.zeros((1, Cp), jnp.float32).at[0, :b.shape[0]].set(b)
        packed += [ww.astype(jnp.bfloat16), bb]
        w_specs.append(pl.BlockSpec((ww.shape[0], Cp), lambda bi: (0, 0)))
        w_specs.append(pl.BlockSpec((1, Cp), lambda bi: (0, 0)))

    kernel = functools.partial(_conv_pass_kernel, Wp=Wp, M=M, L=L, p0=p0)

    out_pad = pl.pallas_call(
        kernel,
        out_shape=jax.ShapeDtypeStruct((B, N_rows, Cp), jnp.float32),
        grid_spec=pltpu.PrefetchScalarGridSpec(
            num_scalar_prefetch=0,
            grid=(B,),
            in_specs=[
                pl.BlockSpec((None, N_rows, Cp), lambda bi: (bi, 0, 0)),
                pl.BlockSpec((M, 1), lambda bi: (0, 0)),
            ] + w_specs,
            out_specs=pl.BlockSpec((None, N_rows, Cp), lambda bi: (bi, 0, 0)),
            scratch_shapes=[
                pltpu.VMEM((N_rows, Cp), jnp.float32),
                pltpu.VMEM((N_rows, Cp), jnp.float32),
            ],
        ),
        compiler_params=pltpu.CompilerParams(
            dimension_semantics=("parallel",),
            vmem_limit_bytes=32 * 1024 * 1024,
        ),
    )(x, mask, *packed)

    # Extract the valid pixels / real channels, back to NCHW.
    c_out = folded_layers[-1][1].shape[-1]
    out = out_pad[:, L:L + Hp * Wp, :].reshape(B, Hp, Wp, Cp)
    out = out[:, 1:H + 1, 1:W + 1, :c_out]
    return jnp.transpose(out, (0, 3, 1, 2))


def reference_forward(x_nchw, folded_layers):
    """Pure-JAX reference with identical bf16 rounding points."""
    x = jnp.transpose(x_nchw, (0, 2, 3, 1)).astype(jnp.bfloat16)
    y = None
    for ksize, w, b in folded_layers:
        wb = w.astype(jnp.bfloat16)
        if ksize == 3:
            y = jax.lax.conv_general_dilated(
                x, wb, window_strides=(1, 1), padding="SAME",
                dimension_numbers=("NHWC", "HWIO", "NHWC"),
                preferred_element_type=jnp.float32)
        else:
            y = jnp.einsum("bhwc,co->bhwo", x, wb,
                           preferred_element_type=jnp.float32)
        y = _leaky_relu(y + b)
        x = y.astype(jnp.bfloat16)
    return jnp.transpose(y, (0, 3, 1, 2))


if __name__ == "__main__":
    # ConvPassBlock(in_channels=4, out_channels=8) on a (2, 4, 16, 16) input.
    B, Cin, H, W = 2, 4, 16, 16
    Co = 8
    layer_dims = [(3, Cin, Co), (1, Co, 2 * Co), (3, 2 * Co, Co),
                  (1, Co, 2 * Co), (3, 2 * Co, Co)]

    key = jax.random.PRNGKey(0)
    key, kx = jax.random.split(key)
    x = jax.random.normal(kx, (B, Cin, H, W), jnp.float32)

    # Build per-layer conv weights + BatchNorm params and fold BN (eval mode).
    folded = []
    eps = 1e-5
    for (k, ci, co) in layer_dims:
        key, kw, kg, kb, km, kv = jax.random.split(key, 6)
        if k == 3:
            w = jax.random.normal(kw, (3, 3, ci, co), jnp.float32) * 0.1
        else:
            w = jax.random.normal(kw, (ci, co), jnp.float32) * 0.1
        gamma = 1.0 + 0.1 * jax.random.normal(kg, (co,), jnp.float32)
        beta = 0.1 * jax.random.normal(kb, (co,), jnp.float32)
        mean = 0.1 * jax.random.normal(km, (co,), jnp.float32)
        var = jnp.abs(jax.random.normal(kv, (co,), jnp.float32)) + 0.5
        scale = gamma / jnp.sqrt(var + eps)
        w_f = w * (scale[None, None, None, :] if k == 3 else scale[None, :])
        b_f = beta - mean * scale
        folded.append((k, w_f, b_f))

    out = conv_pass_block_forward(x, folded)
    out = jax.block_until_ready(out)
    ref = reference_forward(x, folded)

    assert out.shape == (B, Co, H, W), out.shape
    err = float(jnp.max(jnp.abs(out - ref)))
    assert jnp.allclose(out, ref, atol=2e-3, rtol=2e-3), err
    print("KERNEL_OK")
</pallas_src>

<mosaic_0001>
module attributes {stable_mosaic.version = 11 : i64} {
  func.func @_conv_pass_kernel(%arg0: i32, %arg1: memref<1x336x128xf32, #tpu.memory_space<vmem>>, %arg2: memref<288x1xf32, #tpu.memory_space<vmem>>, %arg3: memref<1152x128xbf16, #tpu.memory_space<vmem>>, %arg4: memref<1x128xf32, #tpu.memory_space<vmem>>, %arg5: memref<128x128xbf16, #tpu.memory_space<vmem>>, %arg6: memref<1x128xf32, #tpu.memory_space<vmem>>, %arg7: memref<1152x128xbf16, #tpu.memory_space<vmem>>, %arg8: memref<1x128xf32, #tpu.memory_space<vmem>>, %arg9: memref<128x128xbf16, #tpu.memory_space<vmem>>, %arg10: memref<1x128xf32, #tpu.memory_space<vmem>>, %arg11: memref<1152x128xbf16, #tpu.memory_space<vmem>>, %arg12: memref<1x128xf32, #tpu.memory_space<vmem>>, %arg13: memref<1x336x128xf32, #tpu.memory_space<vmem>>, %arg14: memref<336x128xf32, #tpu.memory_space<vmem>>, %arg15: memref<336x128xf32, #tpu.memory_space<vmem>>) attributes {dimension_semantics = [#tpu.dimension_semantics<parallel>], iteration_bounds = array<i64: 2>, scalar_prefetch = 0 : i64, scratch_operands = 2 : i64, tpu.core_type = #tpu.core_type<tc>, window_params = [{transform_indices = @transform_0, window_bounds = array<i64: 1, 336, 128>}, {pipeline_mode = #tpu.pipeline_mode<synchronous>, transform_indices = @transform_1, window_bounds = array<i64: 288, 1>}, {pipeline_mode = #tpu.pipeline_mode<synchronous>, transform_indices = @transform_2, window_bounds = array<i64: 1152, 128>}, {pipeline_mode = #tpu.pipeline_mode<synchronous>, transform_indices = @transform_3, window_bounds = array<i64: 1, 128>}, {pipeline_mode = #tpu.pipeline_mode<synchronous>, transform_indices = @transform_4, window_bounds = array<i64: 128, 128>}, {pipeline_mode = #tpu.pipeline_mode<synchronous>, transform_indices = @transform_5, window_bounds = array<i64: 1, 128>}, {pipeline_mode = #tpu.pipeline_mode<synchronous>, transform_indices = @transform_6, window_bounds = array<i64: 1152, 128>}, {pipeline_mode = #tpu.pipeline_mode<synchronous>, transform_indices = @transform_7, window_bounds = array<i64: 1, 128>}, {pipeline_mode = #tpu.pipeline_mode<synchronous>, transform_indices = @transform_8, window_bounds = array<i64: 128, 128>}, {pipeline_mode = #tpu.pipeline_mode<synchronous>, transform_indices = @transform_9, window_bounds = array<i64: 1, 128>}, {pipeline_mode = #tpu.pipeline_mode<synchronous>, transform_indices = @transform_10, window_bounds = array<i64: 1152, 128>}, {pipeline_mode = #tpu.pipeline_mode<synchronous>, transform_indices = @transform_11, window_bounds = array<i64: 1, 128>}, {transform_indices = @transform_12, window_bounds = array<i64: 1, 336, 128>}]} {
    %cst = arith.constant 0.000000e+00 : f32
    %0 = vector.broadcast %cst : f32 to vector<336x128xf32>
    %c0 = arith.constant 0 : index
    %c0_0 = arith.constant 0 : index
    %1 = vector.load %arg14[%c0, %c0_0] : memref<336x128xf32, #tpu.memory_space<vmem>>, vector<336x128xf32>
    tpu.vector_store %arg14[%c0, %c0_0], %0 {strides = array<i32>} : memref<336x128xf32, #tpu.memory_space<vmem>>, vector<336x128xf32>,
    %cst_1 = arith.constant 0.000000e+00 : f32
    %2 = vector.broadcast %cst_1 : f32 to vector<336x128xf32>
    %c0_2 = arith.constant 0 : index
    %c0_3 = arith.constant 0 : index
    %3 = vector.load %arg15[%c0_2, %c0_3] : memref<336x128xf32, #tpu.memory_space<vmem>>, vector<336x128xf32>
    tpu.vector_store %arg15[%c0_2, %c0_3], %2 {strides = array<i32>} : memref<336x128xf32, #tpu.memory_space<vmem>>, vector<336x128xf32>,
    %c0_4 = arith.constant 0 : index
    %c0_5 = arith.constant 0 : index
    %4 = vector.load %arg2[%c0_4, %c0_5] : memref<288x1xf32, #tpu.memory_space<vmem>>, vector<288x1xf32>
    %c0_6 = arith.constant 0 : index
    %c5 = arith.constant 5 : index
    %c0_7 = arith.constant 0 : index
    %5 = vector.load %arg1[%c0_6, %c5, %c0_7] : memref<1x336x128xf32, #tpu.memory_space<vmem>>, vector<1x288x128xf32>
    %6 = vector.shape_cast %5 : vector<1x288x128xf32> to vector<288x128xf32>
    %c0_8 = arith.constant 0 : index
    %c6 = arith.constant 6 : index
    %c0_9 = arith.constant 0 : index
    %7 = vector.load %arg1[%c0_8, %c6, %c0_9] : memref<1x336x128xf32, #tpu.memory_space<vmem>>, vector<1x288x128xf32>
    %8 = vector.shape_cast %7 : vector<1x288x128xf32> to vector<288x128xf32>
    %c0_10 = arith.constant 0 : index
    %c7 = arith.constant 7 : index
    %c0_11 = arith.constant 0 : index
    %9 = vector.load %arg1[%c0_10, %c7, %c0_11] : memref<1x336x128xf32, #tpu.memory_space<vmem>>, vector<1x288x128xf32>
    %10 = vector.shape_cast %9 : vector<1x288x128xf32> to vector<288x128xf32>
    %c0_12 = arith.constant 0 : index
    %c23 = arith.constant 23 : index
    %c0_13 = arith.constant 0 : index
    %11 = vector.load %arg1[%c0_12, %c23, %c0_13] : memref<1x336x128xf32, #tpu.memory_space<vmem>>, vector<1x288x128xf32>
    %12 = vector.shape_cast %11 : vector<1x288x128xf32> to vector<288x128xf32>
    %c0_14 = arith.constant 0 : index
    %c24 = arith.constant 24 : index
    %c0_15 = arith.constant 0 : index
    %13 = vector.load %arg1[%c0_14, %c24, %c0_15] : memref<1x336x128xf32, #tpu.memory_space<vmem>>, vector<1x288x128xf32>
    %14 = vector.shape_cast %13 : vector<1x288x128xf32> to vector<288x128xf32>
    %c0_16 = arith.constant 0 : index
    %c25 = arith.constant 25 : index
    %c0_17 = arith.constant 0 : index
    %15 = vector.load %arg1[%c0_16, %c25, %c0_17] : memref<1x336x128xf32, #tpu.memory_space<vmem>>, vector<1x288x128xf32>
    %16 = vector.shape_cast %15 : vector<1x288x128xf32> to vector<288x128xf32>
    %c0_18 = arith.constant 0 : index
    %c41 = arith.constant 41 : index
    %c0_19 = arith.constant 0 : index
    %17 = vector.load %arg1[%c0_18, %c41, %c0_19] : memref<1x336x128xf32, #tpu.memory_space<vmem>>, vector<1x288x128xf32>
    %18 = vector.shape_cast %17 : vector<1x288x128xf32> to vector<288x128xf32>
    %c0_20 = arith.constant 0 : index
    %c42 = arith.constant 42 : index
    %c0_21 = arith.constant 0 : index
    %19 = vector.load %arg1[%c0_20, %c42, %c0_21] : memref<1x336x128xf32, #tpu.memory_space<vmem>>, vector<1x288x128xf32>
    %20 = vector.shape_cast %19 : vector<1x288x128xf32> to vector<288x128xf32>
    %c0_22 = arith.constant 0 : index
    %c43 = arith.constant 43 : index
    %c0_23 = arith.constant 0 : index
    %21 = vector.load %arg1[%c0_22, %c43, %c0_23] : memref<1x336x128xf32, #tpu.memory_space<vmem>>, vector<1x288x128xf32>
    %22 = vector.shape_cast %21 : vector<1x288x128xf32> to vector<288x128xf32>
    %23 = tpu.concatenate %6, %8, %10, %12, %14, %16, %18, %20, %22 in 1 : vector<288x128xf32>, vector<288x128xf32>, vector<288x128xf32>, vector<288x128xf32>, vector<288x128xf32>, vector<288x128xf32>, vector<288x128xf32>, vector<288x128xf32>, vector<288x128xf32> -> vector<288x1152xf32>
    %24 = arith.truncf %23 : vector<288x1152xf32> to vector<288x1152xbf16>
    %c0_24 = arith.constant 0 : index
    %c0_25 = arith.constant 0 : index
    %25 = vector.load %arg3[%c0_24, %c0_25] : memref<1152x128xbf16, #tpu.memory_space<vmem>>, vector<1152x128xbf16>
    %cst_26 = arith.constant dense<0.000000e+00> : vector<288x128xf32>
    %26 = tpu.matmul %24, %25, %cst_26 {dimension_numbers = #tpu.dot_dimension_numbers<[1], [0], [0], [1], [0, 0, 1, 1], [], []>} : vector<288x1152xbf16>, vector<1152x128xbf16>, vector<288x128xf32> -> vector<288x128xf32>
    %c0_27 = arith.constant 0 : index
    %c0_28 = arith.constant 0 : index
    %27 = vector.load %arg4[%c0_27, %c0_28] : memref<1x128xf32, #tpu.memory_space<vmem>>, vector<1x128xf32>
    %28 = vector.broadcast %27 : vector<1x128xf32> to vector<288x128xf32>
    %29 = arith.addf %26, %28 : vector<288x128xf32>
    %cst_29 = arith.constant 0.000000e+00 : f32
    %30 = vector.broadcast %cst_29 : f32 to vector<288x128xf32>
    %31 = arith.cmpf ogt, %29, %30 : vector<288x128xf32>
    %cst_30 = arith.constant 1.000000e-01 : f32
    %32 = vector.broadcast %cst_30 : f32 to vector<288x128xf32>
    %33 = arith.mulf %32, %29 : vector<288x128xf32>
    %34 = arith.select %31, %29, %33 : vector<288x128xi1>, vector<288x128xf32>
    %35 = arith.truncf %34 : vector<288x128xf32> to vector<288x128xbf16>
    %c0_31 = arith.constant 0 : index
    %c0_32 = arith.constant 0 : index
    %36 = vector.load %arg5[%c0_31, %c0_32] : memref<128x128xbf16, #tpu.memory_space<vmem>>, vector<128x128xbf16>
    %cst_33 = arith.constant dense<0.000000e+00> : vector<288x128xf32>
    %37 = tpu.matmul %35, %36, %cst_33 {dimension_numbers = #tpu.dot_dimension_numbers<[1], [0], [0], [1], [0, 0, 1, 1], [], []>} : vector<288x128xbf16>, vector<128x128xbf16>, vector<288x128xf32> -> vector<288x128xf32>
    %c0_34 = arith.constant 0 : index
    %c0_35 = arith.constant 0 : index
    %38 = vector.load %arg6[%c0_34, %c0_35] : memref<1x128xf32, #tpu.memory_space<vmem>>, vector<1x128xf32>
    %39 = vector.broadcast %38 : vector<1x128xf32> to vector<288x128xf32>
    %40 = arith.addf %37, %39 : vector<288x128xf32>
    %cst_36 = arith.constant 0.000000e+00 : f32
    %41 = vector.broadcast %cst_36 : f32 to vector<288x128xf32>
    %42 = arith.cmpf ogt, %40, %41 : vector<288x128xf32>
    %cst_37 = arith.constant 1.000000e-01 : f32
    %43 = vector.broadcast %cst_37 : f32 to vector<288x128xf32>
    %44 = arith.mulf %43, %40 : vector<288x128xf32>
    %45 = arith.select %42, %40, %44 : vector<288x128xi1>, vector<288x128xf32>
    %46 = vector.broadcast %4 : vector<288x1xf32> to vector<288x128xf32>
    %47 = arith.mulf %45, %46 : vector<288x128xf32>
    %c24_38 = arith.constant 24 : index
    %c0_39 = arith.constant 0 : index
    %48 = vector.load %arg14[%c24_38, %c0_39] : memref<336x128xf32, #tpu.memory_space<vmem>>, vector<288x128xf32>
    tpu.vector_store %arg14[%c24_38, %c0_39], %47 {strides = array<i32>} : memref<336x128xf32, #tpu.memory_space<vmem>>, vector<288x128xf32>,
    %c5_40 = arith.constant 5 : index
    %c0_41 = arith.constant 0 : index
    %49 = vector.load %arg14[%c5_40, %c0_41] : memref<336x128xf32, #tpu.memory_space<vmem>>, vector<288x128xf32>
    %c6_42 = arith.constant 6 : index
    %c0_43 = arith.constant 0 : index
    %50 = vector.load %arg14[%c6_42, %c0_43] : memref<336x128xf32, #tpu.memory_space<vmem>>, vector<288x128xf32>
    %c7_44 = arith.constant 7 : index
    %c0_45 = arith.constant 0 : index
    %51 = vector.load %arg14[%c7_44, %c0_45] : memref<336x128xf32, #tpu.memory_space<vmem>>, vector<288x128xf32>
    %c23_46 = arith.constant 23 : index
    %c0_47 = arith.constant 0 : index
    %52 = vector.load %arg14[%c23_46, %c0_47] : memref<336x128xf32, #tpu.memory_space<vmem>>, vector<288x128xf32>
    %c24_48 = arith.constant 24 : index
    %c0_49 = arith.constant 0 : index
    %53 = vector.load %arg14[%c24_48, %c0_49] : memref<336x128xf32, #tpu.memory_space<vmem>>, vector<288x128xf32>
    %c25_50 = arith.constant 25 : index
    %c0_51 = arith.constant 0 : index
    %54 = vector.load %arg14[%c25_50, %c0_51] : memref<336x128xf32, #tpu.memory_space<vmem>>, vector<288x128xf32>
    %c41_52 = arith.constant 41 : index
    %c0_53 = arith.constant 0 : index
    %55 = vector.load %arg14[%c41_52, %c0_53] : memref<336x128xf32, #tpu.memory_space<vmem>>, vector<288x128xf32>
    %c42_54 = arith.constant 42 : index
    %c0_55 = arith.constant 0 : index
    %56 = vector.load %arg14[%c42_54, %c0_55] : memref<336x128xf32, #tpu.memory_space<vmem>>, vector<288x128xf32>
    %c43_56 = arith.constant 43 : index
    %c0_57 = arith.constant 0 : index
    %57 = vector.load %arg14[%c43_56, %c0_57] : memref<336x128xf32, #tpu.memory_space<vmem>>, vector<288x128xf32>
    %58 = tpu.concatenate %49, %50, %51, %52, %53, %54, %55, %56, %57 in 1 : vector<288x128xf32>, vector<288x128xf32>, vector<288x128xf32>, vector<288x128xf32>, vector<288x128xf32>, vector<288x128xf32>, vector<288x128xf32>, vector<288x128xf32>, vector<288x128xf32> -> vector<288x1152xf32>
    %59 = arith.truncf %58 : vector<288x1152xf32> to vector<288x1152xbf16>
    %c0_58 = arith.constant 0 : index
    %c0_59 = arith.constant 0 : index
    %60 = vector.load %arg7[%c0_58, %c0_59] : memref<1152x128xbf16, #tpu.memory_space<vmem>>, vector<1152x128xbf16>
    %cst_60 = arith.constant dense<0.000000e+00> : vector<288x128xf32>
    %61 = tpu.matmul %59, %60, %cst_60 {dimension_numbers = #tpu.dot_dimension_numbers<[1], [0], [0], [1], [0, 0, 1, 1], [], []>} : vector<288x1152xbf16>, vector<1152x128xbf16>, vector<288x128xf32> -> vector<288x128xf32>
    %c0_61 = arith.constant 0 : index
    %c0_62 = arith.constant 0 : index
    %62 = vector.load %arg8[%c0_61, %c0_62] : memref<1x128xf32, #tpu.memory_space<vmem>>, vector<1x128xf32>
    %63 = vector.broadcast %62 : vector<1x128xf32> to vector<288x128xf32>
    %64 = arith.addf %61, %63 : vector<288x128xf32>
    %cst_63 = arith.constant 0.000000e+00 : f32
    %65 = vector.broadcast %cst_63 : f32 to vector<288x128xf32>
    %66 = arith.cmpf ogt, %64, %65 : vector<288x128xf32>
    %cst_64 = arith.constant 1.000000e-01 : f32
    %67 = vector.broadcast %cst_64 : f32 to vector<288x128xf32>
    %68 = arith.mulf %67, %64 : vector<288x128xf32>
    %69 = arith.select %66, %64, %68 : vector<288x128xi1>, vector<288x128xf32>
    %70 = arith.truncf %69 : vector<288x128xf32> to vector<288x128xbf16>
    %c0_65 = arith.constant 0 : index
    %c0_66 = arith.constant 0 : index
    %71 = vector.load %arg9[%c0_65, %c0_66] : memref<128x128xbf16, #tpu.memory_space<vmem>>, vector<128x128xbf16>
    %cst_67 = arith.constant dense<0.000000e+00> : vector<288x128xf32>
    %72 = tpu.matmul %70, %71, %cst_67 {dimension_numbers = #tpu.dot_dimension_numbers<[1], [0], [0], [1], [0, 0, 1, 1], [], []>} : vector<288x128xbf16>, vector<128x128xbf16>, vector<288x128xf32> -> vector<288x128xf32>
    %c0_68 = arith.constant 0 : index
    %c0_69 = arith.constant 0 : index
    %73 = vector.load %arg10[%c0_68, %c0_69] : memref<1x128xf32, #tpu.memory_space<vmem>>, vector<1x128xf32>
    %74 = vector.broadcast %73 : vector<1x128xf32> to vector<288x128xf32>
    %75 = arith.addf %72, %74 : vector<288x128xf32>
    %cst_70 = arith.constant 0.000000e+00 : f32
    %76 = vector.broadcast %cst_70 : f32 to vector<288x128xf32>
    %77 = arith.cmpf ogt, %75, %76 : vector<288x128xf32>
    %cst_71 = arith.constant 1.000000e-01 : f32
    %78 = vector.broadcast %cst_71 : f32 to vector<288x128xf32>
    %79 = arith.mulf %78, %75 : vector<288x128xf32>
    %80 = arith.select %77, %75, %79 : vector<288x128xi1>, vector<288x128xf32>
    %81 = vector.broadcast %4 : vector<288x1xf32> to vector<288x128xf32>
    %82 = arith.mulf %80, %81 : vector<288x128xf32>
    %c24_72 = arith.constant 24 : index
    %c0_73 = arith.constant 0 : index
    %83 = vector.load %arg15[%c24_72, %c0_73] : memref<336x128xf32, #tpu.memory_space<vmem>>, vector<288x128xf32>
    tpu.vector_store %arg15[%c24_72, %c0_73], %82 {strides = array<i32>} : memref<336x128xf32, #tpu.memory_space<vmem>>, vector<288x128xf32>,
    %c5_74 = arith.constant 5 : index
    %c0_75 = arith.constant 0 : index
    %84 = vector.load %arg15[%c5_74, %c0_75] : memref<336x128xf32, #tpu.memory_space<vmem>>, vector<288x128xf32>
    %c6_76 = arith.constant 6 : index
    %c0_77 = arith.constant 0 : index
    %85 = vector.load %arg15[%c6_76, %c0_77] : memref<336x128xf32, #tpu.memory_space<vmem>>, vector<288x128xf32>
    %c7_78 = arith.constant 7 : index
    %c0_79 = arith.constant 0 : index
    %86 = vector.load %arg15[%c7_78, %c0_79] : memref<336x128xf32, #tpu.memory_space<vmem>>, vector<288x128xf32>
    %c23_80 = arith.constant 23 : index
    %c0_81 = arith.constant 0 : index
    %87 = vector.load %arg15[%c23_80, %c0_81] : memref<336x128xf32, #tpu.memory_space<vmem>>, vector<288x128xf32>
    %c24_82 = arith.constant 24 : index
    %c0_83 = arith.constant 0 : index
    %88 = vector.load %arg15[%c24_82, %c0_83] : memref<336x128xf32, #tpu.memory_space<vmem>>, vector<288x128xf32>
    %c25_84 = arith.constant 25 : index
    %c0_85 = arith.constant 0 : index
    %89 = vector.load %arg15[%c25_84, %c0_85] : memref<336x128xf32, #tpu.memory_space<vmem>>, vector<288x128xf32>
    %c41_86 = arith.constant 41 : index
    %c0_87 = arith.constant 0 : index
    %90 = vector.load %arg15[%c41_86, %c0_87] : memref<336x128xf32, #tpu.memory_space<vmem>>, vector<288x128xf32>
    %c42_88 = arith.constant 42 : index
    %c0_89 = arith.constant 0 : index
    %91 = vector.load %arg15[%c42_88, %c0_89] : memref<336x128xf32, #tpu.memory_space<vmem>>, vector<288x128xf32>
    %c43_90 = arith.constant 43 : index
    %c0_91 = arith.constant 0 : index
    %92 = vector.load %arg15[%c43_90, %c0_91] : memref<336x128xf32, #tpu.memory_space<vmem>>, vector<288x128xf32>
    %93 = tpu.concatenate %84, %85, %86, %87, %88, %89, %90, %91, %92 in 1 : vector<288x128xf32>, vector<288x128xf32>, vector<288x128xf32>, vector<288x128xf32>, vector<288x128xf32>, vector<288x128xf32>, vector<288x128xf32>, vector<288x128xf32>, vector<288x128xf32> -> vector<288x1152xf32>
    %94 = arith.truncf %93 : vector<288x1152xf32> to vector<288x1152xbf16>
    %c0_92 = arith.constant 0 : index
    %c0_93 = arith.constant 0 : index
    %95 = vector.load %arg11[%c0_92, %c0_93] : memref<1152x128xbf16, #tpu.memory_space<vmem>>, vector<1152x128xbf16>
    %cst_94 = arith.constant dense<0.000000e+00> : vector<288x128xf32>
    %96 = tpu.matmul %94, %95, %cst_94 {dimension_numbers = #tpu.dot_dimension_numbers<[1], [0], [0], [1], [0, 0, 1, 1], [], []>} : vector<288x1152xbf16>, vector<1152x128xbf16>, vector<288x128xf32> -> vector<288x128xf32>
    %c0_95 = arith.constant 0 : index
    %c0_96 = arith.constant 0 : index
    %97 = vector.load %arg12[%c0_95, %c0_96] : memref<1x128xf32, #tpu.memory_space<vmem>>, vector<1x128xf32>
    %98 = vector.broadcast %97 : vector<1x128xf32> to vector<288x128xf32>
    %99 = arith.addf %96, %98 : vector<288x128xf32>
    %cst_97 = arith.constant 0.000000e+00 : f32
    %100 = vector.broadcast %cst_97 : f32 to vector<288x128xf32>
    %101 = arith.cmpf ogt, %99, %100 : vector<288x128xf32>
    %cst_98 = arith.constant 1.000000e-01 : f32
    %102 = vector.broadcast %cst_98 : f32 to vector<288x128xf32>
    %103 = arith.mulf %102, %99 : vector<288x128xf32>
    %104 = arith.select %101, %99, %103 : vector<288x128xi1>, vector<288x128xf32>
    %cst_99 = arith.constant 0.000000e+00 : f32
    %105 = vector.broadcast %cst_99 : f32 to vector<336x128xf32>
    %c0_100 = arith.constant 0 : index
    %c0_101 = arith.constant 0 : index
    %c0_102 = arith.constant 0 : index
    %106 = vector.load %arg13[%c0_100, %c0_101, %c0_102] : memref<1x336x128xf32, #tpu.memory_space<vmem>>, vector<1x336x128xf32>
    %107 = vector.shape_cast %106 : vector<1x336x128xf32> to vector<336x128xf32>
    %108 = vector.shape_cast %105 : vector<336x128xf32> to vector<1x336x128xf32>
    tpu.vector_store %arg13[%c0_100, %c0_101, %c0_102], %108 {strides = array<i32>} : memref<1x336x128xf32, #tpu.memory_space<vmem>>, vector<1x336x128xf32>,
    %c0_103 = arith.constant 0 : index
    %c24_104 = arith.constant 24 : index
    %c0_105 = arith.constant 0 : index
    %109 = vector.load %arg13[%c0_103, %c24_104, %c0_105] : memref<1x336x128xf32, #tpu.memory_space<vmem>>, vector<1x288x128xf32>
    %110 = vector.shape_cast %109 : vector<1x288x128xf32> to vector<288x128xf32>
    %111 = vector.shape_cast %104 : vector<288x128xf32> to vector<1x288x128xf32>
    tpu.vector_store %arg13[%c0_103, %c24_104, %c0_105], %111 {strides = array<i32>} : memref<1x336x128xf32, #tpu.memory_space<vmem>>, vector<1x288x128xf32>,
    return
  }
  func.func @transform_0(%arg0: i32) -> (i32, i32, i32) {
    %c0_i32 = arith.constant 0 : i32
    %c0_i32_0 = arith.constant 0 : i32
    %c0_i32_1 = arith.constant 0 : i32
    return %arg0, %c0_i32, %c0_i32_0 : i32, i32, i32
  }
  func.func @transform_1(%arg0: i32) -> (i32, i32) {
    %c0_i32 = arith.constant 0 : i32
    %c0_i32_0 = arith.constant 0 : i32
    %c0_i32_1 = arith.constant 0 : i32
    return %c0_i32, %c0_i32_0 : i32, i32
  }
  func.func @transform_2(%arg0: i32) -> (i32, i32) {
    %c0_i32 = arith.constant 0 : i32
    %c0_i32_0 = arith.constant 0 : i32
    %c0_i32_1 = arith.constant 0 : i32
    return %c0_i32, %c0_i32_0 : i32, i32
  }
  func.func @transform_3(%arg0: i32) -> (i32, i32) {
    %c0_i32 = arith.constant 0 : i32
    %c0_i32_0 = arith.constant 0 : i32
    %c0_i32_1 = arith.constant 0 : i32
    return %c0_i32, %c0_i32_0 : i32, i32
  }
  func.func @transform_4(%arg0: i32) -> (i32, i32) {
    %c0_i32 = arith.constant 0 : i32
    %c0_i32_0 = arith.constant 0 : i32
    %c0_i32_1 = arith.constant 0 : i32
    return %c0_i32, %c0_i32_0 : i32, i32
  }
  func.func @transform_5(%arg0: i32) -> (i32, i32) {
    %c0_i32 = arith.constant 0 : i32
    %c0_i32_0 = arith.constant 0 : i32
    %c0_i32_1 = arith.constant 0 : i32
    return %c0_i32, %c0_i32_0 : i32, i32
  }
  func.func @transform_6(%arg0: i32) -> (i32, i32) {
    %c0_i32 = arith.constant 0 : i32
    %c0_i32_0 = arith.constant 0 : i32
    %c0_i32_1 = arith.constant 0 : i32
    return %c0_i32, %c0_i32_0 : i32, i32
  }
  func.func @transform_7(%arg0: i32) -> (i32, i32) {
    %c0_i32 = arith.constant 0 : i32
    %c0_i32_0 = arith.constant 0 : i32
    %c0_i32_1 = arith.constant 0 : i32
    return %c0_i32, %c0_i32_0 : i32, i32
  }
  func.func @transform_8(%arg0: i32) -> (i32, i32) {
    %c0_i32 = arith.constant 0 : i32
    %c0_i32_0 = arith.constant 0 : i32
    %c0_i32_1 = arith.constant 0 : i32
    return %c0_i32, %c0_i32_0 : i32, i32
  }
  func.func @transform_9(%arg0: i32) -> (i32, i32) {
    %c0_i32 = arith.constant 0 : i32
    %c0_i32_0 = arith.constant 0 : i32
    %c0_i32_1 = arith.constant 0 : i32
    return %c0_i32, %c0_i32_0 : i32, i32
  }
  func.func @transform_10(%arg0: i32) -> (i32, i32) {
    %c0_i32 = arith.constant 0 : i32
    %c0_i32_0 = arith.constant 0 : i32
    %c0_i32_1 = arith.constant 0 : i32
    return %c0_i32, %c0_i32_0 : i32, i32
  }
  func.func @transform_11(%arg0: i32) -> (i32, i32) {
    %c0_i32 = arith.constant 0 : i32
    %c0_i32_0 = arith.constant 0 : i32
    %c0_i32_1 = arith.constant 0 : i32
    return %c0_i32, %c0_i32_0 : i32, i32
  }
  func.func @transform_12(%arg0: i32) -> (i32, i32, i32) {
    %c0_i32 = arith.constant 0 : i32
    %c0_i32_0 = arith.constant 0 : i32
    %c0_i32_1 = arith.constant 0 : i32
    return %arg0, %c0_i32, %c0_i32_0 : i32, i32, i32
  }
}

</mosaic_0001>

<llo_original>
// kernel: tpu_custom_call.1
$region0: #{tpu_custom_call.1}
  #allocation0 [shape = 'u32[]', space=smem, size = 0x4, offset = 0x4, fixed_abs, tag = 'smem constant byte address 0x4 - core index']
  #allocation1 [shape = 'u32[144,128]{1,0:T(1,128)}', space=vmem, size = 0x12000, scoped, tag = 'internal scratch']
  #allocation2 [shape = 'f32[336,128]{1,0:T(8,128)}', space=vmem, size = 0x2a000, scoped, tag = 'scratch operand']
  #allocation3 [shape = 'f32[336,128]{1,0:T(8,128)}', space=vmem, size = 0x2a000, scoped, tag = 'scratch operand']
  %s0 = inlined_call_operand.hbm [shape: f32[2,336,128], index: 0, kind: input, shape index: {}]
  %s1 = inlined_call_operand.vmem [shape: f32[288,1], index: 1, kind: input, shape index: {}]
  %s2 = inlined_call_operand.hbm [shape: bf16[1152,128], index: 2, kind: input, shape index: {}]
  %s3 = inlined_call_operand.vmem [shape: f32[1,128], index: 3, kind: input, shape index: {}]
  %s4 = inlined_call_operand.vmem [shape: bf16[128,128], index: 4, kind: input, shape index: {}]
  %s5 = inlined_call_operand.vmem [shape: f32[1,128], index: 5, kind: input, shape index: {}]
  %s6 = inlined_call_operand.hbm [shape: bf16[1152,128], index: 6, kind: input, shape index: {}]
  %s7 = inlined_call_operand.vmem [shape: f32[1,128], index: 7, kind: input, shape index: {}]
  %s8 = inlined_call_operand.vmem [shape: bf16[128,128], index: 8, kind: input, shape index: {}]
  %s9 = inlined_call_operand.vmem [shape: f32[1,128], index: 9, kind: input, shape index: {}]
  %s10 = inlined_call_operand.hbm [shape: bf16[1152,128], index: 10, kind: input, shape index: {}]
  %s11 = inlined_call_operand.vmem [shape: f32[1,128], index: 11, kind: input, shape index: {}]
  %s12 = inlined_call_operand.hbm [shape: f32[2,336,128], index: 12, kind: output, shape index: {}]
  %s13 = sld [smem:[#allocation0]]
  $region97: #{tpu_custom_call.1} parent=0
    _
  %s15 = ssub.s32 1, %s13
  %s16 = scalar_select 0, %s15, %s13
  $region1: #{tpu_custom_call.1} parent=0
    #allocation4 [shape = 'u8[344064]{0}', space=vmem, size = 0x54000, scoped, tag = 'input window, operand 0']
    #allocation5 [shape = 's32[2]{0}', space=sflag, size = 0x8, scoped, tag = 'scoped memory for tpu_custom_call.1']
    #allocation6 [shape = 's32[2]{0}', space=sflag, size = 0x8, scoped, tag = 'scoped memory for tpu_custom_call.1']
    #allocation7 [shape = 'u8[294912]{0}', space=vmem, size = 0x48000, scoped, tag = 'input window, operand 2, single buffered']
    #allocation8 [shape = 's32[1]{0}', space=sflag, size = 0x4, scoped, tag = 'scoped memory for tpu_custom_call.1']
    #allocation9 [shape = 'u8[294912]{0}', space=vmem, size = 0x48000, scoped, tag = 'input window, operand 6, single buffered']
    #allocation10 [shape = 'u8[294912]{0}', space=vmem, size = 0x48000, scoped, tag = 'input window, operand 10, single buffered']
    #allocation11 [shape = 's32[1]{0}', space=sflag, size = 0x4, scoped, tag = 'scoped memory for tpu_custom_call.1']
    #allocation12 [shape = 'u8[344064]{0}', space=vmem, size = 0x54000, scoped, tag = 'output window, operand 0']
    %17 = vsyncpa [#allocation5], 0
    %s18 = scalar_lea.sflag [#allocation5], 1
    %19 = vsyncpa %s18, 0
    %20 = vsyncpa [#allocation8], 0
    %21 = vsyncpa [#allocation11], 0
    %22 = vsyncpa [#allocation6], 0
    %s23 = scalar_lea.sflag [#allocation6], 1
    %24 = vsyncpa %s23, 0
    loop: start=0, step=1, limit=4
    $region2: #{tpu_custom_call.1} parent=1 // loop_pre_header
      _
    $region3: #{tpu_custom_call.1} parent=1 // loop_header
      %s26 = sphi 0, %s30
      %p27 = scmp.ge.s32.totalorder %s26, 4
      %s36 = sphi 0, %s38
      %s39 = sphi 0, %s36
      %s40 = sphi 0, %s39
      %s56 = sphi 0, %s40
      %s60 = sphi 0, %s60
      %s62 = sphi 0, %s60
      %s63 = sphi 0, %s62
      %s77 = sphi 0, %s63
      %s81 = sphi 0, %s81
      %s83 = sphi 0, %s81
      %s84 = sphi 0, %s83
      %s98 = sphi 0, %s84
      %s102 = sphi 0, %s102
      %s104 = sphi 0, %s102
      %s105 = sphi 0, %s104
      %s119 = sphi 0, %s105
      %s123 = sphi 0, %s123
      %s125 = sphi 0, %s123
      %s126 = sphi 0, %s125
      %s140 = sphi 0, %s126
      %s144 = sphi 0, %s144
      %s146 = sphi 0, %s144
      %s147 = sphi 0, %s146
      %s161 = sphi 0, %s147
      %s165 = sphi 0, %s165
      %s167 = sphi 0, %s165
      %s168 = sphi 0, %s167
      %s182 = sphi 0, %s168
      %s186 = sphi 0, %s186
      %s188 = sphi 0, %s186
      %s189 = sphi 0, %s188
      %s203 = sphi 0, %s189
      %s207 = sphi 0, %s207
      %s209 = sphi 0, %s207
      %s210 = sphi 0, %s209
      %s224 = sphi 0, %s210
      %s228 = sphi 0, %s228
      %s230 = sphi 0, %s228
      %s231 = sphi 0, %s230
      %s245 = sphi 0, %s231
      %s249 = sphi 0, %s249
      %s251 = sphi 0, %s249
      %s252 = sphi 0, %s251
      %s266 = sphi 0, %s252
      %s270 = sphi 0, %s270
      %s272 = sphi 0, %s270
      %s273 = sphi 0, %s272
      %s287 = sphi 0, %s273
      %s293 = sphi 0, %s295
      %s296 = sphi 0, %s293
      %s297 = sphi 0, %s296
      %s313 = sphi 0, %s297
    $region4: #{tpu_custom_call.1} parent=1 // loop_header_branch
      %29 = sbr.rel (%p27) target = $region8
    $region5: #{tpu_custom_call.1} parent=1 // loop_body
      %s31 = ssub.s32 %s26, 1
      %s32 = ssub.s32 %s26, 2
      %s33 = sadd.s32 %s26, 1
      %s34 = ssub.s32 %s26, %s33
      %p35 = scmp.eq.s32.totalorder %s34, 0
      %s37 = sadd.s32 %s36, 1
      %s38 = scalar_select %p35, %s36, %s37
      %p41 = pneg %p35
      %p42 = scmp.eq.s32.totalorder %s26, 1
      %p43 = por %p41, %p42
      %p44 = scmp.ne.s32.totalorder %s36, %s39
      %p45 = scmp.eq.s32.totalorder %s26, 0
      %p46 = por %p44, %p45
      %p47 = scmp.ne.s32.totalorder %s36, %s39
      %p48 = scmp.eq.s32.totalorder %s31, 1
      %p49 = por %p47, %p48
      %p50 = scmp.ne.s32.totalorder %s39, %s40
      %p51 = scmp.eq.s32.totalorder %s31, 0
      %p52 = por %p50, %p51
      %p53 = scmp.ne.s32.totalorder %s39, %s40
      %p54 = scmp.eq.s32.totalorder %s32, 1
      %p55 = por %p53, %p54
      %p57 = scmp.ne.s32.totalorder %s40, %s56
      %p58 = scmp.eq.s32.totalorder %s32, 0
      %p59 = por %p57, %p58
      %s61 = sadd.s32 %s60, 1
      %p64 = scmp.eq.s32.totalorder %s26, 1
      %p65 = scmp.ne.s32.totalorder %s60, %s62
      %p66 = scmp.eq.s32.totalorder %s26, 0
      %p67 = por %p65, %p66
      %p68 = scmp.ne.s32.totalorder %s60, %s62
      %p69 = scmp.eq.s32.totalorder %s31, 1
      %p70 = por %p68, %p69
      %p71 = scmp.ne.s32.totalorder %s62, %s63
      %p72 = scmp.eq.s32.totalorder %s31, 0
      %p73 = por %p71, %p72
      %p74 = scmp.ne.s32.totalorder %s62, %s63
      %p75 = scmp.eq.s32.totalorder %s32, 1
      %p76 = por %p74, %p75
      %p78 = scmp.ne.s32.totalorder %s63, %s77
      %p79 = scmp.eq.s32.totalorder %s32, 0
      %p80 = por %p78, %p79
      %s82 = sadd.s32 %s81, 1
      %p85 = scmp.eq.s32.totalorder %s26, 1
      %p86 = scmp.ne.s32.totalorder %s81, %s83
      %p87 = scmp.eq.s32.totalorder %s26, 0
      %p88 = por %p86, %p87
      %p89 = scmp.ne.s32.totalorder %s81, %s83
      %p90 = scmp.eq.s32.totalorder %s31, 1
      %p91 = por %p89, %p90
      %p92 = scmp.ne.s32.totalorder %s83, %s84
      %p93 = scmp.eq.s32.totalorder %s31, 0
      %p94 = por %p92, %p93
      %p95 = scmp.ne.s32.totalorder %s83, %s84
      %p96 = scmp.eq.s32.totalorder %s32, 1
      %p97 = por %p95, %p96
      %p99 = scmp.ne.s32.totalorder %s84, %s98
      %p100 = scmp.eq.s32.totalorder %s32, 0
      %p101 = por %p99, %p100
      %s103 = sadd.s32 %s102, 1
      %p106 = scmp.eq.s32.totalorder %s26, 1
      %p107 = scmp.ne.s32.totalorder %s102, %s104
      %p108 = scmp.eq.s32.totalorder %s26, 0
      %p109 = por %p107, %p108
      %p110 = scmp.ne.s32.totalorder %s102, %s104
      %p111 = scmp.eq.s32.totalorder %s31, 1
      %p112 = por %p110, %p111
      %p113 = scmp.ne.s32.totalorder %s104, %s105
      %p114 = scmp.eq.s32.totalorder %s31, 0
      %p115 = por %p113, %p114
      %p116 = scmp.ne.s32.totalorder %s104, %s105
      %p117 = scmp.eq.s32.totalorder %s32, 1
      %p118 = por %p116, %p117
      %p120 = scmp.ne.s32.totalorder %s105, %s119
      %p121 = scmp.eq.s32.totalorder %s32, 0
      %p122 = por %p120, %p121
      %s124 = sadd.s32 %s123, 1
      %p127 = scmp.eq.s32.totalorder %s26, 1
      %p128 = scmp.ne.s32.totalorder %s123, %s125
      %p129 = scmp.eq.s32.totalorder %s26, 0
      %p130 = por %p128, %p129
      %p131 = scmp.ne.s32.totalorder %s123, %s125
      %p132 = scmp.eq.s32.totalorder %s31, 1
      %p133 = por %p131, %p132
      %p134 = scmp.ne.s32.totalorder %s125, %s126
      %p135 = scmp.eq.s32.totalorder %s31, 0
      %p136 = por %p134, %p135
      %p137 = scmp.ne.s32.totalorder %s125, %s126
      %p138 = scmp.eq.s32.totalorder %s32, 1
      %p139 = por %p137, %p138
      %p141 = scmp.ne.s32.totalorder %s126, %s140
      %p142 = scmp.eq.s32.totalorder %s32, 0
      %p143 = por %p141, %p142
      %s145 = sadd.s32 %s144, 1
      %p148 = scmp.eq.s32.totalorder %s26, 1
      %p149 = scmp.ne.s32.totalorder %s144, %s146
      %p150 = scmp.eq.s32.totalorder %s26, 0
      %p151 = por %p149, %p150
      %p152 = scmp.ne.s32.totalorder %s144, %s146
      %p153 = scmp.eq.s32.totalorder %s31, 1
      %p154 = por %p152, %p153
      %p155 = scmp.ne.s32.totalorder %s146, %s147
      %p156 = scmp.eq.s32.totalorder %s31, 0
      %p157 = por %p155, %p156
      %p158 = scmp.ne.s32.totalorder %s146, %s147
      %p159 = scmp.eq.s32.totalorder %s32, 1
      %p160 = por %p158, %p159
      %p162 = scmp.ne.s32.totalorder %s147, %s161
      %p163 = scmp.eq.s32.totalorder %s32, 0
      %p164 = por %p162, %p163
      %s166 = sadd.s32 %s165, 1
      %p169 = scmp.eq.s32.totalorder %s26, 1
      %p170 = scmp.ne.s32.totalorder %s165, %s167
      %p171 = scmp.eq.s32.totalorder %s26, 0
      %p172 = por %p170, %p171
      %p173 = scmp.ne.s32.totalorder %s165, %s167
      %p174 = scmp.eq.s32.totalorder %s31, 1
      %p175 = por %p173, %p174
      %p176 = scmp.ne.s32.totalorder %s167, %s168
      %p177 = scmp.eq.s32.totalorder %s31, 0
      %p178 = por %p176, %p177
      %p179 = scmp.ne.s32.totalorder %s167, %s168
      %p180 = scmp.eq.s32.totalorder %s32, 1
      %p181 = por %p179, %p180
      %p183 = scmp.ne.s32.totalorder %s168, %s182
      %p184 = scmp.eq.s32.totalorder %s32, 0
      %p185 = por %p183, %p184
      %s187 = sadd.s32 %s186, 1
      %p190 = scmp.eq.s32.totalorder %s26, 1
      %p191 = scmp.ne.s32.totalorder %s186, %s188
      %p192 = scmp.eq.s32.totalorder %s26, 0
      %p193 = por %p191, %p192
      %p194 = scmp.ne.s32.totalorder %s186, %s188
      %p195 = scmp.eq.s32.totalorder %s31, 1
      %p196 = por %p194, %p195
      %p197 = scmp.ne.s32.totalorder %s188, %s189
      %p198 = scmp.eq.s32.totalorder %s31, 0
      %p199 = por %p197, %p198
      %p200 = scmp.ne.s32.totalorder %s188, %s189
      %p201 = scmp.eq.s32.totalorder %s32, 1
      %p202 = por %p200, %p201
      %p204 = scmp.ne.s32.totalorder %s189, %s203
      %p205 = scmp.eq.s32.totalorder %s32, 0
      %p206 = por %p204, %p205
      %s208 = sadd.s32 %s207, 1
      %p211 = scmp.eq.s32.totalorder %s26, 1
      %p212 = scmp.ne.s32.totalorder %s207, %s209
      %p213 = scmp.eq.s32.totalorder %s26, 0
      %p214 = por %p212, %p213
      %p215 = scmp.ne.s32.totalorder %s207, %s209
      %p216 = scmp.eq.s32.totalorder %s31, 1
      %p217 = por %p215, %p216
      %p218 = scmp.ne.s32.totalorder %s209, %s210
      %p219 = scmp.eq.s32.totalorder %s31, 0
      %p220 = por %p218, %p219
      %p221 = scmp.ne.s32.totalorder %s209, %s210
      %p222 = scmp.eq.s32.totalorder %s32, 1
      %p223 = por %p221, %p222
      %p225 = scmp.ne.s32.totalorder %s210, %s224
      %p226 = scmp.eq.s32.totalorder %s32, 0
      %p227 = por %p225, %p226
      %s229 = sadd.s32 %s228, 1
      %p232 = scmp.eq.s32.totalorder %s26, 1
      %p233 = scmp.ne.s32.totalorder %s228, %s230
      %p234 = scmp.eq.s32.totalorder %s26, 0
      %p235 = por %p233, %p234
      %p236 = scmp.ne.s32.totalorder %s228, %s230
      %p237 = scmp.eq.s32.totalorder %s31, 1
      %p238 = por %p236, %p237
      %p239 = scmp.ne.s32.totalorder %s230, %s231
      %p240 = scmp.eq.s32.totalorder %s31, 0
      %p241 = por %p239, %p240
      %p242 = scmp.ne.s32.totalorder %s230, %s231
      %p243 = scmp.eq.s32.totalorder %s32, 1
      %p244 = por %p242, %p243
      %p246 = scmp.ne.s32.totalorder %s231, %s245
      %p247 = scmp.eq.s32.totalorder %s32, 0
      %p248 = por %p246, %p247
      %s250 = sadd.s32 %s249, 1
      %p253 = scmp.eq.s32.totalorder %s26, 1
      %p254 = scmp.ne.s32.totalorder %s249, %s251
      %p255 = scmp.eq.s32.totalorder %s26, 0
      %p256 = por %p254, %p255
      %p257 = scmp.ne.s32.totalorder %s249, %s251
      %p258 = scmp.eq.s32.totalorder %s31, 1
      %p259 = por %p257, %p258
      %p260 = scmp.ne.s32.totalorder %s251, %s252
      %p261 = scmp.eq.s32.totalorder %s31, 0
      %p262 = por %p260, %p261
      %p263 = scmp.ne.s32.totalorder %s251, %s252
      %p264 = scmp.eq.s32.totalorder %s32, 1
      %p265 = por %p263, %p264
      %p267 = scmp.ne.s32.totalorder %s252, %s266
      %p268 = scmp.eq.s32.totalorder %s32, 0
      %p269 = por %p267, %p268
      %s271 = sadd.s32 %s270, 1
      %p274 = scmp.eq.s32.totalorder %s26, 1
      %p275 = scmp.ne.s32.totalorder %s270, %s272
      %p276 = scmp.eq.s32.totalorder %s26, 0
      %p277 = por %p275, %p276
      %p278 = scmp.ne.s32.totalorder %s270, %s272
      %p279 = scmp.eq.s32.totalorder %s31, 1
      %p280 = por %p278, %p279
      %p281 = scmp.ne.s32.totalorder %s272, %s273
      %p282 = scmp.eq.s32.totalorder %s31, 0
      %p283 = por %p281, %p282
      %p284 = scmp.ne.s32.totalorder %s272, %s273
      %p285 = scmp.eq.s32.totalorder %s32, 1
      %p286 = por %p284, %p285
      %p288 = scmp.ne.s32.totalorder %s273, %s287
      %p289 = scmp.eq.s32.totalorder %s32, 0
      %p290 = por %p288, %p289
      %s291 = ssub.s32 %s26, %s33
      %p292 = scmp.eq.s32.totalorder %s291, 0
      %s294 = sadd.s32 %s293, 1
      %s295 = scalar_select %p292, %s293, %s294
      %p298 = pneg %p292
      %p299 = scmp.eq.s32.totalorder %s26, 1
      %p300 = por %p298, %p299
      %p301 = scmp.ne.s32.totalorder %s293, %s296
      %p302 = scmp.eq.s32.totalorder %s26, 0
      %p303 = por %p301, %p302
      %p304 = scmp.ne.s32.totalorder %s293, %s296
      %p305 = scmp.eq.s32.totalorder %s31, 1
      %p306 = por %p304, %p305
      %p307 = scmp.ne.s32.totalorder %s296, %s297
      %p308 = scmp.eq.s32.totalorder %s31, 0
      %p309 = por %p307, %p308
      %p310 = scmp.ne.s32.totalorder %s296, %s297
      %p311 = scmp.eq.s32.totalorder %s32, 1
      %p312 = por %p310, %p311
      %p314 = scmp.ne.s32.totalorder %s297, %s313
      %p315 = scmp.eq.s32.totalorder %s32, 0
      %p316 = por %p314, %p315
      %p317 = scmp.le.s32.totalorder 1, %s26
      %p318 = scmp.lt.s32.totalorder %s26, 3
      %p319 = pnand %p317, %p318
      %p320 = pneg %p319
      // Predicated region
      $region9: #{tpu_custom_call.1} parent=5 // pred_check
        _
      $region10: #{tpu_custom_call.1} parent=5 // pred_check_branch
        %322 = sbr.rel (%p319) target = $region12
      $region11: #{tpu_custom_call.1} parent=5 // pred_region
        %s323 = ssub.s32 %s26, 1
        // Predicated region
        $region13: #{tpu_custom_call.1} parent=11 // pred_check
          %p324 = pneg %p73
        $region14: #{tpu_custom_call.1} parent=11 // pred_check_branch
          %326 = sbr.rel (%p324) target = $region16
        $region15: #{tpu_custom_call.1} parent=11 // pred_region
          _
        $region16: #{tpu_custom_call.1} parent=11 // pred_fallthru
          _
        // Predicated region
        $region17: #{tpu_custom_call.1} parent=11 // pred_check
          %p327 = pneg %p94
        $region18: #{tpu_custom_call.1} parent=11 // pred_check_branch
          %329 = sbr.rel (%p327) target = $region20
        $region19: #{tpu_custom_call.1} parent=11 // pred_region
          %s331 = ssub.s32 9216, 9216
          %332 = vsyncadd [#allocation8], %s331
          %s333 = sshll.u32 [#allocation7], 4
          %s334 = int_to_ptr.vmem [resolvable:$true] %s333
          %339 = dma.hbm_to_vmem [thread:$0]  %s2, 9216, %s334, [#allocation8], 64, 64, 4
        $region20: #{tpu_custom_call.1} parent=11 // pred_fallthru
          _
        // Predicated region
        $region21: #{tpu_custom_call.1} parent=11 // pred_check
          %p340 = pneg %p115
        $region22: #{tpu_custom_call.1} parent=11 // pred_check_branch
          %342 = sbr.rel (%p340) target = $region24
        $region23: #{tpu_custom_call.1} parent=11 // pred_region
          _
        $region24: #{tpu_custom_call.1} parent=11 // pred_fallthru
          _
        // Predicated region
        $region25: #{tpu_custom_call.1} parent=11 // pred_check
          %p343 = pneg %p136
        $region26: #{tpu_custom_call.1} parent=11 // pred_check_branch
          %345 = sbr.rel (%p343) target = $region28
        $region27: #{tpu_custom_call.1} parent=11 // pred_region
          _
        $region28: #{tpu_custom_call.1} parent=11 // pred_fallthru
          _
        // Predicated region
        $region29: #{tpu_custom_call.1} parent=11 // pred_check
          %p346 = pneg %p157
        $region30: #{tpu_custom_call.1} parent=11 // pred_check_branch
          %348 = sbr.rel (%p346) target = $region32
        $region31: #{tpu_custom_call.1} parent=11 // pred_region
          _
        $region32: #{tpu_custom_call.1} parent=11 // pred_fallthru
          _
        // Predicated region
        $region33: #{tpu_custom_call.1} parent=11 // pred_check
          %p349 = pneg %p178
        $region34: #{tpu_custom_call.1} parent=11 // pred_check_branch
          %351 = sbr.rel (%p349) target = $region36
        $region35: #{tpu_custom_call.1} parent=11 // pred_region
          %s353 = ssub.s32 9216, 9216
          %354 = vsyncadd [#allocation8], %s353
          %s355 = sshll.u32 [#allocation9], 4
          %s356 = int_to_ptr.vmem [resolvable:$true] %s355
          %361 = dma.hbm_to_vmem [thread:$0]  %s6, 9216, %s356, [#allocation8], 64, 64, 4
        $region36: #{tpu_custom_call.1} parent=11 // pred_fallthru
          _
        // Predicated region
        $region37: #{tpu_custom_call.1} parent=11 // pred_check
          %p362 = pneg %p199
        $region38: #{tpu_custom_call.1} parent=11 // pred_check_branch
          %364 = sbr.rel (%p362) target = $region40
        $region39: #{tpu_custom_call.1} parent=11 // pred_region
          _
        $region40: #{tpu_custom_call.1} parent=11 // pred_fallthru
          _
        // Predicated region
        $region41: #{tpu_custom_call.1} parent=11 // pred_check
          %p365 = pneg %p220
        $region42: #{tpu_custom_call.1} parent=11 // pred_check_branch
          %367 = sbr.rel (%p365) target = $region44
        $region43: #{tpu_custom_call.1} parent=11 // pred_region
          _
        $region44: #{tpu_custom_call.1} parent=11 // pred_fallthru
          _
        // Predicated region
        $region45: #{tpu_custom_call.1} parent=11 // pred_check
          %p368 = pneg %p241
        $region46: #{tpu_custom_call.1} parent=11 // pred_check_branch
          %370 = sbr.rel (%p368) target = $region48
        $region47: #{tpu_custom_call.1} parent=11 // pred_region
          _
        $region48: #{tpu_custom_call.1} parent=11 // pred_fallthru
          _
        // Predicated region
        $region49: #{tpu_custom_call.1} parent=11 // pred_check
          %p371 = pneg %p262
        $region50: #{tpu_custom_call.1} parent=11 // pred_check_branch
          %373 = sbr.rel (%p371) target = $region52
        $region51: #{tpu_custom_call.1} parent=11 // pred_region
          %s375 = ssub.s32 9216, 9216
          %376 = vsyncadd [#allocation11], %s375
          %s377 = sshll.u32 [#allocation10], 4
          %s378 = int_to_ptr.vmem [resolvable:$true] %s377
          %383 = dma.hbm_to_vmem [thread:$0]  %s10, 9216, %s378, [#allocation11], 64, 64, 4
        $region52: #{tpu_custom_call.1} parent=11 // pred_fallthru
          _
        // Predicated region
        $region53: #{tpu_custom_call.1} parent=11 // pred_check
          %p384 = pneg %p283
        $region54: #{tpu_custom_call.1} parent=11 // pred_check_branch
          %386 = sbr.rel (%p384) target = $region56
        $region55: #{tpu_custom_call.1} parent=11 // pred_region
          _
        $region56: #{tpu_custom_call.1} parent=11 // pred_fallthru
          _
      $region12: #{tpu_custom_call.1} parent=5 // pred_fallthru
        _
      %p387 = scmp.lt.s32.totalorder %s26, 2
      // Predicated region
      $region57: #{tpu_custom_call.1} parent=5 // pred_check
        %p388 = pneg %p387
      $region58: #{tpu_custom_call.1} parent=5 // pred_check_branch
        %390 = sbr.rel (%p388) target = $region60
      $region59: #{tpu_custom_call.1} parent=5 // pred_region
        // Predicated region
        $region61: #{tpu_custom_call.1} parent=59 // pred_check
          %p391 = pneg %p46
        $region62: #{tpu_custom_call.1} parent=59 // pred_check_branch
          %393 = sbr.rel (%p391) target = $region64
        $region63: #{tpu_custom_call.1} parent=59 // pred_region
          %s394 = sand.u32 %s36, 1
          %s395 = scalar_lea.sflag [#allocation5], %s394
          %s396 = sand.u32 %s36, 1
          %s397 = smul.addr %s396, 336
          %s398 = scalar_lea.vmem [#allocation4], %s397
          %s400 = ssub.s32 5376, 5376
          %401 = vsyncadd %s395, %s400
          %s402 = smul.addr %s26, 42
          %s403 = smul.addr %s402, 128
          %s404 = scalar_lea.hbm %s0, %s403
          %s405 = sshll.u32 %s398, 4
          %s406 = int_to_ptr.vmem [resolvable:$true] %s405
          %411 = dma.hbm_to_vmem [thread:$0]  %s404, 5376, %s406, %s395, 128, 128, 8
        $region64: #{tpu_custom_call.1} parent=59 // pred_fallthru
          _
      $region60: #{tpu_custom_call.1} parent=5 // pred_fallthru
        _
      %p412 = scmp.le.s32.totalorder 1, %s26
      %p413 = scmp.lt.s32.totalorder %s26, 3
      %p414 = pnand %p412, %p413
      %p415 = pneg %p414
      // Predicated region
      $region65: #{tpu_custom_call.1} parent=5 // pred_check
        _
      $region66: #{tpu_custom_call.1} parent=5 // pred_check_branch
        %417 = sbr.rel (%p414) target = $region68
      $region67: #{tpu_custom_call.1} parent=5 // pred_region
        %s418 = ssub.s32 %s26, 1
        %s419 = sand.u32 %s39, 1
        %s420 = scalar_lea.sflag [#allocation5], %s419
        %s421 = sand.u32 %s39, 1
        %s422 = smul.addr %s421, 336
        %s423 = scalar_lea.vmem [#allocation4], %s422
        // Predicated region
        $region69: #{tpu_custom_call.1} parent=67 // pred_check
          %p424 = pneg %p52
        $region70: #{tpu_custom_call.1} parent=67 // pred_check_branch
          %426 = sbr.rel (%p424) target = $region72
        $region71: #{tpu_custom_call.1} parent=67 // pred_region
          %427 = dma.done %s420, 5376
        $region72: #{tpu_custom_call.1} parent=67 // pred_fallthru
          _
        // Predicated region
        $region73: #{tpu_custom_call.1} parent=67 // pred_check
          %p428 = pneg %p94
        $region74: #{tpu_custom_call.1} parent=67 // pred_check_branch
          %430 = sbr.rel (%p428) target = $region76
        $region75: #{tpu_custom_call.1} parent=67 // pred_region
          %431 = dma.done [#allocation8], 9216
        $region76: #{tpu_custom_call.1} parent=67 // pred_fallthru
          _
        // Predicated region
        $region77: #{tpu_custom_call.1} parent=67 // pred_check
          %p432 = pneg %p178
        $region78: #{tpu_custom_call.1} parent=67 // pred_check_branch
          %434 = sbr.rel (%p432) target = $region80
        $region79: #{tpu_custom_call.1} parent=67 // pred_region
          %435 = dma.done [#allocation8], 9216
        $region80: #{tpu_custom_call.1} parent=67 // pred_fallthru
          _
        // Predicated region
        $region81: #{tpu_custom_call.1} parent=67 // pred_check
          %p436 = pneg %p262
        $region82: #{tpu_custom_call.1} parent=67 // pred_check_branch
          %438 = sbr.rel (%p436) target = $region84
        $region83: #{tpu_custom_call.1} parent=67 // pred_region
          %439 = dma.done [#allocation11], 9216
        $region84: #{tpu_custom_call.1} parent=67 // pred_fallthru
          _
        %s440 = sand.u32 %s39, 1
        %s441 = scalar_lea.sflag [#allocation5], %s440
        %s442 = sand.u32 %s39, 1
        %s443 = smul.addr %s442, 336
        %s444 = scalar_lea.vmem [#allocation4], %s443
        %p445 = pneg %p52
        %p446 = pneg %p49
        %p447 = pneg %p73
        %p448 = pneg %p70
        %p449 = pneg %p94
        %p450 = pneg %p91
        %p451 = pneg %p115
        %p452 = pneg %p112
        %p453 = pneg %p136
        %p454 = pneg %p133
        %p455 = pneg %p157
        %p456 = pneg %p154
        %p457 = pneg %p178
        %p458 = pneg %p175
        %p459 = pneg %p199
        %p460 = pneg %p196
        %p461 = pneg %p220
        %p462 = pneg %p217
        %p463 = pneg %p241
        %p464 = pneg %p238
        %p465 = pneg %p262
        %p466 = pneg %p259
        %p467 = pneg %p283
        %p468 = pneg %p280
        %p469 = pneg %p309
        %p470 = pneg %p306
        %s471 = sand.u32 %s296, 1
        %s472 = scalar_lea.sflag [#allocation6], %s471
        %s473 = sand.u32 %s296, 1
        %s474 = smul.addr %s473, 336
        %s475 = scalar_lea.vmem [#allocation12], %s474
        %477 = vst [vmem:[#allocation2] sm:$0xff] 0.0
        %478 = vst [vmem:[#allocation2 + $0x8] sm:$0xff] 0.0
        %479 = vst [vmem:[#allocation2 + $0x10] sm:$0xff] 0.0
        %480 = vst [vmem:[#allocation2 + $0x18] sm:$0xff] 0.0
        %481 = vst [vmem:[#allocation2 + $0x20] sm:$0xff] 0.0
        %482 = vst [vmem:[#allocation2 + $0x28] sm:$0xff] 0.0
        %483 = vst [vmem:[#allocation2 + $0x30] sm:$0xff] 0.0
        %484 = vst [vmem:[#allocation2 + $0x38] sm:$0xff] 0.0
        %485 = vst [vmem:[#allocation2 + $0x40] sm:$0xff] 0.0
        %486 = vst [vmem:[#allocation2 + $0x48] sm:$0xff] 0.0
        %487 = vst [vmem:[#allocation2 + $0x50] sm:$0xff] 0.0
        %488 = vst [vmem:[#allocation2 + $0x58] sm:$0xff] 0.0
        %489 = vst [vmem:[#allocation2 + $0x60] sm:$0xff] 0.0
        %490 = vst [vmem:[#allocation2 + $0x68] sm:$0xff] 0.0
        %491 = vst [vmem:[#allocation2 + $0x70] sm:$0xff] 0.0
        %492 = vst [vmem:[#allocation2 + $0x78] sm:$0xff] 0.0
        %493 = vst [vmem:[#allocation2 + $0x80] sm:$0xff] 0.0
        %494 = vst [vmem:[#allocation2 + $0x88] sm:$0xff] 0.0
        %495 = vst [vmem:[#allocation2 + $0x90] sm:$0xff] 0.0
        %496 = vst [vmem:[#allocation2 + $0x98] sm:$0xff] 0.0
        %497 = vst [vmem:[#allocation2 + $0xa0] sm:$0xff] 0.0
        %498 = vst [vmem:[#allocation2 + $0xa8] sm:$0xff] 0.0
        %499 = vst [vmem:[#allocation2 + $0xb0] sm:$0xff] 0.0
        %500 = vst [vmem:[#allocation2 + $0xb8] sm:$0xff] 0.0
        %501 = vst [vmem:[#allocation2 + $0xc0] sm:$0xff] 0.0
        %502 = vst [vmem:[#allocation2 + $0xc8] sm:$0xff] 0.0
        %503 = vst [vmem:[#allocation2 + $0xd0] sm:$0xff] 0.0
        %504 = vst [vmem:[#allocation2 + $0xd8] sm:$0xff] 0.0
        %505 = vst [vmem:[#allocation2 + $0xe0] sm:$0xff] 0.0
        %506 = vst [vmem:[#allocation2 + $0xe8] sm:$0xff] 0.0
        %507 = vst [vmem:[#allocation2 + $0xf0] sm:$0xff] 0.0
        %508 = vst [vmem:[#allocation2 + $0xf8] sm:$0xff] 0.0
        %509 = vst [vmem:[#allocation2 + $0x100] sm:$0xff] 0.0
        %510 = vst [vmem:[#allocation2 + $0x108] sm:$0xff] 0.0
        %511 = vst [vmem:[#allocation2 + $0x110] sm:$0xff] 0.0
        %512 = vst [vmem:[#allocation2 + $0x118] sm:$0xff] 0.0
        %513 = vst [vmem:[#allocation2 + $0x120] sm:$0xff] 0.0
        %514 = vst [vmem:[#allocation2 + $0x128] sm:$0xff] 0.0
        %515 = vst [vmem:[#allocation2 + $0x130] sm:$0xff] 0.0
        %516 = vst [vmem:[#allocation2 + $0x138] sm:$0xff] 0.0
        %517 = vst [vmem:[#allocation2 + $0x140] sm:$0xff] 0.0
        %518 = vst [vmem:[#allocation2 + $0x148] sm:$0xff] 0.0
        %519 = vst [vmem:[#allocation3] sm:$0xff] 0.0
        %520 = vst [vmem:[#allocation3 + $0x8] sm:$0xff] 0.0
        %521 = vst [vmem:[#allocation3 + $0x10] sm:$0xff] 0.0
        %522 = vst [vmem:[#allocation3 + $0x18] sm:$0xff] 0.0
        %523 = vst [vmem:[#allocation3 + $0x20] sm:$0xff] 0.0
        %524 = vst [vmem:[#allocation3 + $0x28] sm:$0xff] 0.0
        %525 = vst [vmem:[#allocation3 + $0x30] sm:$0xff] 0.0
        %526 = vst [vmem:[#allocation3 + $0x38] sm:$0xff] 0.0
        %527 = vst [vmem:[#allocation3 + $0x40] sm:$0xff] 0.0
        %528 = vst [vmem:[#allocation3 + $0x48] sm:$0xff] 0.0
        %529 = vst [vmem:[#allocation3 + $0x50] sm:$0xff] 0.0
        %530 = vst [vmem:[#allocation3 + $0x58] sm:$0xff] 0.0
        %531 = vst [vmem:[#allocation3 + $0x60] sm:$0xff] 0.0
        %532 = vst [vmem:[#allocation3 + $0x68] sm:$0xff] 0.0
        %533 = vst [vmem:[#allocation3 + $0x70] sm:$0xff] 0.0
        %534 = vst [vmem:[#allocation3 + $0x78] sm:$0xff] 0.0
        %535 = vst [vmem:[#allocation3 + $0x80] sm:$0xff] 0.0
        %536 = vst [vmem:[#allocation3 + $0x88] sm:$0xff] 0.0
        %537 = vst [vmem:[#allocation3 + $0x90] sm:$0xff] 0.0
        %538 = vst [vmem:[#allocation3 + $0x98] sm:$0xff] 0.0
        %539 = vst [vmem:[#allocation3 + $0xa0] sm:$0xff] 0.0
        %540 = vst [vmem:[#allocation3 + $0xa8] sm:$0xff] 0.0
        %541 = vst [vmem:[#allocation3 + $0xb0] sm:$0xff] 0.0
        %542 = vst [vmem:[#allocation3 + $0xb8] sm:$0xff] 0.0
        %543 = vst [vmem:[#allocation3 + $0xc0] sm:$0xff] 0.0
        %544 = vst [vmem:[#allocation3 + $0xc8] sm:$0xff] 0.0
        %545 = vst [vmem:[#allocation3 + $0xd0] sm:$0xff] 0.0
        %546 = vst [vmem:[#allocation3 + $0xd8] sm:$0xff] 0.0
        %547 = vst [vmem:[#allocation3 + $0xe0] sm:$0xff] 0.0
        %548 = vst [vmem:[#allocation3 + $0xe8] sm:$0xff] 0.0
        %549 = vst [vmem:[#allocation3 + $0xf0] sm:$0xff] 0.0
        %550 = vst [vmem:[#allocation3 + $0xf8] sm:$0xff] 0.0
        %551 = vst [vmem:[#allocation3 + $0x100] sm:$0xff] 0.0
        %552 = vst [vmem:[#allocation3 + $0x108] sm:$0xff] 0.0
        %553 = vst [vmem:[#allocation3 + $0x110] sm:$0xff] 0.0
        %554 = vst [vmem:[#allocation3 + $0x118] sm:$0xff] 0.0
        %555 = vst [vmem:[#allocation3 + $0x120] sm:$0xff] 0.0
        %556 = vst [vmem:[#allocation3 + $0x128] sm:$0xff] 0.0
        %557 = vst [vmem:[#allocation3 + $0x130] sm:$0xff] 0.0
        %558 = vst [vmem:[#allocation3 + $0x138] sm:$0xff] 0.0
        %559 = vst [vmem:[#allocation3 + $0x140] sm:$0xff] 0.0
        %560 = vst [vmem:[#allocation3 + $0x148] sm:$0xff] 0.0
        %v561 = vld [vmem:[%s1] sm:$0xff]
        %v562 = vld [vmem:[%s1 + $0x8] sm:$0xff]
        %v563 = vld [vmem:[%s1 + $0x10] sm:$0xff]
        %v564 = vld [vmem:[%s1 + $0x18] sm:$0xff]
        %v565 = vld [vmem:[%s1 + $0x20] sm:$0xff]
        %v566 = vld [vmem:[%s1 + $0x28] sm:$0xff]
        %v567 = vld [vmem:[%s1 + $0x30] sm:$0xff]
        %v568 = vld [vmem:[%s1 + $0x38] sm:$0xff]
        %v569 = vld [vmem:[%s1 + $0x40] sm:$0xff]
        %v570 = vld [vmem:[%s1 + $0x48] sm:$0xff]
        %v571 = vld [vmem:[%s1 + $0x50] sm:$0xff]
        %v572 = vld [vmem:[%s1 + $0x58] sm:$0xff]
        %v573 = vld [vmem:[%s1 + $0x60] sm:$0xff]
        %v574 = vld [vmem:[%s1 + $0x68] sm:$0xff]
        %v575 = vld [vmem:[%s1 + $0x70] sm:$0xff]
        %v576 = vld [vmem:[%s1 + $0x78] sm:$0xff]
        %v577 = vld [vmem:[%s1 + $0x80] sm:$0xff]
        %v578 = vld [vmem:[%s1 + $0x88] sm:$0xff]
        %v579 = vld [vmem:[%s1 + $0x90] sm:$0xff]
        %v580 = vld [vmem:[%s1 + $0x98] sm:$0xff]
        %v581 = vld [vmem:[%s1 + $0xa0] sm:$0xff]
        %v582 = vld [vmem:[%s1 + $0xa8] sm:$0xff]
        %v583 = vld [vmem:[%s1 + $0xb0] sm:$0xff]
        %v584 = vld [vmem:[%s1 + $0xb8] sm:$0xff]
        %v585 = vld [vmem:[%s1 + $0xc0] sm:$0xff]
        %v586 = vld [vmem:[%s1 + $0xc8] sm:$0xff]
        %v587 = vld [vmem:[%s1 + $0xd0] sm:$0xff]
        %v588 = vld [vmem:[%s1 + $0xd8] sm:$0xff]
        %v589 = vld [vmem:[%s1 + $0xe0] sm:$0xff]
        %v590 = vld [vmem:[%s1 + $0xe8] sm:$0xff]
        %v591 = vld [vmem:[%s1 + $0xf0] sm:$0xff]
        %v592 = vld [vmem:[%s1 + $0xf8] sm:$0xff]
        %v593 = vld [vmem:[%s1 + $0x100] sm:$0xff]
        %v594 = vld [vmem:[%s1 + $0x108] sm:$0xff]
        %v595 = vld [vmem:[%s1 + $0x110] sm:$0xff]
        %v596 = vld [vmem:[%s1 + $0x118] sm:$0xff]
        %v597 = vld [vmem:[%s423 + $0x5] sm:$0xff]
        %v598 = vld [vmem:[%s423 + $0xd] sm:$0xff]
        %v599 = vld [vmem:[%s423 + $0x15] sm:$0xff]
        %v600 = vld [vmem:[%s423 + $0x1d] sm:$0xff]
        %v601 = vld [vmem:[%s423 + $0x25] sm:$0xff]
        %v602 = vld [vmem:[%s423 + $0x2d] sm:$0xff]
        %v603 = vld [vmem:[%s423 + $0x35] sm:$0xff]
        %v604 = vld [vmem:[%s423 + $0x3d] sm:$0xff]
        %v605 = vld [vmem:[%s423 + $0x45] sm:$0xff]
        %v606 = vld [vmem:[%s423 + $0x4d] sm:$0xff]
        %v607 = vld [vmem:[%s423 + $0x55] sm:$0xff]
        %v608 = vld [vmem:[%s423 + $0x5d] sm:$0xff]
        %v609 = vld [vmem:[%s423 + $0x65] sm:$0xff]
        %v610 = vld [vmem:[%s423 + $0x6d] sm:$0xff]
        %v611 = vld [vmem:[%s423 + $0x75] sm:$0xff]
        %v612 = vld [vmem:[%s423 + $0x7d] sm:$0xff]
        %v613 = vld [vmem:[%s423 + $0x85] sm:$0xff]
        %v614 = vld [vmem:[%s423 + $0x8d] sm:$0xff]
        %v615 = vld [vmem:[%s423 + $0x95] sm:$0xff]
        %v616 = vld [vmem:[%s423 + $0x9d] sm:$0xff]
        %v617 = vld [vmem:[%s423 + $0xa5] sm:$0xff]
        %v618 = vld [vmem:[%s423 + $0xad] sm:$0xff]
        %v619 = vld [vmem:[%s423 + $0xb5] sm:$0xff]
        %v620 = vld [vmem:[%s423 + $0xbd] sm:$0xff]
        %v621 = vld [vmem:[%s423 + $0xc5] sm:$0xff]
        %v622 = vld [vmem:[%s423 + $0xcd] sm:$0xff]
        %v623 = vld [vmem:[%s423 + $0xd5] sm:$0xff]
        %v624 = vld [vmem:[%s423 + $0xdd] sm:$0xff]
        %v625 = vld [vmem:[%s423 + $0xe5] sm:$0xff]
        %v626 = vld [vmem:[%s423 + $0xed] sm:$0xff]
        %v627 = vld [vmem:[%s423 + $0xf5] sm:$0xff]
        %v628 = vld [vmem:[%s423 + $0xfd] sm:$0xff]
        %v629 = vld [vmem:[%s423 + $0x105] sm:$0xff]
        %v630 = vld [vmem:[%s423 + $0x10d] sm:$0xff]
        %v631 = vld [vmem:[%s423 + $0x115] sm:$0xff]
        %v632 = vld [vmem:[%s423 + $0x11d] sm:$0xff]
        %v633 = vld [vmem:[%s423 + $0x6] sm:$0xff]
        %v634 = vld [vmem:[%s423 + $0xe] sm:$0xff]
        %v635 = vld [vmem:[%s423 + $0x16] sm:$0xff]
        %v636 = vld [vmem:[%s423 + $0x1e] sm:$0xff]
        %v637 = vld [vmem:[%s423 + $0x26] sm:$0xff]
        %v638 = vld [vmem:[%s423 + $0x2e] sm:$0xff]
        %v639 = vld [vmem:[%s423 + $0x36] sm:$0xff]
        %v640 = vld [vmem:[%s423 + $0x3e] sm:$0xff]
        %v641 = vld [vmem:[%s423 + $0x46] sm:$0xff]
        %v642 = vld [vmem:[%s423 + $0x4e] sm:$0xff]
        %v643 = vld [vmem:[%s423 + $0x56] sm:$0xff]
        %v644 = vld [vmem:[%s423 + $0x5e] sm:$0xff]
        %v645 = vld [vmem:[%s423 + $0x66] sm:$0xff]
        %v646 = vld [vmem:[%s423 + $0x6e] sm:$0xff]
        %v647 = vld [vmem:[%s423 + $0x76] sm:$0xff]
        %v648 = vld [vmem:[%s423 + $0x7e] sm:$0xff]
        %v649 = vld [vmem:[%s423 + $0x86] sm:$0xff]
        %v650 = vld [vmem:[%s423 + $0x8e] sm:$0xff]
        %v651 = vld [vmem:[%s423 + $0x96] sm:$0xff]
        %v652 = vld [vmem:[%s423 + $0x9e] sm:$0xff]
        %v653 = vld [vmem:[%s423 + $0xa6] sm:$0xff]
        %v654 = vld [vmem:[%s423 + $0xae] sm:$0xff]
        %v655 = vld [vmem:[%s423 + $0xb6] sm:$0xff]
        %v656 = vld [vmem:[%s423 + $0xbe] sm:$0xff]
        %v657 = vld [vmem:[%s423 + $0xc6] sm:$0xff]
        %v658 = vld [vmem:[%s423 + $0xce] sm:$0xff]
        %v659 = vld [vmem:[%s423 + $0xd6] sm:$0xff]
        %v660 = vld [vmem:[%s423 + $0xde] sm:$0xff]
        %v661 = vld [vmem:[%s423 + $0xe6] sm:$0xff]
        %v662 = vld [vmem:[%s423 + $0xee] sm:$0xff]
        %v663 = vld [vmem:[%s423 + $0xf6] sm:$0xff]
        %v664 = vld [vmem:[%s423 + $0xfe] sm:$0xff]
        %v665 = vld [vmem:[%s423 + $0x106] sm:$0xff]
        %v666 = vld [vmem:[%s423 + $0x10e] sm:$0xff]
        %v667 = vld [vmem:[%s423 + $0x116] sm:$0xff]
        %v668 = vld [vmem:[%s423 + $0x11e] sm:$0xff]
        %v669 = vld [vmem:[%s423 + $0x7] sm:$0xff]
        %v670 = vld [vmem:[%s423 + $0xf] sm:$0xff]
        %v671 = vld [vmem:[%s423 + $0x17] sm:$0xff]
        %v672 = vld [vmem:[%s423 + $0x1f] sm:$0xff]
        %v673 = vld [vmem:[%s423 + $0x27] sm:$0xff]
        %v674 = vld [vmem:[%s423 + $0x2f] sm:$0xff]
        %v675 = vld [vmem:[%s423 + $0x37] sm:$0xff]
        %v676 = vld [vmem:[%s423 + $0x3f] sm:$0xff]
        %v677 = vld [vmem:[%s423 + $0x47] sm:$0xff]
        %v678 = vld [vmem:[%s423 + $0x4f] sm:$0xff]
        %v679 = vld [vmem:[%s423 + $0x57] sm:$0xff]
        %v680 = vld [vmem:[%s423 + $0x5f] sm:$0xff]
        %v681 = vld [vmem:[%s423 + $0x67] sm:$0xff]
        %v682 = vld [vmem:[%s423 + $0x6f] sm:$0xff]
        %v683 = vld [vmem:[%s423 + $0x77] sm:$0xff]
        %v684 = vld [vmem:[%s423 + $0x7f] sm:$0xff]
        %v685 = vld [vmem:[%s423 + $0x87] sm:$0xff]
        %v686 = vld [vmem:[%s423 + $0x8f] sm:$0xff]
        %v687 = vld [vmem:[%s423 + $0x97] sm:$0xff]
        %v688 = vld [vmem:[%s423 + $0x9f] sm:$0xff]
        %v689 = vld [vmem:[%s423 + $0xa7] sm:$0xff]
        %v690 = vld [vmem:[%s423 + $0xaf] sm:$0xff]
        %v691 = vld [vmem:[%s423 + $0xb7] sm:$0xff]
        %v692 = vld [vmem:[%s423 + $0xbf] sm:$0xff]
        %v693 = vld [vmem:[%s423 + $0xc7] sm:$0xff]
        %v694 = vld [vmem:[%s423 + $0xcf] sm:$0xff]
        %v695 = vld [vmem:[%s423 + $0xd7] sm:$0xff]
        %v696 = vld [vmem:[%s423 + $0xdf] sm:$0xff]
        %v697 = vld [vmem:[%s423 + $0xe7] sm:$0xff]
        %v698 = vld [vmem:[%s423 + $0xef] sm:$0xff]
        %v699 = vld [vmem:[%s423 + $0xf7] sm:$0xff]
        %v700 = vld [vmem:[%s423 + $0xff] sm:$0xff]
        %v701 = vld [vmem:[%s423 + $0x107] sm:$0xff]
        %v702 = vld [vmem:[%s423 + $0x10f] sm:$0xff]
        %v703 = vld [vmem:[%s423 + $0x117] sm:$0xff]
        %v704 = vld [vmem:[%s423 + $0x11f] sm:$0xff]
        %v705 = vld [vmem:[%s423 + $0x127] sm:$0xff]
        %v706 = vld [vmem:[%s423 + $0x12f] sm:$0xff]
        %v707 = vld [vmem:[%s423 + $0x18] sm:$0xff]
        %v708 = vld [vmem:[%s423 + $0x20] sm:$0xff]
        %v709 = vld [vmem:[%s423 + $0x28] sm:$0xff]
        %v710 = vld [vmem:[%s423 + $0x30] sm:$0xff]
        %v711 = vld [vmem:[%s423 + $0x38] sm:$0xff]
        %v712 = vld [vmem:[%s423 + $0x40] sm:$0xff]
        %v713 = vld [vmem:[%s423 + $0x48] sm:$0xff]
        %v714 = vld [vmem:[%s423 + $0x50] sm:$0xff]
        %v715 = vld [vmem:[%s423 + $0x58] sm:$0xff]
        %v716 = vld [vmem:[%s423 + $0x60] sm:$0xff]
        %v717 = vld [vmem:[%s423 + $0x68] sm:$0xff]
        %v718 = vld [vmem:[%s423 + $0x70] sm:$0xff]
        %v719 = vld [vmem:[%s423 + $0x78] sm:$0xff]
        %v720 = vld [vmem:[%s423 + $0x80] sm:$0xff]
        %v721 = vld [vmem:[%s423 + $0x88] sm:$0xff]
        %v722 = vld [vmem:[%s423 + $0x90] sm:$0xff]
        %v723 = vld [vmem:[%s423 + $0x98] sm:$0xff]
        %v724 = vld [vmem:[%s423 + $0xa0] sm:$0xff]
        %v725 = vld [vmem:[%s423 + $0xa8] sm:$0xff]
        %v726 = vld [vmem:[%s423 + $0xb0] sm:$0xff]
        %v727 = vld [vmem:[%s423 + $0xb8] sm:$0xff]
        %v728 = vld [vmem:[%s423 + $0xc0] sm:$0xff]
        %v729 = vld [vmem:[%s423 + $0xc8] sm:$0xff]
        %v730 = vld [vmem:[%s423 + $0xd0] sm:$0xff]
        %v731 = vld [vmem:[%s423 + $0xd8] sm:$0xff]
        %v732 = vld [vmem:[%s423 + $0xe0] sm:$0xff]
        %v733 = vld [vmem:[%s423 + $0xe8] sm:$0xff]
        %v734 = vld [vmem:[%s423 + $0xf0] sm:$0xff]
        %v735 = vld [vmem:[%s423 + $0xf8] sm:$0xff]
        %v736 = vld [vmem:[%s423 + $0x100] sm:$0xff]
        %v737 = vld [vmem:[%s423 + $0x108] sm:$0xff]
        %v738 = vld [vmem:[%s423 + $0x110] sm:$0xff]
        %v739 = vld [vmem:[%s423 + $0x118] sm:$0xff]
        %v740 = vld [vmem:[%s423 + $0x120] sm:$0xff]
        %v741 = vld [vmem:[%s423 + $0x128] sm:$0xff]
        %v742 = vld [vmem:[%s423 + $0x130] sm:$0xff]
        %v743 = vld [vmem:[%s423 + $0x19] sm:$0xff]
        %v744 = vld [vmem:[%s423 + $0x21] sm:$0xff]
        %v745 = vld [vmem:[%s423 + $0x29] sm:$0xff]
        %v746 = vld [vmem:[%s423 + $0x31] sm:$0xff]
        %v747 = vld [vmem:[%s423 + $0x39] sm:$0xff]
        %v748 = vld [vmem:[%s423 + $0x41] sm:$0xff]
        %v749 = vld [vmem:[%s423 + $0x49] sm:$0xff]
        %v750 = vld [vmem:[%s423 + $0x51] sm:$0xff]
        %v751 = vld [vmem:[%s423 + $0x59] sm:$0xff]
        %v752 = vld [vmem:[%s423 + $0x61] sm:$0xff]
        %v753 = vld [vmem:[%s423 + $0x69] sm:$0xff]
        %v754 = vld [vmem:[%s423 + $0x71] sm:$0xff]
        %v755 = vld [vmem:[%s423 + $0x79] sm:$0xff]
        %v756 = vld [vmem:[%s423 + $0x81] sm:$0xff]
        %v757 = vld [vmem:[%s423 + $0x89] sm:$0xff]
        %v758 = vld [vmem:[%s423 + $0x91] sm:$0xff]
        %v759 = vld [vmem:[%s423 + $0x99] sm:$0xff]
        %v760 = vld [vmem:[%s423 + $0xa1] sm:$0xff]
        %v761 = vld [vmem:[%s423 + $0xa9] sm:$0xff]
        %v762 = vld [vmem:[%s423 + $0xb1] sm:$0xff]
        %v763 = vld [vmem:[%s423 + $0xb9] sm:$0xff]
        %v764 = vld [vmem:[%s423 + $0xc1] sm:$0xff]
        %v765 = vld [vmem:[%s423 + $0xc9] sm:$0xff]
        %v766 = vld [vmem:[%s423 + $0xd1] sm:$0xff]
        %v767 = vld [vmem:[%s423 + $0xd9] sm:$0xff]
        %v768 = vld [vmem:[%s423 + $0xe1] sm:$0xff]
        %v769 = vld [vmem:[%s423 + $0xe9] sm:$0xff]
        %v770 = vld [vmem:[%s423 + $0xf1] sm:$0xff]
        %v771 = vld [vmem:[%s423 + $0xf9] sm:$0xff]
        %v772 = vld [vmem:[%s423 + $0x101] sm:$0xff]
        %v773 = vld [vmem:[%s423 + $0x109] sm:$0xff]
        %v774 = vld [vmem:[%s423 + $0x111] sm:$0xff]
        %v775 = vld [vmem:[%s423 + $0x119] sm:$0xff]
        %v776 = vld [vmem:[%s423 + $0x121] sm:$0xff]
        %v777 = vld [vmem:[%s423 + $0x129] sm:$0xff]
        %v778 = vld [vmem:[%s423 + $0x131] sm:$0xff]
        %v779 = vld [vmem:[%s423 + $0x139] sm:$0xff]
        %v780 = vld [vmem:[%s423 + $0x141] sm:$0xff]
        %v781 = vld [vmem:[%s423 + $0x2a] sm:$0xff]
        %v782 = vld [vmem:[%s423 + $0x32] sm:$0xff]
        %v783 = vld [vmem:[%s423 + $0x3a] sm:$0xff]
        %v784 = vld [vmem:[%s423 + $0x42] sm:$0xff]
        %v785 = vld [vmem:[%s423 + $0x4a] sm:$0xff]
        %v786 = vld [vmem:[%s423 + $0x52] sm:$0xff]
        %v787 = vld [vmem:[%s423 + $0x5a] sm:$0xff]
        %v788 = vld [vmem:[%s423 + $0x62] sm:$0xff]
        %v789 = vld [vmem:[%s423 + $0x6a] sm:$0xff]
        %v790 = vld [vmem:[%s423 + $0x72] sm:$0xff]
        %v791 = vld [vmem:[%s423 + $0x7a] sm:$0xff]
        %v792 = vld [vmem:[%s423 + $0x82] sm:$0xff]
        %v793 = vld [vmem:[%s423 + $0x8a] sm:$0xff]
        %v794 = vld [vmem:[%s423 + $0x92] sm:$0xff]
        %v795 = vld [vmem:[%s423 + $0x9a] sm:$0xff]
        %v796 = vld [vmem:[%s423 + $0xa2] sm:$0xff]
        %v797 = vld [vmem:[%s423 + $0xaa] sm:$0xff]
        %v798 = vld [vmem:[%s423 + $0xb2] sm:$0xff]
        %v799 = vld [vmem:[%s423 + $0xba] sm:$0xff]
        %v800 = vld [vmem:[%s423 + $0xc2] sm:$0xff]
        %v801 = vld [vmem:[%s423 + $0xca] sm:$0xff]
        %v802 = vld [vmem:[%s423 + $0xd2] sm:$0xff]
        %v803 = vld [vmem:[%s423 + $0xda] sm:$0xff]
        %v804 = vld [vmem:[%s423 + $0xe2] sm:$0xff]
        %v805 = vld [vmem:[%s423 + $0xea] sm:$0xff]
        %v806 = vld [vmem:[%s423 + $0xf2] sm:$0xff]
        %v807 = vld [vmem:[%s423 + $0xfa] sm:$0xff]
        %v808 = vld [vmem:[%s423 + $0x102] sm:$0xff]
        %v809 = vld [vmem:[%s423 + $0x10a] sm:$0xff]
        %v810 = vld [vmem:[%s423 + $0x112] sm:$0xff]
        %v811 = vld [vmem:[%s423 + $0x11a] sm:$0xff]
        %v812 = vld [vmem:[%s423 + $0x122] sm:$0xff]
        %v813 = vld [vmem:[%s423 + $0x12a] sm:$0xff]
        %v814 = vld [vmem:[%s423 + $0x132] sm:$0xff]
        %v815 = vld [vmem:[%s423 + $0x13a] sm:$0xff]
        %v816 = vld [vmem:[%s423 + $0x142] sm:$0xff]
        %v817 = vld [vmem:[%s423 + $0x2b] sm:$0xff]
        %v818 = vld [vmem:[%s423 + $0x33] sm:$0xff]
        %v819 = vld [vmem:[%s423 + $0x3b] sm:$0xff]
        %v820 = vld [vmem:[%s423 + $0x43] sm:$0xff]
        %v821 = vld [vmem:[%s423 + $0x4b] sm:$0xff]
        %v822 = vld [vmem:[%s423 + $0x53] sm:$0xff]
        %v823 = vld [vmem:[%s423 + $0x5b] sm:$0xff]
        %v824 = vld [vmem:[%s423 + $0x63] sm:$0xff]
        %v825 = vld [vmem:[%s423 + $0x6b] sm:$0xff]
        %v826 = vld [vmem:[%s423 + $0x73] sm:$0xff]
        %v827 = vld [vmem:[%s423 + $0x7b] sm:$0xff]
        %v828 = vld [vmem:[%s423 + $0x83] sm:$0xff]
        %v829 = vld [vmem:[%s423 + $0x8b] sm:$0xff]
        %v830 = vld [vmem:[%s423 + $0x93] sm:$0xff]
        %v831 = vld [vmem:[%s423 + $0x9b] sm:$0xff]
        %v832 = vld [vmem:[%s423 + $0xa3] sm:$0xff]
        %v833 = vld [vmem:[%s423 + $0xab] sm:$0xff]
        %v834 = vld [vmem:[%s423 + $0xb3] sm:$0xff]
        %v835 = vld [vmem:[%s423 + $0xbb] sm:$0xff]
        %v836 = vld [vmem:[%s423 + $0xc3] sm:$0xff]
        %v837 = vld [vmem:[%s423 + $0xcb] sm:$0xff]
        %v838 = vld [vmem:[%s423 + $0xd3] sm:$0xff]
        %v839 = vld [vmem:[%s423 + $0xdb] sm:$0xff]
        %v840 = vld [vmem:[%s423 + $0xe3] sm:$0xff]
        %v841 = vld [vmem:[%s423 + $0xeb] sm:$0xff]
        %v842 = vld [vmem:[%s423 + $0xf3] sm:$0xff]
        %v843 = vld [vmem:[%s423 + $0xfb] sm:$0xff]
        %v844 = vld [vmem:[%s423 + $0x103] sm:$0xff]
        %v845 = vld [vmem:[%s423 + $0x10b] sm:$0xff]
        %v846 = vld [vmem:[%s423 + $0x113] sm:$0xff]
        %v847 = vld [vmem:[%s423 + $0x11b] sm:$0xff]
        %v848 = vld [vmem:[%s423 + $0x123] sm:$0xff]
        %v849 = vld [vmem:[%s423 + $0x12b] sm:$0xff]
        %v850 = vld [vmem:[%s423 + $0x133] sm:$0xff]
        %v851 = vld [vmem:[%s423 + $0x13b] sm:$0xff]
        %v852 = vld [vmem:[%s423 + $0x143] sm:$0xff]
        %v853 = vpack.c.bf16 %v598, %v597
        %v854 = vpack.c.bf16 %v634, %v633
        %v855 = vpack.c.bf16 %v670, %v669
        %v856 = vpack.c.bf16 %v672, %v671
        %v857 = vpack.c.bf16 %v708, %v707
        %v858 = vpack.c.bf16 %v744, %v743
        %v859 = vpack.c.bf16 %v746, %v745
        %v860 = vpack.c.bf16 %v782, %v781
        %v861 = vpack.c.bf16 %v818, %v817
        %v862 = vpack.c.bf16 %v600, %v599
        %v863 = vpack.c.bf16 %v636, %v635
        %v864 = vpack.c.bf16 %v674, %v673
        %v865 = vpack.c.bf16 %v710, %v709
        %v866 = vpack.c.bf16 %v748, %v747
        %v867 = vpack.c.bf16 %v784, %v783
        %v868 = vpack.c.bf16 %v820, %v819
        %v869 = vpack.c.bf16 %v602, %v601
        %v870 = vpack.c.bf16 %v638, %v637
        %v871 = vpack.c.bf16 %v676, %v675
        %v872 = vpack.c.bf16 %v712, %v711
        %v873 = vpack.c.bf16 %v750, %v749
        %v874 = vpack.c.bf16 %v786, %v785
        %v875 = vpack.c.bf16 %v822, %v821
        %v876 = vpack.c.bf16 %v604, %v603
        %v877 = vpack.c.bf16 %v640, %v639
        %v878 = vpack.c.bf16 %v678, %v677
        %v879 = vpack.c.bf16 %v714, %v713
        %v880 = vpack.c.bf16 %v752, %v751
        %v881 = vpack.c.bf16 %v788, %v787
        %v882 = vpack.c.bf16 %v824, %v823
        %v883 = vpack.c.bf16 %v606, %v605
        %v884 = vpack.c.bf16 %v642, %v641
        %v885 = vpack.c.bf16 %v680, %v679
        %v886 = vpack.c.bf16 %v716, %v715
        %v887 = vpack.c.bf16 %v754, %v753
        %v888 = vpack.c.bf16 %v790, %v789
        %v889 = vpack.c.bf16 %v826, %v825
        %v890 = vpack.c.bf16 %v608, %v607
        %v891 = vpack.c.bf16 %v644, %v643
        %v892 = vpack.c.bf16 %v682, %v681
        %v893 = vpack.c.bf16 %v718, %v717
        %v894 = vpack.c.bf16 %v756, %v755
        %v895 = vpack.c.bf16 %v792, %v791
        %v896 = vpack.c.bf16 %v828, %v827
        %v897 = vpack.c.bf16 %v610, %v609
        %v898 = vpack.c.bf16 %v646, %v645
        %v899 = vpack.c.bf16 %v684, %v683
        %v900 = vpack.c.bf16 %v720, %v719
        %v901 = vpack.c.bf16 %v758, %v757
        %v902 = vpack.c.bf16 %v794, %v793
        %v903 = vpack.c.bf16 %v830, %v829
        %v904 = vpack.c.bf16 %v612, %v611
        %v905 = vpack.c.bf16 %v648, %v647
        %v906 = vpack.c.bf16 %v686, %v685
        %v907 = vpack.c.bf16 %v722, %v721
        %v908 = vpack.c.bf16 %v760, %v759
        %v909 = vpack.c.bf16 %v796, %v795
        %v910 = vpack.c.bf16 %v832, %v831
        %v911 = vpack.c.bf16 %v614, %v613
        %v912 = vpack.c.bf16 %v650, %v649
        %v913 = vpack.c.bf16 %v688, %v687
        %v914 = vpack.c.bf16 %v724, %v723
        %v915 = vpack.c.bf16 %v762, %v761
        %v916 = vpack.c.bf16 %v798, %v797
        %v917 = vpack.c.bf16 %v834, %v833
        %v918 = vpack.c.bf16 %v616, %v615
        %v919 = vpack.c.bf16 %v652, %v651
        %v920 = vpack.c.bf16 %v690, %v689
        %v921 = vpack.c.bf16 %v726, %v725
        %v922 = vpack.c.bf16 %v764, %v763
        %v923 = vpack.c.bf16 %v800, %v799
        %v924 = vpack.c.bf16 %v836, %v835
        %v925 = vpack.c.bf16 %v618, %v617
        %v926 = vpack.c.bf16 %v654, %v653
        %v927 = vpack.c.bf16 %v692, %v691
        %v928 = vpack.c.bf16 %v728, %v727
        %v929 = vpack.c.bf16 %v766, %v765
        %v930 = vpack.c.bf16 %v802, %v801
        %v931 = vpack.c.bf16 %v838, %v837
        %v932 = vpack.c.bf16 %v620, %v619
        %v933 = vpack.c.bf16 %v656, %v655
        %v934 = vpack.c.bf16 %v694, %v693
        %v935 = vpack.c.bf16 %v730, %v729
        %v936 = vpack.c.bf16 %v768, %v767
        %v937 = vpack.c.bf16 %v804, %v803
        %v938 = vpack.c.bf16 %v840, %v839
        %v939 = vpack.c.bf16 %v622, %v621
        %v940 = vpack.c.bf16 %v658, %v657
        %v941 = vpack.c.bf16 %v696, %v695
        %v942 = vpack.c.bf16 %v732, %v731
        %v943 = vpack.c.bf16 %v770, %v769
        %v944 = vpack.c.bf16 %v806, %v805
        %v945 = vpack.c.bf16 %v842, %v841
        %v946 = vpack.c.bf16 %v624, %v623
        %v947 = vpack.c.bf16 %v660, %v659
        %v948 = vpack.c.bf16 %v698, %v697
        %v949 = vpack.c.bf16 %v734, %v733
        %v950 = vpack.c.bf16 %v772, %v771
        %v951 = vpack.c.bf16 %v808, %v807
        %v952 = vpack.c.bf16 %v844, %v843
        %v953 = vpack.c.bf16 %v626, %v625
        %v954 = vpack.c.bf16 %v662, %v661
        %v955 = vpack.c.bf16 %v700, %v699
        %v956 = vpack.c.bf16 %v736, %v735
        %v957 = vpack.c.bf16 %v774, %v773
        %v958 = vpack.c.bf16 %v810, %v809
        %v959 = vpack.c.bf16 %v846, %v845
        %v960 = vpack.c.bf16 %v628, %v627
        %v961 = vpack.c.bf16 %v664, %v663
        %v962 = vpack.c.bf16 %v702, %v701
        %v963 = vpack.c.bf16 %v738, %v737
        %v964 = vpack.c.bf16 %v776, %v775
        %v965 = vpack.c.bf16 %v812, %v811
        %v966 = vpack.c.bf16 %v848, %v847
        %v967 = vpack.c.bf16 %v630, %v629
        %v968 = vpack.c.bf16 %v666, %v665
        %v969 = vpack.c.bf16 %v704, %v703
        %v970 = vpack.c.bf16 %v740, %v739
        %v971 = vpack.c.bf16 %v778, %v777
        %v972 = vpack.c.bf16 %v814, %v813
        %v973 = vpack.c.bf16 %v850, %v849
        %v974 = vpack.c.bf16 %v632, %v631
        %v975 = vpack.c.bf16 %v668, %v667
        %v976 = vpack.c.bf16 %v706, %v705
        %v977 = vpack.c.bf16 %v742, %v741
        %v978 = vpack.c.bf16 %v780, %v779
        %v979 = vpack.c.bf16 %v816, %v815
        %v980 = vpack.c.bf16 %v852, %v851
        %v981 = vld [vmem:[#allocation7] sm:$0xf]
        %v982 = vld [vmem:[#allocation7 + $0x4] sm:$0xf]
        %v983 = vld [vmem:[#allocation7 + $0x8] sm:$0xf]
        %v984 = vld [vmem:[#allocation7 + $0xc] sm:$0xf]
        %v985 = vld [vmem:[#allocation7 + $0x10] sm:$0xf]
        %v986 = vld [vmem:[#allocation7 + $0x14] sm:$0xf]
        %v987 = vld [vmem:[#allocation7 + $0x18] sm:$0xf]
        %v988 = vld [vmem:[#allocation7 + $0x1c] sm:$0xf]
        %v989 = vld [vmem:[#allocation7 + $0x20] sm:$0xf]
        %v990 = vld [vmem:[#allocation7 + $0x24] sm:$0xf]
        %v991 = vld [vmem:[#allocation7 + $0x28] sm:$0xf]
        %v992 = vld [vmem:[#allocation7 + $0x2c] sm:$0xf]
        %v993 = vld [vmem:[#allocation7 + $0x30] sm:$0xf]
        %v994 = vld [vmem:[#allocation7 + $0x34] sm:$0xf]
        %v995 = vld [vmem:[#allocation7 + $0x38] sm:$0xf]
        %v996 = vld [vmem:[#allocation7 + $0x3c] sm:$0xf]
        %v997 = vld [vmem:[#allocation7 + $0x40] sm:$0xf]
        %v998 = vld [vmem:[#allocation7 + $0x44] sm:$0xf]
        %v999 = vld [vmem:[#allocation7 + $0x48] sm:$0xf]
        %v1000 = vld [vmem:[#allocation7 + $0x4c] sm:$0xf]
        %v1001 = vld [vmem:[#allocation7 + $0x50] sm:$0xf]
        %v1002 = vld [vmem:[#allocation7 + $0x54] sm:$0xf]
        %v1003 = vld [vmem:[#allocation7 + $0x58] sm:$0xf]
        %v1004 = vld [vmem:[#allocation7 + $0x5c] sm:$0xf]
        %v1005 = vld [vmem:[#allocation7 + $0x60] sm:$0xf]
        %v1006 = vld [vmem:[#allocation7 + $0x64] sm:$0xf]
        %v1007 = vld [vmem:[#allocation7 + $0x68] sm:$0xf]
        %v1008 = vld [vmem:[#allocation7 + $0x6c] sm:$0xf]
        %v1009 = vld [vmem:[#allocation7 + $0x70] sm:$0xf]
        %v1010 = vld [vmem:[#allocation7 + $0x74] sm:$0xf]
        %v1011 = vld [vmem:[#allocation7 + $0x78] sm:$0xf]
        %v1012 = vld [vmem:[#allocation7 + $0x7c] sm:$0xf]
        %v1013 = vld [vmem:[#allocation7 + $0x80] sm:$0xf]
        %v1014 = vld [vmem:[#allocation7 + $0x84] sm:$0xf]
        %v1015 = vld [vmem:[#allocation7 + $0x88] sm:$0xf]
        %v1016 = vld [vmem:[#allocation7 + $0x8c] sm:$0xf]
        %v1017 = vld [vmem:[#allocation7 + $0x90] sm:$0xf]
        %v1018 = vld [vmem:[#allocation7 + $0x94] sm:$0xf]
        %v1019 = vld [vmem:[#allocation7 + $0x98] sm:$0xf]
        %v1020 = vld [vmem:[#allocation7 + $0x9c] sm:$0xf]
        %v1021 = vld [vmem:[#allocation7 + $0xa0] sm:$0xf]
        %v1022 = vld [vmem:[#allocation7 + $0xa4] sm:$0xf]
        %v1023 = vld [vmem:[#allocation7 + $0xa8] sm:$0xf]
        %v1024 = vld [vmem:[#allocation7 + $0xac] sm:$0xf]
        %v1025 = vld [vmem:[#allocation7 + $0xb0] sm:$0xf]
        %v1026 = vld [vmem:[#allocation7 + $0xb4] sm:$0xf]
        %v1027 = vld [vmem:[#allocation7 + $0xb8] sm:$0xf]
        %v1028 = vld [vmem:[#allocation7 + $0xbc] sm:$0xf]
        %v1029 = vld [vmem:[#allocation7 + $0xc0] sm:$0xf]
        %v1030 = vld [vmem:[#allocation7 + $0xc4] sm:$0xf]
        %v1031 = vld [vmem:[#allocation7 + $0xc8] sm:$0xf]
        %v1032 = vld [vmem:[#allocation7 + $0xcc] sm:$0xf]
        %v1033 = vld [vmem:[#allocation7 + $0xd0] sm:$0xf]
        %v1034 = vld [vmem:[#allocation7 + $0xd4] sm:$0xf]
        %v1035 = vld [vmem:[#allocation7 + $0xd8] sm:$0xf]
        %v1036 = vld [vmem:[#allocation7 + $0xdc] sm:$0xf]
        %v1037 = vld [vmem:[#allocation7 + $0xe0] sm:$0xf]
        %v1038 = vld [vmem:[#allocation7 + $0xe4] sm:$0xf]
        %v1039 = vld [vmem:[#allocation7 + $0xe8] sm:$0xf]
        %v1040 = vld [vmem:[#allocation7 + $0xec] sm:$0xf]
        %v1041 = vld [vmem:[#allocation7 + $0xf0] sm:$0xf]
        %v1042 = vld [vmem:[#allocation7 + $0xf4] sm:$0xf]
        %v1043 = vld [vmem:[#allocation7 + $0xf8] sm:$0xf]
        %v1044 = vld [vmem:[#allocation7 + $0xfc] sm:$0xf]
        %v1045 = vld [vmem:[#allocation7 + $0x100] sm:$0xf]
        %v1046 = vld [vmem:[#allocation7 + $0x104] sm:$0xf]
        %v1047 = vld [vmem:[#allocation7 + $0x108] sm:$0xf]
        %v1048 = vld [vmem:[#allocation7 + $0x10c] sm:$0xf]
        %v1049 = vld [vmem:[#allocation7 + $0x110] sm:$0xf]
        %v1050 = vld [vmem:[#allocation7 + $0x114] sm:$0xf]
        %v1051 = vld [vmem:[#allocation7 + $0x118] sm:$0xf]
        %v1052 = vld [vmem:[#allocation7 + $0x11c] sm:$0xf]
        %v1053 = vld [vmem:[#allocation7 + $0x120] sm:$0xf]
        %v1054 = vld [vmem:[#allocation7 + $0x124] sm:$0xf]
        %v1055 = vld [vmem:[#allocation7 + $0x128] sm:$0xf]
        %v1056 = vld [vmem:[#allocation7 + $0x12c] sm:$0xf]
        %v1057 = vld [vmem:[#allocation7 + $0x130] sm:$0xf]
        %v1058 = vld [vmem:[#allocation7 + $0x134] sm:$0xf]
        %v1059 = vld [vmem:[#allocation7 + $0x138] sm:$0xf]
        %v1060 = vld [vmem:[#allocation7 + $0x13c] sm:$0xf]
        %v1061 = vld [vmem:[#allocation7 + $0x140] sm:$0xf]
        %v1062 = vld [vmem:[#allocation7 + $0x144] sm:$0xf]
        %v1063 = vld [vmem:[#allocation7 + $0x148] sm:$0xf]
        %v1064 = vld [vmem:[#allocation7 + $0x14c] sm:$0xf]
        %v1065 = vld [vmem:[#allocation7 + $0x150] sm:$0xf]
        %v1066 = vld [vmem:[#allocation7 + $0x154] sm:$0xf]
        %v1067 = vld [vmem:[#allocation7 + $0x158] sm:$0xf]
        %v1068 = vld [vmem:[#allocation7 + $0x15c] sm:$0xf]
        %v1069 = vld [vmem:[#allocation7 + $0x160] sm:$0xf]
        %v1070 = vld [vmem:[#allocation7 + $0x164] sm:$0xf]
        %v1071 = vld [vmem:[#allocation7 + $0x168] sm:$0xf]
        %v1072 = vld [vmem:[#allocation7 + $0x16c] sm:$0xf]
        %v1073 = vld [vmem:[#allocation7 + $0x170] sm:$0xf]
        %v1074 = vld [vmem:[#allocation7 + $0x174] sm:$0xf]
        %v1075 = vld [vmem:[#allocation7 + $0x178] sm:$0xf]
        %v1076 = vld [vmem:[#allocation7 + $0x17c] sm:$0xf]
        %v1077 = vld [vmem:[#allocation7 + $0x180] sm:$0xf]
        %v1078 = vld [vmem:[#allocation7 + $0x184] sm:$0xf]
        %v1079 = vld [vmem:[#allocation7 + $0x188] sm:$0xf]
        %v1080 = vld [vmem:[#allocation7 + $0x18c] sm:$0xf]
        %v1081 = vld [vmem:[#allocation7 + $0x190] sm:$0xf]
        %v1082 = vld [vmem:[#allocation7 + $0x194] sm:$0xf]
        %v1083 = vld [vmem:[#allocation7 + $0x198] sm:$0xf]
        %v1084 = vld [vmem:[#allocation7 + $0x19c] sm:$0xf]
        %v1085 = vld [vmem:[#allocation7 + $0x1a0] sm:$0xf]
        %v1086 = vld [vmem:[#allocation7 + $0x1a4] sm:$0xf]
        %v1087 = vld [vmem:[#allocation7 + $0x1a8] sm:$0xf]
        %v1088 = vld [vmem:[#allocation7 + $0x1ac] sm:$0xf]
        %v1089 = vld [vmem:[#allocation7 + $0x1b0] sm:$0xf]
        %v1090 = vld [vmem:[#allocation7 + $0x1b4] sm:$0xf]
        %v1091 = vld [vmem:[#allocation7 + $0x1b8] sm:$0xf]
        %v1092 = vld [vmem:[#allocation7 + $0x1bc] sm:$0xf]
        %v1093 = vld [vmem:[#allocation7 + $0x1c0] sm:$0xf]
        %v1094 = vld [vmem:[#allocation7 + $0x1c4] sm:$0xf]
        %v1095 = vld [vmem:[#allocation7 + $0x1c8] sm:$0xf]
        %v1096 = vld [vmem:[#allocation7 + $0x1cc] sm:$0xf]
        %v1097 = vld [vmem:[#allocation7 + $0x1d0] sm:$0xf]
        %v1098 = vld [vmem:[#allocation7 + $0x1d4] sm:$0xf]
        %v1099 = vld [vmem:[#allocation7 + $0x1d8] sm:$0xf]
        %v1100 = vld [vmem:[#allocation7 + $0x1dc] sm:$0xf]
        %v1101 = vld [vmem:[#allocation7 + $0x1e0] sm:$0xf]
        %v1102 = vld [vmem:[#allocation7 + $0x1e4] sm:$0xf]
        %v1103 = vld [vmem:[#allocation7 + $0x1e8] sm:$0xf]
        %v1104 = vld [vmem:[#allocation7 + $0x1ec] sm:$0xf]
        %v1105 = vld [vmem:[#allocation7 + $0x1f0] sm:$0xf]
        %v1106 = vld [vmem:[#allocation7 + $0x1f4] sm:$0xf]
        %v1107 = vld [vmem:[#allocation7 + $0x1f8] sm:$0xf]
        %v1108 = vld [vmem:[#allocation7 + $0x1fc] sm:$0xf]
        %v1109 = vld [vmem:[#allocation7 + $0x200] sm:$0xf]
        %v1110 = vld [vmem:[#allocation7 + $0x204] sm:$0xf]
        %v1111 = vld [vmem:[#allocation7 + $0x208] sm:$0xf]
        %v1112 = vld [vmem:[#allocation7 + $0x20c] sm:$0xf]
        %v1113 = vld [vmem:[#allocation7 + $0x210] sm:$0xf]
        %v1114 = vld [vmem:[#allocation7 + $0x214] sm:$0xf]
        %v1115 = vld [vmem:[#allocation7 + $0x218] sm:$0xf]
        %v1116 = vld [vmem:[#allocation7 + $0x21c] sm:$0xf]
        %v1117 = vld [vmem:[#allocation7 + $0x220] sm:$0xf]
        %v1118 = vld [vmem:[#allocation7 + $0x224] sm:$0xf]
        %v1119 = vld [vmem:[#allocation7 + $0x228] sm:$0xf]
        %v1120 = vld [vmem:[#allocation7 + $0x22c] sm:$0xf]
        %v1121 = vld [vmem:[#allocation7 + $0x230] sm:$0xf]
        %v1122 = vld [vmem:[#allocation7 + $0x234] sm:$0xf]
        %v1123 = vld [vmem:[#allocation7 + $0x238] sm:$0xf]
        %v1124 = vld [vmem:[#allocation7 + $0x23c] sm:$0xf]
        %v1125 = vld [vmem:[%s3] sm:$0x1]
        %v1127 = vlaneseq
        %v1128 = vshrl.u32 %v1127, 7
        %v1129 = vsub.s32 0, %v1128
        %v1130 = vrot.slane %v1125, %v1129
        %v1276 = vunpack.c.l.b16 %v981
        %v1277 = vunpack.c.l.b16 %v982
        %v1278 = vunpack.c.l.b16 %v983
        %v1279 = vunpack.c.l.b16 %v984
        %v1280 = vunpack.c.l.b16 %v985
        %v1281 = vunpack.c.l.b16 %v986
        %v1282 = vunpack.c.l.b16 %v987
        %v1283 = vunpack.c.l.b16 %v988
        %v1284 = vunpack.c.l.b16 %v989
        %v1285 = vunpack.c.l.b16 %v990
        %v1286 = vunpack.c.l.b16 %v991
        %v1287 = vunpack.c.l.b16 %v992
        %v1288 = vunpack.c.l.b16 %v993
        %v1289 = vunpack.c.l.b16 %v994
        %v1290 = vunpack.c.l.b16 %v995
        %v1291 = vunpack.c.l.b16 %v996
        %v1292 = vunpack.c.l.b16 %v997
        %v1293 = vunpack.c.l.b16 %v998
        %v1294 = vunpack.c.l.b16 %v999
        %v1295 = vunpack.c.l.b16 %v1000
        %v1296 = vunpack.c.l.b16 %v1001
        %v1297 = vunpack.c.l.b16 %v1002
        %v1298 = vunpack.c.l.b16 %v1003
        %v1299 = vunpack.c.l.b16 %v1004
        %v1300 = vunpack.c.l.b16 %v1005
        %v1301 = vunpack.c.l.b16 %v1006
        %v1302 = vunpack.c.l.b16 %v1007
        %v1303 = vunpack.c.l.b16 %v1008
        %v1304 = vunpack.c.l.b16 %v1009
        %v1305 = vunpack.c.l.b16 %v1010
        %v1306 = vunpack.c.l.b16 %v1011
        %v1307 = vunpack.c.l.b16 %v1012
        %v1308 = vunpack.c.l.b16 %v1013
        %v1309 = vunpack.c.l.b16 %v1014
        %v1310 = vunpack.c.l.b16 %v1015
        %v1311 = vunpack.c.l.b16 %v1016
        %v1312 = vunpack.c.l.b16 %v1017
        %v1313 = vunpack.c.l.b16 %v1018
        %v1314 = vunpack.c.l.b16 %v1019
        %v1315 = vunpack.c.l.b16 %v1020
        %v1316 = vunpack.c.l.b16 %v1021
        %v1317 = vunpack.c.l.b16 %v1022
        %v1318 = vunpack.c.l.b16 %v1023
        %v1319 = vunpack.c.l.b16 %v1024
        %v1320 = vunpack.c.l.b16 %v1025
        %v1321 = vunpack.c.l.b16 %v1026
        %v1322 = vunpack.c.l.b16 %v1027
        %v1323 = vunpack.c.l.b16 %v1028
        %v1324 = vunpack.c.l.b16 %v1029
        %v1325 = vunpack.c.l.b16 %v1030
        %v1326 = vunpack.c.l.b16 %v1031
        %v1327 = vunpack.c.l.b16 %v1032
        %v1328 = vunpack.c.l.b16 %v1033
        %v1329 = vunpack.c.l.b16 %v1034
        %v1330 = vunpack.c.l.b16 %v1035
        %v1331 = vunpack.c.l.b16 %v1036
        %v1332 = vunpack.c.l.b16 %v1037
        %v1333 = vunpack.c.l.b16 %v1038
        %v1334 = vunpack.c.l.b16 %v1039
        %v1335 = vunpack.c.l.b16 %v1040
        %v1336 = vunpack.c.l.b16 %v1041
        %v1337 = vunpack.c.l.b16 %v1042
        %v1338 = vunpack.c.l.b16 %v1043
        %v1339 = vunpack.c.l.b16 %v1044
        %v1340 = vunpack.c.l.b16 %v1045
        %v1341 = vunpack.c.l.b16 %v1046
        %v1342 = vunpack.c.l.b16 %v1047
        %v1343 = vunpack.c.l.b16 %v1048
        %v1344 = vunpack.c.l.b16 %v1049
        %v1345 = vunpack.c.l.b16 %v1050
        %v1346 = vunpack.c.l.b16 %v1051
        %v1347 = vunpack.c.l.b16 %v1052
        %v1348 = vunpack.c.l.b16 %v1053
        %v1349 = vunpack.c.l.b16 %v1054
        %v1350 = vunpack.c.l.b16 %v1055
        %v1351 = vunpack.c.l.b16 %v1056
        %v1352 = vunpack.c.l.b16 %v1057
        %v1353 = vunpack.c.l.b16 %v1058
        %v1354 = vunpack.c.l.b16 %v1059
        %v1355 = vunpack.c.l.b16 %v1060
        %v1356 = vunpack.c.l.b16 %v1061
        %v1357 = vunpack.c.l.b16 %v1062
        %v1358 = vunpack.c.l.b16 %v1063
        %v1359 = vunpack.c.l.b16 %v1064
        %v1360 = vunpack.c.l.b16 %v1065
        %v1361 = vunpack.c.l.b16 %v1066
        %v1362 = vunpack.c.l.b16 %v1067
        %v1363 = vunpack.c.l.b16 %v1068
        %v1364 = vunpack.c.l.b16 %v1069
        %v1365 = vunpack.c.l.b16 %v1070
        %v1366 = vunpack.c.l.b16 %v1071
        %v1367 = vunpack.c.l.b16 %v1072
        %v1368 = vunpack.c.l.b16 %v1073
        %v1369 = vunpack.c.l.b16 %v1074
        %v1370 = vunpack.c.l.b16 %v1075
        %v1371 = vunpack.c.l.b16 %v1076
        %v1372 = vunpack.c.l.b16 %v1077
        %v1373 = vunpack.c.l.b16 %v1078
        %v1374 = vunpack.c.l.b16 %v1079
        %v1375 = vunpack.c.l.b16 %v1080
        %v1376 = vunpack.c.l.b16 %v1081
        %v1377 = vunpack.c.l.b16 %v1082
        %v1378 = vunpack.c.l.b16 %v1083
        %v1379 = vunpack.c.l.b16 %v1084
        %v1380 = vunpack.c.l.b16 %v1085
        %v1381 = vunpack.c.l.b16 %v1086
        %v1382 = vunpack.c.l.b16 %v1087
        %v1383 = vunpack.c.l.b16 %v1088
        %v1384 = vunpack.c.l.b16 %v1089
        %v1385 = vunpack.c.l.b16 %v1090
        %v1386 = vunpack.c.l.b16 %v1091
        %v1387 = vunpack.c.l.b16 %v1092
        %v1388 = vunpack.c.l.b16 %v1093
        %v1389 = vunpack.c.l.b16 %v1094
        %v1390 = vunpack.c.l.b16 %v1095
        %v1391 = vunpack.c.l.b16 %v1096
        %v1392 = vunpack.c.l.b16 %v1097
        %v1393 = vunpack.c.l.b16 %v1098
        %v1394 = vunpack.c.l.b16 %v1099
        %v1395 = vunpack.c.l.b16 %v1100
        %v1396 = vunpack.c.l.b16 %v1101
        %v1397 = vunpack.c.l.b16 %v1102
        %v1398 = vunpack.c.l.b16 %v1103
        %v1399 = vunpack.c.l.b16 %v1104
        %v1400 = vunpack.c.l.b16 %v1105
        %v1401 = vunpack.c.l.b16 %v1106
        %v1402 = vunpack.c.l.b16 %v1107
        %v1403 = vunpack.c.l.b16 %v1108
        %v1404 = vunpack.c.l.b16 %v1109
        %v1405 = vunpack.c.l.b16 %v1110
        %v1406 = vunpack.c.l.b16 %v1111
        %v1407 = vunpack.c.l.b16 %v1112
        %v1408 = vunpack.c.l.b16 %v1113
        %v1409 = vunpack.c.l.b16 %v1114
        %v1410 = vunpack.c.l.b16 %v1115
        %v1411 = vunpack.c.l.b16 %v1116
        %v1412 = vunpack.c.l.b16 %v1117
        %v1413 = vunpack.c.l.b16 %v1118
        %v1414 = vunpack.c.l.b16 %v1119
        %v1415 = vunpack.c.l.b16 %v1120
        %v1416 = vunpack.c.l.b16 %v1121
        %v1417 = vunpack.c.l.b16 %v1122
        %v1418 = vunpack.c.l.b16 %v1123
        %v1419 = vunpack.c.l.b16 %v1124
        %v1420 = vpack.c.b16 %v1277, %v1276
        %v1421 = vpack.c.b16 %v1279, %v1278
        %v1422 = vpack.c.b16 %v1281, %v1280
        %v1423 = vpack.c.b16 %v1283, %v1282
        %v1424 = vpack.c.b16 %v1285, %v1284
        %v1425 = vpack.c.b16 %v1287, %v1286
        %v1426 = vpack.c.b16 %v1289, %v1288
        %v1427 = vpack.c.b16 %v1291, %v1290
        %v1428 = vpack.c.b16 %v1293, %v1292
        %v1429 = vpack.c.b16 %v1295, %v1294
        %v1430 = vpack.c.b16 %v1297, %v1296
        %v1431 = vpack.c.b16 %v1299, %v1298
        %v1432 = vpack.c.b16 %v1301, %v1300
        %v1433 = vpack.c.b16 %v1303, %v1302
        %v1434 = vpack.c.b16 %v1305, %v1304
        %v1435 = vpack.c.b16 %v1307, %v1306
        %v1436 = vpack.c.b16 %v1309, %v1308
        %v1437 = vpack.c.b16 %v1311, %v1310
        %v1438 = vpack.c.b16 %v1313, %v1312
        %v1439 = vpack.c.b16 %v1315, %v1314
        %v1440 = vpack.c.b16 %v1317, %v1316
        %v1441 = vpack.c.b16 %v1319, %v1318
        %v1442 = vpack.c.b16 %v1321, %v1320
        %v1443 = vpack.c.b16 %v1323, %v1322
        %v1444 = vpack.c.b16 %v1325, %v1324
        %v1445 = vpack.c.b16 %v1327, %v1326
        %v1446 = vpack.c.b16 %v1329, %v1328
        %v1447 = vpack.c.b16 %v1331, %v1330
        %v1448 = vpack.c.b16 %v1333, %v1332
        %v1449 = vpack.c.b16 %v1335, %v1334
        %v1450 = vpack.c.b16 %v1337, %v1336
        %v1451 = vpack.c.b16 %v1339, %v1338
        %v1452 = vpack.c.b16 %v1341, %v1340
        %v1453 = vpack.c.b16 %v1343, %v1342
        %v1454 = vpack.c.b16 %v1345, %v1344
        %v1455 = vpack.c.b16 %v1347, %v1346
        %v1456 = vpack.c.b16 %v1349, %v1348
        %v1457 = vpack.c.b16 %v1351, %v1350
        %v1458 = vpack.c.b16 %v1353, %v1352
        %v1459 = vpack.c.b16 %v1355, %v1354
        %v1460 = vpack.c.b16 %v1357, %v1356
        %v1461 = vpack.c.b16 %v1359, %v1358
        %v1462 = vpack.c.b16 %v1361, %v1360
        %v1463 = vpack.c.b16 %v1363, %v1362
        %v1464 = vpack.c.b16 %v1365, %v1364
        %v1465 = vpack.c.b16 %v1367, %v1366
        %v1466 = vpack.c.b16 %v1369, %v1368
        %v1467 = vpack.c.b16 %v1371, %v1370
        %v1468 = vpack.c.b16 %v1373, %v1372
        %v1469 = vpack.c.b16 %v1375, %v1374
        %v1470 = vpack.c.b16 %v1377, %v1376
        %v1471 = vpack.c.b16 %v1379, %v1378
        %v1472 = vpack.c.b16 %v1381, %v1380
        %v1473 = vpack.c.b16 %v1383, %v1382
        %v1474 = vpack.c.b16 %v1385, %v1384
        %v1475 = vpack.c.b16 %v1387, %v1386
        %v1476 = vpack.c.b16 %v1389, %v1388
        %v1477 = vpack.c.b16 %v1391, %v1390
        %v1478 = vpack.c.b16 %v1393, %v1392
        %v1479 = vpack.c.b16 %v1395, %v1394
        %v1480 = vpack.c.b16 %v1397, %v1396
        %v1481 = vpack.c.b16 %v1399, %v1398
        %v1482 = vpack.c.b16 %v1401, %v1400
        %v1483 = vpack.c.b16 %v1403, %v1402
        %v1484 = vpack.c.b16 %v1405, %v1404
        %v1485 = vpack.c.b16 %v1407, %v1406
        %v1486 = vpack.c.b16 %v1409, %v1408
        %v1487 = vpack.c.b16 %v1411, %v1410
        %v1488 = vpack.c.b16 %v1413, %v1412
        %v1489 = vpack.c.b16 %v1415, %v1414
        %v1490 = vpack.c.b16 %v1417, %v1416
        %v1491 = vpack.c.b16 %v1419, %v1418
        %1564 = vmatprep.subr.bf16.mxu0 0
        %1565 = vmatpush1.bf16.msra.mxu0 %v1427
        %1566 = vmatprep.subr.bf16.mxu0 0
        %1567 = vmatpush1.bf16.msra.mxu0 %v1426
        %1568 = vmatprep.subr.bf16.mxu0 0
        %1569 = vmatpush1.bf16.msra.mxu0 %v1425
        %1570 = vmatprep.subr.bf16.mxu0 0
        %1571 = vmatpush1.bf16.msra.mxu0 %v1424
        %1572 = vmatprep.subr.bf16.mxu0 0
        %1573 = vmatpush1.bf16.msra.mxu0 %v1423
        %1574 = vmatprep.subr.bf16.mxu0 0
        %1575 = vmatpush1.bf16.msra.mxu0 %v1422
        %1576 = vmatprep.subr.bf16.mxu0 0
        %1577 = vmatpush1.bf16.msra.mxu0 %v1421
        %1578 = vmatprep.subr.bf16.mxu0 0
        %1579 = vmatpush1.bf16.msra.mxu0 %v1420
        %1580 = vmatprep.subr.bf16.mxu0 0
        %1581 = vmatpush2.bf16.msra.mxu0 %v1435
        %1582 = vmatprep.subr.bf16.mxu0 0
        %1583 = vmatpush2.bf16.msra.mxu0 %v1434
        %1584 = vmatprep.subr.bf16.mxu0 0
        %1585 = vmatpush2.bf16.msra.mxu0 %v1433
        %1586 = vmatprep.subr.bf16.mxu0 0
        %1587 = vmatpush2.bf16.msra.mxu0 %v1432
        %1588 = vmatprep.subr.bf16.mxu0 0
        %1589 = vmatpush2.bf16.msra.mxu0 %v1431
        %1590 = vmatprep.subr.bf16.mxu0 0
        %1591 = vmatpush2.bf16.msra.mxu0 %v1430
        %1592 = vmatprep.subr.bf16.mxu0 0
        %1593 = vmatpush2.bf16.msra.mxu0 %v1429
        %1594 = vmatprep.subr.bf16.mxu0 0
        %1595 = vmatpush2.bf16.msra.mxu0 %v1428
        %1596 = vmatprep.mubr.bf16.mxu0 %v854
        %1597 = vmatmul.mubr.bf16.gmra.mxu0 %v853
        %v1598 = vpop.f32.mrf.mxu0
        %v1599 = vadd.f32 %v1130, %v1598
        %v1600 = vpop.f32.mrf.mxu0
        %v1601 = vpop.f32.mrf.mxu0
        %v1602 = vadd.f32 %v1130, %v1601
        %v1603 = vpop.f32.mrf.mxu0
        %1604 = vmatprep.mubr.bf16.mxu0 %v863
        %1605 = vmatmul.mubr.bf16.gmra.mxu0 %v862
        %v1606 = vpop.f32.mrf.mxu0
        %v1607 = vadd.f32 %v1130, %v1606
        %v1608 = vpop.f32.mrf.mxu0
        %v1609 = vpop.f32.mrf.mxu0
        %v1610 = vadd.f32 %v1130, %v1609
        %v1611 = vpop.f32.mrf.mxu0
        %1612 = vmatprep.mubr.bf16.mxu0 %v870
        %1613 = vmatmul.mubr.bf16.gmra.mxu0 %v869
        %v1614 = vpop.f32.mrf.mxu0
        %v1615 = vadd.f32 %v1130, %v1614
        %v1616 = vpop.f32.mrf.mxu0
        %v1617 = vpop.f32.mrf.mxu0
        %v1618 = vadd.f32 %v1130, %v1617
        %v1619 = vpop.f32.mrf.mxu0
        %1620 = vmatprep.mubr.bf16.mxu0 %v877
        %1621 = vmatmul.mubr.bf16.gmra.mxu0 %v876
        %v1622 = vpop.f32.mrf.mxu0
        %v1623 = vadd.f32 %v1130, %v1622
        %v1624 = vpop.f32.mrf.mxu0
        %v1625 = vpop.f32.mrf.mxu0
        %v1626 = vadd.f32 %v1130, %v1625
        %v1627 = vpop.f32.mrf.mxu0
        %1628 = vmatprep.mubr.bf16.mxu0 %v884
        %1629 = vmatmul.mubr.bf16.gmra.mxu0 %v883
        %v1630 = vpop.f32.mrf.mxu0
        %v1631 = vadd.f32 %v1130, %v1630
        %v1632 = vpop.f32.mrf.mxu0
        %v1633 = vpop.f32.mrf.mxu0
        %v1634 = vadd.f32 %v1130, %v1633
        %v1635 = vpop.f32.mrf.mxu0
        %1636 = vmatprep.mubr.bf16.mxu0 %v891
        %1637 = vmatmul.mubr.bf16.gmra.mxu0 %v890
        %v1638 = vpop.f32.mrf.mxu0
        %v1639 = vadd.f32 %v1130, %v1638
        %v1640 = vpop.f32.mrf.mxu0
        %v1641 = vpop.f32.mrf.mxu0
        %v1642 = vadd.f32 %v1130, %v1641
        %v1643 = vpop.f32.mrf.mxu0
        %1644 = vmatprep.mubr.bf16.mxu0 %v898
        %1645 = vmatmul.mubr.bf16.gmra.mxu0 %v897
        %v1646 = vpop.f32.mrf.mxu0
        %v1647 = vadd.f32 %v1130, %v1646
        %v1648 = vpop.f32.mrf.mxu0
        %v1649 = vpop.f32.mrf.mxu0
        %v1650 = vadd.f32 %v1130, %v1649
        %v1651 = vpop.f32.mrf.mxu0
        %1652 = vmatprep.mubr.bf16.mxu0 %v905
        %1653 = vmatmul.mubr.bf16.gmra.mxu0 %v904
        %v1654 = vpop.f32.mrf.mxu0
        %v1655 = vadd.f32 %v1130, %v1654
        %v1656 = vpop.f32.mrf.mxu0
        %v1657 = vpop.f32.mrf.mxu0
        %v1658 = vadd.f32 %v1130, %v1657
        %v1659 = vpop.f32.mrf.mxu0
        %1660 = vmatprep.mubr.bf16.mxu0 %v912
        %1661 = vmatmul.mubr.bf16.gmra.mxu0 %v911
        %v1662 = vpop.f32.mrf.mxu0
        %v1663 = vadd.f32 %v1130, %v1662
        %v1664 = vpop.f32.mrf.mxu0
        %v1665 = vpop.f32.mrf.mxu0
        %v1666 = vadd.f32 %v1130, %v1665
        %v1667 = vpop.f32.mrf.mxu0
        %1668 = vmatprep.mubr.bf16.mxu0 %v919
        %1669 = vmatmul.mubr.bf16.gmra.mxu0 %v918
        %v1670 = vpop.f32.mrf.mxu0
        %v1671 = vadd.f32 %v1130, %v1670
        %v1672 = vpop.f32.mrf.mxu0
        %v1673 = vpop.f32.mrf.mxu0
        %v1674 = vadd.f32 %v1130, %v1673
        %v1675 = vpop.f32.mrf.mxu0
        %1676 = vmatprep.mubr.bf16.mxu0 %v926
        %1677 = vmatmul.mubr.bf16.gmra.mxu0 %v925
        %v1678 = vpop.f32.mrf.mxu0
        %v1679 = vadd.f32 %v1130, %v1678
        %v1680 = vpop.f32.mrf.mxu0
        %v1681 = vpop.f32.mrf.mxu0
        %v1682 = vadd.f32 %v1130, %v1681
        %v1683 = vpop.f32.mrf.mxu0
        %1684 = vmatprep.mubr.bf16.mxu0 %v933
        %1685 = vmatmul.mubr.bf16.gmra.mxu0 %v932
        %v1686 = vpop.f32.mrf.mxu0
        %v1687 = vadd.f32 %v1130, %v1686
        %v1688 = vpop.f32.mrf.mxu0
        %v1689 = vpop.f32.mrf.mxu0
        %v1690 = vadd.f32 %v1130, %v1689
        %v1691 = vpop.f32.mrf.mxu0
        %1692 = vmatprep.mubr.bf16.mxu0 %v940
        %1693 = vmatmul.mubr.bf16.gmra.mxu0 %v939
        %v1694 = vpop.f32.mrf.mxu0
        %v1695 = vadd.f32 %v1130, %v1694
        %v1696 = vpop.f32.mrf.mxu0
        %v1697 = vpop.f32.mrf.mxu0
        %v1698 = vadd.f32 %v1130, %v1697
        %v1699 = vpop.f32.mrf.mxu0
        %1700 = vmatprep.mubr.bf16.mxu0 %v947
        %1701 = vmatmul.mubr.bf16.gmra.mxu0 %v946
        %v1702 = vpop.f32.mrf.mxu0
        %v1703 = vadd.f32 %v1130, %v1702
        %v1704 = vpop.f32.mrf.mxu0
        %v1705 = vpop.f32.mrf.mxu0
        %v1706 = vadd.f32 %v1130, %v1705
        %v1707 = vpop.f32.mrf.mxu0
        %1708 = vmatprep.mubr.bf16.mxu0 %v954
        %1709 = vmatmul.mubr.bf16.gmra.mxu0 %v953
        %v1710 = vpop.f32.mrf.mxu0
        %v1711 = vadd.f32 %v1130, %v1710
        %v1712 = vpop.f32.mrf.mxu0
        %v1713 = vpop.f32.mrf.mxu0
        %v1714 = vadd.f32 %v1130, %v1713
        %v1715 = vpop.f32.mrf.mxu0
        %1716 = vmatprep.mubr.bf16.mxu0 %v961
        %1717 = vmatmul.mubr.bf16.gmra.mxu0 %v960
        %v1718 = vpop.f32.mrf.mxu0
        %v1719 = vadd.f32 %v1130, %v1718
        %v1720 = vpop.f32.mrf.mxu0
        %v1721 = vpop.f32.mrf.mxu0
        %v1722 = vadd.f32 %v1130, %v1721
        %v1723 = vpop.f32.mrf.mxu0
        %1724 = vmatprep.mubr.bf16.mxu0 %v968
        %1725 = vmatmul.mubr.bf16.gmra.mxu0 %v967
        %v1726 = vpop.f32.mrf.mxu0
        %v1727 = vadd.f32 %v1130, %v1726
        %v1728 = vpop.f32.mrf.mxu0
        %v1729 = vpop.f32.mrf.mxu0
        %v1730 = vadd.f32 %v1130, %v1729
        %v1731 = vpop.f32.mrf.mxu0
        %1732 = vmatprep.mubr.bf16.mxu0 %v975
        %1733 = vmatmul.mubr.bf16.gmra.mxu0 %v974
        %v1734 = vpop.f32.mrf.mxu0
        %v1735 = vadd.f32 %v1130, %v1734
        %v1736 = vpop.f32.mrf.mxu0
        %v1737 = vpop.f32.mrf.mxu0
        %v1738 = vadd.f32 %v1130, %v1737
        %v1739 = vpop.f32.mrf.mxu0
        %1740 = vdwg.mxu0
        %1741 = vmatprep.subr.bf16.mxu0 0
        %1742 = vmatpush1.bf16.msra.mxu0 %v1443
        %1743 = vmatprep.subr.bf16.mxu0 0
        %1744 = vmatpush1.bf16.msra.mxu0 %v1442
        %1745 = vmatprep.subr.bf16.mxu0 0
        %1746 = vmatpush1.bf16.msra.mxu0 %v1441
        %1747 = vmatprep.subr.bf16.mxu0 0
        %1748 = vmatpush1.bf16.msra.mxu0 %v1440
        %1749 = vmatprep.subr.bf16.mxu0 0
        %1750 = vmatpush1.bf16.msra.mxu0 %v1439
        %1751 = vmatprep.subr.bf16.mxu0 0
        %1752 = vmatpush1.bf16.msra.mxu0 %v1438
        %1753 = vmatprep.subr.bf16.mxu0 0
        %1754 = vmatpush1.bf16.msra.mxu0 %v1437
        %1755 = vmatprep.subr.bf16.mxu0 0
        %1756 = vmatpush1.bf16.msra.mxu0 %v1436
        %1757 = vmatprep.subr.bf16.mxu0 0
        %1758 = vmatpush2.bf16.msra.mxu0 %v1451
        %1759 = vmatprep.subr.bf16.mxu0 0
        %1760 = vmatpush2.bf16.msra.mxu0 %v1450
        %1761 = vmatprep.subr.bf16.mxu0 0
        %1762 = vmatpush2.bf16.msra.mxu0 %v1449
        %1763 = vmatprep.subr.bf16.mxu0 0
        %1764 = vmatpush2.bf16.msra.mxu0 %v1448
        %1765 = vmatprep.subr.bf16.mxu0 0
        %1766 = vmatpush2.bf16.msra.mxu0 %v1447
        %1767 = vmatprep.subr.bf16.mxu0 0
        %1768 = vmatpush2.bf16.msra.mxu0 %v1446
        %1769 = vmatprep.subr.bf16.mxu0 0
        %1770 = vmatpush2.bf16.msra.mxu0 %v1445
        %1771 = vmatprep.subr.bf16.mxu0 0
        %1772 = vmatpush2.bf16.msra.mxu0 %v1444
        %1773 = vmatprep.mubr.bf16.mxu0 %v856
        %1774 = vmatmul.mubr.bf16.gmra.mxu0 %v855
        %v1775 = vpop.f32.mrf.mxu0
        %v1776 = vadd.f32 %v1599, %v1775
        %v1777 = vpop.f32.mrf.mxu0
        %v1778 = vpop.f32.mrf.mxu0
        %v1779 = vadd.f32 %v1602, %v1778
        %v1780 = vpop.f32.mrf.mxu0
        %1781 = vmatprep.mubr.bf16.mxu0 %v864
        %1782 = vmatmul.mubr.bf16.gmra.mxu0 %v856
        %v1783 = vpop.f32.mrf.mxu0
        %v1784 = vadd.f32 %v1607, %v1783
        %v1785 = vpop.f32.mrf.mxu0
        %v1786 = vpop.f32.mrf.mxu0
        %v1787 = vadd.f32 %v1610, %v1786
        %v1788 = vpop.f32.mrf.mxu0
        %1789 = vmatprep.mubr.bf16.mxu0 %v871
        %1790 = vmatmul.mubr.bf16.gmra.mxu0 %v864
        %v1791 = vpop.f32.mrf.mxu0
        %v1792 = vadd.f32 %v1615, %v1791
        %v1793 = vpop.f32.mrf.mxu0
        %v1794 = vpop.f32.mrf.mxu0
        %v1795 = vadd.f32 %v1618, %v1794
        %v1796 = vpop.f32.mrf.mxu0
        %1797 = vmatprep.mubr.bf16.mxu0 %v878
        %1798 = vmatmul.mubr.bf16.gmra.mxu0 %v871
        %v1799 = vpop.f32.mrf.mxu0
        %v1800 = vadd.f32 %v1623, %v1799
        %v1801 = vpop.f32.mrf.mxu0
        %v1802 = vpop.f32.mrf.mxu0
        %v1803 = vadd.f32 %v1626, %v1802
        %v1804 = vpop.f32.mrf.mxu0
        %1805 = vmatprep.mubr.bf16.mxu0 %v885
        %1806 = vmatmul.mubr.bf16.gmra.mxu0 %v878
        %v1807 = vpop.f32.mrf.mxu0
        %v1808 = vadd.f32 %v1631, %v1807
        %v1809 = vpop.f32.mrf.mxu0
        %v1810 = vpop.f32.mrf.mxu0
        %v1811 = vadd.f32 %v1634, %v1810
        %v1812 = vpop.f32.mrf.mxu0
        %1813 = vmatprep.mubr.bf16.mxu0 %v892
        %1814 = vmatmul.mubr.bf16.gmra.mxu0 %v885
        %v1815 = vpop.f32.mrf.mxu0
        %v1816 = vadd.f32 %v1639, %v1815
        %v1817 = vpop.f32.mrf.mxu0
        %v1818 = vpop.f32.mrf.mxu0
        %v1819 = vadd.f32 %v1642, %v1818
        %v1820 = vpop.f32.mrf.mxu0
        %1821 = vmatprep.mubr.bf16.mxu0 %v899
        %1822 = vmatmul.mubr.bf16.gmra.mxu0 %v892
        %v1823 = vpop.f32.mrf.mxu0
        %v1824 = vadd.f32 %v1647, %v1823
        %v1825 = vpop.f32.mrf.mxu0
        %v1826 = vpop.f32.mrf.mxu0
        %v1827 = vadd.f32 %v1650, %v1826
        %v1828 = vpop.f32.mrf.mxu0
        %1829 = vmatprep.mubr.bf16.mxu0 %v906
        %1830 = vmatmul.mubr.bf16.gmra.mxu0 %v899
        %v1831 = vpop.f32.mrf.mxu0
        %v1832 = vadd.f32 %v1655, %v1831
        %v1833 = vpop.f32.mrf.mxu0
        %v1834 = vpop.f32.mrf.mxu0
        %v1835 = vadd.f32 %v1658, %v1834
        %v1836 = vpop.f32.mrf.mxu0
        %1837 = vmatprep.mubr.bf16.mxu0 %v913
        %1838 = vmatmul.mubr.bf16.gmra.mxu0 %v906
        %v1839 = vpop.f32.mrf.mxu0
        %v1840 = vadd.f32 %v1663, %v1839
        %v1841 = vpop.f32.mrf.mxu0
        %v1842 = vpop.f32.mrf.mxu0
        %v1843 = vadd.f32 %v1666, %v1842
        %v1844 = vpop.f32.mrf.mxu0
        %1845 = vmatprep.mubr.bf16.mxu0 %v920
        %1846 = vmatmul.mubr.bf16.gmra.mxu0 %v913
        %v1847 = vpop.f32.mrf.mxu0
        %v1848 = vadd.f32 %v1671, %v1847
        %v1849 = vpop.f32.mrf.mxu0
        %v1850 = vpop.f32.mrf.mxu0
        %v1851 = vadd.f32 %v1674, %v1850
        %v1852 = vpop.f32.mrf.mxu0
        %1853 = vmatprep.mubr.bf16.mxu0 %v927
        %1854 = vmatmul.mubr.bf16.gmra.mxu0 %v920
        %v1855 = vpop.f32.mrf.mxu0
        %v1856 = vadd.f32 %v1679, %v1855
        %v1857 = vpop.f32.mrf.mxu0
        %v1858 = vpop.f32.mrf.mxu0
        %v1859 = vadd.f32 %v1682, %v1858
        %v1860 = vpop.f32.mrf.mxu0
        %1861 = vmatprep.mubr.bf16.mxu0 %v934
        %1862 = vmatmul.mubr.bf16.gmra.mxu0 %v927
        %v1863 = vpop.f32.mrf.mxu0
        %v1864 = vadd.f32 %v1687, %v1863
        %v1865 = vpop.f32.mrf.mxu0
        %v1866 = vpop.f32.mrf.mxu0
        %v1867 = vadd.f32 %v1690, %v1866
        %v1868 = vpop.f32.mrf.mxu0
        %1869 = vmatprep.mubr.bf16.mxu0 %v941
        %1870 = vmatmul.mubr.bf16.gmra.mxu0 %v934
        %v1871 = vpop.f32.mrf.mxu0
        %v1872 = vadd.f32 %v1695, %v1871
        %v1873 = vpop.f32.mrf.mxu0
        %v1874 = vpop.f32.mrf.mxu0
        %v1875 = vadd.f32 %v1698, %v1874
        %v1876 = vpop.f32.mrf.mxu0
        %1877 = vmatprep.mubr.bf16.mxu0 %v948
        %1878 = vmatmul.mubr.bf16.gmra.mxu0 %v941
        %v1879 = vpop.f32.mrf.mxu0
        %v1880 = vadd.f32 %v1703, %v1879
        %v1881 = vpop.f32.mrf.mxu0
        %v1882 = vpop.f32.mrf.mxu0
        %v1883 = vadd.f32 %v1706, %v1882
        %v1884 = vpop.f32.mrf.mxu0
        %1885 = vmatprep.mubr.bf16.mxu0 %v955
        %1886 = vmatmul.mubr.bf16.gmra.mxu0 %v948
        %v1887 = vpop.f32.mrf.mxu0
        %v1888 = vadd.f32 %v1711, %v1887
        %v1889 = vpop.f32.mrf.mxu0
        %v1890 = vpop.f32.mrf.mxu0
        %v1891 = vadd.f32 %v1714, %v1890
        %v1892 = vpop.f32.mrf.mxu0
        %1893 = vmatprep.mubr.bf16.mxu0 %v962
        %1894 = vmatmul.mubr.bf16.gmra.mxu0 %v955
        %v1895 = vpop.f32.mrf.mxu0
        %v1896 = vadd.f32 %v1719, %v1895
        %v1897 = vpop.f32.mrf.mxu0
        %v1898 = vpop.f32.mrf.mxu0
        %v1899 = vadd.f32 %v1722, %v1898
        %v1900 = vpop.f32.mrf.mxu0
        %1901 = vmatprep.mubr.bf16.mxu0 %v969
        %1902 = vmatmul.mubr.bf16.gmra.mxu0 %v962
        %v1903 = vpop.f32.mrf.mxu0
        %v1904 = vadd.f32 %v1727, %v1903
        %v1905 = vpop.f32.mrf.mxu0
        %v1906 = vpop.f32.mrf.mxu0
        %v1907 = vadd.f32 %v1730, %v1906
        %v1908 = vpop.f32.mrf.mxu0
        %1909 = vmatprep.mubr.bf16.mxu0 %v976
        %1910 = vmatmul.mubr.bf16.gmra.mxu0 %v969
        %v1911 = vpop.f32.mrf.mxu0
        %v1912 = vadd.f32 %v1735, %v1911
        %v1913 = vpop.f32.mrf.mxu0
        %v1914 = vpop.f32.mrf.mxu0
        %v1915 = vadd.f32 %v1738, %v1914
        %v1916 = vpop.f32.mrf.mxu0
        %1917 = vdwg.mxu0
        %1918 = vmatprep.subr.bf16.mxu0 0
        %1919 = vmatpush1.bf16.msra.mxu0 %v1459
        %1920 = vmatprep.subr.bf16.mxu0 0
        %1921 = vmatpush1.bf16.msra.mxu0 %v1458
        %1922 = vmatprep.subr.bf16.mxu0 0
        %1923 = vmatpush1.bf16.msra.mxu0 %v1457
        %1924 = vmatprep.subr.bf16.mxu0 0
        %1925 = vmatpush1.bf16.msra.mxu0 %v1456
        %1926 = vmatprep.subr.bf16.mxu0 0
        %1927 = vmatpush1.bf16.msra.mxu0 %v1455
        %1928 = vmatprep.subr.bf16.mxu0 0
        %1929 = vmatpush1.bf16.msra.mxu0 %v1454
        %1930 = vmatprep.subr.bf16.mxu0 0
        %1931 = vmatpush1.bf16.msra.mxu0 %v1453
        %1932 = vmatprep.subr.bf16.mxu0 0
        %1933 = vmatpush1.bf16.msra.mxu0 %v1452
        %1934 = vmatprep.subr.bf16.mxu0 0
        %1935 = vmatpush2.bf16.msra.mxu0 %v1467
        %1936 = vmatprep.subr.bf16.mxu0 0
        %1937 = vmatpush2.bf16.msra.mxu0 %v1466
        %1938 = vmatprep.subr.bf16.mxu0 0
        %1939 = vmatpush2.bf16.msra.mxu0 %v1465
        %1940 = vmatprep.subr.bf16.mxu0 0
        %1941 = vmatpush2.bf16.msra.mxu0 %v1464
        %1942 = vmatprep.subr.bf16.mxu0 0
        %1943 = vmatpush2.bf16.msra.mxu0 %v1463
        %1944 = vmatprep.subr.bf16.mxu0 0
        %1945 = vmatpush2.bf16.msra.mxu0 %v1462
        %1946 = vmatprep.subr.bf16.mxu0 0
        %1947 = vmatpush2.bf16.msra.mxu0 %v1461
        %1948 = vmatprep.subr.bf16.mxu0 0
        %1949 = vmatpush2.bf16.msra.mxu0 %v1460
        %1950 = vmatprep.mubr.bf16.mxu0 %v858
        %1951 = vmatmul.mubr.bf16.gmra.mxu0 %v857
        %v1952 = vpop.f32.mrf.mxu0
        %v1953 = vadd.f32 %v1776, %v1952
        %v1954 = vpop.f32.mrf.mxu0
        %v1955 = vpop.f32.mrf.mxu0
        %v1956 = vadd.f32 %v1779, %v1955
        %v1957 = vpop.f32.mrf.mxu0
        %1958 = vmatprep.mubr.bf16.mxu0 %v859
        %1959 = vmatmul.mubr.bf16.gmra.mxu0 %v865
        %v1960 = vpop.f32.mrf.mxu0
        %v1961 = vadd.f32 %v1784, %v1960
        %v1962 = vpop.f32.mrf.mxu0
        %v1963 = vpop.f32.mrf.mxu0
        %v1964 = vadd.f32 %v1787, %v1963
        %v1965 = vpop.f32.mrf.mxu0
        %1966 = vmatprep.mubr.bf16.mxu0 %v866
        %1967 = vmatmul.mubr.bf16.gmra.mxu0 %v872
        %v1968 = vpop.f32.mrf.mxu0
        %v1969 = vadd.f32 %v1792, %v1968
        %v1970 = vpop.f32.mrf.mxu0
        %v1971 = vpop.f32.mrf.mxu0
        %v1972 = vadd.f32 %v1795, %v1971
        %v1973 = vpop.f32.mrf.mxu0
        %1974 = vmatprep.mubr.bf16.mxu0 %v873
        %1975 = vmatmul.mubr.bf16.gmra.mxu0 %v879
        %v1976 = vpop.f32.mrf.mxu0
        %v1977 = vadd.f32 %v1800, %v1976
        %v1978 = vpop.f32.mrf.mxu0
        %v1979 = vpop.f32.mrf.mxu0
        %v1980 = vadd.f32 %v1803, %v1979
        %v1981 = vpop.f32.mrf.mxu0
        %1982 = vmatprep.mubr.bf16.mxu0 %v880
        %1983 = vmatmul.mubr.bf16.gmra.mxu0 %v886
        %v1984 = vpop.f32.mrf.mxu0
        %v1985 = vadd.f32 %v1808, %v1984
        %v1986 = vpop.f32.mrf.mxu0
        %v1987 = vpop.f32.mrf.mxu0
        %v1988 = vadd.f32 %v1811, %v1987
        %v1989 = vpop.f32.mrf.mxu0
        %1990 = vmatprep.mubr.bf16.mxu0 %v887
        %1991 = vmatmul.mubr.bf16.gmra.mxu0 %v893
        %v1992 = vpop.f32.mrf.mxu0
        %v1993 = vadd.f32 %v1816, %v1992
        %v1994 = vpop.f32.mrf.mxu0
        %v1995 = vpop.f32.mrf.mxu0
        %v1996 = vadd.f32 %v1819, %v1995
        %v1997 = vpop.f32.mrf.mxu0
        %1998 = vmatprep.mubr.bf16.mxu0 %v894
        %1999 = vmatmul.mubr.bf16.gmra.mxu0 %v900
        %v2000 = vpop.f32.mrf.mxu0
        %v2001 = vadd.f32 %v1824, %v2000
        %v2002 = vpop.f32.mrf.mxu0
        %v2003 = vpop.f32.mrf.mxu0
        %v2004 = vadd.f32 %v1827, %v2003
        %v2005 = vpop.f32.mrf.mxu0
        %2006 = vmatprep.mubr.bf16.mxu0 %v901
        %2007 = vmatmul.mubr.bf16.gmra.mxu0 %v907
        %v2008 = vpop.f32.mrf.mxu0
        %v2009 = vadd.f32 %v1832, %v2008
        %v2010 = vpop.f32.mrf.mxu0
        %v2011 = vpop.f32.mrf.mxu0
        %v2012 = vadd.f32 %v1835, %v2011
        %v2013 = vpop.f32.mrf.mxu0
        %2014 = vmatprep.mubr.bf16.mxu0 %v908
        %2015 = vmatmul.mubr.bf16.gmra.mxu0 %v914
        %v2016 = vpop.f32.mrf.mxu0
        %v2017 = vadd.f32 %v1840, %v2016
        %v2018 = vpop.f32.mrf.mxu0
        %v2019 = vpop.f32.mrf.mxu0
        %v2020 = vadd.f32 %v1843, %v2019
        %v2021 = vpop.f32.mrf.mxu0
        %2022 = vmatprep.mubr.bf16.mxu0 %v915
        %2023 = vmatmul.mubr.bf16.gmra.mxu0 %v921
        %v2024 = vpop.f32.mrf.mxu0
        %v2025 = vadd.f32 %v1848, %v2024
        %v2026 = vpop.f32.mrf.mxu0
        %v2027 = vpop.f32.mrf.mxu0
        %v2028 = vadd.f32 %v1851, %v2027
        %v2029 = vpop.f32.mrf.mxu0
        %2030 = vmatprep.mubr.bf16.mxu0 %v922
        %2031 = vmatmul.mubr.bf16.gmra.mxu0 %v928
        %v2032 = vpop.f32.mrf.mxu0
        %v2033 = vadd.f32 %v1856, %v2032
        %v2034 = vpop.f32.mrf.mxu0
        %v2035 = vpop.f32.mrf.mxu0
        %v2036 = vadd.f32 %v1859, %v2035
        %v2037 = vpop.f32.mrf.mxu0
        %2038 = vmatprep.mubr.bf16.mxu0 %v929
        %2039 = vmatmul.mubr.bf16.gmra.mxu0 %v935
        %v2040 = vpop.f32.mrf.mxu0
        %v2041 = vadd.f32 %v1864, %v2040
        %v2042 = vpop.f32.mrf.mxu0
        %v2043 = vpop.f32.mrf.mxu0
        %v2044 = vadd.f32 %v1867, %v2043
        %v2045 = vpop.f32.mrf.mxu0
        %2046 = vmatprep.mubr.bf16.mxu0 %v936
        %2047 = vmatmul.mubr.bf16.gmra.mxu0 %v942
        %v2048 = vpop.f32.mrf.mxu0
        %v2049 = vadd.f32 %v1872, %v2048
        %v2050 = vpop.f32.mrf.mxu0
        %v2051 = vpop.f32.mrf.mxu0
        %v2052 = vadd.f32 %v1875, %v2051
        %v2053 = vpop.f32.mrf.mxu0
        %2054 = vmatprep.mubr.bf16.mxu0 %v943
        %2055 = vmatmul.mubr.bf16.gmra.mxu0 %v949
        %v2056 = vpop.f32.mrf.mxu0
        %v2057 = vadd.f32 %v1880, %v2056
        %v2058 = vpop.f32.mrf.mxu0
        %v2059 = vpop.f32.mrf.mxu0
        %v2060 = vadd.f32 %v1883, %v2059
        %v2061 = vpop.f32.mrf.mxu0
        %2062 = vmatprep.mubr.bf16.mxu0 %v950
        %2063 = vmatmul.mubr.bf16.gmra.mxu0 %v956
        %v2064 = vpop.f32.mrf.mxu0
        %v2065 = vadd.f32 %v1888, %v2064
        %v2066 = vpop.f32.mrf.mxu0
        %v2067 = vpop.f32.mrf.mxu0
        %v2068 = vadd.f32 %v1891, %v2067
        %v2069 = vpop.f32.mrf.mxu0
        %2070 = vmatprep.mubr.bf16.mxu0 %v957
        %2071 = vmatmul.mubr.bf16.gmra.mxu0 %v963
        %v2072 = vpop.f32.mrf.mxu0
        %v2073 = vadd.f32 %v1896, %v2072
        %v2074 = vpop.f32.mrf.mxu0
        %v2075 = vpop.f32.mrf.mxu0
        %v2076 = vadd.f32 %v1899, %v2075
        %v2077 = vpop.f32.mrf.mxu0
        %2078 = vmatprep.mubr.bf16.mxu0 %v964
        %2079 = vmatmul.mubr.bf16.gmra.mxu0 %v970
        %v2080 = vpop.f32.mrf.mxu0
        %v2081 = vadd.f32 %v1904, %v2080
        %v2082 = vpop.f32.mrf.mxu0
        %v2083 = vpop.f32.mrf.mxu0
        %v2084 = vadd.f32 %v1907, %v2083
        %v2085 = vpop.f32.mrf.mxu0
        %2086 = vmatprep.mubr.bf16.mxu0 %v971
        %2087 = vmatmul.mubr.bf16.gmra.mxu0 %v977
        %v2088 = vpop.f32.mrf.mxu0
        %v2089 = vadd.f32 %v1912, %v2088
        %v2090 = vpop.f32.mrf.mxu0
        %v2091 = vpop.f32.mrf.mxu0
        %v2092 = vadd.f32 %v1915, %v2091
        %v2093 = vpop.f32.mrf.mxu0
        %2094 = vdwg.mxu0
        %2095 = vmatprep.subr.bf16.mxu0 0
        %2096 = vmatpush1.bf16.msra.mxu0 %v1475
        %2097 = vmatprep.subr.bf16.mxu0 0
        %2098 = vmatpush1.bf16.msra.mxu0 %v1474
        %2099 = vmatprep.subr.bf16.mxu0 0
        %2100 = vmatpush1.bf16.msra.mxu0 %v1473
        %2101 = vmatprep.subr.bf16.mxu0 0
        %2102 = vmatpush1.bf16.msra.mxu0 %v1472
        %2103 = vmatprep.subr.bf16.mxu0 0
        %2104 = vmatpush1.bf16.msra.mxu0 %v1471
        %2105 = vmatprep.subr.bf16.mxu0 0
        %2106 = vmatpush1.bf16.msra.mxu0 %v1470
        %2107 = vmatprep.subr.bf16.mxu0 0
        %2108 = vmatpush1.bf16.msra.mxu0 %v1469
        %2109 = vmatprep.subr.bf16.mxu0 0
        %2110 = vmatpush1.bf16.msra.mxu0 %v1468
        %2111 = vmatprep.subr.bf16.mxu0 0
        %2112 = vmatpush2.bf16.msra.mxu0 %v1483
        %2113 = vmatprep.subr.bf16.mxu0 0
        %2114 = vmatpush2.bf16.msra.mxu0 %v1482
        %2115 = vmatprep.subr.bf16.mxu0 0
        %2116 = vmatpush2.bf16.msra.mxu0 %v1481
        %2117 = vmatprep.subr.bf16.mxu0 0
        %2118 = vmatpush2.bf16.msra.mxu0 %v1480
        %2119 = vmatprep.subr.bf16.mxu0 0
        %2120 = vmatpush2.bf16.msra.mxu0 %v1479
        %2121 = vmatprep.subr.bf16.mxu0 0
        %2122 = vmatpush2.bf16.msra.mxu0 %v1478
        %2123 = vmatprep.subr.bf16.mxu0 0
        %2124 = vmatpush2.bf16.msra.mxu0 %v1477
        %2125 = vmatprep.subr.bf16.mxu0 0
        %2126 = vmatpush2.bf16.msra.mxu0 %v1476
        %2127 = vmatprep.mubr.bf16.mxu0 %v860
        %2128 = vmatmul.mubr.bf16.gmra.mxu0 %v859
        %v2129 = vpop.f32.mrf.mxu0
        %v2130 = vadd.f32 %v1953, %v2129
        %v2131 = vpop.f32.mrf.mxu0
        %v2132 = vpop.f32.mrf.mxu0
        %v2133 = vadd.f32 %v1956, %v2132
        %v2134 = vpop.f32.mrf.mxu0
        %2135 = vmatprep.mubr.bf16.mxu0 %v867
        %2136 = vmatmul.mubr.bf16.gmra.mxu0 %v866
        %v2137 = vpop.f32.mrf.mxu0
        %v2138 = vadd.f32 %v1961, %v2137
        %v2139 = vpop.f32.mrf.mxu0
        %v2140 = vpop.f32.mrf.mxu0
        %v2141 = vadd.f32 %v1964, %v2140
        %v2142 = vpop.f32.mrf.mxu0
        %2143 = vmatprep.mubr.bf16.mxu0 %v874
        %2144 = vmatmul.mubr.bf16.gmra.mxu0 %v873
        %v2145 = vpop.f32.mrf.mxu0
        %v2146 = vadd.f32 %v1969, %v2145
        %v2147 = vpop.f32.mrf.mxu0
        %v2148 = vpop.f32.mrf.mxu0
        %v2149 = vadd.f32 %v1972, %v2148
        %v2150 = vpop.f32.mrf.mxu0
        %2151 = vmatprep.mubr.bf16.mxu0 %v881
        %2152 = vmatmul.mubr.bf16.gmra.mxu0 %v880
        %v2153 = vpop.f32.mrf.mxu0
        %v2154 = vadd.f32 %v1977, %v2153
        %v2155 = vpop.f32.mrf.mxu0
        %v2156 = vpop.f32.mrf.mxu0
        %v2157 = vadd.f32 %v1980, %v2156
        %v2158 = vpop.f32.mrf.mxu0
        %2159 = vmatprep.mubr.bf16.mxu0 %v888
        %2160 = vmatmul.mubr.bf16.gmra.mxu0 %v887
        %v2161 = vpop.f32.mrf.mxu0
        %v2162 = vadd.f32 %v1985, %v2161
        %v2163 = vpop.f32.mrf.mxu0
        %v2164 = vpop.f32.mrf.mxu0
        %v2165 = vadd.f32 %v1988, %v2164
        %v2166 = vpop.f32.mrf.mxu0
        %2167 = vmatprep.mubr.bf16.mxu0 %v895
        %2168 = vmatmul.mubr.bf16.gmra.mxu0 %v894
        %v2169 = vpop.f32.mrf.mxu0
        %v2170 = vadd.f32 %v1993, %v2169
        %v2171 = vpop.f32.mrf.mxu0
        %v2172 = vpop.f32.mrf.mxu0
        %v2173 = vadd.f32 %v1996, %v2172
        %v2174 = vpop.f32.mrf.mxu0
        %2175 = vmatprep.mubr.bf16.mxu0 %v902
        %2176 = vmatmul.mubr.bf16.gmra.mxu0 %v901
        %v2177 = vpop.f32.mrf.mxu0
        %v2178 = vadd.f32 %v2001, %v2177
        %v2179 = vpop.f32.mrf.mxu0
        %v2180 = vpop.f32.mrf.mxu0
        %v2181 = vadd.f32 %v2004, %v2180
        %v2182 = vpop.f32.mrf.mxu0
        %2183 = vmatprep.mubr.bf16.mxu0 %v909
        %2184 = vmatmul.mubr.bf16.gmra.mxu0 %v908
        %v2185 = vpop.f32.mrf.mxu0
        %v2186 = vadd.f32 %v2009, %v2185
        %v2187 = vpop.f32.mrf.mxu0
        %v2188 = vpop.f32.mrf.mxu0
        %v2189 = vadd.f32 %v2012, %v2188
        %v2190 = vpop.f32.mrf.mxu0
        %2191 = vmatprep.mubr.bf16.mxu0 %v916
        %2192 = vmatmul.mubr.bf16.gmra.mxu0 %v915
        %v2193 = vpop.f32.mrf.mxu0
        %v2194 = vadd.f32 %v2017, %v2193
        %v2195 = vpop.f32.mrf.mxu0
        %v2196 = vpop.f32.mrf.mxu0
        %v2197 = vadd.f32 %v2020, %v2196
        %v2198 = vpop.f32.mrf.mxu0
        %2199 = vmatprep.mubr.bf16.mxu0 %v923
        %2200 = vmatmul.mubr.bf16.gmra.mxu0 %v922
        %v2201 = vpop.f32.mrf.mxu0
        %v2202 = vadd.f32 %v2025, %v2201
        %v2203 = vpop.f32.mrf.mxu0
        %v2204 = vpop.f32.mrf.mxu0
        %v2205 = vadd.f32 %v2028, %v2204
        %v2206 = vpop.f32.mrf.mxu0
        %2207 = vmatprep.mubr.bf16.mxu0 %v930
        %2208 = vmatmul.mubr.bf16.gmra.mxu0 %v929
        %v2209 = vpop.f32.mrf.mxu0
        %v2210 = vadd.f32 %v2033, %v2209
        %v2211 = vpop.f32.mrf.mxu0
        %v2212 = vpop.f32.mrf.mxu0
        %v2213 = vadd.f32 %v2036, %v2212
        %v2214 = vpop.f32.mrf.mxu0
        %2215 = vmatprep.mubr.bf16.mxu0 %v937
        %2216 = vmatmul.mubr.bf16.gmra.mxu0 %v936
        %v2217 = vpop.f32.mrf.mxu0
        %v2218 = vadd.f32 %v2041, %v2217
        %v2219 = vpop.f32.mrf.mxu0
        %v2220 = vpop.f32.mrf.mxu0
        %v2221 = vadd.f32 %v2044, %v2220
        %v2222 = vpop.f32.mrf.mxu0
        %2223 = vmatprep.mubr.bf16.mxu0 %v944
        %2224 = vmatmul.mubr.bf16.gmra.mxu0 %v943
        %v2225 = vpop.f32.mrf.mxu0
        %v2226 = vadd.f32 %v2049, %v2225
        %v2227 = vpop.f32.mrf.mxu0
        %v2228 = vpop.f32.mrf.mxu0
        %v2229 = vadd.f32 %v2052, %v2228
        %v2230 = vpop.f32.mrf.mxu0
        %2231 = vmatprep.mubr.bf16.mxu0 %v951
        %2232 = vmatmul.mubr.bf16.gmra.mxu0 %v950
        %v2233 = vpop.f32.mrf.mxu0
        %v2234 = vadd.f32 %v2057, %v2233
        %v2235 = vpop.f32.mrf.mxu0
        %v2236 = vpop.f32.mrf.mxu0
        %v2237 = vadd.f32 %v2060, %v2236
        %v2238 = vpop.f32.mrf.mxu0
        %2239 = vmatprep.mubr.bf16.mxu0 %v958
        %2240 = vmatmul.mubr.bf16.gmra.mxu0 %v957
        %v2241 = vpop.f32.mrf.mxu0
        %v2242 = vadd.f32 %v2065, %v2241
        %v2243 = vpop.f32.mrf.mxu0
        %v2244 = vpop.f32.mrf.mxu0
        %v2245 = vadd.f32 %v2068, %v2244
        %v2246 = vpop.f32.mrf.mxu0
        %2247 = vmatprep.mubr.bf16.mxu0 %v965
        %2248 = vmatmul.mubr.bf16.gmra.mxu0 %v964
        %v2249 = vpop.f32.mrf.mxu0
        %v2250 = vadd.f32 %v2073, %v2249
        %v2251 = vpop.f32.mrf.mxu0
        %v2252 = vpop.f32.mrf.mxu0
        %v2253 = vadd.f32 %v2076, %v2252
        %v2254 = vpop.f32.mrf.mxu0
        %2255 = vmatprep.mubr.bf16.mxu0 %v972
        %2256 = vmatmul.mubr.bf16.gmra.mxu0 %v971
        %v2257 = vpop.f32.mrf.mxu0
        %v2258 = vadd.f32 %v2081, %v2257
        %v2259 = vpop.f32.mrf.mxu0
        %v2260 = vpop.f32.mrf.mxu0
        %v2261 = vadd.f32 %v2084, %v2260
        %v2262 = vpop.f32.mrf.mxu0
        %2263 = vmatprep.mubr.bf16.mxu0 %v979
        %2264 = vmatmul.mubr.bf16.gmra.mxu0 %v978
        %v2265 = vpop.f32.mrf.mxu0
        %v2266 = vadd.f32 %v2089, %v2265
        %v2267 = vpop.f32.mrf.mxu0
        %v2268 = vpop.f32.mrf.mxu0
        %v2269 = vadd.f32 %v2092, %v2268
        %v2270 = vpop.f32.mrf.mxu0
        %2271 = vdwg.mxu0
        %2272 = vmatprep.subr.bf16.mxu0 0
        %2273 = vmatpush1.bf16.msra.mxu0 %v1491
        %2274 = vmatprep.subr.bf16.mxu0 0
        %2275 = vmatpush1.bf16.msra.mxu0 %v1490
        %2276 = vmatprep.subr.bf16.mxu0 0
        %2277 = vmatpush1.bf16.msra.mxu0 %v1489
        %2278 = vmatprep.subr.bf16.mxu0 0
        %2279 = vmatpush1.bf16.msra.mxu0 %v1488
        %2280 = vmatprep.subr.bf16.mxu0 0
        %2281 = vmatpush1.bf16.msra.mxu0 %v1487
        %2282 = vmatprep.subr.bf16.mxu0 0
        %2283 = vmatpush1.bf16.msra.mxu0 %v1486
        %2284 = vmatprep.subr.bf16.mxu0 0
        %2285 = vmatpush1.bf16.msra.mxu0 %v1485
        %2286 = vmatprep.subr.bf16.mxu0 0
        %2287 = vmatpush1.bf16.msra.mxu0 %v1484
        %2288 = vmatprep.subr.bf16.mxu0 0
        %2289 = vmatpush2.bf16.msra.mxu0 0
        %2290 = vmatprep.subr.bf16.mxu0 0
        %2291 = vmatpush2.bf16.msra.mxu0 0
        %2292 = vmatprep.subr.bf16.mxu0 0
        %2293 = vmatpush2.bf16.msra.mxu0 0
        %2294 = vmatprep.subr.bf16.mxu0 0
        %2295 = vmatpush2.bf16.msra.mxu0 0
        %2296 = vmatprep.subr.bf16.mxu0 0
        %2297 = vmatpush2.bf16.msra.mxu0 0
        %2298 = vmatprep.subr.bf16.mxu0 0
        %2299 = vmatpush2.bf16.msra.mxu0 0
        %2300 = vmatprep.subr.bf16.mxu0 0
        %2301 = vmatpush2.bf16.msra.mxu0 0
        %2302 = vmatprep.subr.bf16.mxu0 0
        %2303 = vmatpush2.bf16.msra.mxu0 0
        %2304 = vmatprep.mubr.bf16.mxu0 0
        %2305 = vmatmul.mubr.bf16.gmra.mxu0 %v861
        %v2306 = vpop.f32.mrf.mxu0
        %v2307 = vadd.f32 %v2130, %v2306
        %v2308 = vpop.f32.mrf.mxu0
        %v2309 = vpop.f32.mrf.mxu0
        %v2310 = vadd.f32 %v2133, %v2309
        %v2311 = vpop.f32.mrf.mxu0
        %2312 = vmatprep.mubr.bf16.mxu0 0
        %2313 = vmatmul.mubr.bf16.gmra.mxu0 %v868
        %v2314 = vpop.f32.mrf.mxu0
        %v2315 = vadd.f32 %v2138, %v2314
        %v2316 = vpop.f32.mrf.mxu0
        %v2317 = vpop.f32.mrf.mxu0
        %v2318 = vadd.f32 %v2141, %v2317
        %v2319 = vpop.f32.mrf.mxu0
        %2320 = vmatprep.mubr.bf16.mxu0 0
        %2321 = vmatmul.mubr.bf16.gmra.mxu0 %v875
        %v2322 = vpop.f32.mrf.mxu0
        %v2323 = vadd.f32 %v2146, %v2322
        %v2324 = vpop.f32.mrf.mxu0
        %v2325 = vpop.f32.mrf.mxu0
        %v2326 = vadd.f32 %v2149, %v2325
        %v2327 = vpop.f32.mrf.mxu0
        %2328 = vmatprep.mubr.bf16.mxu0 0
        %2329 = vmatmul.mubr.bf16.gmra.mxu0 %v882
        %v2330 = vpop.f32.mrf.mxu0
        %v2331 = vadd.f32 %v2154, %v2330
        %v2332 = vpop.f32.mrf.mxu0
        %v2333 = vpop.f32.mrf.mxu0
        %v2334 = vadd.f32 %v2157, %v2333
        %v2335 = vpop.f32.mrf.mxu0
        %2336 = vmatprep.mubr.bf16.mxu0 0
        %2337 = vmatmul.mubr.bf16.gmra.mxu0 %v889
        %v2338 = vpop.f32.mrf.mxu0
        %v2339 = vadd.f32 %v2162, %v2338
        %v2340 = vpop.f32.mrf.mxu0
        %v2341 = vpop.f32.mrf.mxu0
        %v2342 = vadd.f32 %v2165, %v2341
        %v2343 = vpop.f32.mrf.mxu0
        %2344 = vmatprep.mubr.bf16.mxu0 0
        %2345 = vmatmul.mubr.bf16.gmra.mxu0 %v896
        %v2346 = vpop.f32.mrf.mxu0
        %v2347 = vadd.f32 %v2170, %v2346
        %v2348 = vpop.f32.mrf.mxu0
        %v2349 = vpop.f32.mrf.mxu0
        %v2350 = vadd.f32 %v2173, %v2349
        %v2351 = vpop.f32.mrf.mxu0
        %2352 = vmatprep.mubr.bf16.mxu0 0
        %2353 = vmatmul.mubr.bf16.gmra.mxu0 %v903
        %v2354 = vpop.f32.mrf.mxu0
        %v2355 = vadd.f32 %v2178, %v2354
        %v2356 = vpop.f32.mrf.mxu0
        %v2357 = vpop.f32.mrf.mxu0
        %v2358 = vadd.f32 %v2181, %v2357
        %v2359 = vpop.f32.mrf.mxu0
        %2360 = vmatprep.mubr.bf16.mxu0 0
        %2361 = vmatmul.mubr.bf16.gmra.mxu0 %v910
        %v2362 = vpop.f32.mrf.mxu0
        %v2363 = vadd.f32 %v2186, %v2362
        %v2364 = vpop.f32.mrf.mxu0
        %v2365 = vpop.f32.mrf.mxu0
        %v2366 = vadd.f32 %v2189, %v2365
        %v2367 = vpop.f32.mrf.mxu0
        %2368 = vmatprep.mubr.bf16.mxu0 0
        %2369 = vmatmul.mubr.bf16.gmra.mxu0 %v917
        %v2370 = vpop.f32.mrf.mxu0
        %v2371 = vadd.f32 %v2194, %v2370
        %v2372 = vpop.f32.mrf.mxu0
        %v2373 = vpop.f32.mrf.mxu0
        %v2374 = vadd.f32 %v2197, %v2373
        %v2375 = vpop.f32.mrf.mxu0
        %2376 = vmatprep.mubr.bf16.mxu0 0
        %2377 = vmatmul.mubr.bf16.gmra.mxu0 %v924
        %v2378 = vpop.f32.mrf.mxu0
        %v2379 = vadd.f32 %v2202, %v2378
        %v2380 = vpop.f32.mrf.mxu0
        %v2381 = vpop.f32.mrf.mxu0
        %v2382 = vadd.f32 %v2205, %v2381
        %v2383 = vpop.f32.mrf.mxu0
        %2384 = vmatprep.mubr.bf16.mxu0 0
        %2385 = vmatmul.mubr.bf16.gmra.mxu0 %v931
        %v2386 = vpop.f32.mrf.mxu0
        %v2387 = vadd.f32 %v2210, %v2386
        %v2388 = vpop.f32.mrf.mxu0
        %v2389 = vpop.f32.mrf.mxu0
        %v2390 = vadd.f32 %v2213, %v2389
        %v2391 = vpop.f32.mrf.mxu0
        %2392 = vmatprep.mubr.bf16.mxu0 0
        %2393 = vmatmul.mubr.bf16.gmra.mxu0 %v938
        %v2394 = vpop.f32.mrf.mxu0
        %v2395 = vadd.f32 %v2218, %v2394
        %v2396 = vpop.f32.mrf.mxu0
        %v2397 = vpop.f32.mrf.mxu0
        %v2398 = vadd.f32 %v2221, %v2397
        %v2399 = vpop.f32.mrf.mxu0
        %2400 = vmatprep.mubr.bf16.mxu0 0
        %2401 = vmatmul.mubr.bf16.gmra.mxu0 %v945
        %v2402 = vpop.f32.mrf.mxu0
        %v2403 = vadd.f32 %v2226, %v2402
        %v2404 = vpop.f32.mrf.mxu0
        %v2405 = vpop.f32.mrf.mxu0
        %v2406 = vadd.f32 %v2229, %v2405
        %v2407 = vpop.f32.mrf.mxu0
        %2408 = vmatprep.mubr.bf16.mxu0 0
        %2409 = vmatmul.mubr.bf16.gmra.mxu0 %v952
        %v2410 = vpop.f32.mrf.mxu0
        %v2411 = vadd.f32 %v2234, %v2410
        %v2412 = vpop.f32.mrf.mxu0
        %v2413 = vpop.f32.mrf.mxu0
        %v2414 = vadd.f32 %v2237, %v2413
        %v2415 = vpop.f32.mrf.mxu0
        %2416 = vmatprep.mubr.bf16.mxu0 0
        %2417 = vmatmul.mubr.bf16.gmra.mxu0 %v959
        %v2418 = vpop.f32.mrf.mxu0
        %v2419 = vadd.f32 %v2242, %v2418
        %v2420 = vpop.f32.mrf.mxu0
        %v2421 = vpop.f32.mrf.mxu0
        %v2422 = vadd.f32 %v2245, %v2421
        %v2423 = vpop.f32.mrf.mxu0
        %2424 = vmatprep.mubr.bf16.mxu0 0
        %2425 = vmatmul.mubr.bf16.gmra.mxu0 %v966
        %v2426 = vpop.f32.mrf.mxu0
        %v2427 = vadd.f32 %v2250, %v2426
        %v2428 = vpop.f32.mrf.mxu0
        %v2429 = vpop.f32.mrf.mxu0
        %v2430 = vadd.f32 %v2253, %v2429
        %v2431 = vpop.f32.mrf.mxu0
        %2432 = vmatprep.mubr.bf16.mxu0 0
        %2433 = vmatmul.mubr.bf16.gmra.mxu0 %v973
        %v2434 = vpop.f32.mrf.mxu0
        %v2435 = vadd.f32 %v2258, %v2434
        %v2436 = vpop.f32.mrf.mxu0
        %v2437 = vpop.f32.mrf.mxu0
        %v2438 = vadd.f32 %v2261, %v2437
        %v2439 = vpop.f32.mrf.mxu0
        %2440 = vmatprep.mubr.bf16.mxu0 0
        %2441 = vmatmul.mubr.bf16.gmra.mxu0 %v980
        %v2442 = vpop.f32.mrf.mxu0
        %v2443 = vadd.f32 %v2266, %v2442
        %v2444 = vpop.f32.mrf.mxu0
        %v2445 = vpop.f32.mrf.mxu0
        %v2446 = vadd.f32 %v2269, %v2445
        %v2447 = vpop.f32.mrf.mxu0
        %2448 = vdwg.mxu0
        %vm2449 = vcmp.gt.f32.partialorder %v2307, 0.0
        %vm2450 = vcmp.gt.f32.partialorder %v2310, 0.0
        %vm2451 = vcmp.gt.f32.partialorder %v2315, 0.0
        %vm2452 = vcmp.gt.f32.partialorder %v2318, 0.0
        %vm2453 = vcmp.gt.f32.partialorder %v2323, 0.0
        %vm2454 = vcmp.gt.f32.partialorder %v2326, 0.0
        %vm2455 = vcmp.gt.f32.partialorder %v2331, 0.0
        %vm2456 = vcmp.gt.f32.partialorder %v2334, 0.0
        %vm2457 = vcmp.gt.f32.partialorder %v2339, 0.0
        %vm2458 = vcmp.gt.f32.partialorder %v2342, 0.0
        %vm2459 = vcmp.gt.f32.partialorder %v2347, 0.0
        %vm2460 = vcmp.gt.f32.partialorder %v2350, 0.0
        %vm2461 = vcmp.gt.f32.partialorder %v2355, 0.0
        %vm2462 = vcmp.gt.f32.partialorder %v2358, 0.0
        %vm2463 = vcmp.gt.f32.partialorder %v2363, 0.0
        %vm2464 = vcmp.gt.f32.partialorder %v2366, 0.0
        %vm2465 = vcmp.gt.f32.partialorder %v2371, 0.0
        %vm2466 = vcmp.gt.f32.partialorder %v2374, 0.0
        %vm2467 = vcmp.gt.f32.partialorder %v2379, 0.0
        %vm2468 = vcmp.gt.f32.partialorder %v2382, 0.0
        %vm2469 = vcmp.gt.f32.partialorder %v2387, 0.0
        %vm2470 = vcmp.gt.f32.partialorder %v2390, 0.0
        %vm2471 = vcmp.gt.f32.partialorder %v2395, 0.0
        %vm2472 = vcmp.gt.f32.partialorder %v2398, 0.0
        %vm2473 = vcmp.gt.f32.partialorder %v2403, 0.0
        %vm2474 = vcmp.gt.f32.partialorder %v2406, 0.0
        %vm2475 = vcmp.gt.f32.partialorder %v2411, 0.0
        %vm2476 = vcmp.gt.f32.partialorder %v2414, 0.0
        %vm2477 = vcmp.gt.f32.partialorder %v2419, 0.0
        %vm2478 = vcmp.gt.f32.partialorder %v2422, 0.0
        %vm2479 = vcmp.gt.f32.partialorder %v2427, 0.0
        %vm2480 = vcmp.gt.f32.partialorder %v2430, 0.0
        %vm2481 = vcmp.gt.f32.partialorder %v2435, 0.0
        %vm2482 = vcmp.gt.f32.partialorder %v2438, 0.0
        %vm2483 = vcmp.gt.f32.partialorder %v2443, 0.0
        %vm2484 = vcmp.gt.f32.partialorder %v2446, 0.0
        %v2485 = vmul.f32 %v2307, 0.1
        %v2486 = vmul.f32 %v2310, 0.1
        %v2487 = vmul.f32 %v2315, 0.1
        %v2488 = vmul.f32 %v2318, 0.1
        %v2489 = vmul.f32 %v2323, 0.1
        %v2490 = vmul.f32 %v2326, 0.1
        %v2491 = vmul.f32 %v2331, 0.1
        %v2492 = vmul.f32 %v2334, 0.1
        %v2493 = vmul.f32 %v2339, 0.1
        %v2494 = vmul.f32 %v2342, 0.1
        %v2495 = vmul.f32 %v2347, 0.1
        %v2496 = vmul.f32 %v2350, 0.1
        %v2497 = vmul.f32 %v2355, 0.1
        %v2498 = vmul.f32 %v2358, 0.1
        %v2499 = vmul.f32 %v2363, 0.1
        %v2500 = vmul.f32 %v2366, 0.1
        %v2501 = vmul.f32 %v2371, 0.1
        %v2502 = vmul.f32 %v2374, 0.1
        %v2503 = vmul.f32 %v2379, 0.1
        %v2504 = vmul.f32 %v2382, 0.1
        %v2505 = vmul.f32 %v2387, 0.1
        %v2506 = vmul.f32 %v2390, 0.1
        %v2507 = vmul.f32 %v2395, 0.1
        %v2508 = vmul.f32 %v2398, 0.1
        %v2509 = vmul.f32 %v2403, 0.1
        %v2510 = vmul.f32 %v2406, 0.1
        %v2511 = vmul.f32 %v2411, 0.1
        %v2512 = vmul.f32 %v2414, 0.1
        %v2513 = vmul.f32 %v2419, 0.1
        %v2514 = vmul.f32 %v2422, 0.1
        %v2515 = vmul.f32 %v2427, 0.1
        %v2516 = vmul.f32 %v2430, 0.1
        %v2517 = vmul.f32 %v2435, 0.1
        %v2518 = vmul.f32 %v2438, 0.1
        %v2519 = vmul.f32 %v2443, 0.1
        %v2520 = vmul.f32 %v2446, 0.1
        %v2521 = vsel %vm2449, %v2307, %v2485
        %v2522 = vsel %vm2450, %v2310, %v2486
        %v2523 = vsel %vm2451, %v2315, %v2487
        %v2524 = vsel %vm2452, %v2318, %v2488
        %v2525 = vsel %vm2453, %v2323, %v2489
        %v2526 = vsel %vm2454, %v2326, %v2490
        %v2527 = vsel %vm2455, %v2331, %v2491
        %v2528 = vsel %vm2456, %v2334, %v2492
        %v2529 = vsel %vm2457, %v2339, %v2493
        %v2530 = vsel %vm2458, %v2342, %v2494
        %v2531 = vsel %vm2459, %v2347, %v2495
        %v2532 = vsel %vm2460, %v2350, %v2496
        %v2533 = vsel %vm2461, %v2355, %v2497
        %v2534 = vsel %vm2462, %v2358, %v2498
        %v2535 = vsel %vm2463, %v2363, %v2499
        %v2536 = vsel %vm2464, %v2366, %v2500
        %v2537 = vsel %vm2465, %v2371, %v2501
        %v2538 = vsel %vm2466, %v2374, %v2502
        %v2539 = vsel %vm2467, %v2379, %v2503
        %v2540 = vsel %vm2468, %v2382, %v2504
        %v2541 = vsel %vm2469, %v2387, %v2505
        %v2542 = vsel %vm2470, %v2390, %v2506
        %v2543 = vsel %vm2471, %v2395, %v2507
        %v2544 = vsel %vm2472, %v2398, %v2508
        %v2545 = vsel %vm2473, %v2403, %v2509
        %v2546 = vsel %vm2474, %v2406, %v2510
        %v2547 = vsel %vm2475, %v2411, %v2511
        %v2548 = vsel %vm2476, %v2414, %v2512
        %v2549 = vsel %vm2477, %v2419, %v2513
        %v2550 = vsel %vm2478, %v2422, %v2514
        %v2551 = vsel %vm2479, %v2427, %v2515
        %v2552 = vsel %vm2480, %v2430, %v2516
        %v2553 = vsel %vm2481, %v2435, %v2517
        %v2554 = vsel %vm2482, %v2438, %v2518
        %v2555 = vsel %vm2483, %v2443, %v2519
        %v2556 = vsel %vm2484, %v2446, %v2520
        %v2557 = vpack.c.bf16 %v2522, %v2521
        %v2558 = vpack.c.bf16 %v2524, %v2523
        %v2559 = vpack.c.bf16 %v2526, %v2525
        %v2560 = vpack.c.bf16 %v2528, %v2527
        %v2561 = vpack.c.bf16 %v2530, %v2529
        %v2562 = vpack.c.bf16 %v2532, %v2531
        %v2563 = vpack.c.bf16 %v2534, %v2533
        %v2564 = vpack.c.bf16 %v2536, %v2535
        %v2565 = vpack.c.bf16 %v2538, %v2537
        %v2566 = vpack.c.bf16 %v2540, %v2539
        %v2567 = vpack.c.bf16 %v2542, %v2541
        %v2568 = vpack.c.bf16 %v2544, %v2543
        %v2569 = vpack.c.bf16 %v2546, %v2545
        %v2570 = vpack.c.bf16 %v2548, %v2547
        %v2571 = vpack.c.bf16 %v2550, %v2549
        %v2572 = vpack.c.bf16 %v2552, %v2551
        %v2573 = vpack.c.bf16 %v2554, %v2553
        %v2574 = vpack.c.bf16 %v2556, %v2555
        %v2575 = vld [vmem:[%s4] sm:$0xf]
        %v2576 = vld [vmem:[%s4 + $0x4] sm:$0xf]
        %v2577 = vld [vmem:[%s4 + $0x8] sm:$0xf]
        %v2578 = vld [vmem:[%s4 + $0xc] sm:$0xf]
        %v2579 = vld [vmem:[%s4 + $0x10] sm:$0xf]
        %v2580 = vld [vmem:[%s4 + $0x14] sm:$0xf]
        %v2581 = vld [vmem:[%s4 + $0x18] sm:$0xf]
        %v2582 = vld [vmem:[%s4 + $0x1c] sm:$0xf]
        %v2583 = vld [vmem:[%s4 + $0x20] sm:$0xf]
        %v2584 = vld [vmem:[%s4 + $0x24] sm:$0xf]
        %v2585 = vld [vmem:[%s4 + $0x28] sm:$0xf]
        %v2586 = vld [vmem:[%s4 + $0x2c] sm:$0xf]
        %v2587 = vld [vmem:[%s4 + $0x30] sm:$0xf]
        %v2588 = vld [vmem:[%s4 + $0x34] sm:$0xf]
        %v2589 = vld [vmem:[%s4 + $0x38] sm:$0xf]
        %v2590 = vld [vmem:[%s4 + $0x3c] sm:$0xf]
        %v2591 = vld [vmem:[%s5] sm:$0x1]
        %v2593 = vlaneseq
        %v2594 = vshrl.u32 %v2593, 7
        %v2595 = vsub.s32 0, %v2594
        %v2596 = vrot.slane %v2591, %v2595
        %v2614 = vunpack.c.l.b16 %v2575
        %v2615 = vunpack.c.l.b16 %v2576
        %v2616 = vunpack.c.l.b16 %v2577
        %v2617 = vunpack.c.l.b16 %v2578
        %v2618 = vunpack.c.l.b16 %v2579
        %v2619 = vunpack.c.l.b16 %v2580
        %v2620 = vunpack.c.l.b16 %v2581
        %v2621 = vunpack.c.l.b16 %v2582
        %v2622 = vunpack.c.l.b16 %v2583
        %v2623 = vunpack.c.l.b16 %v2584
        %v2624 = vunpack.c.l.b16 %v2585
        %v2625 = vunpack.c.l.b16 %v2586
        %v2626 = vunpack.c.l.b16 %v2587
        %v2627 = vunpack.c.l.b16 %v2588
        %v2628 = vunpack.c.l.b16 %v2589
        %v2629 = vunpack.c.l.b16 %v2590
        %v2630 = vpack.c.b16 %v2615, %v2614
        %v2631 = vpack.c.b16 %v2617, %v2616
        %v2632 = vpack.c.b16 %v2619, %v2618
        %v2633 = vpack.c.b16 %v2621, %v2620
        %v2634 = vpack.c.b16 %v2623, %v2622
        %v2635 = vpack.c.b16 %v2625, %v2624
        %v2636 = vpack.c.b16 %v2627, %v2626
        %v2637 = vpack.c.b16 %v2629, %v2628
        %2646 = vmatprep.subr.bf16.mxu0 0
        %2647 = vmatpush1.bf16.msra.mxu0 %v2637
        %2648 = vmatprep.subr.bf16.mxu0 0
        %2649 = vmatpush1.bf16.msra.mxu0 %v2636
        %2650 = vmatprep.subr.bf16.mxu0 0
        %2651 = vmatpush1.bf16.msra.mxu0 %v2635
        %2652 = vmatprep.subr.bf16.mxu0 0
        %2653 = vmatpush1.bf16.msra.mxu0 %v2634
        %2654 = vmatprep.subr.bf16.mxu0 0
        %2655 = vmatpush1.bf16.msra.mxu0 %v2633
        %2656 = vmatprep.subr.bf16.mxu0 0
        %2657 = vmatpush1.bf16.msra.mxu0 %v2632
        %2658 = vmatprep.subr.bf16.mxu0 0
        %2659 = vmatpush1.bf16.msra.mxu0 %v2631
        %2660 = vmatprep.subr.bf16.mxu0 0
        %2661 = vmatpush1.bf16.msra.mxu0 %v2630
        %2662 = vmatprep.subr.bf16.mxu0 0
        %2663 = vmatpush2.bf16.msra.mxu0 0
        %2664 = vmatprep.subr.bf16.mxu0 0
        %2665 = vmatpush2.bf16.msra.mxu0 0
        %2666 = vmatprep.subr.bf16.mxu0 0
        %2667 = vmatpush2.bf16.msra.mxu0 0
        %2668 = vmatprep.subr.bf16.mxu0 0
        %2669 = vmatpush2.bf16.msra.mxu0 0
        %2670 = vmatprep.subr.bf16.mxu0 0
        %2671 = vmatpush2.bf16.msra.mxu0 0
        %2672 = vmatprep.subr.bf16.mxu0 0
        %2673 = vmatpush2.bf16.msra.mxu0 0
        %2674 = vmatprep.subr.bf16.mxu0 0
        %2675 = vmatpush2.bf16.msra.mxu0 0
        %2676 = vmatprep.subr.bf16.mxu0 0
        %2677 = vmatpush2.bf16.msra.mxu0 0
        %2678 = vmatprep.mubr.bf16.mxu0 0
        %2679 = vmatmul.mubr.bf16.gmra.mxu0 %v2557
        %v2680 = vpop.f32.mrf.mxu0
        %v2681 = vadd.f32 %v2596, %v2680
        %v2682 = vpop.f32.mrf.mxu0
        %v2683 = vpop.f32.mrf.mxu0
        %v2684 = vadd.f32 %v2596, %v2683
        %v2685 = vpop.f32.mrf.mxu0
        %2686 = vmatprep.mubr.bf16.mxu0 0
        %2687 = vmatmul.mubr.bf16.gmra.mxu0 %v2558
        %v2688 = vpop.f32.mrf.mxu0
        %v2689 = vadd.f32 %v2596, %v2688
        %v2690 = vpop.f32.mrf.mxu0
        %v2691 = vpop.f32.mrf.mxu0
        %v2692 = vadd.f32 %v2596, %v2691
        %v2693 = vpop.f32.mrf.mxu0
        %2694 = vmatprep.mubr.bf16.mxu0 0
        %2695 = vmatmul.mubr.bf16.gmra.mxu0 %v2559
        %v2696 = vpop.f32.mrf.mxu0
        %v2697 = vadd.f32 %v2596, %v2696
        %v2698 = vpop.f32.mrf.mxu0
        %v2699 = vpop.f32.mrf.mxu0
        %v2700 = vadd.f32 %v2596, %v2699
        %v2701 = vpop.f32.mrf.mxu0
        %2702 = vmatprep.mubr.bf16.mxu0 0
        %2703 = vmatmul.mubr.bf16.gmra.mxu0 %v2560
        %v2704 = vpop.f32.mrf.mxu0
        %v2705 = vadd.f32 %v2596, %v2704
        %v2706 = vpop.f32.mrf.mxu0
        %v2707 = vpop.f32.mrf.mxu0
        %v2708 = vadd.f32 %v2596, %v2707
        %v2709 = vpop.f32.mrf.mxu0
        %2710 = vmatprep.mubr.bf16.mxu0 0
        %2711 = vmatmul.mubr.bf16.gmra.mxu0 %v2561
        %v2712 = vpop.f32.mrf.mxu0
        %v2713 = vadd.f32 %v2596, %v2712
        %v2714 = vpop.f32.mrf.mxu0
        %v2715 = vpop.f32.mrf.mxu0
        %v2716 = vadd.f32 %v2596, %v2715
        %v2717 = vpop.f32.mrf.mxu0
        %2718 = vmatprep.mubr.bf16.mxu0 0
        %2719 = vmatmul.mubr.bf16.gmra.mxu0 %v2562
        %v2720 = vpop.f32.mrf.mxu0
        %v2721 = vadd.f32 %v2596, %v2720
        %v2722 = vpop.f32.mrf.mxu0
        %v2723 = vpop.f32.mrf.mxu0
        %v2724 = vadd.f32 %v2596, %v2723
        %v2725 = vpop.f32.mrf.mxu0
        %2726 = vmatprep.mubr.bf16.mxu0 0
        %2727 = vmatmul.mubr.bf16.gmra.mxu0 %v2563
        %v2728 = vpop.f32.mrf.mxu0
        %v2729 = vadd.f32 %v2596, %v2728
        %v2730 = vpop.f32.mrf.mxu0
        %v2731 = vpop.f32.mrf.mxu0
        %v2732 = vadd.f32 %v2596, %v2731
        %v2733 = vpop.f32.mrf.mxu0
        %2734 = vmatprep.mubr.bf16.mxu0 0
        %2735 = vmatmul.mubr.bf16.gmra.mxu0 %v2564
        %v2736 = vpop.f32.mrf.mxu0
        %v2737 = vadd.f32 %v2596, %v2736
        %v2738 = vpop.f32.mrf.mxu0
        %v2739 = vpop.f32.mrf.mxu0
        %v2740 = vadd.f32 %v2596, %v2739
        %v2741 = vpop.f32.mrf.mxu0
        %2742 = vmatprep.mubr.bf16.mxu0 0
        %2743 = vmatmul.mubr.bf16.gmra.mxu0 %v2565
        %v2744 = vpop.f32.mrf.mxu0
        %v2745 = vadd.f32 %v2596, %v2744
        %v2746 = vpop.f32.mrf.mxu0
        %v2747 = vpop.f32.mrf.mxu0
        %v2748 = vadd.f32 %v2596, %v2747
        %v2749 = vpop.f32.mrf.mxu0
        %2750 = vmatprep.mubr.bf16.mxu0 0
        %2751 = vmatmul.mubr.bf16.gmra.mxu0 %v2566
        %v2752 = vpop.f32.mrf.mxu0
        %v2753 = vadd.f32 %v2596, %v2752
        %v2754 = vpop.f32.mrf.mxu0
        %v2755 = vpop.f32.mrf.mxu0
        %v2756 = vadd.f32 %v2596, %v2755
        %v2757 = vpop.f32.mrf.mxu0
        %2758 = vmatprep.mubr.bf16.mxu0 0
        %2759 = vmatmul.mubr.bf16.gmra.mxu0 %v2567
        %v2760 = vpop.f32.mrf.mxu0
        %v2761 = vadd.f32 %v2596, %v2760
        %v2762 = vpop.f32.mrf.mxu0
        %v2763 = vpop.f32.mrf.mxu0
        %v2764 = vadd.f32 %v2596, %v2763
        %v2765 = vpop.f32.mrf.mxu0
        %2766 = vmatprep.mubr.bf16.mxu0 0
        %2767 = vmatmul.mubr.bf16.gmra.mxu0 %v2568
        %v2768 = vpop.f32.mrf.mxu0
        %v2769 = vadd.f32 %v2596, %v2768
        %v2770 = vpop.f32.mrf.mxu0
        %v2771 = vpop.f32.mrf.mxu0
        %v2772 = vadd.f32 %v2596, %v2771
        %v2773 = vpop.f32.mrf.mxu0
        %2774 = vmatprep.mubr.bf16.mxu0 0
        %2775 = vmatmul.mubr.bf16.gmra.mxu0 %v2569
        %v2776 = vpop.f32.mrf.mxu0
        %v2777 = vadd.f32 %v2596, %v2776
        %v2778 = vpop.f32.mrf.mxu0
        %v2779 = vpop.f32.mrf.mxu0
        %v2780 = vadd.f32 %v2596, %v2779
        %v2781 = vpop.f32.mrf.mxu0
        %2782 = vmatprep.mubr.bf16.mxu0 0
        %2783 = vmatmul.mubr.bf16.gmra.mxu0 %v2570
        %v2784 = vpop.f32.mrf.mxu0
        %v2785 = vadd.f32 %v2596, %v2784
        %v2786 = vpop.f32.mrf.mxu0
        %v2787 = vpop.f32.mrf.mxu0
        %v2788 = vadd.f32 %v2596, %v2787
        %v2789 = vpop.f32.mrf.mxu0
        %2790 = vmatprep.mubr.bf16.mxu0 0
        %2791 = vmatmul.mubr.bf16.gmra.mxu0 %v2571
        %v2792 = vpop.f32.mrf.mxu0
        %v2793 = vadd.f32 %v2596, %v2792
        %v2794 = vpop.f32.mrf.mxu0
        %v2795 = vpop.f32.mrf.mxu0
        %v2796 = vadd.f32 %v2596, %v2795
        %v2797 = vpop.f32.mrf.mxu0
        %2798 = vmatprep.mubr.bf16.mxu0 0
        %2799 = vmatmul.mubr.bf16.gmra.mxu0 %v2572
        %v2800 = vpop.f32.mrf.mxu0
        %v2801 = vadd.f32 %v2596, %v2800
        %v2802 = vpop.f32.mrf.mxu0
        %v2803 = vpop.f32.mrf.mxu0
        %v2804 = vadd.f32 %v2596, %v2803
        %v2805 = vpop.f32.mrf.mxu0
        %2806 = vmatprep.mubr.bf16.mxu0 0
        %2807 = vmatmul.mubr.bf16.gmra.mxu0 %v2573
        %v2808 = vpop.f32.mrf.mxu0
        %v2809 = vadd.f32 %v2596, %v2808
        %v2810 = vpop.f32.mrf.mxu0
        %v2811 = vpop.f32.mrf.mxu0
        %v2812 = vadd.f32 %v2596, %v2811
        %v2813 = vpop.f32.mrf.mxu0
        %2814 = vmatprep.mubr.bf16.mxu0 0
        %2815 = vmatmul.mubr.bf16.gmra.mxu0 %v2574
        %v2816 = vpop.f32.mrf.mxu0
        %v2817 = vadd.f32 %v2596, %v2816
        %v2818 = vpop.f32.mrf.mxu0
        %v2819 = vpop.f32.mrf.mxu0
        %v2820 = vadd.f32 %v2596, %v2819
        %v2821 = vpop.f32.mrf.mxu0
        %2822 = vdwg.mxu0
        %vm2823 = vcmp.gt.f32.partialorder %v2681, 0.0
        %vm2824 = vcmp.gt.f32.partialorder %v2684, 0.0
        %vm2825 = vcmp.gt.f32.partialorder %v2689, 0.0
        %vm2826 = vcmp.gt.f32.partialorder %v2692, 0.0
        %vm2827 = vcmp.gt.f32.partialorder %v2697, 0.0
        %vm2828 = vcmp.gt.f32.partialorder %v2700, 0.0
        %vm2829 = vcmp.gt.f32.partialorder %v2705, 0.0
        %vm2830 = vcmp.gt.f32.partialorder %v2708, 0.0
        %vm2831 = vcmp.gt.f32.partialorder %v2713, 0.0
        %vm2832 = vcmp.gt.f32.partialorder %v2716, 0.0
        %vm2833 = vcmp.gt.f32.partialorder %v2721, 0.0
        %vm2834 = vcmp.gt.f32.partialorder %v2724, 0.0
        %vm2835 = vcmp.gt.f32.partialorder %v2729, 0.0
        %vm2836 = vcmp.gt.f32.partialorder %v2732, 0.0
        %vm2837 = vcmp.gt.f32.partialorder %v2737, 0.0
        %vm2838 = vcmp.gt.f32.partialorder %v2740, 0.0
        %vm2839 = vcmp.gt.f32.partialorder %v2745, 0.0
        %vm2840 = vcmp.gt.f32.partialorder %v2748, 0.0
        %vm2841 = vcmp.gt.f32.partialorder %v2753, 0.0
        %vm2842 = vcmp.gt.f32.partialorder %v2756, 0.0
        %vm2843 = vcmp.gt.f32.partialorder %v2761, 0.0
        %vm2844 = vcmp.gt.f32.partialorder %v2764, 0.0
        %vm2845 = vcmp.gt.f32.partialorder %v2769, 0.0
        %vm2846 = vcmp.gt.f32.partialorder %v2772, 0.0
        %vm2847 = vcmp.gt.f32.partialorder %v2777, 0.0
        %vm2848 = vcmp.gt.f32.partialorder %v2780, 0.0
        %vm2849 = vcmp.gt.f32.partialorder %v2785, 0.0
        %vm2850 = vcmp.gt.f32.partialorder %v2788, 0.0
        %vm2851 = vcmp.gt.f32.partialorder %v2793, 0.0
        %vm2852 = vcmp.gt.f32.partialorder %v2796, 0.0
        %vm2853 = vcmp.gt.f32.partialorder %v2801, 0.0
        %vm2854 = vcmp.gt.f32.partialorder %v2804, 0.0
        %vm2855 = vcmp.gt.f32.partialorder %v2809, 0.0
        %vm2856 = vcmp.gt.f32.partialorder %v2812, 0.0
        %vm2857 = vcmp.gt.f32.partialorder %v2817, 0.0
        %vm2858 = vcmp.gt.f32.partialorder %v2820, 0.0
        %v2859 = vmul.f32 %v2681, 0.1
        %v2860 = vmul.f32 %v2684, 0.1
        %v2861 = vmul.f32 %v2689, 0.1
        %v2862 = vmul.f32 %v2692, 0.1
        %v2863 = vmul.f32 %v2697, 0.1
        %v2864 = vmul.f32 %v2700, 0.1
        %v2865 = vmul.f32 %v2705, 0.1
        %v2866 = vmul.f32 %v2708, 0.1
        %v2867 = vmul.f32 %v2713, 0.1
        %v2868 = vmul.f32 %v2716, 0.1
        %v2869 = vmul.f32 %v2721, 0.1
        %v2870 = vmul.f32 %v2724, 0.1
        %v2871 = vmul.f32 %v2729, 0.1
        %v2872 = vmul.f32 %v2732, 0.1
        %v2873 = vmul.f32 %v2737, 0.1
        %v2874 = vmul.f32 %v2740, 0.1
        %v2875 = vmul.f32 %v2745, 0.1
        %v2876 = vmul.f32 %v2748, 0.1
        %v2877 = vmul.f32 %v2753, 0.1
        %v2878 = vmul.f32 %v2756, 0.1
        %v2879 = vmul.f32 %v2761, 0.1
        %v2880 = vmul.f32 %v2764, 0.1
        %v2881 = vmul.f32 %v2769, 0.1
        %v2882 = vmul.f32 %v2772, 0.1
        %v2883 = vmul.f32 %v2777, 0.1
        %v2884 = vmul.f32 %v2780, 0.1
        %v2885 = vmul.f32 %v2785, 0.1
        %v2886 = vmul.f32 %v2788, 0.1
        %v2887 = vmul.f32 %v2793, 0.1
        %v2888 = vmul.f32 %v2796, 0.1
        %v2889 = vmul.f32 %v2801, 0.1
        %v2890 = vmul.f32 %v2804, 0.1
        %v2891 = vmul.f32 %v2809, 0.1
        %v2892 = vmul.f32 %v2812, 0.1
        %v2893 = vmul.f32 %v2817, 0.1
        %v2894 = vmul.f32 %v2820, 0.1
        %v2895 = vsel %vm2823, %v2681, %v2859
        %v2896 = vsel %vm2824, %v2684, %v2860
        %v2897 = vsel %vm2825, %v2689, %v2861
        %v2898 = vsel %vm2826, %v2692, %v2862
        %v2899 = vsel %vm2827, %v2697, %v2863
        %v2900 = vsel %vm2828, %v2700, %v2864
        %v2901 = vsel %vm2829, %v2705, %v2865
        %v2902 = vsel %vm2830, %v2708, %v2866
        %v2903 = vsel %vm2831, %v2713, %v2867
        %v2904 = vsel %vm2832, %v2716, %v2868
        %v2905 = vsel %vm2833, %v2721, %v2869
        %v2906 = vsel %vm2834, %v2724, %v2870
        %v2907 = vsel %vm2835, %v2729, %v2871
        %v2908 = vsel %vm2836, %v2732, %v2872
        %v2909 = vsel %vm2837, %v2737, %v2873
        %v2910 = vsel %vm2838, %v2740, %v2874
        %v2911 = vsel %vm2839, %v2745, %v2875
        %v2912 = vsel %vm2840, %v2748, %v2876
        %v2913 = vsel %vm2841, %v2753, %v2877
        %v2914 = vsel %vm2842, %v2756, %v2878
        %v2915 = vsel %vm2843, %v2761, %v2879
        %v2916 = vsel %vm2844, %v2764, %v2880
        %v2917 = vsel %vm2845, %v2769, %v2881
        %v2918 = vsel %vm2846, %v2772, %v2882
        %v2919 = vsel %vm2847, %v2777, %v2883
        %v2920 = vsel %vm2848, %v2780, %v2884
        %v2921 = vsel %vm2849, %v2785, %v2885
        %v2922 = vsel %vm2850, %v2788, %v2886
        %v2923 = vsel %vm2851, %v2793, %v2887
        %v2924 = vsel %vm2852, %v2796, %v2888
        %v2925 = vsel %vm2853, %v2801, %v2889
        %v2926 = vsel %vm2854, %v2804, %v2890
        %v2927 = vsel %vm2855, %v2809, %v2891
        %v2928 = vsel %vm2856, %v2812, %v2892
        %v2929 = vsel %vm2857, %v2817, %v2893
        %v2930 = vsel %vm2858, %v2820, %v2894
        %2932 = vset.pattern.permute.xlu0 0
        %2933 = vperm.xlu0 %2932, %v561
        %v2934 = vpop.permute.xlu0 %2933
        %2937 = vset.pattern.permute.xlu0 0
        %2938 = vperm.xlu0 %2937, %v562
        %v2939 = vpop.permute.xlu0 %2938
        %2942 = vset.pattern.permute.xlu0 0
        %2943 = vperm.xlu0 %2942, %v563
        %v2944 = vpop.permute.xlu0 %2943
        %2947 = vset.pattern.permute.xlu0 0
        %2948 = vperm.xlu0 %2947, %v564
        %v2949 = vpop.permute.xlu0 %2948
        %2952 = vset.pattern.permute.xlu0 0
        %2953 = vperm.xlu0 %2952, %v565
        %v2954 = vpop.permute.xlu0 %2953
        %2957 = vset.pattern.permute.xlu0 0
        %2958 = vperm.xlu0 %2957, %v566
        %v2959 = vpop.permute.xlu0 %2958
        %2962 = vset.pattern.permute.xlu0 0
        %2963 = vperm.xlu0 %2962, %v567
        %v2964 = vpop.permute.xlu0 %2963
        %2967 = vset.pattern.permute.xlu0 0
        %2968 = vperm.xlu0 %2967, %v568
        %v2969 = vpop.permute.xlu0 %2968
        %2972 = vset.pattern.permute.xlu0 0
        %2973 = vperm.xlu0 %2972, %v569
        %v2974 = vpop.permute.xlu0 %2973
        %2977 = vset.pattern.permute.xlu0 0
        %2978 = vperm.xlu0 %2977, %v570
        %v2979 = vpop.permute.xlu0 %2978
        %2982 = vset.pattern.permute.xlu0 0
        %2983 = vperm.xlu0 %2982, %v571
        %v2984 = vpop.permute.xlu0 %2983
        %2987 = vset.pattern.permute.xlu0 0
        %2988 = vperm.xlu0 %2987, %v572
        %v2989 = vpop.permute.xlu0 %2988
        %2992 = vset.pattern.permute.xlu0 0
        %2993 = vperm.xlu0 %2992, %v573
        %v2994 = vpop.permute.xlu0 %2993
        %2997 = vset.pattern.permute.xlu0 0
        %2998 = vperm.xlu0 %2997, %v574
        %v2999 = vpop.permute.xlu0 %2998
        %3002 = vset.pattern.permute.xlu0 0
        %3003 = vperm.xlu0 %3002, %v575
        %v3004 = vpop.permute.xlu0 %3003
        %3007 = vset.pattern.permute.xlu0 0
        %3008 = vperm.xlu0 %3007, %v576
        %v3009 = vpop.permute.xlu0 %3008
        %3012 = vset.pattern.permute.xlu0 0
        %3013 = vperm.xlu0 %3012, %v577
        %v3014 = vpop.permute.xlu0 %3013
        %3017 = vset.pattern.permute.xlu0 0
        %3018 = vperm.xlu0 %3017, %v578
        %v3019 = vpop.permute.xlu0 %3018
        %3022 = vset.pattern.permute.xlu0 0
        %3023 = vperm.xlu0 %3022, %v579
        %v3024 = vpop.permute.xlu0 %3023
        %3027 = vset.pattern.permute.xlu0 0
        %3028 = vperm.xlu0 %3027, %v580
        %v3029 = vpop.permute.xlu0 %3028
        %3032 = vset.pattern.permute.xlu0 0
        %3033 = vperm.xlu0 %3032, %v581
        %v3034 = vpop.permute.xlu0 %3033
        %3037 = vset.pattern.permute.xlu0 0
        %3038 = vperm.xlu0 %3037, %v582
        %v3039 = vpop.permute.xlu0 %3038
        %3042 = vset.pattern.permute.xlu0 0
        %3043 = vperm.xlu0 %3042, %v583
        %v3044 = vpop.permute.xlu0 %3043
        %3047 = vset.pattern.permute.xlu0 0
        %3048 = vperm.xlu0 %3047, %v584
        %v3049 = vpop.permute.xlu0 %3048
        %3052 = vset.pattern.permute.xlu0 0
        %3053 = vperm.xlu0 %3052, %v585
        %v3054 = vpop.permute.xlu0 %3053
        %3057 = vset.pattern.permute.xlu0 0
        %3058 = vperm.xlu0 %3057, %v586
        %v3059 = vpop.permute.xlu0 %3058
        %3062 = vset.pattern.permute.xlu0 0
        %3063 = vperm.xlu0 %3062, %v587
        %v3064 = vpop.permute.xlu0 %3063
        %3067 = vset.pattern.permute.xlu0 0
        %3068 = vperm.xlu0 %3067, %v588
        %v3069 = vpop.permute.xlu0 %3068
        %3072 = vset.pattern.permute.xlu0 0
        %3073 = vperm.xlu0 %3072, %v589
        %v3074 = vpop.permute.xlu0 %3073
        %3077 = vset.pattern.permute.xlu0 0
        %3078 = vperm.xlu0 %3077, %v590
        %v3079 = vpop.permute.xlu0 %3078
        %3082 = vset.pattern.permute.xlu0 0
        %3083 = vperm.xlu0 %3082, %v591
        %v3084 = vpop.permute.xlu0 %3083
        %3087 = vset.pattern.permute.xlu0 0
        %3088 = vperm.xlu0 %3087, %v592
        %v3089 = vpop.permute.xlu0 %3088
        %3092 = vset.pattern.permute.xlu0 0
        %3093 = vperm.xlu0 %3092, %v593
        %v3094 = vpop.permute.xlu0 %3093
        %3097 = vset.pattern.permute.xlu0 0
        %3098 = vperm.xlu0 %3097, %v594
        %v3099 = vpop.permute.xlu0 %3098
        %3102 = vset.pattern.permute.xlu0 0
        %3103 = vperm.xlu0 %3102, %v595
        %v3104 = vpop.permute.xlu0 %3103
        %3107 = vset.pattern.permute.xlu0 0
        %3108 = vperm.xlu0 %3107, %v596
        %v3109 = vpop.permute.xlu0 %3108
        %v3111 = vmul.f32 %v2895, %v2934
        %v3112 = vmul.f32 %v2896, %v2939
        %v3113 = vmul.f32 %v2897, %v2944
        %v3114 = vmul.f32 %v2898, %v2949
        %v3115 = vmul.f32 %v2899, %v2954
        %v3116 = vmul.f32 %v2900, %v2959
        %v3117 = vmul.f32 %v2901, %v2964
        %v3118 = vmul.f32 %v2902, %v2969
        %v3119 = vmul.f32 %v2903, %v2974
        %v3120 = vmul.f32 %v2904, %v2979
        %v3121 = vmul.f32 %v2905, %v2984
        %v3122 = vmul.f32 %v2906, %v2989
        %v3123 = vmul.f32 %v2907, %v2994
        %v3124 = vmul.f32 %v2908, %v2999
        %v3125 = vmul.f32 %v2909, %v3004
        %v3126 = vmul.f32 %v2910, %v3009
        %v3127 = vmul.f32 %v2911, %v3014
        %v3128 = vmul.f32 %v2912, %v3019
        %v3129 = vmul.f32 %v2913, %v3024
        %v3130 = vmul.f32 %v2914, %v3029
        %v3131 = vmul.f32 %v2915, %v3034
        %v3132 = vmul.f32 %v2916, %v3039
        %v3133 = vmul.f32 %v2917, %v3044
        %v3134 = vmul.f32 %v2918, %v3049
        %v3135 = vmul.f32 %v2919, %v3054
        %v3136 = vmul.f32 %v2920, %v3059
        %v3137 = vmul.f32 %v2921, %v3064
        %v3138 = vmul.f32 %v2922, %v3069
        %v3139 = vmul.f32 %v2923, %v3074
        %v3140 = vmul.f32 %v2924, %v3079
        %v3141 = vmul.f32 %v2925, %v3084
        %v3142 = vmul.f32 %v2926, %v3089
        %v3143 = vmul.f32 %v2927, %v3094
        %v3144 = vmul.f32 %v2928, %v3099
        %v3145 = vmul.f32 %v2929, %v3104
        %v3146 = vmul.f32 %v2930, %v3109
        %3147 = vst [vmem:[#allocation2 + $0x18] sm:$0xff] %v3111
        %3148 = vst [vmem:[#allocation2 + $0x20] sm:$0xff] %v3112
        %3149 = vst [vmem:[#allocation2 + $0x28] sm:$0xff] %v3113
        %3150 = vst [vmem:[#allocation2 + $0x30] sm:$0xff] %v3114
        %3151 = vst [vmem:[#allocation2 + $0x38] sm:$0xff] %v3115
        %3152 = vst [vmem:[#allocation2 + $0x40] sm:$0xff] %v3116
        %3153 = vst [vmem:[#allocation2 + $0x48] sm:$0xff] %v3117
        %3154 = vst [vmem:[#allocation2 + $0x50] sm:$0xff] %v3118
        %3155 = vst [vmem:[#allocation2 + $0x58] sm:$0xff] %v3119
        %3156 = vst [vmem:[#allocation2 + $0x60] sm:$0xff] %v3120
        %3157 = vst [vmem:[#allocation2 + $0x68] sm:$0xff] %v3121
        %3158 = vst [vmem:[#allocation2 + $0x70] sm:$0xff] %v3122
        %3159 = vst [vmem:[#allocation2 + $0x78] sm:$0xff] %v3123
        %3160 = vst [vmem:[#allocation2 + $0x80] sm:$0xff] %v3124
        %3161 = vst [vmem:[#allocation2 + $0x88] sm:$0xff] %v3125
        %3162 = vst [vmem:[#allocation2 + $0x90] sm:$0xff] %v3126
        %3163 = vst [vmem:[#allocation2 + $0x98] sm:$0xff] %v3127
        %3164 = vst [vmem:[#allocation2 + $0xa0] sm:$0xff] %v3128
        %3165 = vst [vmem:[#allocation2 + $0xa8] sm:$0xff] %v3129
        %3166 = vst [vmem:[#allocation2 + $0xb0] sm:$0xff] %v3130
        %3167 = vst [vmem:[#allocation2 + $0xb8] sm:$0xff] %v3131
        %3168 = vst [vmem:[#allocation2 + $0xc0] sm:$0xff] %v3132
        %3169 = vst [vmem:[#allocation2 + $0xc8] sm:$0xff] %v3133
        %3170 = vst [vmem:[#allocation2 + $0xd0] sm:$0xff] %v3134
        %3171 = vst [vmem:[#allocation2 + $0xd8] sm:$0xff] %v3135
        %3172 = vst [vmem:[#allocation2 + $0xe0] sm:$0xff] %v3136
        %3173 = vst [vmem:[#allocation2 + $0xe8] sm:$0xff] %v3137
        %3174 = vst [vmem:[#allocation2 + $0xf0] sm:$0xff] %v3138
        %3175 = vst [vmem:[#allocation2 + $0xf8] sm:$0xff] %v3139
        %3176 = vst [vmem:[#allocation2 + $0x100] sm:$0xff] %v3140
        %3177 = vst [vmem:[#allocation2 + $0x108] sm:$0xff] %v3141
        %3178 = vst [vmem:[#allocation2 + $0x110] sm:$0xff] %v3142
        %3179 = vst [vmem:[#allocation2 + $0x118] sm:$0xff] %v3143
        %3180 = vst [vmem:[#allocation2 + $0x120] sm:$0xff] %v3144
        %3181 = vst [vmem:[#allocation2 + $0x128] sm:$0xff] %v3145
        %3182 = vst [vmem:[#allocation2 + $0x130] sm:$0xff] %v3146
        %v3183 = vld [vmem:[#allocation2 + $0x5] sm:$0xff]
        %v3184 = vld [vmem:[#allocation2 + $0xd] sm:$0xff]
        %v3185 = vld [vmem:[#allocation2 + $0x15] sm:$0xff]
        %v3186 = vld [vmem:[#allocation2 + $0x1d] sm:$0xff]
        %v3187 = vld [vmem:[#allocation2 + $0x25] sm:$0xff]
        %v3188 = vld [vmem:[#allocation2 + $0x2d] sm:$0xff]
        %v3189 = vld [vmem:[#allocation2 + $0x35] sm:$0xff]
        %v3190 = vld [vmem:[#allocation2 + $0x3d] sm:$0xff]
        %v3191 = vld [vmem:[#allocation2 + $0x45] sm:$0xff]
        %v3192 = vld [vmem:[#allocation2 + $0x4d] sm:$0xff]
        %v3193 = vld [vmem:[#allocation2 + $0x55] sm:$0xff]
        %v3194 = vld [vmem:[#allocation2 + $0x5d] sm:$0xff]
        %v3195 = vld [vmem:[#allocation2 + $0x65] sm:$0xff]
        %v3196 = vld [vmem:[#allocation2 + $0x6d] sm:$0xff]
        %v3197 = vld [vmem:[#allocation2 + $0x75] sm:$0xff]
        %v3198 = vld [vmem:[#allocation2 + $0x7d] sm:$0xff]
        %v3199 = vld [vmem:[#allocation2 + $0x85] sm:$0xff]
        %v3200 = vld [vmem:[#allocation2 + $0x8d] sm:$0xff]
        %v3201 = vld [vmem:[#allocation2 + $0x95] sm:$0xff]
        %v3202 = vld [vmem:[#allocation2 + $0x9d] sm:$0xff]
        %v3203 = vld [vmem:[#allocation2 + $0xa5] sm:$0xff]
        %v3204 = vld [vmem:[#allocation2 + $0xad] sm:$0xff]
        %v3205 = vld [vmem:[#allocation2 + $0xb5] sm:$0xff]
        %v3206 = vld [vmem:[#allocation2 + $0xbd] sm:$0xff]
        %v3207 = vld [vmem:[#allocation2 + $0xc5] sm:$0xff]
        %v3208 = vld [vmem:[#allocation2 + $0xcd] sm:$0xff]
        %v3209 = vld [vmem:[#allocation2 + $0xd5] sm:$0xff]
        %v3210 = vld [vmem:[#allocation2 + $0xdd] sm:$0xff]
        %v3211 = vld [vmem:[#allocation2 + $0xe5] sm:$0xff]
        %v3212 = vld [vmem:[#allocation2 + $0xed] sm:$0xff]
        %v3213 = vld [vmem:[#allocation2 + $0xf5] sm:$0xff]
        %v3214 = vld [vmem:[#allocation2 + $0xfd] sm:$0xff]
        %v3215 = vld [vmem:[#allocation2 + $0x105] sm:$0xff]
        %v3216 = vld [vmem:[#allocation2 + $0x10d] sm:$0xff]
        %v3217 = vld [vmem:[#allocation2 + $0x115] sm:$0xff]
        %v3218 = vld [vmem:[#allocation2 + $0x11d] sm:$0xff]
        %v3219 = vld [vmem:[#allocation2 + $0x6] sm:$0xff]
        %v3220 = vld [vmem:[#allocation2 + $0xe] sm:$0xff]
        %v3221 = vld [vmem:[#allocation2 + $0x16] sm:$0xff]
        %v3222 = vld [vmem:[#allocation2 + $0x1e] sm:$0xff]
        %v3223 = vld [vmem:[#allocation2 + $0x26] sm:$0xff]
        %v3224 = vld [vmem:[#allocation2 + $0x2e] sm:$0xff]
        %v3225 = vld [vmem:[#allocation2 + $0x36] sm:$0xff]
        %v3226 = vld [vmem:[#allocation2 + $0x3e] sm:$0xff]
        %v3227 = vld [vmem:[#allocation2 + $0x46] sm:$0xff]
        %v3228 = vld [vmem:[#allocation2 + $0x4e] sm:$0xff]
        %v3229 = vld [vmem:[#allocation2 + $0x56] sm:$0xff]
        %v3230 = vld [vmem:[#allocation2 + $0x5e] sm:$0xff]
        %v3231 = vld [vmem:[#allocation2 + $0x66] sm:$0xff]
        %v3232 = vld [vmem:[#allocation2 + $0x6e] sm:$0xff]
        %v3233 = vld [vmem:[#allocation2 + $0x76] sm:$0xff]
        %v3234 = vld [vmem:[#allocation2 + $0x7e] sm:$0xff]
        %v3235 = vld [vmem:[#allocation2 + $0x86] sm:$0xff]
        %v3236 = vld [vmem:[#allocation2 + $0x8e] sm:$0xff]
        %v3237 = vld [vmem:[#allocation2 + $0x96] sm:$0xff]
        %v3238 = vld [vmem:[#allocation2 + $0x9e] sm:$0xff]
        %v3239 = vld [vmem:[#allocation2 + $0xa6] sm:$0xff]
        %v3240 = vld [vmem:[#allocation2 + $0xae] sm:$0xff]
        %v3241 = vld [vmem:[#allocation2 + $0xb6] sm:$0xff]
        %v3242 = vld [vmem:[#allocation2 + $0xbe] sm:$0xff]
        %v3243 = vld [vmem:[#allocation2 + $0xc6] sm:$0xff]
        %v3244 = vld [vmem:[#allocation2 + $0xce] sm:$0xff]
        %v3245 = vld [vmem:[#allocation2 + $0xd6] sm:$0xff]
        %v3246 = vld [vmem:[#allocation2 + $0xde] sm:$0xff]
        %v3247 = vld [vmem:[#allocation2 + $0xe6] sm:$0xff]
        %v3248 = vld [vmem:[#allocation2 + $0xee] sm:$0xff]
        %v3249 = vld [vmem:[#allocation2 + $0xf6] sm:$0xff]
        %v3250 = vld [vmem:[#allocation2 + $0xfe] sm:$0xff]
        %v3251 = vld [vmem:[#allocation2 + $0x106] sm:$0xff]
        %v3252 = vld [vmem:[#allocation2 + $0x10e] sm:$0xff]
        %v3253 = vld [vmem:[#allocation2 + $0x116] sm:$0xff]
        %v3254 = vld [vmem:[#allocation2 + $0x11e] sm:$0xff]
        %v3255 = vld [vmem:[#allocation2 + $0x7] sm:$0xff]
        %v3256 = vld [vmem:[#allocation2 + $0xf] sm:$0xff]
        %v3257 = vld [vmem:[#allocation2 + $0x17] sm:$0xff]
        %v3258 = vld [vmem:[#allocation2 + $0x1f] sm:$0xff]
        %v3259 = vld [vmem:[#allocation2 + $0x27] sm:$0xff]
        %v3260 = vld [vmem:[#allocation2 + $0x2f] sm:$0xff]
        %v3261 = vld [vmem:[#allocation2 + $0x37] sm:$0xff]
        %v3262 = vld [vmem:[#allocation2 + $0x3f] sm:$0xff]
        %v3263 = vld [vmem:[#allocation2 + $0x47] sm:$0xff]
        %v3264 = vld [vmem:[#allocation2 + $0x4f] sm:$0xff]
        %v3265 = vld [vmem:[#allocation2 + $0x57] sm:$0xff]
        %v3266 = vld [vmem:[#allocation2 + $0x5f] sm:$0xff]
        %v3267 = vld [vmem:[#allocation2 + $0x67] sm:$0xff]
        %v3268 = vld [vmem:[#allocation2 + $0x6f] sm:$0xff]
        %v3269 = vld [vmem:[#allocation2 + $0x77] sm:$0xff]
        %v3270 = vld [vmem:[#allocation2 + $0x7f] sm:$0xff]
        %v3271 = vld [vmem:[#allocation2 + $0x87] sm:$0xff]
        %v3272 = vld [vmem:[#allocation2 + $0x8f] sm:$0xff]
        %v3273 = vld [vmem:[#allocation2 + $0x97] sm:$0xff]
        %v3274 = vld [vmem:[#allocation2 + $0x9f] sm:$0xff]
        %v3275 = vld [vmem:[#allocation2 + $0xa7] sm:$0xff]
        %v3276 = vld [vmem:[#allocation2 + $0xaf] sm:$0xff]
        %v3277 = vld [vmem:[#allocation2 + $0xb7] sm:$0xff]
        %v3278 = vld [vmem:[#allocation2 + $0xbf] sm:$0xff]
        %v3279 = vld [vmem:[#allocation2 + $0xc7] sm:$0xff]
        %v3280 = vld [vmem:[#allocation2 + $0xcf] sm:$0xff]
        %v3281 = vld [vmem:[#allocation2 + $0xd7] sm:$0xff]
        %v3282 = vld [vmem:[#allocation2 + $0xdf] sm:$0xff]
        %v3283 = vld [vmem:[#allocation2 + $0xe7] sm:$0xff]
        %v3284 = vld [vmem:[#allocation2 + $0xef] sm:$0xff]
        %v3285 = vld [vmem:[#allocation2 + $0xf7] sm:$0xff]
        %v3286 = vld [vmem:[#allocation2 + $0xff] sm:$0xff]
        %v3287 = vld [vmem:[#allocation2 + $0x107] sm:$0xff]
        %v3288 = vld [vmem:[#allocation2 + $0x10f] sm:$0xff]
        %v3289 = vld [vmem:[#allocation2 + $0x117] sm:$0xff]
        %v3290 = vld [vmem:[#allocation2 + $0x11f] sm:$0xff]
        %v3291 = vld [vmem:[#allocation2 + $0x127] sm:$0xff]
        %v3292 = vld [vmem:[#allocation2 + $0x12f] sm:$0xff]
        %v3293 = vld [vmem:[#allocation2 + $0x18] sm:$0xff]
        %v3294 = vld [vmem:[#allocation2 + $0x20] sm:$0xff]
        %v3295 = vld [vmem:[#allocation2 + $0x28] sm:$0xff]
        %v3296 = vld [vmem:[#allocation2 + $0x30] sm:$0xff]
        %v3297 = vld [vmem:[#allocation2 + $0x38] sm:$0xff]
        %v3298 = vld [vmem:[#allocation2 + $0x40] sm:$0xff]
        %v3299 = vld [vmem:[#allocation2 + $0x48] sm:$0xff]
        %v3300 = vld [vmem:[#allocation2 + $0x50] sm:$0xff]
        %v3301 = vld [vmem:[#allocation2 + $0x58] sm:$0xff]
        %v3302 = vld [vmem:[#allocation2 + $0x60] sm:$0xff]
        %v3303 = vld [vmem:[#allocation2 + $0x68] sm:$0xff]
        %v3304 = vld [vmem:[#allocation2 + $0x70] sm:$0xff]
        %v3305 = vld [vmem:[#allocation2 + $0x78] sm:$0xff]
        %v3306 = vld [vmem:[#allocation2 + $0x80] sm:$0xff]
        %v3307 = vld [vmem:[#allocation2 + $0x88] sm:$0xff]
        %v3308 = vld [vmem:[#allocation2 + $0x90] sm:$0xff]
        %v3309 = vld [vmem:[#allocation2 + $0x98] sm:$0xff]
        %v3310 = vld [vmem:[#allocation2 + $0xa0] sm:$0xff]
        %v3311 = vld [vmem:[#allocation2 + $0xa8] sm:$0xff]
        %v3312 = vld [vmem:[#allocation2 + $0xb0] sm:$0xff]
        %v3313 = vld [vmem:[#allocation2 + $0xb8] sm:$0xff]
        %v3314 = vld [vmem:[#allocation2 + $0xc0] sm:$0xff]
        %v3315 = vld [vmem:[#allocation2 + $0xc8] sm:$0xff]
        %v3316 = vld [vmem:[#allocation2 + $0xd0] sm:$0xff]
        %v3317 = vld [vmem:[#allocation2 + $0xd8] sm:$0xff]
        %v3318 = vld [vmem:[#allocation2 + $0xe0] sm:$0xff]
        %v3319 = vld [vmem:[#allocation2 + $0xe8] sm:$0xff]
        %v3320 = vld [vmem:[#allocation2 + $0xf0] sm:$0xff]
        %v3321 = vld [vmem:[#allocation2 + $0xf8] sm:$0xff]
        %v3322 = vld [vmem:[#allocation2 + $0x100] sm:$0xff]
        %v3323 = vld [vmem:[#allocation2 + $0x108] sm:$0xff]
        %v3324 = vld [vmem:[#allocation2 + $0x110] sm:$0xff]
        %v3325 = vld [vmem:[#allocation2 + $0x118] sm:$0xff]
        %v3326 = vld [vmem:[#allocation2 + $0x120] sm:$0xff]
        %v3327 = vld [vmem:[#allocation2 + $0x128] sm:$0xff]
        %v3328 = vld [vmem:[#allocation2 + $0x130] sm:$0xff]
        %v3329 = vld [vmem:[#allocation2 + $0x19] sm:$0xff]
        %v3330 = vld [vmem:[#allocation2 + $0x21] sm:$0xff]
        %v3331 = vld [vmem:[#allocation2 + $0x29] sm:$0xff]
        %v3332 = vld [vmem:[#allocation2 + $0x31] sm:$0xff]
        %v3333 = vld [vmem:[#allocation2 + $0x39] sm:$0xff]
        %v3334 = vld [vmem:[#allocation2 + $0x41] sm:$0xff]
        %v3335 = vld [vmem:[#allocation2 + $0x49] sm:$0xff]
        %v3336 = vld [vmem:[#allocation2 + $0x51] sm:$0xff]
        %v3337 = vld [vmem:[#allocation2 + $0x59] sm:$0xff]
        %v3338 = vld [vmem:[#allocation2 + $0x61] sm:$0xff]
        %v3339 = vld [vmem:[#allocation2 + $0x69] sm:$0xff]
        %v3340 = vld [vmem:[#allocation2 + $0x71] sm:$0xff]
        %v3341 = vld [vmem:[#allocation2 + $0x79] sm:$0xff]
        %v3342 = vld [vmem:[#allocation2 + $0x81] sm:$0xff]
        %v3343 = vld [vmem:[#allocation2 + $0x89] sm:$0xff]
        %v3344 = vld [vmem:[#allocation2 + $0x91] sm:$0xff]
        %v3345 = vld [vmem:[#allocation2 + $0x99] sm:$0xff]
        %v3346 = vld [vmem:[#allocation2 + $0xa1] sm:$0xff]
        %v3347 = vld [vmem:[#allocation2 + $0xa9] sm:$0xff]
        %v3348 = vld [vmem:[#allocation2 + $0xb1] sm:$0xff]
        %v3349 = vld [vmem:[#allocation2 + $0xb9] sm:$0xff]
        %v3350 = vld [vmem:[#allocation2 + $0xc1] sm:$0xff]
        %v3351 = vld [vmem:[#allocation2 + $0xc9] sm:$0xff]
        %v3352 = vld [vmem:[#allocation2 + $0xd1] sm:$0xff]
        %v3353 = vld [vmem:[#allocation2 + $0xd9] sm:$0xff]
        %v3354 = vld [vmem:[#allocation2 + $0xe1] sm:$0xff]
        %v3355 = vld [vmem:[#allocation2 + $0xe9] sm:$0xff]
        %v3356 = vld [vmem:[#allocation2 + $0xf1] sm:$0xff]
        %v3357 = vld [vmem:[#allocation2 + $0xf9] sm:$0xff]
        %v3358 = vld [vmem:[#allocation2 + $0x101] sm:$0xff]
        %v3359 = vld [vmem:[#allocation2 + $0x109] sm:$0xff]
        %v3360 = vld [vmem:[#allocation2 + $0x111] sm:$0xff]
        %v3361 = vld [vmem:[#allocation2 + $0x119] sm:$0xff]
        %v3362 = vld [vmem:[#allocation2 + $0x121] sm:$0xff]
        %v3363 = vld [vmem:[#allocation2 + $0x129] sm:$0xff]
        %v3364 = vld [vmem:[#allocation2 + $0x131] sm:$0xff]
        %v3365 = vld [vmem:[#allocation2 + $0x139] sm:$0xff]
        %v3366 = vld [vmem:[#allocation2 + $0x141] sm:$0xff]
        %v3367 = vld [vmem:[#allocation2 + $0x2a] sm:$0xff]
        %v3368 = vld [vmem:[#allocation2 + $0x32] sm:$0xff]
        %v3369 = vld [vmem:[#allocation2 + $0x3a] sm:$0xff]
        %v3370 = vld [vmem:[#allocation2 + $0x42] sm:$0xff]
        %v3371 = vld [vmem:[#allocation2 + $0x4a] sm:$0xff]
        %v3372 = vld [vmem:[#allocation2 + $0x52] sm:$0xff]
        %v3373 = vld [vmem:[#allocation2 + $0x5a] sm:$0xff]
        %v3374 = vld [vmem:[#allocation2 + $0x62] sm:$0xff]
        %v3375 = vld [vmem:[#allocation2 + $0x6a] sm:$0xff]
        %v3376 = vld [vmem:[#allocation2 + $0x72] sm:$0xff]
        %v3377 = vld [vmem:[#allocation2 + $0x7a] sm:$0xff]
        %v3378 = vld [vmem:[#allocation2 + $0x82] sm:$0xff]
        %v3379 = vld [vmem:[#allocation2 + $0x8a] sm:$0xff]
        %v3380 = vld [vmem:[#allocation2 + $0x92] sm:$0xff]
        %v3381 = vld [vmem:[#allocation2 + $0x9a] sm:$0xff]
        %v3382 = vld [vmem:[#allocation2 + $0xa2] sm:$0xff]
        %v3383 = vld [vmem:[#allocation2 + $0xaa] sm:$0xff]
        %v3384 = vld [vmem:[#allocation2 + $0xb2] sm:$0xff]
        %v3385 = vld [vmem:[#allocation2 + $0xba] sm:$0xff]
        %v3386 = vld [vmem:[#allocation2 + $0xc2] sm:$0xff]
        %v3387 = vld [vmem:[#allocation2 + $0xca] sm:$0xff]
        %v3388 = vld [vmem:[#allocation2 + $0xd2] sm:$0xff]
        %v3389 = vld [vmem:[#allocation2 + $0xda] sm:$0xff]
        %v3390 = vld [vmem:[#allocation2 + $0xe2] sm:$0xff]
        %v3391 = vld [vmem:[#allocation2 + $0xea] sm:$0xff]
        %v3392 = vld [vmem:[#allocation2 + $0xf2] sm:$0xff]
        %v3393 = vld [vmem:[#allocation2 + $0xfa] sm:$0xff]
        %v3394 = vld [vmem:[#allocation2 + $0x102] sm:$0xff]
        %v3395 = vld [vmem:[#allocation2 + $0x10a] sm:$0xff]
        %v3396 = vld [vmem:[#allocation2 + $0x112] sm:$0xff]
        %v3397 = vld [vmem:[#allocation2 + $0x11a] sm:$0xff]
        %v3398 = vld [vmem:[#allocation2 + $0x122] sm:$0xff]
        %v3399 = vld [vmem:[#allocation2 + $0x12a] sm:$0xff]
        %v3400 = vld [vmem:[#allocation2 + $0x132] sm:$0xff]
        %v3401 = vld [vmem:[#allocation2 + $0x13a] sm:$0xff]
        %v3402 = vld [vmem:[#allocation2 + $0x142] sm:$0xff]
        %v3403 = vld [vmem:[#allocation2 + $0x2b] sm:$0xff]
        %v3404 = vld [vmem:[#allocation2 + $0x33] sm:$0xff]
        %v3405 = vld [vmem:[#allocation2 + $0x3b] sm:$0xff]
        %v3406 = vld [vmem:[#allocation2 + $0x43] sm:$0xff]
        %v3407 = vld [vmem:[#allocation2 + $0x4b] sm:$0xff]
        %v3408 = vld [vmem:[#allocation2 + $0x53] sm:$0xff]
        %v3409 = vld [vmem:[#allocation2 + $0x5b] sm:$0xff]
        %v3410 = vld [vmem:[#allocation2 + $0x63] sm:$0xff]
        %v3411 = vld [vmem:[#allocation2 + $0x6b] sm:$0xff]
        %v3412 = vld [vmem:[#allocation2 + $0x73] sm:$0xff]
        %v3413 = vld [vmem:[#allocation2 + $0x7b] sm:$0xff]
        %v3414 = vld [vmem:[#allocation2 + $0x83] sm:$0xff]
        %v3415 = vld [vmem:[#allocation2 + $0x8b] sm:$0xff]
        %v3416 = vld [vmem:[#allocation2 + $0x93] sm:$0xff]
        %v3417 = vld [vmem:[#allocation2 + $0x9b] sm:$0xff]
        %v3418 = vld [vmem:[#allocation2 + $0xa3] sm:$0xff]
        %v3419 = vld [vmem:[#allocation2 + $0xab] sm:$0xff]
        %v3420 = vld [vmem:[#allocation2 + $0xb3] sm:$0xff]
        %v3421 = vld [vmem:[#allocation2 + $0xbb] sm:$0xff]
        %v3422 = vld [vmem:[#allocation2 + $0xc3] sm:$0xff]
        %v3423 = vld [vmem:[#allocation2 + $0xcb] sm:$0xff]
        %v3424 = vld [vmem:[#allocation2 + $0xd3] sm:$0xff]
        %v3425 = vld [vmem:[#allocation2 + $0xdb] sm:$0xff]
        %v3426 = vld [vmem:[#allocation2 + $0xe3] sm:$0xff]
        %v3427 = vld [vmem:[#allocation2 + $0xeb] sm:$0xff]
        %v3428 = vld [vmem:[#allocation2 + $0xf3] sm:$0xff]
        %v3429 = vld [vmem:[#allocation2 + $0xfb] sm:$0xff]
        %v3430 = vld [vmem:[#allocation2 + $0x103] sm:$0xff]
        %v3431 = vld [vmem:[#allocation2 + $0x10b] sm:$0xff]
        %v3432 = vld [vmem:[#allocation2 + $0x113] sm:$0xff]
        %v3433 = vld [vmem:[#allocation2 + $0x11b] sm:$0xff]
        %v3434 = vld [vmem:[#allocation2 + $0x123] sm:$0xff]
        %v3435 = vld [vmem:[#allocation2 + $0x12b] sm:$0xff]
        %v3436 = vld [vmem:[#allocation2 + $0x133] sm:$0xff]
        %v3437 = vld [vmem:[#allocation2 + $0x13b] sm:$0xff]
        %v3438 = vld [vmem:[#allocation2 + $0x143] sm:$0xff]
        %v3439 = vpack.c.bf16 %v3184, %v3183
        %v3440 = vpack.c.bf16 %v3220, %v3219
        %v3441 = vpack.c.bf16 %v3256, %v3255
        %v3442 = vpack.c.bf16 %v3258, %v3257
        %v3443 = vpack.c.bf16 %v3294, %v3293
        %v3444 = vpack.c.bf16 %v3330, %v3329
        %v3445 = vpack.c.bf16 %v3332, %v3331
        %v3446 = vpack.c.bf16 %v3368, %v3367
        %v3447 = vpack.c.bf16 %v3404, %v3403
        %v3448 = vpack.c.bf16 %v3186, %v3185
        %v3449 = vpack.c.bf16 %v3222, %v3221
        %v3450 = vpack.c.bf16 %v3260, %v3259
        %v3451 = vpack.c.bf16 %v3296, %v3295
        %v3452 = vpack.c.bf16 %v3334, %v3333
        %v3453 = vpack.c.bf16 %v3370, %v3369
        %v3454 = vpack.c.bf16 %v3406, %v3405
        %v3455 = vpack.c.bf16 %v3188, %v3187
        %v3456 = vpack.c.bf16 %v3224, %v3223
        %v3457 = vpack.c.bf16 %v3262, %v3261
        %v3458 = vpack.c.bf16 %v3298, %v3297
        %v3459 = vpack.c.bf16 %v3336, %v3335
        %v3460 = vpack.c.bf16 %v3372, %v3371
        %v3461 = vpack.c.bf16 %v3408, %v3407
        %v3462 = vpack.c.bf16 %v3190, %v3189
        %v3463 = vpack.c.bf16 %v3226, %v3225
        %v3464 = vpack.c.bf16 %v3264, %v3263
        %v3465 = vpack.c.bf16 %v3300, %v3299
        %v3466 = vpack.c.bf16 %v3338, %v3337
        %v3467 = vpack.c.bf16 %v3374, %v3373
        %v3468 = vpack.c.bf16 %v3410, %v3409
        %v3469 = vpack.c.bf16 %v3192, %v3191
        %v3470 = vpack.c.bf16 %v3228, %v3227
        %v3471 = vpack.c.bf16 %v3266, %v3265
        %v3472 = vpack.c.bf16 %v3302, %v3301
        %v3473 = vpack.c.bf16 %v3340, %v3339
        %v3474 = vpack.c.bf16 %v3376, %v3375
        %v3475 = vpack.c.bf16 %v3412, %v3411
        %v3476 = vpack.c.bf16 %v3194, %v3193
        %v3477 = vpack.c.bf16 %v3230, %v3229
        %v3478 = vpack.c.bf16 %v3268, %v3267
        %v3479 = vpack.c.bf16 %v3304, %v3303
        %v3480 = vpack.c.bf16 %v3342, %v3341
        %v3481 = vpack.c.bf16 %v3378, %v3377
        %v3482 = vpack.c.bf16 %v3414, %v3413
        %v3483 = vpack.c.bf16 %v3196, %v3195
        %v3484 = vpack.c.bf16 %v3232, %v3231
        %v3485 = vpack.c.bf16 %v3270, %v3269
        %v3486 = vpack.c.bf16 %v3306, %v3305
        %v3487 = vpack.c.bf16 %v3344, %v3343
        %v3488 = vpack.c.bf16 %v3380, %v3379
        %v3489 = vpack.c.bf16 %v3416, %v3415
        %v3490 = vpack.c.bf16 %v3198, %v3197
        %v3491 = vpack.c.bf16 %v3234, %v3233
        %v3492 = vpack.c.bf16 %v3272, %v3271
        %v3493 = vpack.c.bf16 %v3308, %v3307
        %v3494 = vpack.c.bf16 %v3346, %v3345
        %v3495 = vpack.c.bf16 %v3382, %v3381
        %v3496 = vpack.c.bf16 %v3418, %v3417
        %v3497 = vpack.c.bf16 %v3200, %v3199
        %v3498 = vpack.c.bf16 %v3236, %v3235
        %v3499 = vpack.c.bf16 %v3274, %v3273
        %v3500 = vpack.c.bf16 %v3310, %v3309
        %v3501 = vpack.c.bf16 %v3348, %v3347
        %v3502 = vpack.c.bf16 %v3384, %v3383
        %v3503 = vpack.c.bf16 %v3420, %v3419
        %v3504 = vpack.c.bf16 %v3202, %v3201
        %v3505 = vpack.c.bf16 %v3238, %v3237
        %v3506 = vpack.c.bf16 %v3276, %v3275
        %v3507 = vpack.c.bf16 %v3312, %v3311
        %v3508 = vpack.c.bf16 %v3350, %v3349
        %v3509 = vpack.c.bf16 %v3386, %v3385
        %v3510 = vpack.c.bf16 %v3422, %v3421
        %v3511 = vpack.c.bf16 %v3204, %v3203
        %v3512 = vpack.c.bf16 %v3240, %v3239
        %v3513 = vpack.c.bf16 %v3278, %v3277
        %v3514 = vpack.c.bf16 %v3314, %v3313
        %v3515 = vpack.c.bf16 %v3352, %v3351
        %v3516 = vpack.c.bf16 %v3388, %v3387
        %v3517 = vpack.c.bf16 %v3424, %v3423
        %v3518 = vpack.c.bf16 %v3206, %v3205
        %v3519 = vpack.c.bf16 %v3242, %v3241
        %v3520 = vpack.c.bf16 %v3280, %v3279
        %v3521 = vpack.c.bf16 %v3316, %v3315
        %v3522 = vpack.c.bf16 %v3354, %v3353
        %v3523 = vpack.c.bf16 %v3390, %v3389
        %v3524 = vpack.c.bf16 %v3426, %v3425
        %v3525 = vpack.c.bf16 %v3208, %v3207
        %v3526 = vpack.c.bf16 %v3244, %v3243
        %v3527 = vpack.c.bf16 %v3282, %v3281
        %v3528 = vpack.c.bf16 %v3318, %v3317
        %v3529 = vpack.c.bf16 %v3356, %v3355
        %v3530 = vpack.c.bf16 %v3392, %v3391
        %v3531 = vpack.c.bf16 %v3428, %v3427
        %v3532 = vpack.c.bf16 %v3210, %v3209
        %v3533 = vpack.c.bf16 %v3246, %v3245
        %v3534 = vpack.c.bf16 %v3284, %v3283
        %v3535 = vpack.c.bf16 %v3320, %v3319
        %v3536 = vpack.c.bf16 %v3358, %v3357
        %v3537 = vpack.c.bf16 %v3394, %v3393
        %v3538 = vpack.c.bf16 %v3430, %v3429
        %v3539 = vpack.c.bf16 %v3212, %v3211
        %v3540 = vpack.c.bf16 %v3248, %v3247
        %v3541 = vpack.c.bf16 %v3286, %v3285
        %v3542 = vpack.c.bf16 %v3322, %v3321
        %v3543 = vpack.c.bf16 %v3360, %v3359
        %v3544 = vpack.c.bf16 %v3396, %v3395
        %v3545 = vpack.c.bf16 %v3432, %v3431
        %v3546 = vpack.c.bf16 %v3214, %v3213
        %v3547 = vpack.c.bf16 %v3250, %v3249
        %v3548 = vpack.c.bf16 %v3288, %v3287
        %v3549 = vpack.c.bf16 %v3324, %v3323
        %v3550 = vpack.c.bf16 %v3362, %v3361
        %v3551 = vpack.c.bf16 %v3398, %v3397
        %v3552 = vpack.c.bf16 %v3434, %v3433
        %v3553 = vpack.c.bf16 %v3216, %v3215
        %v3554 = vpack.c.bf16 %v3252, %v3251
        %v3555 = vpack.c.bf16 %v3290, %v3289
        %v3556 = vpack.c.bf16 %v3326, %v3325
        %v3557 = vpack.c.bf16 %v3364, %v3363
        %v3558 = vpack.c.bf16 %v3400, %v3399
        %v3559 = vpack.c.bf16 %v3436, %v3435
        %v3560 = vpack.c.bf16 %v3218, %v3217
        %v3561 = vpack.c.bf16 %v3254, %v3253
        %v3562 = vpack.c.bf16 %v3292, %v3291
        %v3563 = vpack.c.bf16 %v3328, %v3327
        %v3564 = vpack.c.bf16 %v3366, %v3365
        %v3565 = vpack.c.bf16 %v3402, %v3401
        %v3566 = vpack.c.bf16 %v3438, %v3437
        %v3567 = vld [vmem:[#allocation9] sm:$0xf]
        %v3568 = vld [vmem:[#allocation9 + $0x4] sm:$0xf]
        %v3569 = vld [vmem:[#allocation9 + $0x8] sm:$0xf]
        %v3570 = vld [vmem:[#allocation9 + $0xc] sm:$0xf]
        %v3571 = vld [vmem:[#allocation9 + $0x10] sm:$0xf]
        %v3572 = vld [vmem:[#allocation9 + $0x14] sm:$0xf]
        %v3573 = vld [vmem:[#allocation9 + $0x18] sm:$0xf]
        %v3574 = vld [vmem:[#allocation9 + $0x1c] sm:$0xf]
        %v3575 = vld [vmem:[#allocation9 + $0x20] sm:$0xf]
        %v3576 = vld [vmem:[#allocation9 + $0x24] sm:$0xf]
        %v3577 = vld [vmem:[#allocation9 + $0x28] sm:$0xf]
        %v3578 = vld [vmem:[#allocation9 + $0x2c] sm:$0xf]
        %v3579 = vld [vmem:[#allocation9 + $0x30] sm:$0xf]
        %v3580 = vld [vmem:[#allocation9 + $0x34] sm:$0xf]
        %v3581 = vld [vmem:[#allocation9 + $0x38] sm:$0xf]
        %v3582 = vld [vmem:[#allocation9 + $0x3c] sm:$0xf]
        %v3583 = vld [vmem:[#allocation9 + $0x40] sm:$0xf]
        %v3584 = vld [vmem:[#allocation9 + $0x44] sm:$0xf]
        %v3585 = vld [vmem:[#allocation9 + $0x48] sm:$0xf]
        %v3586 = vld [vmem:[#allocation9 + $0x4c] sm:$0xf]
        %v3587 = vld [vmem:[#allocation9 + $0x50] sm:$0xf]
        %v3588 = vld [vmem:[#allocation9 + $0x54] sm:$0xf]
        %v3589 = vld [vmem:[#allocation9 + $0x58] sm:$0xf]
        %v3590 = vld [vmem:[#allocation9 + $0x5c] sm:$0xf]
        %v3591 = vld [vmem:[#allocation9 + $0x60] sm:$0xf]
        %v3592 = vld [vmem:[#allocation9 + $0x64] sm:$0xf]
        %v3593 = vld [vmem:[#allocation9 + $0x68] sm:$0xf]
        %v3594 = vld [vmem:[#allocation9 + $0x6c] sm:$0xf]
        %v3595 = vld [vmem:[#allocation9 + $0x70] sm:$0xf]
        %v3596 = vld [vmem:[#allocation9 + $0x74] sm:$0xf]
        %v3597 = vld [vmem:[#allocation9 + $0x78] sm:$0xf]
        %v3598 = vld [vmem:[#allocation9 + $0x7c] sm:$0xf]
        %v3599 = vld [vmem:[#allocation9 + $0x80] sm:$0xf]
        %v3600 = vld [vmem:[#allocation9 + $0x84] sm:$0xf]
        %v3601 = vld [vmem:[#allocation9 + $0x88] sm:$0xf]
        %v3602 = vld [vmem:[#allocation9 + $0x8c] sm:$0xf]
        %v3603 = vld [vmem:[#allocation9 + $0x90] sm:$0xf]
        %v3604 = vld [vmem:[#allocation9 + $0x94] sm:$0xf]
        %v3605 = vld [vmem:[#allocation9 + $0x98] sm:$0xf]
        %v3606 = vld [vmem:[#allocation9 + $0x9c] sm:$0xf]
        %v3607 = vld [vmem:[#allocation9 + $0xa0] sm:$0xf]
        %v3608 = vld [vmem:[#allocation9 + $0xa4] sm:$0xf]
        %v3609 = vld [vmem:[#allocation9 + $0xa8] sm:$0xf]
        %v3610 = vld [vmem:[#allocation9 + $0xac] sm:$0xf]
        %v3611 = vld [vmem:[#allocation9 + $0xb0] sm:$0xf]
        %v3612 = vld [vmem:[#allocation9 + $0xb4] sm:$0xf]
        %v3613 = vld [vmem:[#allocation9 + $0xb8] sm:$0xf]
        %v3614 = vld [vmem:[#allocation9 + $0xbc] sm:$0xf]
        %v3615 = vld [vmem:[#allocation9 + $0xc0] sm:$0xf]
        %v3616 = vld [vmem:[#allocation9 + $0xc4] sm:$0xf]
        %v3617 = vld [vmem:[#allocation9 + $0xc8] sm:$0xf]
        %v3618 = vld [vmem:[#allocation9 + $0xcc] sm:$0xf]
        %v3619 = vld [vmem:[#allocation9 + $0xd0] sm:$0xf]
        %v3620 = vld [vmem:[#allocation9 + $0xd4] sm:$0xf]
        %v3621 = vld [vmem:[#allocation9 + $0xd8] sm:$0xf]
        %v3622 = vld [vmem:[#allocation9 + $0xdc] sm:$0xf]
        %v3623 = vld [vmem:[#allocation9 + $0xe0] sm:$0xf]
        %v3624 = vld [vmem:[#allocation9 + $0xe4] sm:$0xf]
        %v3625 = vld [vmem:[#allocation9 + $0xe8] sm:$0xf]
        %v3626 = vld [vmem:[#allocation9 + $0xec] sm:$0xf]
        %v3627 = vld [vmem:[#allocation9 + $0xf0] sm:$0xf]
        %v3628 = vld [vmem:[#allocation9 + $0xf4] sm:$0xf]
        %v3629 = vld [vmem:[#allocation9 + $0xf8] sm:$0xf]
        %v3630 = vld [vmem:[#allocation9 + $0xfc] sm:$0xf]
        %v3631 = vld [vmem:[#allocation9 + $0x100] sm:$0xf]
        %v3632 = vld [vmem:[#allocation9 + $0x104] sm:$0xf]
        %v3633 = vld [vmem:[#allocation9 + $0x108] sm:$0xf]
        %v3634 = vld [vmem:[#allocation9 + $0x10c] sm:$0xf]
        %v3635 = vld [vmem:[#allocation9 + $0x110] sm:$0xf]
        %v3636 = vld [vmem:[#allocation9 + $0x114] sm:$0xf]
        %v3637 = vld [vmem:[#allocation9 + $0x118] sm:$0xf]
        %v3638 = vld [vmem:[#allocation9 + $0x11c] sm:$0xf]
        %v3639 = vld [vmem:[#allocation9 + $0x120] sm:$0xf]
        %v3640 = vld [vmem:[#allocation9 + $0x124] sm:$0xf]
        %v3641 = vld [vmem:[#allocation9 + $0x128] sm:$0xf]
        %v3642 = vld [vmem:[#allocation9 + $0x12c] sm:$0xf]
        %v3643 = vld [vmem:[#allocation9 + $0x130] sm:$0xf]
        %v3644 = vld [vmem:[#allocation9 + $0x134] sm:$0xf]
        %v3645 = vld [vmem:[#allocation9 + $0x138] sm:$0xf]
        %v3646 = vld [vmem:[#allocation9 + $0x13c] sm:$0xf]
        %v3647 = vld [vmem:[#allocation9 + $0x140] sm:$0xf]
        %v3648 = vld [vmem:[#allocation9 + $0x144] sm:$0xf]
        %v3649 = vld [vmem:[#allocation9 + $0x148] sm:$0xf]
        %v3650 = vld [vmem:[#allocation9 + $0x14c] sm:$0xf]
        %v3651 = vld [vmem:[#allocation9 + $0x150] sm:$0xf]
        %v3652 = vld [vmem:[#allocation9 + $0x154] sm:$0xf]
        %v3653 = vld [vmem:[#allocation9 + $0x158] sm:$0xf]
        %v3654 = vld [vmem:[#allocation9 + $0x15c] sm:$0xf]
        %v3655 = vld [vmem:[#allocation9 + $0x160] sm:$0xf]
        %v3656 = vld [vmem:[#allocation9 + $0x164] sm:$0xf]
        %v3657 = vld [vmem:[#allocation9 + $0x168] sm:$0xf]
        %v3658 = vld [vmem:[#allocation9 + $0x16c] sm:$0xf]
        %v3659 = vld [vmem:[#allocation9 + $0x170] sm:$0xf]
        %v3660 = vld [vmem:[#allocation9 + $0x174] sm:$0xf]
        %v3661 = vld [vmem:[#allocation9 + $0x178] sm:$0xf]
        %v3662 = vld [vmem:[#allocation9 + $0x17c] sm:$0xf]
        %v3663 = vld [vmem:[#allocation9 + $0x180] sm:$0xf]
        %v3664 = vld [vmem:[#allocation9 + $0x184] sm:$0xf]
        %v3665 = vld [vmem:[#allocation9 + $0x188] sm:$0xf]
        %v3666 = vld [vmem:[#allocation9 + $0x18c] sm:$0xf]
        %v3667 = vld [vmem:[#allocation9 + $0x190] sm:$0xf]
        %v3668 = vld [vmem:[#allocation9 + $0x194] sm:$0xf]
        %v3669 = vld [vmem:[#allocation9 + $0x198] sm:$0xf]
        %v3670 = vld [vmem:[#allocation9 + $0x19c] sm:$0xf]
        %v3671 = vld [vmem:[#allocation9 + $0x1a0] sm:$0xf]
        %v3672 = vld [vmem:[#allocation9 + $0x1a4] sm:$0xf]
        %v3673 = vld [vmem:[#allocation9 + $0x1a8] sm:$0xf]
        %v3674 = vld [vmem:[#allocation9 + $0x1ac] sm:$0xf]
        %v3675 = vld [vmem:[#allocation9 + $0x1b0] sm:$0xf]
        %v3676 = vld [vmem:[#allocation9 + $0x1b4] sm:$0xf]
        %v3677 = vld [vmem:[#allocation9 + $0x1b8] sm:$0xf]
        %v3678 = vld [vmem:[#allocation9 + $0x1bc] sm:$0xf]
        %v3679 = vld [vmem:[#allocation9 + $0x1c0] sm:$0xf]
        %v3680 = vld [vmem:[#allocation9 + $0x1c4] sm:$0xf]
        %v3681 = vld [vmem:[#allocation9 + $0x1c8] sm:$0xf]
        %v3682 = vld [vmem:[#allocation9 + $0x1cc] sm:$0xf]
        %v3683 = vld [vmem:[#allocation9 + $0x1d0] sm:$0xf]
        %v3684 = vld [vmem:[#allocation9 + $0x1d4] sm:$0xf]
        %v3685 = vld [vmem:[#allocation9 + $0x1d8] sm:$0xf]
        %v3686 = vld [vmem:[#allocation9 + $0x1dc] sm:$0xf]
        %v3687 = vld [vmem:[#allocation9 + $0x1e0] sm:$0xf]
        %v3688 = vld [vmem:[#allocation9 + $0x1e4] sm:$0xf]
        %v3689 = vld [vmem:[#allocation9 + $0x1e8] sm:$0xf]
        %v3690 = vld [vmem:[#allocation9 + $0x1ec] sm:$0xf]
        %v3691 = vld [vmem:[#allocation9 + $0x1f0] sm:$0xf]
        %v3692 = vld [vmem:[#allocation9 + $0x1f4] sm:$0xf]
        %v3693 = vld [vmem:[#allocation9 + $0x1f8] sm:$0xf]
        %v3694 = vld [vmem:[#allocation9 + $0x1fc] sm:$0xf]
        %v3695 = vld [vmem:[#allocation9 + $0x200] sm:$0xf]
        %v3696 = vld [vmem:[#allocation9 + $0x204] sm:$0xf]
        %v3697 = vld [vmem:[#allocation9 + $0x208] sm:$0xf]
        %v3698 = vld [vmem:[#allocation9 + $0x20c] sm:$0xf]
        %v3699 = vld [vmem:[#allocation9 + $0x210] sm:$0xf]
        %v3700 = vld [vmem:[#allocation9 + $0x214] sm:$0xf]
        %v3701 = vld [vmem:[#allocation9 + $0x218] sm:$0xf]
        %v3702 = vld [vmem:[#allocation9 + $0x21c] sm:$0xf]
        %v3703 = vld [vmem:[#allocation9 + $0x220] sm:$0xf]
        %v3704 = vld [vmem:[#allocation9 + $0x224] sm:$0xf]
        %v3705 = vld [vmem:[#allocation9 + $0x228] sm:$0xf]
        %v3706 = vld [vmem:[#allocation9 + $0x22c] sm:$0xf]
        %v3707 = vld [vmem:[#allocation9 + $0x230] sm:$0xf]
        %v3708 = vld [vmem:[#allocation9 + $0x234] sm:$0xf]
        %v3709 = vld [vmem:[#allocation9 + $0x238] sm:$0xf]
        %v3710 = vld [vmem:[#allocation9 + $0x23c] sm:$0xf]
        %v3711 = vld [vmem:[%s7] sm:$0x1]
        %v3713 = vlaneseq
        %v3714 = vshrl.u32 %v3713, 7
        %v3715 = vsub.s32 0, %v3714
        %v3716 = vrot.slane %v3711, %v3715
        %v3862 = vunpack.c.l.b16 %v3567
        %v3863 = vunpack.c.l.b16 %v3568
        %v3864 = vunpack.c.l.b16 %v3569
        %v3865 = vunpack.c.l.b16 %v3570
        %v3866 = vunpack.c.l.b16 %v3571
        %v3867 = vunpack.c.l.b16 %v3572
        %v3868 = vunpack.c.l.b16 %v3573
        %v3869 = vunpack.c.l.b16 %v3574
        %v3870 = vunpack.c.l.b16 %v3575
        %v3871 = vunpack.c.l.b16 %v3576
        %v3872 = vunpack.c.l.b16 %v3577
        %v3873 = vunpack.c.l.b16 %v3578
        %v3874 = vunpack.c.l.b16 %v3579
        %v3875 = vunpack.c.l.b16 %v3580
        %v3876 = vunpack.c.l.b16 %v3581
        %v3877 = vunpack.c.l.b16 %v3582
        %v3878 = vunpack.c.l.b16 %v3583
        %v3879 = vunpack.c.l.b16 %v3584
        %v3880 = vunpack.c.l.b16 %v3585
        %v3881 = vunpack.c.l.b16 %v3586
        %v3882 = vunpack.c.l.b16 %v3587
        %v3883 = vunpack.c.l.b16 %v3588
        %v3884 = vunpack.c.l.b16 %v3589
        %v3885 = vunpack.c.l.b16 %v3590
        %v3886 = vunpack.c.l.b16 %v3591
        %v3887 = vunpack.c.l.b16 %v3592
        %v3888 = vunpack.c.l.b16 %v3593
        %v3889 = vunpack.c.l.b16 %v3594
        %v3890 = vunpack.c.l.b16 %v3595
        %v3891 = vunpack.c.l.b16 %v3596
        %v3892 = vunpack.c.l.b16 %v3597
        %v3893 = vunpack.c.l.b16 %v3598
        %v3894 = vunpack.c.l.b16 %v3599
        %v3895 = vunpack.c.l.b16 %v3600
        %v3896 = vunpack.c.l.b16 %v3601
        %v3897 = vunpack.c.l.b16 %v3602
        %v3898 = vunpack.c.l.b16 %v3603
        %v3899 = vunpack.c.l.b16 %v3604
        %v3900 = vunpack.c.l.b16 %v3605
        %v3901 = vunpack.c.l.b16 %v3606
        %v3902 = vunpack.c.l.b16 %v3607
        %v3903 = vunpack.c.l.b16 %v3608
        %v3904 = vunpack.c.l.b16 %v3609
        %v3905 = vunpack.c.l.b16 %v3610
        %v3906 = vunpack.c.l.b16 %v3611
        %v3907 = vunpack.c.l.b16 %v3612
        %v3908 = vunpack.c.l.b16 %v3613
        %v3909 = vunpack.c.l.b16 %v3614
        %v3910 = vunpack.c.l.b16 %v3615
        %v3911 = vunpack.c.l.b16 %v3616
        %v3912 = vunpack.c.l.b16 %v3617
        %v3913 = vunpack.c.l.b16 %v3618
        %v3914 = vunpack.c.l.b16 %v3619
        %v3915 = vunpack.c.l.b16 %v3620
        %v3916 = vunpack.c.l.b16 %v3621
        %v3917 = vunpack.c.l.b16 %v3622
        %v3918 = vunpack.c.l.b16 %v3623
        %v3919 = vunpack.c.l.b16 %v3624
        %v3920 = vunpack.c.l.b16 %v3625
        %v3921 = vunpack.c.l.b16 %v3626
        %v3922 = vunpack.c.l.b16 %v3627
        %v3923 = vunpack.c.l.b16 %v3628
        %v3924 = vunpack.c.l.b16 %v3629
        %v3925 = vunpack.c.l.b16 %v3630
        %v3926 = vunpack.c.l.b16 %v3631
        %v3927 = vunpack.c.l.b16 %v3632
        %v3928 = vunpack.c.l.b16 %v3633
        %v3929 = vunpack.c.l.b16 %v3634
        %v3930 = vunpack.c.l.b16 %v3635
        %v3931 = vunpack.c.l.b16 %v3636
        %v3932 = vunpack.c.l.b16 %v3637
        %v3933 = vunpack.c.l.b16 %v3638
        %v3934 = vunpack.c.l.b16 %v3639
        %v3935 = vunpack.c.l.b16 %v3640
        %v3936 = vunpack.c.l.b16 %v3641
        %v3937 = vunpack.c.l.b16 %v3642
        %v3938 = vunpack.c.l.b16 %v3643
        %v3939 = vunpack.c.l.b16 %v3644
        %v3940 = vunpack.c.l.b16 %v3645
        %v3941 = vunpack.c.l.b16 %v3646
        %v3942 = vunpack.c.l.b16 %v3647
        %v3943 = vunpack.c.l.b16 %v3648
        %v3944 = vunpack.c.l.b16 %v3649
        %v3945 = vunpack.c.l.b16 %v3650
        %v3946 = vunpack.c.l.b16 %v3651
        %v3947 = vunpack.c.l.b16 %v3652
        %v3948 = vunpack.c.l.b16 %v3653
        %v3949 = vunpack.c.l.b16 %v3654
        %v3950 = vunpack.c.l.b16 %v3655
        %v3951 = vunpack.c.l.b16 %v3656
        %v3952 = vunpack.c.l.b16 %v3657
        %v3953 = vunpack.c.l.b16 %v3658
        %v3954 = vunpack.c.l.b16 %v3659
        %v3955 = vunpack.c.l.b16 %v3660
        %v3956 = vunpack.c.l.b16 %v3661
        %v3957 = vunpack.c.l.b16 %v3662
        %v3958 = vunpack.c.l.b16 %v3663
        %v3959 = vunpack.c.l.b16 %v3664
        %v3960 = vunpack.c.l.b16 %v3665
        %v3961 = vunpack.c.l.b16 %v3666
        %v3962 = vunpack.c.l.b16 %v3667
        %v3963 = vunpack.c.l.b16 %v3668
        %v3964 = vunpack.c.l.b16 %v3669
        %v3965 = vunpack.c.l.b16 %v3670
        %v3966 = vunpack.c.l.b16 %v3671
        %v3967 = vunpack.c.l.b16 %v3672
        %v3968 = vunpack.c.l.b16 %v3673
        %v3969 = vunpack.c.l.b16 %v3674
        %v3970 = vunpack.c.l.b16 %v3675
        %v3971 = vunpack.c.l.b16 %v3676
        %v3972 = vunpack.c.l.b16 %v3677
        %v3973 = vunpack.c.l.b16 %v3678
        %v3974 = vunpack.c.l.b16 %v3679
        %v3975 = vunpack.c.l.b16 %v3680
        %v3976 = vunpack.c.l.b16 %v3681
        %v3977 = vunpack.c.l.b16 %v3682
        %v3978 = vunpack.c.l.b16 %v3683
        %v3979 = vunpack.c.l.b16 %v3684
        %v3980 = vunpack.c.l.b16 %v3685
        %v3981 = vunpack.c.l.b16 %v3686
        %v3982 = vunpack.c.l.b16 %v3687
        %v3983 = vunpack.c.l.b16 %v3688
        %v3984 = vunpack.c.l.b16 %v3689
        %v3985 = vunpack.c.l.b16 %v3690
        %v3986 = vunpack.c.l.b16 %v3691
        %v3987 = vunpack.c.l.b16 %v3692
        %v3988 = vunpack.c.l.b16 %v3693
        %v3989 = vunpack.c.l.b16 %v3694
        %v3990 = vunpack.c.l.b16 %v3695
        %v3991 = vunpack.c.l.b16 %v3696
        %v3992 = vunpack.c.l.b16 %v3697
        %v3993 = vunpack.c.l.b16 %v3698
        %v3994 = vunpack.c.l.b16 %v3699
        %v3995 = vunpack.c.l.b16 %v3700
        %v3996 = vunpack.c.l.b16 %v3701
        %v3997 = vunpack.c.l.b16 %v3702
        %v3998 = vunpack.c.l.b16 %v3703
        %v3999 = vunpack.c.l.b16 %v3704
        %v4000 = vunpack.c.l.b16 %v3705
        %v4001 = vunpack.c.l.b16 %v3706
        %v4002 = vunpack.c.l.b16 %v3707
        %v4003 = vunpack.c.l.b16 %v3708
        %v4004 = vunpack.c.l.b16 %v3709
        %v4005 = vunpack.c.l.b16 %v3710
        %v4006 = vpack.c.b16 %v3863, %v3862
        %v4007 = vpack.c.b16 %v3865, %v3864
        %v4008 = vpack.c.b16 %v3867, %v3866
        %v4009 = vpack.c.b16 %v3869, %v3868
        %v4010 = vpack.c.b16 %v3871, %v3870
        %v4011 = vpack.c.b16 %v3873, %v3872
        %v4012 = vpack.c.b16 %v3875, %v3874
        %v4013 = vpack.c.b16 %v3877, %v3876
        %v4014 = vpack.c.b16 %v3879, %v3878
        %v4015 = vpack.c.b16 %v3881, %v3880
        %v4016 = vpack.c.b16 %v3883, %v3882
        %v4017 = vpack.c.b16 %v3885, %v3884
        %v4018 = vpack.c.b16 %v3887, %v3886
        %v4019 = vpack.c.b16 %v3889, %v3888
        %v4020 = vpack.c.b16 %v3891, %v3890
        %v4021 = vpack.c.b16 %v3893, %v3892
        %v4022 = vpack.c.b16 %v3895, %v3894
        %v4023 = vpack.c.b16 %v3897, %v3896
        %v4024 = vpack.c.b16 %v3899, %v3898
        %v4025 = vpack.c.b16 %v3901, %v3900
        %v4026 = vpack.c.b16 %v3903, %v3902
        %v4027 = vpack.c.b16 %v3905, %v3904
        %v4028 = vpack.c.b16 %v3907, %v3906
        %v4029 = vpack.c.b16 %v3909, %v3908
        %v4030 = vpack.c.b16 %v3911, %v3910
        %v4031 = vpack.c.b16 %v3913, %v3912
        %v4032 = vpack.c.b16 %v3915, %v3914
        %v4033 = vpack.c.b16 %v3917, %v3916
        %v4034 = vpack.c.b16 %v3919, %v3918
        %v4035 = vpack.c.b16 %v3921, %v3920
        %v4036 = vpack.c.b16 %v3923, %v3922
        %v4037 = vpack.c.b16 %v3925, %v3924
        %v4038 = vpack.c.b16 %v3927, %v3926
        %v4039 = vpack.c.b16 %v3929, %v3928
        %v4040 = vpack.c.b16 %v3931, %v3930
        %v4041 = vpack.c.b16 %v3933, %v3932
        %v4042 = vpack.c.b16 %v3935, %v3934
        %v4043 = vpack.c.b16 %v3937, %v3936
        %v4044 = vpack.c.b16 %v3939, %v3938
        %v4045 = vpack.c.b16 %v3941, %v3940
        %v4046 = vpack.c.b16 %v3943, %v3942
        %v4047 = vpack.c.b16 %v3945, %v3944
        %v4048 = vpack.c.b16 %v3947, %v3946
        %v4049 = vpack.c.b16 %v3949, %v3948
        %v4050 = vpack.c.b16 %v3951, %v3950
        %v4051 = vpack.c.b16 %v3953, %v3952
        %v4052 = vpack.c.b16 %v3955, %v3954
        %v4053 = vpack.c.b16 %v3957, %v3956
        %v4054 = vpack.c.b16 %v3959, %v3958
        %v4055 = vpack.c.b16 %v3961, %v3960
        %v4056 = vpack.c.b16 %v3963, %v3962
        %v4057 = vpack.c.b16 %v3965, %v3964
        %v4058 = vpack.c.b16 %v3967, %v3966
        %v4059 = vpack.c.b16 %v3969, %v3968
        %v4060 = vpack.c.b16 %v3971, %v3970
        %v4061 = vpack.c.b16 %v3973, %v3972
        %v4062 = vpack.c.b16 %v3975, %v3974
        %v4063 = vpack.c.b16 %v3977, %v3976
        %v4064 = vpack.c.b16 %v3979, %v3978
        %v4065 = vpack.c.b16 %v3981, %v3980
        %v4066 = vpack.c.b16 %v3983, %v3982
        %v4067 = vpack.c.b16 %v3985, %v3984
        %v4068 = vpack.c.b16 %v3987, %v3986
        %v4069 = vpack.c.b16 %v3989, %v3988
        %v4070 = vpack.c.b16 %v3991, %v3990
        %v4071 = vpack.c.b16 %v3993, %v3992
        %v4072 = vpack.c.b16 %v3995, %v3994
        %v4073 = vpack.c.b16 %v3997, %v3996
        %v4074 = vpack.c.b16 %v3999, %v3998
        %v4075 = vpack.c.b16 %v4001, %v4000
        %v4076 = vpack.c.b16 %v4003, %v4002
        %v4077 = vpack.c.b16 %v4005, %v4004
        %4150 = vmatprep.subr.bf16.mxu0 0
        %4151 = vmatpush1.bf16.msra.mxu0 %v4013
        %4152 = vmatprep.subr.bf16.mxu0 0
        %4153 = vmatpush1.bf16.msra.mxu0 %v4012
        %4154 = vmatprep.subr.bf16.mxu0 0
        %4155 = vmatpush1.bf16.msra.mxu0 %v4011
        %4156 = vmatprep.subr.bf16.mxu0 0
        %4157 = vmatpush1.bf16.msra.mxu0 %v4010
        %4158 = vmatprep.subr.bf16.mxu0 0
        %4159 = vmatpush1.bf16.msra.mxu0 %v4009
        %4160 = vmatprep.subr.bf16.mxu0 0
        %4161 = vmatpush1.bf16.msra.mxu0 %v4008
        %4162 = vmatprep.subr.bf16.mxu0 0
        %4163 = vmatpush1.bf16.msra.mxu0 %v4007
        %4164 = vmatprep.subr.bf16.mxu0 0
        %4165 = vmatpush1.bf16.msra.mxu0 %v4006
        %4166 = vmatprep.subr.bf16.mxu0 0
        %4167 = vmatpush2.bf16.msra.mxu0 %v4021
        %4168 = vmatprep.subr.bf16.mxu0 0
        %4169 = vmatpush2.bf16.msra.mxu0 %v4020
        %4170 = vmatprep.subr.bf16.mxu0 0
        %4171 = vmatpush2.bf16.msra.mxu0 %v4019
        %4172 = vmatprep.subr.bf16.mxu0 0
        %4173 = vmatpush2.bf16.msra.mxu0 %v4018
        %4174 = vmatprep.subr.bf16.mxu0 0
        %4175 = vmatpush2.bf16.msra.mxu0 %v4017
        %4176 = vmatprep.subr.bf16.mxu0 0
        %4177 = vmatpush2.bf16.msra.mxu0 %v4016
        %4178 = vmatprep.subr.bf16.mxu0 0
        %4179 = vmatpush2.bf16.msra.mxu0 %v4015
        %4180 = vmatprep.subr.bf16.mxu0 0
        %4181 = vmatpush2.bf16.msra.mxu0 %v4014
        %4182 = vmatprep.mubr.bf16.mxu0 %v3440
        %4183 = vmatmul.mubr.bf16.gmra.mxu0 %v3439
        %v4184 = vpop.f32.mrf.mxu0
        %v4185 = vadd.f32 %v3716, %v4184
        %v4186 = vpop.f32.mrf.mxu0
        %v4187 = vpop.f32.mrf.mxu0
        %v4188 = vadd.f32 %v3716, %v4187
        %v4189 = vpop.f32.mrf.mxu0
        %4190 = vmatprep.mubr.bf16.mxu0 %v3449
        %4191 = vmatmul.mubr.bf16.gmra.mxu0 %v3448
        %v4192 = vpop.f32.mrf.mxu0
        %v4193 = vadd.f32 %v3716, %v4192
        %v4194 = vpop.f32.mrf.mxu0
        %v4195 = vpop.f32.mrf.mxu0
        %v4196 = vadd.f32 %v3716, %v4195
        %v4197 = vpop.f32.mrf.mxu0
        %4198 = vmatprep.mubr.bf16.mxu0 %v3456
        %4199 = vmatmul.mubr.bf16.gmra.mxu0 %v3455
        %v4200 = vpop.f32.mrf.mxu0
        %v4201 = vadd.f32 %v3716, %v4200
        %v4202 = vpop.f32.mrf.mxu0
        %v4203 = vpop.f32.mrf.mxu0
        %v4204 = vadd.f32 %v3716, %v4203
        %v4205 = vpop.f32.mrf.mxu0
        %4206 = vmatprep.mubr.bf16.mxu0 %v3463
        %4207 = vmatmul.mubr.bf16.gmra.mxu0 %v3462
        %v4208 = vpop.f32.mrf.mxu0
        %v4209 = vadd.f32 %v3716, %v4208
        %v4210 = vpop.f32.mrf.mxu0
        %v4211 = vpop.f32.mrf.mxu0
        %v4212 = vadd.f32 %v3716, %v4211
        %v4213 = vpop.f32.mrf.mxu0
        %4214 = vmatprep.mubr.bf16.mxu0 %v3470
        %4215 = vmatmul.mubr.bf16.gmra.mxu0 %v3469
        %v4216 = vpop.f32.mrf.mxu0
        %v4217 = vadd.f32 %v3716, %v4216
        %v4218 = vpop.f32.mrf.mxu0
        %v4219 = vpop.f32.mrf.mxu0
        %v4220 = vadd.f32 %v3716, %v4219
        %v4221 = vpop.f32.mrf.mxu0
        %4222 = vmatprep.mubr.bf16.mxu0 %v3477
        %4223 = vmatmul.mubr.bf16.gmra.mxu0 %v3476
        %v4224 = vpop.f32.mrf.mxu0
        %v4225 = vadd.f32 %v3716, %v4224
        %v4226 = vpop.f32.mrf.mxu0
        %v4227 = vpop.f32.mrf.mxu0
        %v4228 = vadd.f32 %v3716, %v4227
        %v4229 = vpop.f32.mrf.mxu0
        %4230 = vmatprep.mubr.bf16.mxu0 %v3484
        %4231 = vmatmul.mubr.bf16.gmra.mxu0 %v3483
        %v4232 = vpop.f32.mrf.mxu0
        %v4233 = vadd.f32 %v3716, %v4232
        %v4234 = vpop.f32.mrf.mxu0
        %v4235 = vpop.f32.mrf.mxu0
        %v4236 = vadd.f32 %v3716, %v4235
        %v4237 = vpop.f32.mrf.mxu0
        %4238 = vmatprep.mubr.bf16.mxu0 %v3491
        %4239 = vmatmul.mubr.bf16.gmra.mxu0 %v3490
        %v4240 = vpop.f32.mrf.mxu0
        %v4241 = vadd.f32 %v3716, %v4240
        %v4242 = vpop.f32.mrf.mxu0
        %v4243 = vpop.f32.mrf.mxu0
        %v4244 = vadd.f32 %v3716, %v4243
        %v4245 = vpop.f32.mrf.mxu0
        %4246 = vmatprep.mubr.bf16.mxu0 %v3498
        %4247 = vmatmul.mubr.bf16.gmra.mxu0 %v3497
        %v4248 = vpop.f32.mrf.mxu0
        %v4249 = vadd.f32 %v3716, %v4248
        %v4250 = vpop.f32.mrf.mxu0
        %v4251 = vpop.f32.mrf.mxu0
        %v4252 = vadd.f32 %v3716, %v4251
        %v4253 = vpop.f32.mrf.mxu0
        %4254 = vmatprep.mubr.bf16.mxu0 %v3505
        %4255 = vmatmul.mubr.bf16.gmra.mxu0 %v3504
        %v4256 = vpop.f32.mrf.mxu0
        %v4257 = vadd.f32 %v3716, %v4256
        %v4258 = vpop.f32.mrf.mxu0
        %v4259 = vpop.f32.mrf.mxu0
        %v4260 = vadd.f32 %v3716, %v4259
        %v4261 = vpop.f32.mrf.mxu0
        %4262 = vmatprep.mubr.bf16.mxu0 %v3512
        %4263 = vmatmul.mubr.bf16.gmra.mxu0 %v3511
        %v4264 = vpop.f32.mrf.mxu0
        %v4265 = vadd.f32 %v3716, %v4264
        %v4266 = vpop.f32.mrf.mxu0
        %v4267 = vpop.f32.mrf.mxu0
        %v4268 = vadd.f32 %v3716, %v4267
        %v4269 = vpop.f32.mrf.mxu0
        %4270 = vmatprep.mubr.bf16.mxu0 %v3519
        %4271 = vmatmul.mubr.bf16.gmra.mxu0 %v3518
        %v4272 = vpop.f32.mrf.mxu0
        %v4273 = vadd.f32 %v3716, %v4272
        %v4274 = vpop.f32.mrf.mxu0
        %v4275 = vpop.f32.mrf.mxu0
        %v4276 = vadd.f32 %v3716, %v4275
        %v4277 = vpop.f32.mrf.mxu0
        %4278 = vmatprep.mubr.bf16.mxu0 %v3526
        %4279 = vmatmul.mubr.bf16.gmra.mxu0 %v3525
        %v4280 = vpop.f32.mrf.mxu0
        %v4281 = vadd.f32 %v3716, %v4280
        %v4282 = vpop.f32.mrf.mxu0
        %v4283 = vpop.f32.mrf.mxu0
        %v4284 = vadd.f32 %v3716, %v4283
        %v4285 = vpop.f32.mrf.mxu0
        %4286 = vmatprep.mubr.bf16.mxu0 %v3533
        %4287 = vmatmul.mubr.bf16.gmra.mxu0 %v3532
        %v4288 = vpop.f32.mrf.mxu0
        %v4289 = vadd.f32 %v3716, %v4288
        %v4290 = vpop.f32.mrf.mxu0
        %v4291 = vpop.f32.mrf.mxu0
        %v4292 = vadd.f32 %v3716, %v4291
        %v4293 = vpop.f32.mrf.mxu0
        %4294 = vmatprep.mubr.bf16.mxu0 %v3540
        %4295 = vmatmul.mubr.bf16.gmra.mxu0 %v3539
        %v4296 = vpop.f32.mrf.mxu0
        %v4297 = vadd.f32 %v3716, %v4296
        %v4298 = vpop.f32.mrf.mxu0
        %v4299 = vpop.f32.mrf.mxu0
        %v4300 = vadd.f32 %v3716, %v4299
        %v4301 = vpop.f32.mrf.mxu0
        %4302 = vmatprep.mubr.bf16.mxu0 %v3547
        %4303 = vmatmul.mubr.bf16.gmra.mxu0 %v3546
        %v4304 = vpop.f32.mrf.mxu0
        %v4305 = vadd.f32 %v3716, %v4304
        %v4306 = vpop.f32.mrf.mxu0
        %v4307 = vpop.f32.mrf.mxu0
        %v4308 = vadd.f32 %v3716, %v4307
        %v4309 = vpop.f32.mrf.mxu0
        %4310 = vmatprep.mubr.bf16.mxu0 %v3554
        %4311 = vmatmul.mubr.bf16.gmra.mxu0 %v3553
        %v4312 = vpop.f32.mrf.mxu0
        %v4313 = vadd.f32 %v3716, %v4312
        %v4314 = vpop.f32.mrf.mxu0
        %v4315 = vpop.f32.mrf.mxu0
        %v4316 = vadd.f32 %v3716, %v4315
        %v4317 = vpop.f32.mrf.mxu0
        %4318 = vmatprep.mubr.bf16.mxu0 %v3561
        %4319 = vmatmul.mubr.bf16.gmra.mxu0 %v3560
        %v4320 = vpop.f32.mrf.mxu0
        %v4321 = vadd.f32 %v3716, %v4320
        %v4322 = vpop.f32.mrf.mxu0
        %v4323 = vpop.f32.mrf.mxu0
        %v4324 = vadd.f32 %v3716, %v4323
        %v4325 = vpop.f32.mrf.mxu0
        %4326 = vdwg.mxu0
        %4327 = vmatprep.subr.bf16.mxu0 0
        %4328 = vmatpush1.bf16.msra.mxu0 %v4029
        %4329 = vmatprep.subr.bf16.mxu0 0
        %4330 = vmatpush1.bf16.msra.mxu0 %v4028
        %4331 = vmatprep.subr.bf16.mxu0 0
        %4332 = vmatpush1.bf16.msra.mxu0 %v4027
        %4333 = vmatprep.subr.bf16.mxu0 0
        %4334 = vmatpush1.bf16.msra.mxu0 %v4026
        %4335 = vmatprep.subr.bf16.mxu0 0
        %4336 = vmatpush1.bf16.msra.mxu0 %v4025
        %4337 = vmatprep.subr.bf16.mxu0 0
        %4338 = vmatpush1.bf16.msra.mxu0 %v4024
        %4339 = vmatprep.subr.bf16.mxu0 0
        %4340 = vmatpush1.bf16.msra.mxu0 %v4023
        %4341 = vmatprep.subr.bf16.mxu0 0
        %4342 = vmatpush1.bf16.msra.mxu0 %v4022
        %4343 = vmatprep.subr.bf16.mxu0 0
        %4344 = vmatpush2.bf16.msra.mxu0 %v4037
        %4345 = vmatprep.subr.bf16.mxu0 0
        %4346 = vmatpush2.bf16.msra.mxu0 %v4036
        %4347 = vmatprep.subr.bf16.mxu0 0
        %4348 = vmatpush2.bf16.msra.mxu0 %v4035
        %4349 = vmatprep.subr.bf16.mxu0 0
        %4350 = vmatpush2.bf16.msra.mxu0 %v4034
        %4351 = vmatprep.subr.bf16.mxu0 0
        %4352 = vmatpush2.bf16.msra.mxu0 %v4033
        %4353 = vmatprep.subr.bf16.mxu0 0
        %4354 = vmatpush2.bf16.msra.mxu0 %v4032
        %4355 = vmatprep.subr.bf16.mxu0 0
        %4356 = vmatpush2.bf16.msra.mxu0 %v4031
        %4357 = vmatprep.subr.bf16.mxu0 0
        %4358 = vmatpush2.bf16.msra.mxu0 %v4030
        %4359 = vmatprep.mubr.bf16.mxu0 %v3442
        %4360 = vmatmul.mubr.bf16.gmra.mxu0 %v3441
        %v4361 = vpop.f32.mrf.mxu0
        %v4362 = vadd.f32 %v4185, %v4361
        %v4363 = vpop.f32.mrf.mxu0
        %v4364 = vpop.f32.mrf.mxu0
        %v4365 = vadd.f32 %v4188, %v4364
        %v4366 = vpop.f32.mrf.mxu0
        %4367 = vmatprep.mubr.bf16.mxu0 %v3450
        %4368 = vmatmul.mubr.bf16.gmra.mxu0 %v3442
        %v4369 = vpop.f32.mrf.mxu0
        %v4370 = vadd.f32 %v4193, %v4369
        %v4371 = vpop.f32.mrf.mxu0
        %v4372 = vpop.f32.mrf.mxu0
        %v4373 = vadd.f32 %v4196, %v4372
        %v4374 = vpop.f32.mrf.mxu0
        %4375 = vmatprep.mubr.bf16.mxu0 %v3457
        %4376 = vmatmul.mubr.bf16.gmra.mxu0 %v3450
        %v4377 = vpop.f32.mrf.mxu0
        %v4378 = vadd.f32 %v4201, %v4377
        %v4379 = vpop.f32.mrf.mxu0
        %v4380 = vpop.f32.mrf.mxu0
        %v4381 = vadd.f32 %v4204, %v4380
        %v4382 = vpop.f32.mrf.mxu0
        %4383 = vmatprep.mubr.bf16.mxu0 %v3464
        %4384 = vmatmul.mubr.bf16.gmra.mxu0 %v3457
        %v4385 = vpop.f32.mrf.mxu0
        %v4386 = vadd.f32 %v4209, %v4385
        %v4387 = vpop.f32.mrf.mxu0
        %v4388 = vpop.f32.mrf.mxu0
        %v4389 = vadd.f32 %v4212, %v4388
        %v4390 = vpop.f32.mrf.mxu0
        %4391 = vmatprep.mubr.bf16.mxu0 %v3471
        %4392 = vmatmul.mubr.bf16.gmra.mxu0 %v3464
        %v4393 = vpop.f32.mrf.mxu0
        %v4394 = vadd.f32 %v4217, %v4393
        %v4395 = vpop.f32.mrf.mxu0
        %v4396 = vpop.f32.mrf.mxu0
        %v4397 = vadd.f32 %v4220, %v4396
        %v4398 = vpop.f32.mrf.mxu0
        %4399 = vmatprep.mubr.bf16.mxu0 %v3478
        %4400 = vmatmul.mubr.bf16.gmra.mxu0 %v3471
        %v4401 = vpop.f32.mrf.mxu0
        %v4402 = vadd.f32 %v4225, %v4401
        %v4403 = vpop.f32.mrf.mxu0
        %v4404 = vpop.f32.mrf.mxu0
        %v4405 = vadd.f32 %v4228, %v4404
        %v4406 = vpop.f32.mrf.mxu0
        %4407 = vmatprep.mubr.bf16.mxu0 %v3485
        %4408 = vmatmul.mubr.bf16.gmra.mxu0 %v3478
        %v4409 = vpop.f32.mrf.mxu0
        %v4410 = vadd.f32 %v4233, %v4409
        %v4411 = vpop.f32.mrf.mxu0
        %v4412 = vpop.f32.mrf.mxu0
        %v4413 = vadd.f32 %v4236, %v4412
        %v4414 = vpop.f32.mrf.mxu0
        %4415 = vmatprep.mubr.bf16.mxu0 %v3492
        %4416 = vmatmul.mubr.bf16.gmra.mxu0 %v3485
        %v4417 = vpop.f32.mrf.mxu0
        %v4418 = vadd.f32 %v4241, %v4417
        %v4419 = vpop.f32.mrf.mxu0
        %v4420 = vpop.f32.mrf.mxu0
        %v4421 = vadd.f32 %v4244, %v4420
        %v4422 = vpop.f32.mrf.mxu0
        %4423 = vmatprep.mubr.bf16.mxu0 %v3499
        %4424 = vmatmul.mubr.bf16.gmra.mxu0 %v3492
        %v4425 = vpop.f32.mrf.mxu0
        %v4426 = vadd.f32 %v4249, %v4425
        %v4427 = vpop.f32.mrf.mxu0
        %v4428 = vpop.f32.mrf.mxu0
        %v4429 = vadd.f32 %v4252, %v4428
        %v4430 = vpop.f32.mrf.mxu0
        %4431 = vmatprep.mubr.bf16.mxu0 %v3506
        %4432 = vmatmul.mubr.bf16.gmra.mxu0 %v3499
        %v4433 = vpop.f32.mrf.mxu0
        %v4434 = vadd.f32 %v4257, %v4433
        %v4435 = vpop.f32.mrf.mxu0
        %v4436 = vpop.f32.mrf.mxu0
        %v4437 = vadd.f32 %v4260, %v4436
        %v4438 = vpop.f32.mrf.mxu0
        %4439 = vmatprep.mubr.bf16.mxu0 %v3513
        %4440 = vmatmul.mubr.bf16.gmra.mxu0 %v3506
        %v4441 = vpop.f32.mrf.mxu0
        %v4442 = vadd.f32 %v4265, %v4441
        %v4443 = vpop.f32.mrf.mxu0
        %v4444 = vpop.f32.mrf.mxu0
        %v4445 = vadd.f32 %v4268, %v4444
        %v4446 = vpop.f32.mrf.mxu0
        %4447 = vmatprep.mubr.bf16.mxu0 %v3520
        %4448 = vmatmul.mubr.bf16.gmra.mxu0 %v3513
        %v4449 = vpop.f32.mrf.mxu0
        %v4450 = vadd.f32 %v4273, %v4449
        %v4451 = vpop.f32.mrf.mxu0
        %v4452 = vpop.f32.mrf.mxu0
        %v4453 = vadd.f32 %v4276, %v4452
        %v4454 = vpop.f32.mrf.mxu0
        %4455 = vmatprep.mubr.bf16.mxu0 %v3527
        %4456 = vmatmul.mubr.bf16.gmra.mxu0 %v3520
        %v4457 = vpop.f32.mrf.mxu0
        %v4458 = vadd.f32 %v4281, %v4457
        %v4459 = vpop.f32.mrf.mxu0
        %v4460 = vpop.f32.mrf.mxu0
        %v4461 = vadd.f32 %v4284, %v4460
        %v4462 = vpop.f32.mrf.mxu0
        %4463 = vmatprep.mubr.bf16.mxu0 %v3534
        %4464 = vmatmul.mubr.bf16.gmra.mxu0 %v3527
        %v4465 = vpop.f32.mrf.mxu0
        %v4466 = vadd.f32 %v4289, %v4465
        %v4467 = vpop.f32.mrf.mxu0
        %v4468 = vpop.f32.mrf.mxu0
        %v4469 = vadd.f32 %v4292, %v4468
        %v4470 = vpop.f32.mrf.mxu0
        %4471 = vmatprep.mubr.bf16.mxu0 %v3541
        %4472 = vmatmul.mubr.bf16.gmra.mxu0 %v3534
        %v4473 = vpop.f32.mrf.mxu0
        %v4474 = vadd.f32 %v4297, %v4473
        %v4475 = vpop.f32.mrf.mxu0
        %v4476 = vpop.f32.mrf.mxu0
        %v4477 = vadd.f32 %v4300, %v4476
        %v4478 = vpop.f32.mrf.mxu0
        %4479 = vmatprep.mubr.bf16.mxu0 %v3548
        %4480 = vmatmul.mubr.bf16.gmra.mxu0 %v3541
        %v4481 = vpop.f32.mrf.mxu0
        %v4482 = vadd.f32 %v4305, %v4481
        %v4483 = vpop.f32.mrf.mxu0
        %v4484 = vpop.f32.mrf.mxu0
        %v4485 = vadd.f32 %v4308, %v4484
        %v4486 = vpop.f32.mrf.mxu0
        %4487 = vmatprep.mubr.bf16.mxu0 %v3555
        %4488 = vmatmul.mubr.bf16.gmra.mxu0 %v3548
        %v4489 = vpop.f32.mrf.mxu0
        %v4490 = vadd.f32 %v4313, %v4489
        %v4491 = vpop.f32.mrf.mxu0
        %v4492 = vpop.f32.mrf.mxu0
        %v4493 = vadd.f32 %v4316, %v4492
        %v4494 = vpop.f32.mrf.mxu0
        %4495 = vmatprep.mubr.bf16.mxu0 %v3562
        %4496 = vmatmul.mubr.bf16.gmra.mxu0 %v3555
        %v4497 = vpop.f32.mrf.mxu0
        %v4498 = vadd.f32 %v4321, %v4497
        %v4499 = vpop.f32.mrf.mxu0
        %v4500 = vpop.f32.mrf.mxu0
        %v4501 = vadd.f32 %v4324, %v4500
        %v4502 = vpop.f32.mrf.mxu0
        %4503 = vdwg.mxu0
        %4504 = vmatprep.subr.bf16.mxu0 0
        %4505 = vmatpush1.bf16.msra.mxu0 %v4045
        %4506 = vmatprep.subr.bf16.mxu0 0
        %4507 = vmatpush1.bf16.msra.mxu0 %v4044
        %4508 = vmatprep.subr.bf16.mxu0 0
        %4509 = vmatpush1.bf16.msra.mxu0 %v4043
        %4510 = vmatprep.subr.bf16.mxu0 0
        %4511 = vmatpush1.bf16.msra.mxu0 %v4042
        %4512 = vmatprep.subr.bf16.mxu0 0
        %4513 = vmatpush1.bf16.msra.mxu0 %v4041
        %4514 = vmatprep.subr.bf16.mxu0 0
        %4515 = vmatpush1.bf16.msra.mxu0 %v4040
        %4516 = vmatprep.subr.bf16.mxu0 0
        %4517 = vmatpush1.bf16.msra.mxu0 %v4039
        %4518 = vmatprep.subr.bf16.mxu0 0
        %4519 = vmatpush1.bf16.msra.mxu0 %v4038
        %4520 = vmatprep.subr.bf16.mxu0 0
        %4521 = vmatpush2.bf16.msra.mxu0 %v4053
        %4522 = vmatprep.subr.bf16.mxu0 0
        %4523 = vmatpush2.bf16.msra.mxu0 %v4052
        %4524 = vmatprep.subr.bf16.mxu0 0
        %4525 = vmatpush2.bf16.msra.mxu0 %v4051
        %4526 = vmatprep.subr.bf16.mxu0 0
        %4527 = vmatpush2.bf16.msra.mxu0 %v4050
        %4528 = vmatprep.subr.bf16.mxu0 0
        %4529 = vmatpush2.bf16.msra.mxu0 %v4049
        %4530 = vmatprep.subr.bf16.mxu0 0
        %4531 = vmatpush2.bf16.msra.mxu0 %v4048
        %4532 = vmatprep.subr.bf16.mxu0 0
        %4533 = vmatpush2.bf16.msra.mxu0 %v4047
        %4534 = vmatprep.subr.bf16.mxu0 0
        %4535 = vmatpush2.bf16.msra.mxu0 %v4046
        %4536 = vmatprep.mubr.bf16.mxu0 %v3444
        %4537 = vmatmul.mubr.bf16.gmra.mxu0 %v3443
        %v4538 = vpop.f32.mrf.mxu0
        %v4539 = vadd.f32 %v4362, %v4538
        %v4540 = vpop.f32.mrf.mxu0
        %v4541 = vpop.f32.mrf.mxu0
        %v4542 = vadd.f32 %v4365, %v4541
        %v4543 = vpop.f32.mrf.mxu0
        %4544 = vmatprep.mubr.bf16.mxu0 %v3445
        %4545 = vmatmul.mubr.bf16.gmra.mxu0 %v3451
        %v4546 = vpop.f32.mrf.mxu0
        %v4547 = vadd.f32 %v4370, %v4546
        %v4548 = vpop.f32.mrf.mxu0
        %v4549 = vpop.f32.mrf.mxu0
        %v4550 = vadd.f32 %v4373, %v4549
        %v4551 = vpop.f32.mrf.mxu0
        %4552 = vmatprep.mubr.bf16.mxu0 %v3452
        %4553 = vmatmul.mubr.bf16.gmra.mxu0 %v3458
        %v4554 = vpop.f32.mrf.mxu0
        %v4555 = vadd.f32 %v4378, %v4554
        %v4556 = vpop.f32.mrf.mxu0
        %v4557 = vpop.f32.mrf.mxu0
        %v4558 = vadd.f32 %v4381, %v4557
        %v4559 = vpop.f32.mrf.mxu0
        %4560 = vmatprep.mubr.bf16.mxu0 %v3459
        %4561 = vmatmul.mubr.bf16.gmra.mxu0 %v3465
        %v4562 = vpop.f32.mrf.mxu0
        %v4563 = vadd.f32 %v4386, %v4562
        %v4564 = vpop.f32.mrf.mxu0
        %v4565 = vpop.f32.mrf.mxu0
        %v4566 = vadd.f32 %v4389, %v4565
        %v4567 = vpop.f32.mrf.mxu0
        %4568 = vmatprep.mubr.bf16.mxu0 %v3466
        %4569 = vmatmul.mubr.bf16.gmra.mxu0 %v3472
        %v4570 = vpop.f32.mrf.mxu0
        %v4571 = vadd.f32 %v4394, %v4570
        %v4572 = vpop.f32.mrf.mxu0
        %v4573 = vpop.f32.mrf.mxu0
        %v4574 = vadd.f32 %v4397, %v4573
        %v4575 = vpop.f32.mrf.mxu0
        %4576 = vmatprep.mubr.bf16.mxu0 %v3473
        %4577 = vmatmul.mubr.bf16.gmra.mxu0 %v3479
        %v4578 = vpop.f32.mrf.mxu0
        %v4579 = vadd.f32 %v4402, %v4578
        %v4580 = vpop.f32.mrf.mxu0
        %v4581 = vpop.f32.mrf.mxu0
        %v4582 = vadd.f32 %v4405, %v4581
        %v4583 = vpop.f32.mrf.mxu0
        %4584 = vmatprep.mubr.bf16.mxu0 %v3480
        %4585 = vmatmul.mubr.bf16.gmra.mxu0 %v3486
        %v4586 = vpop.f32.mrf.mxu0
        %v4587 = vadd.f32 %v4410, %v4586
        %v4588 = vpop.f32.mrf.mxu0
        %v4589 = vpop.f32.mrf.mxu0
        %v4590 = vadd.f32 %v4413, %v4589
        %v4591 = vpop.f32.mrf.mxu0
        %4592 = vmatprep.mubr.bf16.mxu0 %v3487
        %4593 = vmatmul.mubr.bf16.gmra.mxu0 %v3493
        %v4594 = vpop.f32.mrf.mxu0
        %v4595 = vadd.f32 %v4418, %v4594
        %v4596 = vpop.f32.mrf.mxu0
        %v4597 = vpop.f32.mrf.mxu0
        %v4598 = vadd.f32 %v4421, %v4597
        %v4599 = vpop.f32.mrf.mxu0
        %4600 = vmatprep.mubr.bf16.mxu0 %v3494
        %4601 = vmatmul.mubr.bf16.gmra.mxu0 %v3500
        %v4602 = vpop.f32.mrf.mxu0
        %v4603 = vadd.f32 %v4426, %v4602
        %v4604 = vpop.f32.mrf.mxu0
        %v4605 = vpop.f32.mrf.mxu0
        %v4606 = vadd.f32 %v4429, %v4605
        %v4607 = vpop.f32.mrf.mxu0
        %4608 = vmatprep.mubr.bf16.mxu0 %v3501
        %4609 = vmatmul.mubr.bf16.gmra.mxu0 %v3507
        %v4610 = vpop.f32.mrf.mxu0
        %v4611 = vadd.f32 %v4434, %v4610
        %v4612 = vpop.f32.mrf.mxu0
        %v4613 = vpop.f32.mrf.mxu0
        %v4614 = vadd.f32 %v4437, %v4613
        %v4615 = vpop.f32.mrf.mxu0
        %4616 = vmatprep.mubr.bf16.mxu0 %v3508
        %4617 = vmatmul.mubr.bf16.gmra.mxu0 %v3514
        %v4618 = vpop.f32.mrf.mxu0
        %v4619 = vadd.f32 %v4442, %v4618
        %v4620 = vpop.f32.mrf.mxu0
        %v4621 = vpop.f32.mrf.mxu0
        %v4622 = vadd.f32 %v4445, %v4621
        %v4623 = vpop.f32.mrf.mxu0
        %4624 = vmatprep.mubr.bf16.mxu0 %v3515
        %4625 = vmatmul.mubr.bf16.gmra.mxu0 %v3521
        %v4626 = vpop.f32.mrf.mxu0
        %v4627 = vadd.f32 %v4450, %v4626
        %v4628 = vpop.f32.mrf.mxu0
        %v4629 = vpop.f32.mrf.mxu0
        %v4630 = vadd.f32 %v4453, %v4629
        %v4631 = vpop.f32.mrf.mxu0
        %4632 = vmatprep.mubr.bf16.mxu0 %v3522
        %4633 = vmatmul.mubr.bf16.gmra.mxu0 %v3528
        %v4634 = vpop.f32.mrf.mxu0
        %v4635 = vadd.f32 %v4458, %v4634
        %v4636 = vpop.f32.mrf.mxu0
        %v4637 = vpop.f32.mrf.mxu0
        %v4638 = vadd.f32 %v4461, %v4637
        %v4639 = vpop.f32.mrf.mxu0
        %4640 = vmatprep.mubr.bf16.mxu0 %v3529
        %4641 = vmatmul.mubr.bf16.gmra.mxu0 %v3535
        %v4642 = vpop.f32.mrf.mxu0
        %v4643 = vadd.f32 %v4466, %v4642
        %v4644 = vpop.f32.mrf.mxu0
        %v4645 = vpop.f32.mrf.mxu0
        %v4646 = vadd.f32 %v4469, %v4645
        %v4647 = vpop.f32.mrf.mxu0
        %4648 = vmatprep.mubr.bf16.mxu0 %v3536
        %4649 = vmatmul.mubr.bf16.gmra.mxu0 %v3542
        %v4650 = vpop.f32.mrf.mxu0
        %v4651 = vadd.f32 %v4474, %v4650
        %v4652 = vpop.f32.mrf.mxu0
        %v4653 = vpop.f32.mrf.mxu0
        %v4654 = vadd.f32 %v4477, %v4653
        %v4655 = vpop.f32.mrf.mxu0
        %4656 = vmatprep.mubr.bf16.mxu0 %v3543
        %4657 = vmatmul.mubr.bf16.gmra.mxu0 %v3549
        %v4658 = vpop.f32.mrf.mxu0
        %v4659 = vadd.f32 %v4482, %v4658
        %v4660 = vpop.f32.mrf.mxu0
        %v4661 = vpop.f32.mrf.mxu0
        %v4662 = vadd.f32 %v4485, %v4661
        %v4663 = vpop.f32.mrf.mxu0
        %4664 = vmatprep.mubr.bf16.mxu0 %v3550
        %4665 = vmatmul.mubr.bf16.gmra.mxu0 %v3556
        %v4666 = vpop.f32.mrf.mxu0
        %v4667 = vadd.f32 %v4490, %v4666
        %v4668 = vpop.f32.mrf.mxu0
        %v4669 = vpop.f32.mrf.mxu0
        %v4670 = vadd.f32 %v4493, %v4669
        %v4671 = vpop.f32.mrf.mxu0
        %4672 = vmatprep.mubr.bf16.mxu0 %v3557
        %4673 = vmatmul.mubr.bf16.gmra.mxu0 %v3563
        %v4674 = vpop.f32.mrf.mxu0
        %v4675 = vadd.f32 %v4498, %v4674
        %v4676 = vpop.f32.mrf.mxu0
        %v4677 = vpop.f32.mrf.mxu0
        %v4678 = vadd.f32 %v4501, %v4677
        %v4679 = vpop.f32.mrf.mxu0
        %4680 = vdwg.mxu0
        %4681 = vmatprep.subr.bf16.mxu0 0
        %4682 = vmatpush1.bf16.msra.mxu0 %v4061
        %4683 = vmatprep.subr.bf16.mxu0 0
        %4684 = vmatpush1.bf16.msra.mxu0 %v4060
        %4685 = vmatprep.subr.bf16.mxu0 0
        %4686 = vmatpush1.bf16.msra.mxu0 %v4059
        %4687 = vmatprep.subr.bf16.mxu0 0
        %4688 = vmatpush1.bf16.msra.mxu0 %v4058
        %4689 = vmatprep.subr.bf16.mxu0 0
        %4690 = vmatpush1.bf16.msra.mxu0 %v4057
        %4691 = vmatprep.subr.bf16.mxu0 0
        %4692 = vmatpush1.bf16.msra.mxu0 %v4056
        %4693 = vmatprep.subr.bf16.mxu0 0
        %4694 = vmatpush1.bf16.msra.mxu0 %v4055
        %4695 = vmatprep.subr.bf16.mxu0 0
        %4696 = vmatpush1.bf16.msra.mxu0 %v4054
        %4697 = vmatprep.subr.bf16.mxu0 0
        %4698 = vmatpush2.bf16.msra.mxu0 %v4069
        %4699 = vmatprep.subr.bf16.mxu0 0
        %4700 = vmatpush2.bf16.msra.mxu0 %v4068
        %4701 = vmatprep.subr.bf16.mxu0 0
        %4702 = vmatpush2.bf16.msra.mxu0 %v4067
        %4703 = vmatprep.subr.bf16.mxu0 0
        %4704 = vmatpush2.bf16.msra.mxu0 %v4066
        %4705 = vmatprep.subr.bf16.mxu0 0
        %4706 = vmatpush2.bf16.msra.mxu0 %v4065
        %4707 = vmatprep.subr.bf16.mxu0 0
        %4708 = vmatpush2.bf16.msra.mxu0 %v4064
        %4709 = vmatprep.subr.bf16.mxu0 0
        %4710 = vmatpush2.bf16.msra.mxu0 %v4063
        %4711 = vmatprep.subr.bf16.mxu0 0
        %4712 = vmatpush2.bf16.msra.mxu0 %v4062
        %4713 = vmatprep.mubr.bf16.mxu0 %v3446
        %4714 = vmatmul.mubr.bf16.gmra.mxu0 %v3445
        %v4715 = vpop.f32.mrf.mxu0
        %v4716 = vadd.f32 %v4539, %v4715
        %v4717 = vpop.f32.mrf.mxu0
        %v4718 = vpop.f32.mrf.mxu0
        %v4719 = vadd.f32 %v4542, %v4718
        %v4720 = vpop.f32.mrf.mxu0
        %4721 = vmatprep.mubr.bf16.mxu0 %v3453
        %4722 = vmatmul.mubr.bf16.gmra.mxu0 %v3452
        %v4723 = vpop.f32.mrf.mxu0
        %v4724 = vadd.f32 %v4547, %v4723
        %v4725 = vpop.f32.mrf.mxu0
        %v4726 = vpop.f32.mrf.mxu0
        %v4727 = vadd.f32 %v4550, %v4726
        %v4728 = vpop.f32.mrf.mxu0
        %4729 = vmatprep.mubr.bf16.mxu0 %v3460
        %4730 = vmatmul.mubr.bf16.gmra.mxu0 %v3459
        %v4731 = vpop.f32.mrf.mxu0
        %v4732 = vadd.f32 %v4555, %v4731
        %v4733 = vpop.f32.mrf.mxu0
        %v4734 = vpop.f32.mrf.mxu0
        %v4735 = vadd.f32 %v4558, %v4734
        %v4736 = vpop.f32.mrf.mxu0
        %4737 = vmatprep.mubr.bf16.mxu0 %v3467
        %4738 = vmatmul.mubr.bf16.gmra.mxu0 %v3466
        %v4739 = vpop.f32.mrf.mxu0
        %v4740 = vadd.f32 %v4563, %v4739
        %v4741 = vpop.f32.mrf.mxu0
        %v4742 = vpop.f32.mrf.mxu0
        %v4743 = vadd.f32 %v4566, %v4742
        %v4744 = vpop.f32.mrf.mxu0
        %4745 = vmatprep.mubr.bf16.mxu0 %v3474
        %4746 = vmatmul.mubr.bf16.gmra.mxu0 %v3473
        %v4747 = vpop.f32.mrf.mxu0
        %v4748 = vadd.f32 %v4571, %v4747
        %v4749 = vpop.f32.mrf.mxu0
        %v4750 = vpop.f32.mrf.mxu0
        %v4751 = vadd.f32 %v4574, %v4750
        %v4752 = vpop.f32.mrf.mxu0
        %4753 = vmatprep.mubr.bf16.mxu0 %v3481
        %4754 = vmatmul.mubr.bf16.gmra.mxu0 %v3480
        %v4755 = vpop.f32.mrf.mxu0
        %v4756 = vadd.f32 %v4579, %v4755
        %v4757 = vpop.f32.mrf.mxu0
        %v4758 = vpop.f32.mrf.mxu0
        %v4759 = vadd.f32 %v4582, %v4758
        %v4760 = vpop.f32.mrf.mxu0
        %4761 = vmatprep.mubr.bf16.mxu0 %v3488
        %4762 = vmatmul.mubr.bf16.gmra.mxu0 %v3487
        %v4763 = vpop.f32.mrf.mxu0
        %v4764 = vadd.f32 %v4587, %v4763
        %v4765 = vpop.f32.mrf.mxu0
        %v4766 = vpop.f32.mrf.mxu0
        %v4767 = vadd.f32 %v4590, %v4766
        %v4768 = vpop.f32.mrf.mxu0
        %4769 = vmatprep.mubr.bf16.mxu0 %v3495
        %4770 = vmatmul.mubr.bf16.gmra.mxu0 %v3494
        %v4771 = vpop.f32.mrf.mxu0
        %v4772 = vadd.f32 %v4595, %v4771
        %v4773 = vpop.f32.mrf.mxu0
        %v4774 = vpop.f32.mrf.mxu0
        %v4775 = vadd.f32 %v4598, %v4774
        %v4776 = vpop.f32.mrf.mxu0
        %4777 = vmatprep.mubr.bf16.mxu0 %v3502
        %4778 = vmatmul.mubr.bf16.gmra.mxu0 %v3501
        %v4779 = vpop.f32.mrf.mxu0
        %v4780 = vadd.f32 %v4603, %v4779
        %v4781 = vpop.f32.mrf.mxu0
        %v4782 = vpop.f32.mrf.mxu0
        %v4783 = vadd.f32 %v4606, %v4782
        %v4784 = vpop.f32.mrf.mxu0
        %4785 = vmatprep.mubr.bf16.mxu0 %v3509
        %4786 = vmatmul.mubr.bf16.gmra.mxu0 %v3508
        %v4787 = vpop.f32.mrf.mxu0
        %v4788 = vadd.f32 %v4611, %v4787
        %v4789 = vpop.f32.mrf.mxu0
        %v4790 = vpop.f32.mrf.mxu0
        %v4791 = vadd.f32 %v4614, %v4790
        %v4792 = vpop.f32.mrf.mxu0
        %4793 = vmatprep.mubr.bf16.mxu0 %v3516
        %4794 = vmatmul.mubr.bf16.gmra.mxu0 %v3515
        %v4795 = vpop.f32.mrf.mxu0
        %v4796 = vadd.f32 %v4619, %v4795
        %v4797 = vpop.f32.mrf.mxu0
        %v4798 = vpop.f32.mrf.mxu0
        %v4799 = vadd.f32 %v4622, %v4798
        %v4800 = vpop.f32.mrf.mxu0
        %4801 = vmatprep.mubr.bf16.mxu0 %v3523
        %4802 = vmatmul.mubr.bf16.gmra.mxu0 %v3522
        %v4803 = vpop.f32.mrf.mxu0
        %v4804 = vadd.f32 %v4627, %v4803
        %v4805 = vpop.f32.mrf.mxu0
        %v4806 = vpop.f32.mrf.mxu0
        %v4807 = vadd.f32 %v4630, %v4806
        %v4808 = vpop.f32.mrf.mxu0
        %4809 = vmatprep.mubr.bf16.mxu0 %v3530
        %4810 = vmatmul.mubr.bf16.gmra.mxu0 %v3529
        %v4811 = vpop.f32.mrf.mxu0
        %v4812 = vadd.f32 %v4635, %v4811
        %v4813 = vpop.f32.mrf.mxu0
        %v4814 = vpop.f32.mrf.mxu0
        %v4815 = vadd.f32 %v4638, %v4814
        %v4816 = vpop.f32.mrf.mxu0
        %4817 = vmatprep.mubr.bf16.mxu0 %v3537
        %4818 = vmatmul.mubr.bf16.gmra.mxu0 %v3536
        %v4819 = vpop.f32.mrf.mxu0
        %v4820 = vadd.f32 %v4643, %v4819
        %v4821 = vpop.f32.mrf.mxu0
        %v4822 = vpop.f32.mrf.mxu0
        %v4823 = vadd.f32 %v4646, %v4822
        %v4824 = vpop.f32.mrf.mxu0
        %4825 = vmatprep.mubr.bf16.mxu0 %v3544
        %4826 = vmatmul.mubr.bf16.gmra.mxu0 %v3543
        %v4827 = vpop.f32.mrf.mxu0
        %v4828 = vadd.f32 %v4651, %v4827
        %v4829 = vpop.f32.mrf.mxu0
        %v4830 = vpop.f32.mrf.mxu0
        %v4831 = vadd.f32 %v4654, %v4830
        %v4832 = vpop.f32.mrf.mxu0
        %4833 = vmatprep.mubr.bf16.mxu0 %v3551
        %4834 = vmatmul.mubr.bf16.gmra.mxu0 %v3550
        %v4835 = vpop.f32.mrf.mxu0
        %v4836 = vadd.f32 %v4659, %v4835
        %v4837 = vpop.f32.mrf.mxu0
        %v4838 = vpop.f32.mrf.mxu0
        %v4839 = vadd.f32 %v4662, %v4838
        %v4840 = vpop.f32.mrf.mxu0
        %4841 = vmatprep.mubr.bf16.mxu0 %v3558
        %4842 = vmatmul.mubr.bf16.gmra.mxu0 %v3557
        %v4843 = vpop.f32.mrf.mxu0
        %v4844 = vadd.f32 %v4667, %v4843
        %v4845 = vpop.f32.mrf.mxu0
        %v4846 = vpop.f32.mrf.mxu0
        %v4847 = vadd.f32 %v4670, %v4846
        %v4848 = vpop.f32.mrf.mxu0
        %4849 = vmatprep.mubr.bf16.mxu0 %v3565
        %4850 = vmatmul.mubr.bf16.gmra.mxu0 %v3564
        %v4851 = vpop.f32.mrf.mxu0
        %v4852 = vadd.f32 %v4675, %v4851
        %v4853 = vpop.f32.mrf.mxu0
        %v4854 = vpop.f32.mrf.mxu0
        %v4855 = vadd.f32 %v4678, %v4854
        %v4856 = vpop.f32.mrf.mxu0
        %4857 = vdwg.mxu0
        %4858 = vmatprep.subr.bf16.mxu0 0
        %4859 = vmatpush1.bf16.msra.mxu0 %v4077
        %4860 = vmatprep.subr.bf16.mxu0 0
        %4861 = vmatpush1.bf16.msra.mxu0 %v4076
        %4862 = vmatprep.subr.bf16.mxu0 0
        %4863 = vmatpush1.bf16.msra.mxu0 %v4075
        %4864 = vmatprep.subr.bf16.mxu0 0
        %4865 = vmatpush1.bf16.msra.mxu0 %v4074
        %4866 = vmatprep.subr.bf16.mxu0 0
        %4867 = vmatpush1.bf16.msra.mxu0 %v4073
        %4868 = vmatprep.subr.bf16.mxu0 0
        %4869 = vmatpush1.bf16.msra.mxu0 %v4072
        %4870 = vmatprep.subr.bf16.mxu0 0
        %4871 = vmatpush1.bf16.msra.mxu0 %v4071
        %4872 = vmatprep.subr.bf16.mxu0 0
        %4873 = vmatpush1.bf16.msra.mxu0 %v4070
        %4874 = vmatprep.subr.bf16.mxu0 0
        %4875 = vmatpush2.bf16.msra.mxu0 0
        %4876 = vmatprep.subr.bf16.mxu0 0
        %4877 = vmatpush2.bf16.msra.mxu0 0
        %4878 = vmatprep.subr.bf16.mxu0 0
        %4879 = vmatpush2.bf16.msra.mxu0 0
        %4880 = vmatprep.subr.bf16.mxu0 0
        %4881 = vmatpush2.bf16.msra.mxu0 0
        %4882 = vmatprep.subr.bf16.mxu0 0
        %4883 = vmatpush2.bf16.msra.mxu0 0
        %4884 = vmatprep.subr.bf16.mxu0 0
        %4885 = vmatpush2.bf16.msra.mxu0 0
        %4886 = vmatprep.subr.bf16.mxu0 0
        %4887 = vmatpush2.bf16.msra.mxu0 0
        %4888 = vmatprep.subr.bf16.mxu0 0
        %4889 = vmatpush2.bf16.msra.mxu0 0
        %4890 = vmatprep.mubr.bf16.mxu0 0
        %4891 = vmatmul.mubr.bf16.gmra.mxu0 %v3447
        %v4892 = vpop.f32.mrf.mxu0
        %v4893 = vadd.f32 %v4716, %v4892
        %v4894 = vpop.f32.mrf.mxu0
        %v4895 = vpop.f32.mrf.mxu0
        %v4896 = vadd.f32 %v4719, %v4895
        %v4897 = vpop.f32.mrf.mxu0
        %4898 = vmatprep.mubr.bf16.mxu0 0
        %4899 = vmatmul.mubr.bf16.gmra.mxu0 %v3454
        %v4900 = vpop.f32.mrf.mxu0
        %v4901 = vadd.f32 %v4724, %v4900
        %v4902 = vpop.f32.mrf.mxu0
        %v4903 = vpop.f32.mrf.mxu0
        %v4904 = vadd.f32 %v4727, %v4903
        %v4905 = vpop.f32.mrf.mxu0
        %4906 = vmatprep.mubr.bf16.mxu0 0
        %4907 = vmatmul.mubr.bf16.gmra.mxu0 %v3461
        %v4908 = vpop.f32.mrf.mxu0
        %v4909 = vadd.f32 %v4732, %v4908
        %v4910 = vpop.f32.mrf.mxu0
        %v4911 = vpop.f32.mrf.mxu0
        %v4912 = vadd.f32 %v4735, %v4911
        %v4913 = vpop.f32.mrf.mxu0
        %4914 = vmatprep.mubr.bf16.mxu0 0
        %4915 = vmatmul.mubr.bf16.gmra.mxu0 %v3468
        %v4916 = vpop.f32.mrf.mxu0
        %v4917 = vadd.f32 %v4740, %v4916
        %v4918 = vpop.f32.mrf.mxu0
        %v4919 = vpop.f32.mrf.mxu0
        %v4920 = vadd.f32 %v4743, %v4919
        %v4921 = vpop.f32.mrf.mxu0
        %4922 = vmatprep.mubr.bf16.mxu0 0
        %4923 = vmatmul.mubr.bf16.gmra.mxu0 %v3475
        %v4924 = vpop.f32.mrf.mxu0
        %v4925 = vadd.f32 %v4748, %v4924
        %v4926 = vpop.f32.mrf.mxu0
        %v4927 = vpop.f32.mrf.mxu0
        %v4928 = vadd.f32 %v4751, %v4927
        %v4929 = vpop.f32.mrf.mxu0
        %4930 = vmatprep.mubr.bf16.mxu0 0
        %4931 = vmatmul.mubr.bf16.gmra.mxu0 %v3482
        %v4932 = vpop.f32.mrf.mxu0
        %v4933 = vadd.f32 %v4756, %v4932
        %v4934 = vpop.f32.mrf.mxu0
        %v4935 = vpop.f32.mrf.mxu0
        %v4936 = vadd.f32 %v4759, %v4935
        %v4937 = vpop.f32.mrf.mxu0
        %4938 = vmatprep.mubr.bf16.mxu0 0
        %4939 = vmatmul.mubr.bf16.gmra.mxu0 %v3489
        %v4940 = vpop.f32.mrf.mxu0
        %v4941 = vadd.f32 %v4764, %v4940
        %v4942 = vpop.f32.mrf.mxu0
        %v4943 = vpop.f32.mrf.mxu0
        %v4944 = vadd.f32 %v4767, %v4943
        %v4945 = vpop.f32.mrf.mxu0
        %4946 = vmatprep.mubr.bf16.mxu0 0
        %4947 = vmatmul.mubr.bf16.gmra.mxu0 %v3496
        %v4948 = vpop.f32.mrf.mxu0
        %v4949 = vadd.f32 %v4772, %v4948
        %v4950 = vpop.f32.mrf.mxu0
        %v4951 = vpop.f32.mrf.mxu0
        %v4952 = vadd.f32 %v4775, %v4951
        %v4953 = vpop.f32.mrf.mxu0
        %4954 = vmatprep.mubr.bf16.mxu0 0
        %4955 = vmatmul.mubr.bf16.gmra.mxu0 %v3503
        %v4956 = vpop.f32.mrf.mxu0
        %v4957 = vadd.f32 %v4780, %v4956
        %v4958 = vpop.f32.mrf.mxu0
        %v4959 = vpop.f32.mrf.mxu0
        %v4960 = vadd.f32 %v4783, %v4959
        %v4961 = vpop.f32.mrf.mxu0
        %4962 = vmatprep.mubr.bf16.mxu0 0
        %4963 = vmatmul.mubr.bf16.gmra.mxu0 %v3510
        %v4964 = vpop.f32.mrf.mxu0
        %v4965 = vadd.f32 %v4788, %v4964
        %v4966 = vpop.f32.mrf.mxu0
        %v4967 = vpop.f32.mrf.mxu0
        %v4968 = vadd.f32 %v4791, %v4967
        %v4969 = vpop.f32.mrf.mxu0
        %4970 = vmatprep.mubr.bf16.mxu0 0
        %4971 = vmatmul.mubr.bf16.gmra.mxu0 %v3517
        %v4972 = vpop.f32.mrf.mxu0
        %v4973 = vadd.f32 %v4796, %v4972
        %v4974 = vpop.f32.mrf.mxu0
        %v4975 = vpop.f32.mrf.mxu0
        %v4976 = vadd.f32 %v4799, %v4975
        %v4977 = vpop.f32.mrf.mxu0
        %4978 = vmatprep.mubr.bf16.mxu0 0
        %4979 = vmatmul.mubr.bf16.gmra.mxu0 %v3524
        %v4980 = vpop.f32.mrf.mxu0
        %v4981 = vadd.f32 %v4804, %v4980
        %v4982 = vpop.f32.mrf.mxu0
        %v4983 = vpop.f32.mrf.mxu0
        %v4984 = vadd.f32 %v4807, %v4983
        %v4985 = vpop.f32.mrf.mxu0
        %4986 = vmatprep.mubr.bf16.mxu0 0
        %4987 = vmatmul.mubr.bf16.gmra.mxu0 %v3531
        %v4988 = vpop.f32.mrf.mxu0
        %v4989 = vadd.f32 %v4812, %v4988
        %v4990 = vpop.f32.mrf.mxu0
        %v4991 = vpop.f32.mrf.mxu0
        %v4992 = vadd.f32 %v4815, %v4991
        %v4993 = vpop.f32.mrf.mxu0
        %4994 = vmatprep.mubr.bf16.mxu0 0
        %4995 = vmatmul.mubr.bf16.gmra.mxu0 %v3538
        %v4996 = vpop.f32.mrf.mxu0
        %v4997 = vadd.f32 %v4820, %v4996
        %v4998 = vpop.f32.mrf.mxu0
        %v4999 = vpop.f32.mrf.mxu0
        %v5000 = vadd.f32 %v4823, %v4999
        %v5001 = vpop.f32.mrf.mxu0
        %5002 = vmatprep.mubr.bf16.mxu0 0
        %5003 = vmatmul.mubr.bf16.gmra.mxu0 %v3545
        %v5004 = vpop.f32.mrf.mxu0
        %v5005 = vadd.f32 %v4828, %v5004
        %v5006 = vpop.f32.mrf.mxu0
        %v5007 = vpop.f32.mrf.mxu0
        %v5008 = vadd.f32 %v4831, %v5007
        %v5009 = vpop.f32.mrf.mxu0
        %5010 = vmatprep.mubr.bf16.mxu0 0
        %5011 = vmatmul.mubr.bf16.gmra.mxu0 %v3552
        %v5012 = vpop.f32.mrf.mxu0
        %v5013 = vadd.f32 %v4836, %v5012
        %v5014 = vpop.f32.mrf.mxu0
        %v5015 = vpop.f32.mrf.mxu0
        %v5016 = vadd.f32 %v4839, %v5015
        %v5017 = vpop.f32.mrf.mxu0
        %5018 = vmatprep.mubr.bf16.mxu0 0
        %5019 = vmatmul.mubr.bf16.gmra.mxu0 %v3559
        %v5020 = vpop.f32.mrf.mxu0
        %v5021 = vadd.f32 %v4844, %v5020
        %v5022 = vpop.f32.mrf.mxu0
        %v5023 = vpop.f32.mrf.mxu0
        %v5024 = vadd.f32 %v4847, %v5023
        %v5025 = vpop.f32.mrf.mxu0
        %5026 = vmatprep.mubr.bf16.mxu0 0
        %5027 = vmatmul.mubr.bf16.gmra.mxu0 %v3566
        %v5028 = vpop.f32.mrf.mxu0
        %v5029 = vadd.f32 %v4852, %v5028
        %v5030 = vpop.f32.mrf.mxu0
        %v5031 = vpop.f32.mrf.mxu0
        %v5032 = vadd.f32 %v4855, %v5031
        %v5033 = vpop.f32.mrf.mxu0
        %5034 = vdwg.mxu0
        %vm5035 = vcmp.gt.f32.partialorder %v4893, 0.0
        %vm5036 = vcmp.gt.f32.partialorder %v4896, 0.0
        %vm5037 = vcmp.gt.f32.partialorder %v4901, 0.0
        %vm5038 = vcmp.gt.f32.partialorder %v4904, 0.0
        %vm5039 = vcmp.gt.f32.partialorder %v4909, 0.0
        %vm5040 = vcmp.gt.f32.partialorder %v4912, 0.0
        %vm5041 = vcmp.gt.f32.partialorder %v4917, 0.0
        %vm5042 = vcmp.gt.f32.partialorder %v4920, 0.0
        %vm5043 = vcmp.gt.f32.partialorder %v4925, 0.0
        %vm5044 = vcmp.gt.f32.partialorder %v4928, 0.0
        %vm5045 = vcmp.gt.f32.partialorder %v4933, 0.0
        %vm5046 = vcmp.gt.f32.partialorder %v4936, 0.0
        %vm5047 = vcmp.gt.f32.partialorder %v4941, 0.0
        %vm5048 = vcmp.gt.f32.partialorder %v4944, 0.0
        %vm5049 = vcmp.gt.f32.partialorder %v4949, 0.0
        %vm5050 = vcmp.gt.f32.partialorder %v4952, 0.0
        %vm5051 = vcmp.gt.f32.partialorder %v4957, 0.0
        %vm5052 = vcmp.gt.f32.partialorder %v4960, 0.0
        %vm5053 = vcmp.gt.f32.partialorder %v4965, 0.0
        %vm5054 = vcmp.gt.f32.partialorder %v4968, 0.0
        %vm5055 = vcmp.gt.f32.partialorder %v4973, 0.0
        %vm5056 = vcmp.gt.f32.partialorder %v4976, 0.0
        %vm5057 = vcmp.gt.f32.partialorder %v4981, 0.0
        %vm5058 = vcmp.gt.f32.partialorder %v4984, 0.0
        %vm5059 = vcmp.gt.f32.partialorder %v4989, 0.0
        %vm5060 = vcmp.gt.f32.partialorder %v4992, 0.0
        %vm5061 = vcmp.gt.f32.partialorder %v4997, 0.0
        %vm5062 = vcmp.gt.f32.partialorder %v5000, 0.0
        %vm5063 = vcmp.gt.f32.partialorder %v5005, 0.0
        %vm5064 = vcmp.gt.f32.partialorder %v5008, 0.0
        %vm5065 = vcmp.gt.f32.partialorder %v5013, 0.0
        %vm5066 = vcmp.gt.f32.partialorder %v5016, 0.0
        %vm5067 = vcmp.gt.f32.partialorder %v5021, 0.0
        %vm5068 = vcmp.gt.f32.partialorder %v5024, 0.0
        %vm5069 = vcmp.gt.f32.partialorder %v5029, 0.0
        %vm5070 = vcmp.gt.f32.partialorder %v5032, 0.0
        %v5071 = vmul.f32 %v4893, 0.1
        %v5072 = vmul.f32 %v4896, 0.1
        %v5073 = vmul.f32 %v4901, 0.1
        %v5074 = vmul.f32 %v4904, 0.1
        %v5075 = vmul.f32 %v4909, 0.1
        %v5076 = vmul.f32 %v4912, 0.1
        %v5077 = vmul.f32 %v4917, 0.1
        %v5078 = vmul.f32 %v4920, 0.1
        %v5079 = vmul.f32 %v4925, 0.1
        %v5080 = vmul.f32 %v4928, 0.1
        %v5081 = vmul.f32 %v4933, 0.1
        %v5082 = vmul.f32 %v4936, 0.1
        %v5083 = vmul.f32 %v4941, 0.1
        %v5084 = vmul.f32 %v4944, 0.1
        %v5085 = vmul.f32 %v4949, 0.1
        %v5086 = vmul.f32 %v4952, 0.1
        %v5087 = vmul.f32 %v4957, 0.1
        %v5088 = vmul.f32 %v4960, 0.1
        %v5089 = vmul.f32 %v4965, 0.1
        %v5090 = vmul.f32 %v4968, 0.1
        %v5091 = vmul.f32 %v4973, 0.1
        %v5092 = vmul.f32 %v4976, 0.1
        %v5093 = vmul.f32 %v4981, 0.1
        %v5094 = vmul.f32 %v4984, 0.1
        %v5095 = vmul.f32 %v4989, 0.1
        %v5096 = vmul.f32 %v4992, 0.1
        %v5097 = vmul.f32 %v4997, 0.1
        %v5098 = vmul.f32 %v5000, 0.1
        %v5099 = vmul.f32 %v5005, 0.1
        %v5100 = vmul.f32 %v5008, 0.1
        %v5101 = vmul.f32 %v5013, 0.1
        %v5102 = vmul.f32 %v5016, 0.1
        %v5103 = vmul.f32 %v5021, 0.1
        %v5104 = vmul.f32 %v5024, 0.1
        %v5105 = vmul.f32 %v5029, 0.1
        %v5106 = vmul.f32 %v5032, 0.1
        %v5107 = vsel %vm5035, %v4893, %v5071
        %v5108 = vsel %vm5036, %v4896, %v5072
        %v5109 = vsel %vm5037, %v4901, %v5073
        %v5110 = vsel %vm5038, %v4904, %v5074
        %v5111 = vsel %vm5039, %v4909, %v5075
        %v5112 = vsel %vm5040, %v4912, %v5076
        %v5113 = vsel %vm5041, %v4917, %v5077
        %v5114 = vsel %vm5042, %v4920, %v5078
        %v5115 = vsel %vm5043, %v4925, %v5079
        %v5116 = vsel %vm5044, %v4928, %v5080
        %v5117 = vsel %vm5045, %v4933, %v5081
        %v5118 = vsel %vm5046, %v4936, %v5082
        %v5119 = vsel %vm5047, %v4941, %v5083
        %v5120 = vsel %vm5048, %v4944, %v5084
        %v5121 = vsel %vm5049, %v4949, %v5085
        %v5122 = vsel %vm5050, %v4952, %v5086
        %v5123 = vsel %vm5051, %v4957, %v5087
        %v5124 = vsel %vm5052, %v4960, %v5088
        %v5125 = vsel %vm5053, %v4965, %v5089
        %v5126 = vsel %vm5054, %v4968, %v5090
        %v5127 = vsel %vm5055, %v4973, %v5091
        %v5128 = vsel %vm5056, %v4976, %v5092
        %v5129 = vsel %vm5057, %v4981, %v5093
        %v5130 = vsel %vm5058, %v4984, %v5094
        %v5131 = vsel %vm5059, %v4989, %v5095
        %v5132 = vsel %vm5060, %v4992, %v5096
        %v5133 = vsel %vm5061, %v4997, %v5097
        %v5134 = vsel %vm5062, %v5000, %v5098
        %v5135 = vsel %vm5063, %v5005, %v5099
        %v5136 = vsel %vm5064, %v5008, %v5100
        %v5137 = vsel %vm5065, %v5013, %v5101
        %v5138 = vsel %vm5066, %v5016, %v5102
        %v5139 = vsel %vm5067, %v5021, %v5103
        %v5140 = vsel %vm5068, %v5024, %v5104
        %v5141 = vsel %vm5069, %v5029, %v5105
        %v5142 = vsel %vm5070, %v5032, %v5106
        %v5143 = vpack.c.bf16 %v5108, %v5107
        %v5144 = vpack.c.bf16 %v5110, %v5109
        %v5145 = vpack.c.bf16 %v5112, %v5111
        %v5146 = vpack.c.bf16 %v5114, %v5113
        %v5147 = vpack.c.bf16 %v5116, %v5115
        %v5148 = vpack.c.bf16 %v5118, %v5117
        %v5149 = vpack.c.bf16 %v5120, %v5119
        %v5150 = vpack.c.bf16 %v5122, %v5121
        %v5151 = vpack.c.bf16 %v5124, %v5123
        %v5152 = vpack.c.bf16 %v5126, %v5125
        %v5153 = vpack.c.bf16 %v5128, %v5127
        %v5154 = vpack.c.bf16 %v5130, %v5129
        %v5155 = vpack.c.bf16 %v5132, %v5131
        %v5156 = vpack.c.bf16 %v5134, %v5133
        %v5157 = vpack.c.bf16 %v5136, %v5135
        %v5158 = vpack.c.bf16 %v5138, %v5137
        %v5159 = vpack.c.bf16 %v5140, %v5139
        %v5160 = vpack.c.bf16 %v5142, %v5141
        %v5161 = vld [vmem:[%s8] sm:$0xf]
        %v5162 = vld [vmem:[%s8 + $0x4] sm:$0xf]
        %v5163 = vld [vmem:[%s8 + $0x8] sm:$0xf]
        %v5164 = vld [vmem:[%s8 + $0xc] sm:$0xf]
        %v5165 = vld [vmem:[%s8 + $0x10] sm:$0xf]
        %v5166 = vld [vmem:[%s8 + $0x14] sm:$0xf]
        %v5167 = vld [vmem:[%s8 + $0x18] sm:$0xf]
        %v5168 = vld [vmem:[%s8 + $0x1c] sm:$0xf]
        %v5169 = vld [vmem:[%s8 + $0x20] sm:$0xf]
        %v5170 = vld [vmem:[%s8 + $0x24] sm:$0xf]
        %v5171 = vld [vmem:[%s8 + $0x28] sm:$0xf]
        %v5172 = vld [vmem:[%s8 + $0x2c] sm:$0xf]
        %v5173 = vld [vmem:[%s8 + $0x30] sm:$0xf]
        %v5174 = vld [vmem:[%s8 + $0x34] sm:$0xf]
        %v5175 = vld [vmem:[%s8 + $0x38] sm:$0xf]
        %v5176 = vld [vmem:[%s8 + $0x3c] sm:$0xf]
        %v5177 = vld [vmem:[%s9] sm:$0x1]
        %v5179 = vlaneseq
        %v5180 = vshrl.u32 %v5179, 7
        %v5181 = vsub.s32 0, %v5180
        %v5182 = vrot.slane %v5177, %v5181
        %v5200 = vunpack.c.l.b16 %v5161
        %v5201 = vunpack.c.l.b16 %v5162
        %v5202 = vunpack.c.l.b16 %v5163
        %v5203 = vunpack.c.l.b16 %v5164
        %v5204 = vunpack.c.l.b16 %v5165
        %v5205 = vunpack.c.l.b16 %v5166
        %v5206 = vunpack.c.l.b16 %v5167
        %v5207 = vunpack.c.l.b16 %v5168
        %v5208 = vunpack.c.l.b16 %v5169
        %v5209 = vunpack.c.l.b16 %v5170
        %v5210 = vunpack.c.l.b16 %v5171
        %v5211 = vunpack.c.l.b16 %v5172
        %v5212 = vunpack.c.l.b16 %v5173
        %v5213 = vunpack.c.l.b16 %v5174
        %v5214 = vunpack.c.l.b16 %v5175
        %v5215 = vunpack.c.l.b16 %v5176
        %v5216 = vpack.c.b16 %v5201, %v5200
        %v5217 = vpack.c.b16 %v5203, %v5202
        %v5218 = vpack.c.b16 %v5205, %v5204
        %v5219 = vpack.c.b16 %v5207, %v5206
        %v5220 = vpack.c.b16 %v5209, %v5208
        %v5221 = vpack.c.b16 %v5211, %v5210
        %v5222 = vpack.c.b16 %v5213, %v5212
        %v5223 = vpack.c.b16 %v5215, %v5214
        %5232 = vmatprep.subr.bf16.mxu0 0
        %5233 = vmatpush1.bf16.msra.mxu0 %v5223
        %5234 = vmatprep.subr.bf16.mxu0 0
        %5235 = vmatpush1.bf16.msra.mxu0 %v5222
        %5236 = vmatprep.subr.bf16.mxu0 0
        %5237 = vmatpush1.bf16.msra.mxu0 %v5221
        %5238 = vmatprep.subr.bf16.mxu0 0
        %5239 = vmatpush1.bf16.msra.mxu0 %v5220
        %5240 = vmatprep.subr.bf16.mxu0 0
        %5241 = vmatpush1.bf16.msra.mxu0 %v5219
        %5242 = vmatprep.subr.bf16.mxu0 0
        %5243 = vmatpush1.bf16.msra.mxu0 %v5218
        %5244 = vmatprep.subr.bf16.mxu0 0
        %5245 = vmatpush1.bf16.msra.mxu0 %v5217
        %5246 = vmatprep.subr.bf16.mxu0 0
        %5247 = vmatpush1.bf16.msra.mxu0 %v5216
        %5248 = vmatprep.subr.bf16.mxu0 0
        %5249 = vmatpush2.bf16.msra.mxu0 0
        %5250 = vmatprep.subr.bf16.mxu0 0
        %5251 = vmatpush2.bf16.msra.mxu0 0
        %5252 = vmatprep.subr.bf16.mxu0 0
        %5253 = vmatpush2.bf16.msra.mxu0 0
        %5254 = vmatprep.subr.bf16.mxu0 0
        %5255 = vmatpush2.bf16.msra.mxu0 0
        %5256 = vmatprep.subr.bf16.mxu0 0
        %5257 = vmatpush2.bf16.msra.mxu0 0
        %5258 = vmatprep.subr.bf16.mxu0 0
        %5259 = vmatpush2.bf16.msra.mxu0 0
        %5260 = vmatprep.subr.bf16.mxu0 0
        %5261 = vmatpush2.bf16.msra.mxu0 0
        %5262 = vmatprep.subr.bf16.mxu0 0
        %5263 = vmatpush2.bf16.msra.mxu0 0
        %5264 = vmatprep.mubr.bf16.mxu0 0
        %5265 = vmatmul.mubr.bf16.gmra.mxu0 %v5143
        %v5266 = vpop.f32.mrf.mxu0
        %v5267 = vadd.f32 %v5182, %v5266
        %v5268 = vpop.f32.mrf.mxu0
        %v5269 = vpop.f32.mrf.mxu0
        %v5270 = vadd.f32 %v5182, %v5269
        %v5271 = vpop.f32.mrf.mxu0
        %5272 = vmatprep.mubr.bf16.mxu0 0
        %5273 = vmatmul.mubr.bf16.gmra.mxu0 %v5144
        %v5274 = vpop.f32.mrf.mxu0
        %v5275 = vadd.f32 %v5182, %v5274
        %v5276 = vpop.f32.mrf.mxu0
        %v5277 = vpop.f32.mrf.mxu0
        %v5278 = vadd.f32 %v5182, %v5277
        %v5279 = vpop.f32.mrf.mxu0
        %5280 = vmatprep.mubr.bf16.mxu0 0
        %5281 = vmatmul.mubr.bf16.gmra.mxu0 %v5145
        %v5282 = vpop.f32.mrf.mxu0
        %v5283 = vadd.f32 %v5182, %v5282
        %v5284 = vpop.f32.mrf.mxu0
        %v5285 = vpop.f32.mrf.mxu0
        %v5286 = vadd.f32 %v5182, %v5285
        %v5287 = vpop.f32.mrf.mxu0
        %5288 = vmatprep.mubr.bf16.mxu0 0
        %5289 = vmatmul.mubr.bf16.gmra.mxu0 %v5146
        %v5290 = vpop.f32.mrf.mxu0
        %v5291 = vadd.f32 %v5182, %v5290
        %v5292 = vpop.f32.mrf.mxu0
        %v5293 = vpop.f32.mrf.mxu0
        %v5294 = vadd.f32 %v5182, %v5293
        %v5295 = vpop.f32.mrf.mxu0
        %5296 = vmatprep.mubr.bf16.mxu0 0
        %5297 = vmatmul.mubr.bf16.gmra.mxu0 %v5147
        %v5298 = vpop.f32.mrf.mxu0
        %v5299 = vadd.f32 %v5182, %v5298
        %v5300 = vpop.f32.mrf.mxu0
        %v5301 = vpop.f32.mrf.mxu0
        %v5302 = vadd.f32 %v5182, %v5301
        %v5303 = vpop.f32.mrf.mxu0
        %5304 = vmatprep.mubr.bf16.mxu0 0
        %5305 = vmatmul.mubr.bf16.gmra.mxu0 %v5148
        %v5306 = vpop.f32.mrf.mxu0
        %v5307 = vadd.f32 %v5182, %v5306
        %v5308 = vpop.f32.mrf.mxu0
        %v5309 = vpop.f32.mrf.mxu0
        %v5310 = vadd.f32 %v5182, %v5309
        %v5311 = vpop.f32.mrf.mxu0
        %5312 = vmatprep.mubr.bf16.mxu0 0
        %5313 = vmatmul.mubr.bf16.gmra.mxu0 %v5149
        %v5314 = vpop.f32.mrf.mxu0
        %v5315 = vadd.f32 %v5182, %v5314
        %v5316 = vpop.f32.mrf.mxu0
        %v5317 = vpop.f32.mrf.mxu0
        %v5318 = vadd.f32 %v5182, %v5317
        %v5319 = vpop.f32.mrf.mxu0
        %5320 = vmatprep.mubr.bf16.mxu0 0
        %5321 = vmatmul.mubr.bf16.gmra.mxu0 %v5150
        %v5322 = vpop.f32.mrf.mxu0
        %v5323 = vadd.f32 %v5182, %v5322
        %v5324 = vpop.f32.mrf.mxu0
        %v5325 = vpop.f32.mrf.mxu0
        %v5326 = vadd.f32 %v5182, %v5325
        %v5327 = vpop.f32.mrf.mxu0
        %5328 = vmatprep.mubr.bf16.mxu0 0
        %5329 = vmatmul.mubr.bf16.gmra.mxu0 %v5151
        %v5330 = vpop.f32.mrf.mxu0
        %v5331 = vadd.f32 %v5182, %v5330
        %v5332 = vpop.f32.mrf.mxu0
        %v5333 = vpop.f32.mrf.mxu0
        %v5334 = vadd.f32 %v5182, %v5333
        %v5335 = vpop.f32.mrf.mxu0
        %5336 = vmatprep.mubr.bf16.mxu0 0
        %5337 = vmatmul.mubr.bf16.gmra.mxu0 %v5152
        %v5338 = vpop.f32.mrf.mxu0
        %v5339 = vadd.f32 %v5182, %v5338
        %v5340 = vpop.f32.mrf.mxu0
        %v5341 = vpop.f32.mrf.mxu0
        %v5342 = vadd.f32 %v5182, %v5341
        %v5343 = vpop.f32.mrf.mxu0
        %5344 = vmatprep.mubr.bf16.mxu0 0
        %5345 = vmatmul.mubr.bf16.gmra.mxu0 %v5153
        %v5346 = vpop.f32.mrf.mxu0
        %v5347 = vadd.f32 %v5182, %v5346
        %v5348 = vpop.f32.mrf.mxu0
        %v5349 = vpop.f32.mrf.mxu0
        %v5350 = vadd.f32 %v5182, %v5349
        %v5351 = vpop.f32.mrf.mxu0
        %5352 = vmatprep.mubr.bf16.mxu0 0
        %5353 = vmatmul.mubr.bf16.gmra.mxu0 %v5154
        %v5354 = vpop.f32.mrf.mxu0
        %v5355 = vadd.f32 %v5182, %v5354
        %v5356 = vpop.f32.mrf.mxu0
        %v5357 = vpop.f32.mrf.mxu0
        %v5358 = vadd.f32 %v5182, %v5357
        %v5359 = vpop.f32.mrf.mxu0
        %5360 = vmatprep.mubr.bf16.mxu0 0
        %5361 = vmatmul.mubr.bf16.gmra.mxu0 %v5155
        %v5362 = vpop.f32.mrf.mxu0
        %v5363 = vadd.f32 %v5182, %v5362
        %v5364 = vpop.f32.mrf.mxu0
        %v5365 = vpop.f32.mrf.mxu0
        %v5366 = vadd.f32 %v5182, %v5365
        %v5367 = vpop.f32.mrf.mxu0
        %5368 = vmatprep.mubr.bf16.mxu0 0
        %5369 = vmatmul.mubr.bf16.gmra.mxu0 %v5156
        %v5370 = vpop.f32.mrf.mxu0
        %v5371 = vadd.f32 %v5182, %v5370
        %v5372 = vpop.f32.mrf.mxu0
        %v5373 = vpop.f32.mrf.mxu0
        %v5374 = vadd.f32 %v5182, %v5373
        %v5375 = vpop.f32.mrf.mxu0
        %5376 = vmatprep.mubr.bf16.mxu0 0
        %5377 = vmatmul.mubr.bf16.gmra.mxu0 %v5157
        %v5378 = vpop.f32.mrf.mxu0
        %v5379 = vadd.f32 %v5182, %v5378
        %v5380 = vpop.f32.mrf.mxu0
        %v5381 = vpop.f32.mrf.mxu0
        %v5382 = vadd.f32 %v5182, %v5381
        %v5383 = vpop.f32.mrf.mxu0
        %5384 = vmatprep.mubr.bf16.mxu0 0
        %5385 = vmatmul.mubr.bf16.gmra.mxu0 %v5158
        %v5386 = vpop.f32.mrf.mxu0
        %v5387 = vadd.f32 %v5182, %v5386
        %v5388 = vpop.f32.mrf.mxu0
        %v5389 = vpop.f32.mrf.mxu0
        %v5390 = vadd.f32 %v5182, %v5389
        %v5391 = vpop.f32.mrf.mxu0
        %5392 = vmatprep.mubr.bf16.mxu0 0
        %5393 = vmatmul.mubr.bf16.gmra.mxu0 %v5159
        %v5394 = vpop.f32.mrf.mxu0
        %v5395 = vadd.f32 %v5182, %v5394
        %v5396 = vpop.f32.mrf.mxu0
        %v5397 = vpop.f32.mrf.mxu0
        %v5398 = vadd.f32 %v5182, %v5397
        %v5399 = vpop.f32.mrf.mxu0
        %5400 = vmatprep.mubr.bf16.mxu0 0
        %5401 = vmatmul.mubr.bf16.gmra.mxu0 %v5160
        %v5402 = vpop.f32.mrf.mxu0
        %v5403 = vadd.f32 %v5182, %v5402
        %v5404 = vpop.f32.mrf.mxu0
        %v5405 = vpop.f32.mrf.mxu0
        %v5406 = vadd.f32 %v5182, %v5405
        %v5407 = vpop.f32.mrf.mxu0
        %5408 = vdwg.mxu0
        %vm5409 = vcmp.gt.f32.partialorder %v5267, 0.0
        %vm5410 = vcmp.gt.f32.partialorder %v5270, 0.0
        %vm5411 = vcmp.gt.f32.partialorder %v5275, 0.0
        %vm5412 = vcmp.gt.f32.partialorder %v5278, 0.0
        %vm5413 = vcmp.gt.f32.partialorder %v5283, 0.0
        %vm5414 = vcmp.gt.f32.partialorder %v5286, 0.0
        %vm5415 = vcmp.gt.f32.partialorder %v5291, 0.0
        %vm5416 = vcmp.gt.f32.partialorder %v5294, 0.0
        %vm5417 = vcmp.gt.f32.partialorder %v5299, 0.0
        %vm5418 = vcmp.gt.f32.partialorder %v5302, 0.0
        %vm5419 = vcmp.gt.f32.partialorder %v5307, 0.0
        %vm5420 = vcmp.gt.f32.partialorder %v5310, 0.0
        %vm5421 = vcmp.gt.f32.partialorder %v5315, 0.0
        %vm5422 = vcmp.gt.f32.partialorder %v5318, 0.0
        %vm5423 = vcmp.gt.f32.partialorder %v5323, 0.0
        %vm5424 = vcmp.gt.f32.partialorder %v5326, 0.0
        %vm5425 = vcmp.gt.f32.partialorder %v5331, 0.0
        %vm5426 = vcmp.gt.f32.partialorder %v5334, 0.0
        %vm5427 = vcmp.gt.f32.partialorder %v5339, 0.0
        %vm5428 = vcmp.gt.f32.partialorder %v5342, 0.0
        %vm5429 = vcmp.gt.f32.partialorder %v5347, 0.0
        %vm5430 = vcmp.gt.f32.partialorder %v5350, 0.0
        %vm5431 = vcmp.gt.f32.partialorder %v5355, 0.0
        %vm5432 = vcmp.gt.f32.partialorder %v5358, 0.0
        %vm5433 = vcmp.gt.f32.partialorder %v5363, 0.0
        %vm5434 = vcmp.gt.f32.partialorder %v5366, 0.0
        %vm5435 = vcmp.gt.f32.partialorder %v5371, 0.0
        %vm5436 = vcmp.gt.f32.partialorder %v5374, 0.0
        %vm5437 = vcmp.gt.f32.partialorder %v5379, 0.0
        %vm5438 = vcmp.gt.f32.partialorder %v5382, 0.0
        %vm5439 = vcmp.gt.f32.partialorder %v5387, 0.0
        %vm5440 = vcmp.gt.f32.partialorder %v5390, 0.0
        %vm5441 = vcmp.gt.f32.partialorder %v5395, 0.0
        %vm5442 = vcmp.gt.f32.partialorder %v5398, 0.0
        %vm5443 = vcmp.gt.f32.partialorder %v5403, 0.0
        %vm5444 = vcmp.gt.f32.partialorder %v5406, 0.0
        %v5445 = vmul.f32 %v5267, 0.1
        %v5446 = vmul.f32 %v5270, 0.1
        %v5447 = vmul.f32 %v5275, 0.1
        %v5448 = vmul.f32 %v5278, 0.1
        %v5449 = vmul.f32 %v5283, 0.1
        %v5450 = vmul.f32 %v5286, 0.1
        %v5451 = vmul.f32 %v5291, 0.1
        %v5452 = vmul.f32 %v5294, 0.1
        %v5453 = vmul.f32 %v5299, 0.1
        %v5454 = vmul.f32 %v5302, 0.1
        %v5455 = vmul.f32 %v5307, 0.1
        %v5456 = vmul.f32 %v5310, 0.1
        %v5457 = vmul.f32 %v5315, 0.1
        %v5458 = vmul.f32 %v5318, 0.1
        %v5459 = vmul.f32 %v5323, 0.1
        %v5460 = vmul.f32 %v5326, 0.1
        %v5461 = vmul.f32 %v5331, 0.1
        %v5462 = vmul.f32 %v5334, 0.1
        %v5463 = vmul.f32 %v5339, 0.1
        %v5464 = vmul.f32 %v5342, 0.1
        %v5465 = vmul.f32 %v5347, 0.1
        %v5466 = vmul.f32 %v5350, 0.1
        %v5467 = vmul.f32 %v5355, 0.1
        %v5468 = vmul.f32 %v5358, 0.1
        %v5469 = vmul.f32 %v5363, 0.1
        %v5470 = vmul.f32 %v5366, 0.1
        %v5471 = vmul.f32 %v5371, 0.1
        %v5472 = vmul.f32 %v5374, 0.1
        %v5473 = vmul.f32 %v5379, 0.1
        %v5474 = vmul.f32 %v5382, 0.1
        %v5475 = vmul.f32 %v5387, 0.1
        %v5476 = vmul.f32 %v5390, 0.1
        %v5477 = vmul.f32 %v5395, 0.1
        %v5478 = vmul.f32 %v5398, 0.1
        %v5479 = vmul.f32 %v5403, 0.1
        %v5480 = vmul.f32 %v5406, 0.1
        %v5481 = vsel %vm5409, %v5267, %v5445
        %v5482 = vsel %vm5410, %v5270, %v5446
        %v5483 = vsel %vm5411, %v5275, %v5447
        %v5484 = vsel %vm5412, %v5278, %v5448
        %v5485 = vsel %vm5413, %v5283, %v5449
        %v5486 = vsel %vm5414, %v5286, %v5450
        %v5487 = vsel %vm5415, %v5291, %v5451
        %v5488 = vsel %vm5416, %v5294, %v5452
        %v5489 = vsel %vm5417, %v5299, %v5453
        %v5490 = vsel %vm5418, %v5302, %v5454
        %v5491 = vsel %vm5419, %v5307, %v5455
        %v5492 = vsel %vm5420, %v5310, %v5456
        %v5493 = vsel %vm5421, %v5315, %v5457
        %v5494 = vsel %vm5422, %v5318, %v5458
        %v5495 = vsel %vm5423, %v5323, %v5459
        %v5496 = vsel %vm5424, %v5326, %v5460
        %v5497 = vsel %vm5425, %v5331, %v5461
        %v5498 = vsel %vm5426, %v5334, %v5462
        %v5499 = vsel %vm5427, %v5339, %v5463
        %v5500 = vsel %vm5428, %v5342, %v5464
        %v5501 = vsel %vm5429, %v5347, %v5465
        %v5502 = vsel %vm5430, %v5350, %v5466
        %v5503 = vsel %vm5431, %v5355, %v5467
        %v5504 = vsel %vm5432, %v5358, %v5468
        %v5505 = vsel %vm5433, %v5363, %v5469
        %v5506 = vsel %vm5434, %v5366, %v5470
        %v5507 = vsel %vm5435, %v5371, %v5471
        %v5508 = vsel %vm5436, %v5374, %v5472
        %v5509 = vsel %vm5437, %v5379, %v5473
        %v5510 = vsel %vm5438, %v5382, %v5474
        %v5511 = vsel %vm5439, %v5387, %v5475
        %v5512 = vsel %vm5440, %v5390, %v5476
        %v5513 = vsel %vm5441, %v5395, %v5477
        %v5514 = vsel %vm5442, %v5398, %v5478
        %v5515 = vsel %vm5443, %v5403, %v5479
        %v5516 = vsel %vm5444, %v5406, %v5480
        %v5517 = vmul.f32 %v5481, %v2934
        %v5518 = vmul.f32 %v5482, %v2939
        %v5519 = vmul.f32 %v5483, %v2944
        %v5520 = vmul.f32 %v5484, %v2949
        %v5521 = vmul.f32 %v5485, %v2954
        %v5522 = vmul.f32 %v5486, %v2959
        %v5523 = vmul.f32 %v5487, %v2964
        %v5524 = vmul.f32 %v5488, %v2969
        %v5525 = vmul.f32 %v5489, %v2974
        %v5526 = vmul.f32 %v5490, %v2979
        %v5527 = vmul.f32 %v5491, %v2984
        %v5528 = vmul.f32 %v5492, %v2989
        %v5529 = vmul.f32 %v5493, %v2994
        %v5530 = vmul.f32 %v5494, %v2999
        %v5531 = vmul.f32 %v5495, %v3004
        %v5532 = vmul.f32 %v5496, %v3009
        %v5533 = vmul.f32 %v5497, %v3014
        %v5534 = vmul.f32 %v5498, %v3019
        %v5535 = vmul.f32 %v5499, %v3024
        %v5536 = vmul.f32 %v5500, %v3029
        %v5537 = vmul.f32 %v5501, %v3034
        %v5538 = vmul.f32 %v5502, %v3039
        %v5539 = vmul.f32 %v5503, %v3044
        %v5540 = vmul.f32 %v5504, %v3049
        %v5541 = vmul.f32 %v5505, %v3054
        %v5542 = vmul.f32 %v5506, %v3059
        %v5543 = vmul.f32 %v5507, %v3064
        %v5544 = vmul.f32 %v5508, %v3069
        %v5545 = vmul.f32 %v5509, %v3074
        %v5546 = vmul.f32 %v5510, %v3079
        %v5547 = vmul.f32 %v5511, %v3084
        %v5548 = vmul.f32 %v5512, %v3089
        %v5549 = vmul.f32 %v5513, %v3094
        %v5550 = vmul.f32 %v5514, %v3099
        %v5551 = vmul.f32 %v5515, %v3104
        %v5552 = vmul.f32 %v5516, %v3109
        %5553 = vst [vmem:[#allocation3 + $0x18] sm:$0xff] %v5517
        %5554 = vst [vmem:[#allocation3 + $0x20] sm:$0xff] %v5518
        %5555 = vst [vmem:[#allocation3 + $0x28] sm:$0xff] %v5519
        %5556 = vst [vmem:[#allocation3 + $0x30] sm:$0xff] %v5520
        %5557 = vst [vmem:[#allocation3 + $0x38] sm:$0xff] %v5521
        %5558 = vst [vmem:[#allocation3 + $0x40] sm:$0xff] %v5522
        %5559 = vst [vmem:[#allocation3 + $0x48] sm:$0xff] %v5523
        %5560 = vst [vmem:[#allocation3 + $0x50] sm:$0xff] %v5524
        %5561 = vst [vmem:[#allocation3 + $0x58] sm:$0xff] %v5525
        %5562 = vst [vmem:[#allocation3 + $0x60] sm:$0xff] %v5526
        %5563 = vst [vmem:[#allocation3 + $0x68] sm:$0xff] %v5527
        %5564 = vst [vmem:[#allocation3 + $0x70] sm:$0xff] %v5528
        %5565 = vst [vmem:[#allocation3 + $0x78] sm:$0xff] %v5529
        %5566 = vst [vmem:[#allocation3 + $0x80] sm:$0xff] %v5530
        %5567 = vst [vmem:[#allocation3 + $0x88] sm:$0xff] %v5531
        %5568 = vst [vmem:[#allocation3 + $0x90] sm:$0xff] %v5532
        %5569 = vst [vmem:[#allocation3 + $0x98] sm:$0xff] %v5533
        %5570 = vst [vmem:[#allocation3 + $0xa0] sm:$0xff] %v5534
        %5571 = vst [vmem:[#allocation3 + $0xa8] sm:$0xff] %v5535
        %5572 = vst [vmem:[#allocation3 + $0xb0] sm:$0xff] %v5536
        %5573 = vst [vmem:[#allocation3 + $0xb8] sm:$0xff] %v5537
        %5574 = vst [vmem:[#allocation3 + $0xc0] sm:$0xff] %v5538
        %5575 = vst [vmem:[#allocation3 + $0xc8] sm:$0xff] %v5539
        %5576 = vst [vmem:[#allocation3 + $0xd0] sm:$0xff] %v5540
        %5577 = vst [vmem:[#allocation3 + $0xd8] sm:$0xff] %v5541
        %5578 = vst [vmem:[#allocation3 + $0xe0] sm:$0xff] %v5542
        %5579 = vst [vmem:[#allocation3 + $0xe8] sm:$0xff] %v5543
        %5580 = vst [vmem:[#allocation3 + $0xf0] sm:$0xff] %v5544
        %5581 = vst [vmem:[#allocation3 + $0xf8] sm:$0xff] %v5545
        %5582 = vst [vmem:[#allocation3 + $0x100] sm:$0xff] %v5546
        %5583 = vst [vmem:[#allocation3 + $0x108] sm:$0xff] %v5547
        %5584 = vst [vmem:[#allocation3 + $0x110] sm:$0xff] %v5548
        %5585 = vst [vmem:[#allocation3 + $0x118] sm:$0xff] %v5549
        %5586 = vst [vmem:[#allocation3 + $0x120] sm:$0xff] %v5550
        %5587 = vst [vmem:[#allocation3 + $0x128] sm:$0xff] %v5551
        %5588 = vst [vmem:[#allocation3 + $0x130] sm:$0xff] %v5552
        %v5589 = vld [vmem:[#allocation3 + $0x5] sm:$0xff]
        %v5590 = vld [vmem:[#allocation3 + $0xd] sm:$0xff]
        %v5591 = vld [vmem:[#allocation3 + $0x15] sm:$0xff]
        %v5592 = vld [vmem:[#allocation3 + $0x1d] sm:$0xff]
        %v5593 = vld [vmem:[#allocation3 + $0x25] sm:$0xff]
        %v5594 = vld [vmem:[#allocation3 + $0x2d] sm:$0xff]
        %v5595 = vld [vmem:[#allocation3 + $0x35] sm:$0xff]
        %v5596 = vld [vmem:[#allocation3 + $0x3d] sm:$0xff]
        %v5597 = vld [vmem:[#allocation3 + $0x45] sm:$0xff]
        %v5598 = vld [vmem:[#allocation3 + $0x4d] sm:$0xff]
        %v5599 = vld [vmem:[#allocation3 + $0x55] sm:$0xff]
        %v5600 = vld [vmem:[#allocation3 + $0x5d] sm:$0xff]
        %v5601 = vld [vmem:[#allocation3 + $0x65] sm:$0xff]
        %v5602 = vld [vmem:[#allocation3 + $0x6d] sm:$0xff]
        %v5603 = vld [vmem:[#allocation3 + $0x75] sm:$0xff]
        %v5604 = vld [vmem:[#allocation3 + $0x7d] sm:$0xff]
        %v5605 = vld [vmem:[#allocation3 + $0x85] sm:$0xff]
        %v5606 = vld [vmem:[#allocation3 + $0x8d] sm:$0xff]
        %v5607 = vld [vmem:[#allocation3 + $0x95] sm:$0xff]
        %v5608 = vld [vmem:[#allocation3 + $0x9d] sm:$0xff]
        %v5609 = vld [vmem:[#allocation3 + $0xa5] sm:$0xff]
        %v5610 = vld [vmem:[#allocation3 + $0xad] sm:$0xff]
        %v5611 = vld [vmem:[#allocation3 + $0xb5] sm:$0xff]
        %v5612 = vld [vmem:[#allocation3 + $0xbd] sm:$0xff]
        %v5613 = vld [vmem:[#allocation3 + $0xc5] sm:$0xff]
        %v5614 = vld [vmem:[#allocation3 + $0xcd] sm:$0xff]
        %v5615 = vld [vmem:[#allocation3 + $0xd5] sm:$0xff]
        %v5616 = vld [vmem:[#allocation3 + $0xdd] sm:$0xff]
        %v5617 = vld [vmem:[#allocation3 + $0xe5] sm:$0xff]
        %v5618 = vld [vmem:[#allocation3 + $0xed] sm:$0xff]
        %v5619 = vld [vmem:[#allocation3 + $0xf5] sm:$0xff]
        %v5620 = vld [vmem:[#allocation3 + $0xfd] sm:$0xff]
        %v5621 = vld [vmem:[#allocation3 + $0x105] sm:$0xff]
        %v5622 = vld [vmem:[#allocation3 + $0x10d] sm:$0xff]
        %v5623 = vld [vmem:[#allocation3 + $0x115] sm:$0xff]
        %v5624 = vld [vmem:[#allocation3 + $0x11d] sm:$0xff]
        %v5625 = vld [vmem:[#allocation3 + $0x6] sm:$0xff]
        %v5626 = vld [vmem:[#allocation3 + $0xe] sm:$0xff]
        %v5627 = vld [vmem:[#allocation3 + $0x16] sm:$0xff]
        %v5628 = vld [vmem:[#allocation3 + $0x1e] sm:$0xff]
        %v5629 = vld [vmem:[#allocation3 + $0x26] sm:$0xff]
        %v5630 = vld [vmem:[#allocation3 + $0x2e] sm:$0xff]
        %v5631 = vld [vmem:[#allocation3 + $0x36] sm:$0xff]
        %v5632 = vld [vmem:[#allocation3 + $0x3e] sm:$0xff]
        %v5633 = vld [vmem:[#allocation3 + $0x46] sm:$0xff]
        %v5634 = vld [vmem:[#allocation3 + $0x4e] sm:$0xff]
        %v5635 = vld [vmem:[#allocation3 + $0x56] sm:$0xff]
        %v5636 = vld [vmem:[#allocation3 + $0x5e] sm:$0xff]
        %v5637 = vld [vmem:[#allocation3 + $0x66] sm:$0xff]
        %v5638 = vld [vmem:[#allocation3 + $0x6e] sm:$0xff]
        %v5639 = vld [vmem:[#allocation3 + $0x76] sm:$0xff]
        %v5640 = vld [vmem:[#allocation3 + $0x7e] sm:$0xff]
        %v5641 = vld [vmem:[#allocation3 + $0x86] sm:$0xff]
        %v5642 = vld [vmem:[#allocation3 + $0x8e] sm:$0xff]
        %v5643 = vld [vmem:[#allocation3 + $0x96] sm:$0xff]
        %v5644 = vld [vmem:[#allocation3 + $0x9e] sm:$0xff]
        %v5645 = vld [vmem:[#allocation3 + $0xa6] sm:$0xff]
        %v5646 = vld [vmem:[#allocation3 + $0xae] sm:$0xff]
        %v5647 = vld [vmem:[#allocation3 + $0xb6] sm:$0xff]
        %v5648 = vld [vmem:[#allocation3 + $0xbe] sm:$0xff]
        %v5649 = vld [vmem:[#allocation3 + $0xc6] sm:$0xff]
        %v5650 = vld [vmem:[#allocation3 + $0xce] sm:$0xff]
        %v5651 = vld [vmem:[#allocation3 + $0xd6] sm:$0xff]
        %v5652 = vld [vmem:[#allocation3 + $0xde] sm:$0xff]
        %v5653 = vld [vmem:[#allocation3 + $0xe6] sm:$0xff]
        %v5654 = vld [vmem:[#allocation3 + $0xee] sm:$0xff]
        %v5655 = vld [vmem:[#allocation3 + $0xf6] sm:$0xff]
        %v5656 = vld [vmem:[#allocation3 + $0xfe] sm:$0xff]
        %v5657 = vld [vmem:[#allocation3 + $0x106] sm:$0xff]
        %v5658 = vld [vmem:[#allocation3 + $0x10e] sm:$0xff]
        %v5659 = vld [vmem:[#allocation3 + $0x116] sm:$0xff]
        %v5660 = vld [vmem:[#allocation3 + $0x11e] sm:$0xff]
        %v5661 = vld [vmem:[#allocation3 + $0x7] sm:$0xff]
        %v5662 = vld [vmem:[#allocation3 + $0xf] sm:$0xff]
        %v5663 = vld [vmem:[#allocation3 + $0x17] sm:$0xff]
        %v5664 = vld [vmem:[#allocation3 + $0x1f] sm:$0xff]
        %v5665 = vld [vmem:[#allocation3 + $0x27] sm:$0xff]
        %v5666 = vld [vmem:[#allocation3 + $0x2f] sm:$0xff]
        %v5667 = vld [vmem:[#allocation3 + $0x37] sm:$0xff]
        %v5668 = vld [vmem:[#allocation3 + $0x3f] sm:$0xff]
        %v5669 = vld [vmem:[#allocation3 + $0x47] sm:$0xff]
        %v5670 = vld [vmem:[#allocation3 + $0x4f] sm:$0xff]
        %v5671 = vld [vmem:[#allocation3 + $0x57] sm:$0xff]
        %v5672 = vld [vmem:[#allocation3 + $0x5f] sm:$0xff]
        %v5673 = vld [vmem:[#allocation3 + $0x67] sm:$0xff]
        %v5674 = vld [vmem:[#allocation3 + $0x6f] sm:$0xff]
        %v5675 = vld [vmem:[#allocation3 + $0x77] sm:$0xff]
        %v5676 = vld [vmem:[#allocation3 + $0x7f] sm:$0xff]
        %v5677 = vld [vmem:[#allocation3 + $0x87] sm:$0xff]
        %v5678 = vld [vmem:[#allocation3 + $0x8f] sm:$0xff]
        %v5679 = vld [vmem:[#allocation3 + $0x97] sm:$0xff]
        %v5680 = vld [vmem:[#allocation3 + $0x9f] sm:$0xff]
        %v5681 = vld [vmem:[#allocation3 + $0xa7] sm:$0xff]
        %v5682 = vld [vmem:[#allocation3 + $0xaf] sm:$0xff]
        %v5683 = vld [vmem:[#allocation3 + $0xb7] sm:$0xff]
        %v5684 = vld [vmem:[#allocation3 + $0xbf] sm:$0xff]
        %v5685 = vld [vmem:[#allocation3 + $0xc7] sm:$0xff]
        %v5686 = vld [vmem:[#allocation3 + $0xcf] sm:$0xff]
        %v5687 = vld [vmem:[#allocation3 + $0xd7] sm:$0xff]
        %v5688 = vld [vmem:[#allocation3 + $0xdf] sm:$0xff]
        %v5689 = vld [vmem:[#allocation3 + $0xe7] sm:$0xff]
        %v5690 = vld [vmem:[#allocation3 + $0xef] sm:$0xff]
        %v5691 = vld [vmem:[#allocation3 + $0xf7] sm:$0xff]
        %v5692 = vld [vmem:[#allocation3 + $0xff] sm:$0xff]
        %v5693 = vld [vmem:[#allocation3 + $0x107] sm:$0xff]
        %v5694 = vld [vmem:[#allocation3 + $0x10f] sm:$0xff]
        %v5695 = vld [vmem:[#allocation3 + $0x117] sm:$0xff]
        %v5696 = vld [vmem:[#allocation3 + $0x11f] sm:$0xff]
        %v5697 = vld [vmem:[#allocation3 + $0x127] sm:$0xff]
        %v5698 = vld [vmem:[#allocation3 + $0x12f] sm:$0xff]
        %v5699 = vld [vmem:[#allocation3 + $0x18] sm:$0xff]
        %v5700 = vld [vmem:[#allocation3 + $0x20] sm:$0xff]
        %v5701 = vld [vmem:[#allocation3 + $0x28] sm:$0xff]
        %v5702 = vld [vmem:[#allocation3 + $0x30] sm:$0xff]
        %v5703 = vld [vmem:[#allocation3 + $0x38] sm:$0xff]
        %v5704 = vld [vmem:[#allocation3 + $0x40] sm:$0xff]
        %v5705 = vld [vmem:[#allocation3 + $0x48] sm:$0xff]
        %v5706 = vld [vmem:[#allocation3 + $0x50] sm:$0xff]
        %v5707 = vld [vmem:[#allocation3 + $0x58] sm:$0xff]
        %v5708 = vld [vmem:[#allocation3 + $0x60] sm:$0xff]
        %v5709 = vld [vmem:[#allocation3 + $0x68] sm:$0xff]
        %v5710 = vld [vmem:[#allocation3 + $0x70] sm:$0xff]
        %v5711 = vld [vmem:[#allocation3 + $0x78] sm:$0xff]
        %v5712 = vld [vmem:[#allocation3 + $0x80] sm:$0xff]
        %v5713 = vld [vmem:[#allocation3 + $0x88] sm:$0xff]
        %v5714 = vld [vmem:[#allocation3 + $0x90] sm:$0xff]
        %v5715 = vld [vmem:[#allocation3 + $0x98] sm:$0xff]
        %v5716 = vld [vmem:[#allocation3 + $0xa0] sm:$0xff]
        %v5717 = vld [vmem:[#allocation3 + $0xa8] sm:$0xff]
        %v5718 = vld [vmem:[#allocation3 + $0xb0] sm:$0xff]
        %v5719 = vld [vmem:[#allocation3 + $0xb8] sm:$0xff]
        %v5720 = vld [vmem:[#allocation3 + $0xc0] sm:$0xff]
        %v5721 = vld [vmem:[#allocation3 + $0xc8] sm:$0xff]
        %v5722 = vld [vmem:[#allocation3 + $0xd0] sm:$0xff]
        %v5723 = vld [vmem:[#allocation3 + $0xd8] sm:$0xff]
        %v5724 = vld [vmem:[#allocation3 + $0xe0] sm:$0xff]
        %v5725 = vld [vmem:[#allocation3 + $0xe8] sm:$0xff]
        %v5726 = vld [vmem:[#allocation3 + $0xf0] sm:$0xff]
        %v5727 = vld [vmem:[#allocation3 + $0xf8] sm:$0xff]
        %v5728 = vld [vmem:[#allocation3 + $0x100] sm:$0xff]
        %v5729 = vld [vmem:[#allocation3 + $0x108] sm:$0xff]
        %v5730 = vld [vmem:[#allocation3 + $0x110] sm:$0xff]
        %v5731 = vld [vmem:[#allocation3 + $0x118] sm:$0xff]
        %v5732 = vld [vmem:[#allocation3 + $0x120] sm:$0xff]
        %v5733 = vld [vmem:[#allocation3 + $0x128] sm:$0xff]
        %v5734 = vld [vmem:[#allocation3 + $0x130] sm:$0xff]
        %v5735 = vld [vmem:[#allocation3 + $0x19] sm:$0xff]
        %v5736 = vld [vmem:[#allocation3 + $0x21] sm:$0xff]
        %v5737 = vld [vmem:[#allocation3 + $0x29] sm:$0xff]
        %v5738 = vld [vmem:[#allocation3 + $0x31] sm:$0xff]
        %v5739 = vld [vmem:[#allocation3 + $0x39] sm:$0xff]
        %v5740 = vld [vmem:[#allocation3 + $0x41] sm:$0xff]
        %v5741 = vld [vmem:[#allocation3 + $0x49] sm:$0xff]
        %v5742 = vld [vmem:[#allocation3 + $0x51] sm:$0xff]
        %v5743 = vld [vmem:[#allocation3 + $0x59] sm:$0xff]
        %v5744 = vld [vmem:[#allocation3 + $0x61] sm:$0xff]
        %v5745 = vld [vmem:[#allocation3 + $0x69] sm:$0xff]
        %v5746 = vld [vmem:[#allocation3 + $0x71] sm:$0xff]
        %v5747 = vld [vmem:[#allocation3 + $0x79] sm:$0xff]
        %v5748 = vld [vmem:[#allocation3 + $0x81] sm:$0xff]
        %v5749 = vld [vmem:[#allocation3 + $0x89] sm:$0xff]
        %v5750 = vld [vmem:[#allocation3 + $0x91] sm:$0xff]
        %v5751 = vld [vmem:[#allocation3 + $0x99] sm:$0xff]
        %v5752 = vld [vmem:[#allocation3 + $0xa1] sm:$0xff]
        %v5753 = vld [vmem:[#allocation3 + $0xa9] sm:$0xff]
        %v5754 = vld [vmem:[#allocation3 + $0xb1] sm:$0xff]
        %v5755 = vld [vmem:[#allocation3 + $0xb9] sm:$0xff]
        %v5756 = vld [vmem:[#allocation3 + $0xc1] sm:$0xff]
        %v5757 = vld [vmem:[#allocation3 + $0xc9] sm:$0xff]
        %v5758 = vld [vmem:[#allocation3 + $0xd1] sm:$0xff]
        %v5759 = vld [vmem:[#allocation3 + $0xd9] sm:$0xff]
        %v5760 = vld [vmem:[#allocation3 + $0xe1] sm:$0xff]
        %v5761 = vld [vmem:[#allocation3 + $0xe9] sm:$0xff]
        %v5762 = vld [vmem:[#allocation3 + $0xf1] sm:$0xff]
        %v5763 = vld [vmem:[#allocation3 + $0xf9] sm:$0xff]
        %v5764 = vld [vmem:[#allocation3 + $0x101] sm:$0xff]
        %v5765 = vld [vmem:[#allocation3 + $0x109] sm:$0xff]
        %v5766 = vld [vmem:[#allocation3 + $0x111] sm:$0xff]
        %v5767 = vld [vmem:[#allocation3 + $0x119] sm:$0xff]
        %v5768 = vld [vmem:[#allocation3 + $0x121] sm:$0xff]
        %v5769 = vld [vmem:[#allocation3 + $0x129] sm:$0xff]
        %v5770 = vld [vmem:[#allocation3 + $0x131] sm:$0xff]
        %v5771 = vld [vmem:[#allocation3 + $0x139] sm:$0xff]
        %v5772 = vld [vmem:[#allocation3 + $0x141] sm:$0xff]
        %v5773 = vld [vmem:[#allocation3 + $0x2a] sm:$0xff]
        %v5774 = vld [vmem:[#allocation3 + $0x32] sm:$0xff]
        %v5775 = vld [vmem:[#allocation3 + $0x3a] sm:$0xff]
        %v5776 = vld [vmem:[#allocation3 + $0x42] sm:$0xff]
        %v5777 = vld [vmem:[#allocation3 + $0x4a] sm:$0xff]
        %v5778 = vld [vmem:[#allocation3 + $0x52] sm:$0xff]
        %v5779 = vld [vmem:[#allocation3 + $0x5a] sm:$0xff]
        %v5780 = vld [vmem:[#allocation3 + $0x62] sm:$0xff]
        %v5781 = vld [vmem:[#allocation3 + $0x6a] sm:$0xff]
        %v5782 = vld [vmem:[#allocation3 + $0x72] sm:$0xff]
        %v5783 = vld [vmem:[#allocation3 + $0x7a] sm:$0xff]
        %v5784 = vld [vmem:[#allocation3 + $0x82] sm:$0xff]
        %v5785 = vld [vmem:[#allocation3 + $0x8a] sm:$0xff]
        %v5786 = vld [vmem:[#allocation3 + $0x92] sm:$0xff]
        %v5787 = vld [vmem:[#allocation3 + $0x9a] sm:$0xff]
        %v5788 = vld [vmem:[#allocation3 + $0xa2] sm:$0xff]
        %v5789 = vld [vmem:[#allocation3 + $0xaa] sm:$0xff]
        %v5790 = vld [vmem:[#allocation3 + $0xb2] sm:$0xff]
        %v5791 = vld [vmem:[#allocation3 + $0xba] sm:$0xff]
        %v5792 = vld [vmem:[#allocation3 + $0xc2] sm:$0xff]
        %v5793 = vld [vmem:[#allocation3 + $0xca] sm:$0xff]
        %v5794 = vld [vmem:[#allocation3 + $0xd2] sm:$0xff]
        %v5795 = vld [vmem:[#allocation3 + $0xda] sm:$0xff]
        %v5796 = vld [vmem:[#allocation3 + $0xe2] sm:$0xff]
        %v5797 = vld [vmem:[#allocation3 + $0xea] sm:$0xff]
        %v5798 = vld [vmem:[#allocation3 + $0xf2] sm:$0xff]
        %v5799 = vld [vmem:[#allocation3 + $0xfa] sm:$0xff]
        %v5800 = vld [vmem:[#allocation3 + $0x102] sm:$0xff]
        %v5801 = vld [vmem:[#allocation3 + $0x10a] sm:$0xff]
        %v5802 = vld [vmem:[#allocation3 + $0x112] sm:$0xff]
        %v5803 = vld [vmem:[#allocation3 + $0x11a] sm:$0xff]
        %v5804 = vld [vmem:[#allocation3 + $0x122] sm:$0xff]
        %v5805 = vld [vmem:[#allocation3 + $0x12a] sm:$0xff]
        %v5806 = vld [vmem:[#allocation3 + $0x132] sm:$0xff]
        %v5807 = vld [vmem:[#allocation3 + $0x13a] sm:$0xff]
        %v5808 = vld [vmem:[#allocation3 + $0x142] sm:$0xff]
        %v5809 = vld [vmem:[#allocation3 + $0x2b] sm:$0xff]
        %v5810 = vld [vmem:[#allocation3 + $0x33] sm:$0xff]
        %v5811 = vld [vmem:[#allocation3 + $0x3b] sm:$0xff]
        %v5812 = vld [vmem:[#allocation3 + $0x43] sm:$0xff]
        %v5813 = vld [vmem:[#allocation3 + $0x4b] sm:$0xff]
        %v5814 = vld [vmem:[#allocation3 + $0x53] sm:$0xff]
        %v5815 = vld [vmem:[#allocation3 + $0x5b] sm:$0xff]
        %v5816 = vld [vmem:[#allocation3 + $0x63] sm:$0xff]
        %v5817 = vld [vmem:[#allocation3 + $0x6b] sm:$0xff]
        %v5818 = vld [vmem:[#allocation3 + $0x73] sm:$0xff]
        %v5819 = vld [vmem:[#allocation3 + $0x7b] sm:$0xff]
        %v5820 = vld [vmem:[#allocation3 + $0x83] sm:$0xff]
        %v5821 = vld [vmem:[#allocation3 + $0x8b] sm:$0xff]
        %v5822 = vld [vmem:[#allocation3 + $0x93] sm:$0xff]
        %v5823 = vld [vmem:[#allocation3 + $0x9b] sm:$0xff]
        %v5824 = vld [vmem:[#allocation3 + $0xa3] sm:$0xff]
        %v5825 = vld [vmem:[#allocation3 + $0xab] sm:$0xff]
        %v5826 = vld [vmem:[#allocation3 + $0xb3] sm:$0xff]
        %v5827 = vld [vmem:[#allocation3 + $0xbb] sm:$0xff]
        %v5828 = vld [vmem:[#allocation3 + $0xc3] sm:$0xff]
        %v5829 = vld [vmem:[#allocation3 + $0xcb] sm:$0xff]
        %v5830 = vld [vmem:[#allocation3 + $0xd3] sm:$0xff]
        %v5831 = vld [vmem:[#allocation3 + $0xdb] sm:$0xff]
        %v5832 = vld [vmem:[#allocation3 + $0xe3] sm:$0xff]
        %v5833 = vld [vmem:[#allocation3 + $0xeb] sm:$0xff]
        %v5834 = vld [vmem:[#allocation3 + $0xf3] sm:$0xff]
        %v5835 = vld [vmem:[#allocation3 + $0xfb] sm:$0xff]
        %v5836 = vld [vmem:[#allocation3 + $0x103] sm:$0xff]
        %v5837 = vld [vmem:[#allocation3 + $0x10b] sm:$0xff]
        %v5838 = vld [vmem:[#allocation3 + $0x113] sm:$0xff]
        %v5839 = vld [vmem:[#allocation3 + $0x11b] sm:$0xff]
        %v5840 = vld [vmem:[#allocation3 + $0x123] sm:$0xff]
        %v5841 = vld [vmem:[#allocation3 + $0x12b] sm:$0xff]
        %v5842 = vld [vmem:[#allocation3 + $0x133] sm:$0xff]
        %v5843 = vld [vmem:[#allocation3 + $0x13b] sm:$0xff]
        %v5844 = vld [vmem:[#allocation3 + $0x143] sm:$0xff]
        %v5845 = vpack.c.bf16 %v5590, %v5589
        %v5846 = vpack.c.bf16 %v5626, %v5625
        %v5847 = vpack.c.bf16 %v5662, %v5661
        %v5848 = vpack.c.bf16 %v5664, %v5663
        %v5849 = vpack.c.bf16 %v5700, %v5699
        %v5850 = vpack.c.bf16 %v5736, %v5735
        %v5851 = vpack.c.bf16 %v5738, %v5737
        %v5852 = vpack.c.bf16 %v5774, %v5773
        %v5853 = vpack.c.bf16 %v5810, %v5809
        %v5854 = vpack.c.bf16 %v5592, %v5591
        %v5855 = vpack.c.bf16 %v5628, %v5627
        %v5856 = vpack.c.bf16 %v5666, %v5665
        %v5857 = vpack.c.bf16 %v5702, %v5701
        %v5858 = vpack.c.bf16 %v5740, %v5739
        %v5859 = vpack.c.bf16 %v5776, %v5775
        %v5860 = vpack.c.bf16 %v5812, %v5811
        %v5861 = vpack.c.bf16 %v5594, %v5593
        %v5862 = vpack.c.bf16 %v5630, %v5629
        %v5863 = vpack.c.bf16 %v5668, %v5667
        %v5864 = vpack.c.bf16 %v5704, %v5703
        %v5865 = vpack.c.bf16 %v5742, %v5741
        %v5866 = vpack.c.bf16 %v5778, %v5777
        %v5867 = vpack.c.bf16 %v5814, %v5813
        %v5868 = vpack.c.bf16 %v5596, %v5595
        %v5869 = vpack.c.bf16 %v5632, %v5631
        %v5870 = vpack.c.bf16 %v5670, %v5669
        %v5871 = vpack.c.bf16 %v5706, %v5705
        %v5872 = vpack.c.bf16 %v5744, %v5743
        %v5873 = vpack.c.bf16 %v5780, %v5779
        %v5874 = vpack.c.bf16 %v5816, %v5815
        %v5875 = vpack.c.bf16 %v5598, %v5597
        %v5876 = vpack.c.bf16 %v5634, %v5633
        %v5877 = vpack.c.bf16 %v5672, %v5671
        %v5878 = vpack.c.bf16 %v5708, %v5707
        %v5879 = vpack.c.bf16 %v5746, %v5745
        %v5880 = vpack.c.bf16 %v5782, %v5781
        %v5881 = vpack.c.bf16 %v5818, %v5817
        %v5882 = vpack.c.bf16 %v5600, %v5599
        %v5883 = vpack.c.bf16 %v5636, %v5635
        %v5884 = vpack.c.bf16 %v5674, %v5673
        %v5885 = vpack.c.bf16 %v5710, %v5709
        %v5886 = vpack.c.bf16 %v5748, %v5747
        %v5887 = vpack.c.bf16 %v5784, %v5783
        %v5888 = vpack.c.bf16 %v5820, %v5819
        %v5889 = vpack.c.bf16 %v5602, %v5601
        %v5890 = vpack.c.bf16 %v5638, %v5637
        %v5891 = vpack.c.bf16 %v5676, %v5675
        %v5892 = vpack.c.bf16 %v5712, %v5711
        %v5893 = vpack.c.bf16 %v5750, %v5749
        %v5894 = vpack.c.bf16 %v5786, %v5785
        %v5895 = vpack.c.bf16 %v5822, %v5821
        %v5896 = vpack.c.bf16 %v5604, %v5603
        %v5897 = vpack.c.bf16 %v5640, %v5639
        %v5898 = vpack.c.bf16 %v5678, %v5677
        %v5899 = vpack.c.bf16 %v5714, %v5713
        %v5900 = vpack.c.bf16 %v5752, %v5751
        %v5901 = vpack.c.bf16 %v5788, %v5787
        %v5902 = vpack.c.bf16 %v5824, %v5823
        %v5903 = vpack.c.bf16 %v5606, %v5605
        %v5904 = vpack.c.bf16 %v5642, %v5641
        %v5905 = vpack.c.bf16 %v5680, %v5679
        %v5906 = vpack.c.bf16 %v5716, %v5715
        %v5907 = vpack.c.bf16 %v5754, %v5753
        %v5908 = vpack.c.bf16 %v5790, %v5789
        %v5909 = vpack.c.bf16 %v5826, %v5825
        %v5910 = vpack.c.bf16 %v5608, %v5607
        %v5911 = vpack.c.bf16 %v5644, %v5643
        %v5912 = vpack.c.bf16 %v5682, %v5681
        %v5913 = vpack.c.bf16 %v5718, %v5717
        %v5914 = vpack.c.bf16 %v5756, %v5755
        %v5915 = vpack.c.bf16 %v5792, %v5791
        %v5916 = vpack.c.bf16 %v5828, %v5827
        %v5917 = vpack.c.bf16 %v5610, %v5609
        %v5918 = vpack.c.bf16 %v5646, %v5645
        %v5919 = vpack.c.bf16 %v5684, %v5683
        %v5920 = vpack.c.bf16 %v5720, %v5719
        %v5921 = vpack.c.bf16 %v5758, %v5757
        %v5922 = vpack.c.bf16 %v5794, %v5793
        %v5923 = vpack.c.bf16 %v5830, %v5829
        %v5924 = vpack.c.bf16 %v5612, %v5611
        %v5925 = vpack.c.bf16 %v5648, %v5647
        %v5926 = vpack.c.bf16 %v5686, %v5685
        %v5927 = vpack.c.bf16 %v5722, %v5721
        %v5928 = vpack.c.bf16 %v5760, %v5759
        %v5929 = vpack.c.bf16 %v5796, %v5795
        %v5930 = vpack.c.bf16 %v5832, %v5831
        %v5931 = vpack.c.bf16 %v5614, %v5613
        %v5932 = vpack.c.bf16 %v5650, %v5649
        %v5933 = vpack.c.bf16 %v5688, %v5687
        %v5934 = vpack.c.bf16 %v5724, %v5723
        %v5935 = vpack.c.bf16 %v5762, %v5761
        %v5936 = vpack.c.bf16 %v5798, %v5797
        %v5937 = vpack.c.bf16 %v5834, %v5833
        %v5938 = vpack.c.bf16 %v5616, %v5615
        %v5939 = vpack.c.bf16 %v5652, %v5651
        %v5940 = vpack.c.bf16 %v5690, %v5689
        %v5941 = vpack.c.bf16 %v5726, %v5725
        %v5942 = vpack.c.bf16 %v5764, %v5763
        %v5943 = vpack.c.bf16 %v5800, %v5799
        %v5944 = vpack.c.bf16 %v5836, %v5835
        %v5945 = vpack.c.bf16 %v5618, %v5617
        %v5946 = vpack.c.bf16 %v5654, %v5653
        %v5947 = vpack.c.bf16 %v5692, %v5691
        %v5948 = vpack.c.bf16 %v5728, %v5727
        %v5949 = vpack.c.bf16 %v5766, %v5765
        %v5950 = vpack.c.bf16 %v5802, %v5801
        %v5951 = vpack.c.bf16 %v5838, %v5837
        %v5952 = vpack.c.bf16 %v5620, %v5619
        %v5953 = vpack.c.bf16 %v5656, %v5655
        %v5954 = vpack.c.bf16 %v5694, %v5693
        %v5955 = vpack.c.bf16 %v5730, %v5729
        %v5956 = vpack.c.bf16 %v5768, %v5767
        %v5957 = vpack.c.bf16 %v5804, %v5803
        %v5958 = vpack.c.bf16 %v5840, %v5839
        %v5959 = vpack.c.bf16 %v5622, %v5621
        %v5960 = vpack.c.bf16 %v5658, %v5657
        %v5961 = vpack.c.bf16 %v5696, %v5695
        %v5962 = vpack.c.bf16 %v5732, %v5731
        %v5963 = vpack.c.bf16 %v5770, %v5769
        %v5964 = vpack.c.bf16 %v5806, %v5805
        %v5965 = vpack.c.bf16 %v5842, %v5841
        %v5966 = vpack.c.bf16 %v5624, %v5623
        %v5967 = vpack.c.bf16 %v5660, %v5659
        %v5968 = vpack.c.bf16 %v5698, %v5697
        %v5969 = vpack.c.bf16 %v5734, %v5733
        %v5970 = vpack.c.bf16 %v5772, %v5771
        %v5971 = vpack.c.bf16 %v5808, %v5807
        %v5972 = vpack.c.bf16 %v5844, %v5843
        %v5973 = vld [vmem:[#allocation10] sm:$0xf]
        %v5974 = vld [vmem:[#allocation10 + $0x4] sm:$0xf]
        %v5975 = vld [vmem:[#allocation10 + $0x8] sm:$0xf]
        %v5976 = vld [vmem:[#allocation10 + $0xc] sm:$0xf]
        %v5977 = vld [vmem:[#allocation10 + $0x10] sm:$0xf]
        %v5978 = vld [vmem:[#allocation10 + $0x14] sm:$0xf]
        %v5979 = vld [vmem:[#allocation10 + $0x18] sm:$0xf]
        %v5980 = vld [vmem:[#allocation10 + $0x1c] sm:$0xf]
        %v5981 = vld [vmem:[#allocation10 + $0x20] sm:$0xf]
        %v5982 = vld [vmem:[#allocation10 + $0x24] sm:$0xf]
        %v5983 = vld [vmem:[#allocation10 + $0x28] sm:$0xf]
        %v5984 = vld [vmem:[#allocation10 + $0x2c] sm:$0xf]
        %v5985 = vld [vmem:[#allocation10 + $0x30] sm:$0xf]
        %v5986 = vld [vmem:[#allocation10 + $0x34] sm:$0xf]
        %v5987 = vld [vmem:[#allocation10 + $0x38] sm:$0xf]
        %v5988 = vld [vmem:[#allocation10 + $0x3c] sm:$0xf]
        %v5989 = vld [vmem:[#allocation10 + $0x40] sm:$0xf]
        %v5990 = vld [vmem:[#allocation10 + $0x44] sm:$0xf]
        %v5991 = vld [vmem:[#allocation10 + $0x48] sm:$0xf]
        %v5992 = vld [vmem:[#allocation10 + $0x4c] sm:$0xf]
        %v5993 = vld [vmem:[#allocation10 + $0x50] sm:$0xf]
        %v5994 = vld [vmem:[#allocation10 + $0x54] sm:$0xf]
        %v5995 = vld [vmem:[#allocation10 + $0x58] sm:$0xf]
        %v5996 = vld [vmem:[#allocation10 + $0x5c] sm:$0xf]
        %v5997 = vld [vmem:[#allocation10 + $0x60] sm:$0xf]
        %v5998 = vld [vmem:[#allocation10 + $0x64] sm:$0xf]
        %v5999 = vld [vmem:[#allocation10 + $0x68] sm:$0xf]
        %v6000 = vld [vmem:[#allocation10 + $0x6c] sm:$0xf]
        %v6001 = vld [vmem:[#allocation10 + $0x70] sm:$0xf]
        %v6002 = vld [vmem:[#allocation10 + $0x74] sm:$0xf]
        %v6003 = vld [vmem:[#allocation10 + $0x78] sm:$0xf]
        %v6004 = vld [vmem:[#allocation10 + $0x7c] sm:$0xf]
        %v6005 = vld [vmem:[#allocation10 + $0x80] sm:$0xf]
        %v6006 = vld [vmem:[#allocation10 + $0x84] sm:$0xf]
        %v6007 = vld [vmem:[#allocation10 + $0x88] sm:$0xf]
        %v6008 = vld [vmem:[#allocation10 + $0x8c] sm:$0xf]
        %v6009 = vld [vmem:[#allocation10 + $0x90] sm:$0xf]
        %v6010 = vld [vmem:[#allocation10 + $0x94] sm:$0xf]
        %v6011 = vld [vmem:[#allocation10 + $0x98] sm:$0xf]
        %v6012 = vld [vmem:[#allocation10 + $0x9c] sm:$0xf]
        %v6013 = vld [vmem:[#allocation10 + $0xa0] sm:$0xf]
        %v6014 = vld [vmem:[#allocation10 + $0xa4] sm:$0xf]
        %v6015 = vld [vmem:[#allocation10 + $0xa8] sm:$0xf]
        %v6016 = vld [vmem:[#allocation10 + $0xac] sm:$0xf]
        %v6017 = vld [vmem:[#allocation10 + $0xb0] sm:$0xf]
        %v6018 = vld [vmem:[#allocation10 + $0xb4] sm:$0xf]
        %v6019 = vld [vmem:[#allocation10 + $0xb8] sm:$0xf]
        %v6020 = vld [vmem:[#allocation10 + $0xbc] sm:$0xf]
        %v6021 = vld [vmem:[#allocation10 + $0xc0] sm:$0xf]
        %v6022 = vld [vmem:[#allocation10 + $0xc4] sm:$0xf]
        %v6023 = vld [vmem:[#allocation10 + $0xc8] sm:$0xf]
        %v6024 = vld [vmem:[#allocation10 + $0xcc] sm:$0xf]
        %v6025 = vld [vmem:[#allocation10 + $0xd0] sm:$0xf]
        %v6026 = vld [vmem:[#allocation10 + $0xd4] sm:$0xf]
        %v6027 = vld [vmem:[#allocation10 + $0xd8] sm:$0xf]
        %v6028 = vld [vmem:[#allocation10 + $0xdc] sm:$0xf]
        %v6029 = vld [vmem:[#allocation10 + $0xe0] sm:$0xf]
        %v6030 = vld [vmem:[#allocation10 + $0xe4] sm:$0xf]
        %v6031 = vld [vmem:[#allocation10 + $0xe8] sm:$0xf]
        %v6032 = vld [vmem:[#allocation10 + $0xec] sm:$0xf]
        %v6033 = vld [vmem:[#allocation10 + $0xf0] sm:$0xf]
        %v6034 = vld [vmem:[#allocation10 + $0xf4] sm:$0xf]
        %v6035 = vld [vmem:[#allocation10 + $0xf8] sm:$0xf]
        %v6036 = vld [vmem:[#allocation10 + $0xfc] sm:$0xf]
        %v6037 = vld [vmem:[#allocation10 + $0x100] sm:$0xf]
        %v6038 = vld [vmem:[#allocation10 + $0x104] sm:$0xf]
        %v6039 = vld [vmem:[#allocation10 + $0x108] sm:$0xf]
        %v6040 = vld [vmem:[#allocation10 + $0x10c] sm:$0xf]
        %v6041 = vld [vmem:[#allocation10 + $0x110] sm:$0xf]
        %v6042 = vld [vmem:[#allocation10 + $0x114] sm:$0xf]
        %v6043 = vld [vmem:[#allocation10 + $0x118] sm:$0xf]
        %v6044 = vld [vmem:[#allocation10 + $0x11c] sm:$0xf]
        %v6045 = vld [vmem:[#allocation10 + $0x120] sm:$0xf]
        %v6046 = vld [vmem:[#allocation10 + $0x124] sm:$0xf]
        %v6047 = vld [vmem:[#allocation10 + $0x128] sm:$0xf]
        %v6048 = vld [vmem:[#allocation10 + $0x12c] sm:$0xf]
        %v6049 = vld [vmem:[#allocation10 + $0x130] sm:$0xf]
        %v6050 = vld [vmem:[#allocation10 + $0x134] sm:$0xf]
        %v6051 = vld [vmem:[#allocation10 + $0x138] sm:$0xf]
        %v6052 = vld [vmem:[#allocation10 + $0x13c] sm:$0xf]
        %v6053 = vld [vmem:[#allocation10 + $0x140] sm:$0xf]
        %v6054 = vld [vmem:[#allocation10 + $0x144] sm:$0xf]
        %v6055 = vld [vmem:[#allocation10 + $0x148] sm:$0xf]
        %v6056 = vld [vmem:[#allocation10 + $0x14c] sm:$0xf]
        %v6057 = vld [vmem:[#allocation10 + $0x150] sm:$0xf]
        %v6058 = vld [vmem:[#allocation10 + $0x154] sm:$0xf]
        %v6059 = vld [vmem:[#allocation10 + $0x158] sm:$0xf]
        %v6060 = vld [vmem:[#allocation10 + $0x15c] sm:$0xf]
        %v6061 = vld [vmem:[#allocation10 + $0x160] sm:$0xf]
        %v6062 = vld [vmem:[#allocation10 + $0x164] sm:$0xf]
        %v6063 = vld [vmem:[#allocation10 + $0x168] sm:$0xf]
        %v6064 = vld [vmem:[#allocation10 + $0x16c] sm:$0xf]
        %v6065 = vld [vmem:[#allocation10 + $0x170] sm:$0xf]
        %v6066 = vld [vmem:[#allocation10 + $0x174] sm:$0xf]
        %v6067 = vld [vmem:[#allocation10 + $0x178] sm:$0xf]
        %v6068 = vld [vmem:[#allocation10 + $0x17c] sm:$0xf]
        %v6069 = vld [vmem:[#allocation10 + $0x180] sm:$0xf]
        %v6070 = vld [vmem:[#allocation10 + $0x184] sm:$0xf]
        %v6071 = vld [vmem:[#allocation10 + $0x188] sm:$0xf]
        %v6072 = vld [vmem:[#allocation10 + $0x18c] sm:$0xf]
        %v6073 = vld [vmem:[#allocation10 + $0x190] sm:$0xf]
        %v6074 = vld [vmem:[#allocation10 + $0x194] sm:$0xf]
        %v6075 = vld [vmem:[#allocation10 + $0x198] sm:$0xf]
        %v6076 = vld [vmem:[#allocation10 + $0x19c] sm:$0xf]
        %v6077 = vld [vmem:[#allocation10 + $0x1a0] sm:$0xf]
        %v6078 = vld [vmem:[#allocation10 + $0x1a4] sm:$0xf]
        %v6079 = vld [vmem:[#allocation10 + $0x1a8] sm:$0xf]
        %v6080 = vld [vmem:[#allocation10 + $0x1ac] sm:$0xf]
        %v6081 = vld [vmem:[#allocation10 + $0x1b0] sm:$0xf]
        %v6082 = vld [vmem:[#allocation10 + $0x1b4] sm:$0xf]
        %v6083 = vld [vmem:[#allocation10 + $0x1b8] sm:$0xf]
        %v6084 = vld [vmem:[#allocation10 + $0x1bc] sm:$0xf]
        %v6085 = vld [vmem:[#allocation10 + $0x1c0] sm:$0xf]
        %v6086 = vld [vmem:[#allocation10 + $0x1c4] sm:$0xf]
        %v6087 = vld [vmem:[#allocation10 + $0x1c8] sm:$0xf]
        %v6088 = vld [vmem:[#allocation10 + $0x1cc] sm:$0xf]
        %v6089 = vld [vmem:[#allocation10 + $0x1d0] sm:$0xf]
        %v6090 = vld [vmem:[#allocation10 + $0x1d4] sm:$0xf]
        %v6091 = vld [vmem:[#allocation10 + $0x1d8] sm:$0xf]
        %v6092 = vld [vmem:[#allocation10 + $0x1dc] sm:$0xf]
        %v6093 = vld [vmem:[#allocation10 + $0x1e0] sm:$0xf]
        %v6094 = vld [vmem:[#allocation10 + $0x1e4] sm:$0xf]
        %v6095 = vld [vmem:[#allocation10 + $0x1e8] sm:$0xf]
        %v6096 = vld [vmem:[#allocation10 + $0x1ec] sm:$0xf]
        %v6097 = vld [vmem:[#allocation10 + $0x1f0] sm:$0xf]
        %v6098 = vld [vmem:[#allocation10 + $0x1f4] sm:$0xf]
        %v6099 = vld [vmem:[#allocation10 + $0x1f8] sm:$0xf]
        %v6100 = vld [vmem:[#allocation10 + $0x1fc] sm:$0xf]
        %v6101 = vld [vmem:[#allocation10 + $0x200] sm:$0xf]
        %v6102 = vld [vmem:[#allocation10 + $0x204] sm:$0xf]
        %v6103 = vld [vmem:[#allocation10 + $0x208] sm:$0xf]
        %v6104 = vld [vmem:[#allocation10 + $0x20c] sm:$0xf]
        %v6105 = vld [vmem:[#allocation10 + $0x210] sm:$0xf]
        %v6106 = vld [vmem:[#allocation10 + $0x214] sm:$0xf]
        %v6107 = vld [vmem:[#allocation10 + $0x218] sm:$0xf]
        %v6108 = vld [vmem:[#allocation10 + $0x21c] sm:$0xf]
        %v6109 = vld [vmem:[#allocation10 + $0x220] sm:$0xf]
        %v6110 = vld [vmem:[#allocation10 + $0x224] sm:$0xf]
        %v6111 = vld [vmem:[#allocation10 + $0x228] sm:$0xf]
        %v6112 = vld [vmem:[#allocation10 + $0x22c] sm:$0xf]
        %v6113 = vld [vmem:[#allocation10 + $0x230] sm:$0xf]
        %v6114 = vld [vmem:[#allocation10 + $0x234] sm:$0xf]
        %v6115 = vld [vmem:[#allocation10 + $0x238] sm:$0xf]
        %v6116 = vld [vmem:[#allocation10 + $0x23c] sm:$0xf]
        %v6117 = vld [vmem:[%s11] sm:$0x1]
        %v6119 = vlaneseq
        %v6120 = vshrl.u32 %v6119, 7
        %v6121 = vsub.s32 0, %v6120
        %v6122 = vrot.slane %v6117, %v6121
        %v6268 = vunpack.c.l.b16 %v5973
        %v6269 = vunpack.c.l.b16 %v5974
        %v6270 = vunpack.c.l.b16 %v5975
        %v6271 = vunpack.c.l.b16 %v5976
        %v6272 = vunpack.c.l.b16 %v5977
        %v6273 = vunpack.c.l.b16 %v5978
        %v6274 = vunpack.c.l.b16 %v5979
        %v6275 = vunpack.c.l.b16 %v5980
        %v6276 = vunpack.c.l.b16 %v5981
        %v6277 = vunpack.c.l.b16 %v5982
        %v6278 = vunpack.c.l.b16 %v5983
        %v6279 = vunpack.c.l.b16 %v5984
        %v6280 = vunpack.c.l.b16 %v5985
        %v6281 = vunpack.c.l.b16 %v5986
        %v6282 = vunpack.c.l.b16 %v5987
        %v6283 = vunpack.c.l.b16 %v5988
        %v6284 = vunpack.c.l.b16 %v5989
        %v6285 = vunpack.c.l.b16 %v5990
        %v6286 = vunpack.c.l.b16 %v5991
        %v6287 = vunpack.c.l.b16 %v5992
        %v6288 = vunpack.c.l.b16 %v5993
        %v6289 = vunpack.c.l.b16 %v5994
        %v6290 = vunpack.c.l.b16 %v5995
        %v6291 = vunpack.c.l.b16 %v5996
        %v6292 = vunpack.c.l.b16 %v5997
        %v6293 = vunpack.c.l.b16 %v5998
        %v6294 = vunpack.c.l.b16 %v5999
        %v6295 = vunpack.c.l.b16 %v6000
        %v6296 = vunpack.c.l.b16 %v6001
        %v6297 = vunpack.c.l.b16 %v6002
        %v6298 = vunpack.c.l.b16 %v6003
        %v6299 = vunpack.c.l.b16 %v6004
        %v6300 = vunpack.c.l.b16 %v6005
        %v6301 = vunpack.c.l.b16 %v6006
        %v6302 = vunpack.c.l.b16 %v6007
        %v6303 = vunpack.c.l.b16 %v6008
        %v6304 = vunpack.c.l.b16 %v6009
        %v6305 = vunpack.c.l.b16 %v6010
        %v6306 = vunpack.c.l.b16 %v6011
        %v6307 = vunpack.c.l.b16 %v6012
        %v6308 = vunpack.c.l.b16 %v6013
        %v6309 = vunpack.c.l.b16 %v6014
        %v6310 = vunpack.c.l.b16 %v6015
        %v6311 = vunpack.c.l.b16 %v6016
        %v6312 = vunpack.c.l.b16 %v6017
        %v6313 = vunpack.c.l.b16 %v6018
        %v6314 = vunpack.c.l.b16 %v6019
        %v6315 = vunpack.c.l.b16 %v6020
        %v6316 = vunpack.c.l.b16 %v6021
        %v6317 = vunpack.c.l.b16 %v6022
        %v6318 = vunpack.c.l.b16 %v6023
        %v6319 = vunpack.c.l.b16 %v6024
        %v6320 = vunpack.c.l.b16 %v6025
        %v6321 = vunpack.c.l.b16 %v6026
        %v6322 = vunpack.c.l.b16 %v6027
        %v6323 = vunpack.c.l.b16 %v6028
        %v6324 = vunpack.c.l.b16 %v6029
        %v6325 = vunpack.c.l.b16 %v6030
        %v6326 = vunpack.c.l.b16 %v6031
        %v6327 = vunpack.c.l.b16 %v6032
        %v6328 = vunpack.c.l.b16 %v6033
        %v6329 = vunpack.c.l.b16 %v6034
        %v6330 = vunpack.c.l.b16 %v6035
        %v6331 = vunpack.c.l.b16 %v6036
        %v6332 = vunpack.c.l.b16 %v6037
        %v6333 = vunpack.c.l.b16 %v6038
        %v6334 = vunpack.c.l.b16 %v6039
        %v6335 = vunpack.c.l.b16 %v6040
        %v6336 = vunpack.c.l.b16 %v6041
        %v6337 = vunpack.c.l.b16 %v6042
        %v6338 = vunpack.c.l.b16 %v6043
        %v6339 = vunpack.c.l.b16 %v6044
        %v6340 = vunpack.c.l.b16 %v6045
        %v6341 = vunpack.c.l.b16 %v6046
        %v6342 = vunpack.c.l.b16 %v6047
        %v6343 = vunpack.c.l.b16 %v6048
        %v6344 = vunpack.c.l.b16 %v6049
        %v6345 = vunpack.c.l.b16 %v6050
        %v6346 = vunpack.c.l.b16 %v6051
        %v6347 = vunpack.c.l.b16 %v6052
        %v6348 = vunpack.c.l.b16 %v6053
        %v6349 = vunpack.c.l.b16 %v6054
        %v6350 = vunpack.c.l.b16 %v6055
        %v6351 = vunpack.c.l.b16 %v6056
        %v6352 = vunpack.c.l.b16 %v6057
        %v6353 = vunpack.c.l.b16 %v6058
        %v6354 = vunpack.c.l.b16 %v6059
        %v6355 = vunpack.c.l.b16 %v6060
        %v6356 = vunpack.c.l.b16 %v6061
        %v6357 = vunpack.c.l.b16 %v6062
        %v6358 = vunpack.c.l.b16 %v6063
        %v6359 = vunpack.c.l.b16 %v6064
        %v6360 = vunpack.c.l.b16 %v6065
        %v6361 = vunpack.c.l.b16 %v6066
        %v6362 = vunpack.c.l.b16 %v6067
        %v6363 = vunpack.c.l.b16 %v6068
        %v6364 = vunpack.c.l.b16 %v6069
        %v6365 = vunpack.c.l.b16 %v6070
        %v6366 = vunpack.c.l.b16 %v6071
        %v6367 = vunpack.c.l.b16 %v6072
        %v6368 = vunpack.c.l.b16 %v6073
        %v6369 = vunpack.c.l.b16 %v6074
        %v6370 = vunpack.c.l.b16 %v6075
        %v6371 = vunpack.c.l.b16 %v6076
        %v6372 = vunpack.c.l.b16 %v6077
        %v6373 = vunpack.c.l.b16 %v6078
        %v6374 = vunpack.c.l.b16 %v6079
        %v6375 = vunpack.c.l.b16 %v6080
        %v6376 = vunpack.c.l.b16 %v6081
        %v6377 = vunpack.c.l.b16 %v6082
        %v6378 = vunpack.c.l.b16 %v6083
        %v6379 = vunpack.c.l.b16 %v6084
        %v6380 = vunpack.c.l.b16 %v6085
        %v6381 = vunpack.c.l.b16 %v6086
        %v6382 = vunpack.c.l.b16 %v6087
        %v6383 = vunpack.c.l.b16 %v6088
        %v6384 = vunpack.c.l.b16 %v6089
        %v6385 = vunpack.c.l.b16 %v6090
        %v6386 = vunpack.c.l.b16 %v6091
        %v6387 = vunpack.c.l.b16 %v6092
        %v6388 = vunpack.c.l.b16 %v6093
        %v6389 = vunpack.c.l.b16 %v6094
        %v6390 = vunpack.c.l.b16 %v6095
        %v6391 = vunpack.c.l.b16 %v6096
        %v6392 = vunpack.c.l.b16 %v6097
        %v6393 = vunpack.c.l.b16 %v6098
        %v6394 = vunpack.c.l.b16 %v6099
        %v6395 = vunpack.c.l.b16 %v6100
        %v6396 = vunpack.c.l.b16 %v6101
        %v6397 = vunpack.c.l.b16 %v6102
        %v6398 = vunpack.c.l.b16 %v6103
        %v6399 = vunpack.c.l.b16 %v6104
        %v6400 = vunpack.c.l.b16 %v6105
        %v6401 = vunpack.c.l.b16 %v6106
        %v6402 = vunpack.c.l.b16 %v6107
        %v6403 = vunpack.c.l.b16 %v6108
        %v6404 = vunpack.c.l.b16 %v6109
        %v6405 = vunpack.c.l.b16 %v6110
        %v6406 = vunpack.c.l.b16 %v6111
        %v6407 = vunpack.c.l.b16 %v6112
        %v6408 = vunpack.c.l.b16 %v6113
        %v6409 = vunpack.c.l.b16 %v6114
        %v6410 = vunpack.c.l.b16 %v6115
        %v6411 = vunpack.c.l.b16 %v6116
        %v6412 = vpack.c.b16 %v6269, %v6268
        %v6413 = vpack.c.b16 %v6271, %v6270
        %v6414 = vpack.c.b16 %v6273, %v6272
        %v6415 = vpack.c.b16 %v6275, %v6274
        %v6416 = vpack.c.b16 %v6277, %v6276
        %v6417 = vpack.c.b16 %v6279, %v6278
        %v6418 = vpack.c.b16 %v6281, %v6280
        %v6419 = vpack.c.b16 %v6283, %v6282
        %v6420 = vpack.c.b16 %v6285, %v6284
        %v6421 = vpack.c.b16 %v6287, %v6286
        %v6422 = vpack.c.b16 %v6289, %v6288
        %v6423 = vpack.c.b16 %v6291, %v6290
        %v6424 = vpack.c.b16 %v6293, %v6292
        %v6425 = vpack.c.b16 %v6295, %v6294
        %v6426 = vpack.c.b16 %v6297, %v6296
        %v6427 = vpack.c.b16 %v6299, %v6298
        %v6428 = vpack.c.b16 %v6301, %v6300
        %v6429 = vpack.c.b16 %v6303, %v6302
        %v6430 = vpack.c.b16 %v6305, %v6304
        %v6431 = vpack.c.b16 %v6307, %v6306
        %v6432 = vpack.c.b16 %v6309, %v6308
        %v6433 = vpack.c.b16 %v6311, %v6310
        %v6434 = vpack.c.b16 %v6313, %v6312
        %v6435 = vpack.c.b16 %v6315, %v6314
        %v6436 = vpack.c.b16 %v6317, %v6316
        %v6437 = vpack.c.b16 %v6319, %v6318
        %v6438 = vpack.c.b16 %v6321, %v6320
        %v6439 = vpack.c.b16 %v6323, %v6322
        %v6440 = vpack.c.b16 %v6325, %v6324
        %v6441 = vpack.c.b16 %v6327, %v6326
        %v6442 = vpack.c.b16 %v6329, %v6328
        %v6443 = vpack.c.b16 %v6331, %v6330
        %v6444 = vpack.c.b16 %v6333, %v6332
        %v6445 = vpack.c.b16 %v6335, %v6334
        %v6446 = vpack.c.b16 %v6337, %v6336
        %v6447 = vpack.c.b16 %v6339, %v6338
        %v6448 = vpack.c.b16 %v6341, %v6340
        %v6449 = vpack.c.b16 %v6343, %v6342
        %v6450 = vpack.c.b16 %v6345, %v6344
        %v6451 = vpack.c.b16 %v6347, %v6346
        %v6452 = vpack.c.b16 %v6349, %v6348
        %v6453 = vpack.c.b16 %v6351, %v6350
        %v6454 = vpack.c.b16 %v6353, %v6352
        %v6455 = vpack.c.b16 %v6355, %v6354
        %v6456 = vpack.c.b16 %v6357, %v6356
        %v6457 = vpack.c.b16 %v6359, %v6358
        %v6458 = vpack.c.b16 %v6361, %v6360
        %v6459 = vpack.c.b16 %v6363, %v6362
        %v6460 = vpack.c.b16 %v6365, %v6364
        %v6461 = vpack.c.b16 %v6367, %v6366
        %v6462 = vpack.c.b16 %v6369, %v6368
        %v6463 = vpack.c.b16 %v6371, %v6370
        %v6464 = vpack.c.b16 %v6373, %v6372
        %v6465 = vpack.c.b16 %v6375, %v6374
        %v6466 = vpack.c.b16 %v6377, %v6376
        %v6467 = vpack.c.b16 %v6379, %v6378
        %v6468 = vpack.c.b16 %v6381, %v6380
        %v6469 = vpack.c.b16 %v6383, %v6382
        %v6470 = vpack.c.b16 %v6385, %v6384
        %v6471 = vpack.c.b16 %v6387, %v6386
        %v6472 = vpack.c.b16 %v6389, %v6388
        %v6473 = vpack.c.b16 %v6391, %v6390
        %v6474 = vpack.c.b16 %v6393, %v6392
        %v6475 = vpack.c.b16 %v6395, %v6394
        %v6476 = vpack.c.b16 %v6397, %v6396
        %v6477 = vpack.c.b16 %v6399, %v6398
        %v6478 = vpack.c.b16 %v6401, %v6400
        %v6479 = vpack.c.b16 %v6403, %v6402
        %v6480 = vpack.c.b16 %v6405, %v6404
        %v6481 = vpack.c.b16 %v6407, %v6406
        %v6482 = vpack.c.b16 %v6409, %v6408
        %v6483 = vpack.c.b16 %v6411, %v6410
        %6556 = vmatprep.subr.bf16.mxu0 0
        %6557 = vmatpush1.bf16.msra.mxu0 %v6419
        %6558 = vmatprep.subr.bf16.mxu0 0
        %6559 = vmatpush1.bf16.msra.mxu0 %v6418
        %6560 = vmatprep.subr.bf16.mxu0 0
        %6561 = vmatpush1.bf16.msra.mxu0 %v6417
        %6562 = vmatprep.subr.bf16.mxu0 0
        %6563 = vmatpush1.bf16.msra.mxu0 %v6416
        %6564 = vmatprep.subr.bf16.mxu0 0
        %6565 = vmatpush1.bf16.msra.mxu0 %v6415
        %6566 = vmatprep.subr.bf16.mxu0 0
        %6567 = vmatpush1.bf16.msra.mxu0 %v6414
        %6568 = vmatprep.subr.bf16.mxu0 0
        %6569 = vmatpush1.bf16.msra.mxu0 %v6413
        %6570 = vmatprep.subr.bf16.mxu0 0
        %6571 = vmatpush1.bf16.msra.mxu0 %v6412
        %6572 = vmatprep.subr.bf16.mxu0 0
        %6573 = vmatpush2.bf16.msra.mxu0 %v6427
        %6574 = vmatprep.subr.bf16.mxu0 0
        %6575 = vmatpush2.bf16.msra.mxu0 %v6426
        %6576 = vmatprep.subr.bf16.mxu0 0
        %6577 = vmatpush2.bf16.msra.mxu0 %v6425
        %6578 = vmatprep.subr.bf16.mxu0 0
        %6579 = vmatpush2.bf16.msra.mxu0 %v6424
        %6580 = vmatprep.subr.bf16.mxu0 0
        %6581 = vmatpush2.bf16.msra.mxu0 %v6423
        %6582 = vmatprep.subr.bf16.mxu0 0
        %6583 = vmatpush2.bf16.msra.mxu0 %v6422
        %6584 = vmatprep.subr.bf16.mxu0 0
        %6585 = vmatpush2.bf16.msra.mxu0 %v6421
        %6586 = vmatprep.subr.bf16.mxu0 0
        %6587 = vmatpush2.bf16.msra.mxu0 %v6420
        %6588 = vmatprep.mubr.bf16.mxu0 %v5846
        %6589 = vmatmul.mubr.bf16.gmra.mxu0 %v5845
        %v6590 = vpop.f32.mrf.mxu0
        %v6591 = vadd.f32 %v6122, %v6590
        %v6592 = vpop.f32.mrf.mxu0
        %v6593 = vpop.f32.mrf.mxu0
        %v6594 = vadd.f32 %v6122, %v6593
        %v6595 = vpop.f32.mrf.mxu0
        %6596 = vmatprep.mubr.bf16.mxu0 %v5855
        %6597 = vmatmul.mubr.bf16.gmra.mxu0 %v5854
        %v6598 = vpop.f32.mrf.mxu0
        %v6599 = vadd.f32 %v6122, %v6598
        %v6600 = vpop.f32.mrf.mxu0
        %v6601 = vpop.f32.mrf.mxu0
        %v6602 = vadd.f32 %v6122, %v6601
        %v6603 = vpop.f32.mrf.mxu0
        %6604 = vmatprep.mubr.bf16.mxu0 %v5862
        %6605 = vmatmul.mubr.bf16.gmra.mxu0 %v5861
        %v6606 = vpop.f32.mrf.mxu0
        %v6607 = vadd.f32 %v6122, %v6606
        %v6608 = vpop.f32.mrf.mxu0
        %v6609 = vpop.f32.mrf.mxu0
        %v6610 = vadd.f32 %v6122, %v6609
        %v6611 = vpop.f32.mrf.mxu0
        %6612 = vmatprep.mubr.bf16.mxu0 %v5869
        %6613 = vmatmul.mubr.bf16.gmra.mxu0 %v5868
        %v6614 = vpop.f32.mrf.mxu0
        %v6615 = vadd.f32 %v6122, %v6614
        %v6616 = vpop.f32.mrf.mxu0
        %v6617 = vpop.f32.mrf.mxu0
        %v6618 = vadd.f32 %v6122, %v6617
        %v6619 = vpop.f32.mrf.mxu0
        %6620 = vmatprep.mubr.bf16.mxu0 %v5876
        %6621 = vmatmul.mubr.bf16.gmra.mxu0 %v5875
        %v6622 = vpop.f32.mrf.mxu0
        %v6623 = vadd.f32 %v6122, %v6622
        %v6624 = vpop.f32.mrf.mxu0
        %v6625 = vpop.f32.mrf.mxu0
        %v6626 = vadd.f32 %v6122, %v6625
        %v6627 = vpop.f32.mrf.mxu0
        %6628 = vmatprep.mubr.bf16.mxu0 %v5883
        %6629 = vmatmul.mubr.bf16.gmra.mxu0 %v5882
        %v6630 = vpop.f32.mrf.mxu0
        %v6631 = vadd.f32 %v6122, %v6630
        %v6632 = vpop.f32.mrf.mxu0
        %v6633 = vpop.f32.mrf.mxu0
        %v6634 = vadd.f32 %v6122, %v6633
        %v6635 = vpop.f32.mrf.mxu0
        %6636 = vmatprep.mubr.bf16.mxu0 %v5890
        %6637 = vmatmul.mubr.bf16.gmra.mxu0 %v5889
        %v6638 = vpop.f32.mrf.mxu0
        %v6639 = vadd.f32 %v6122, %v6638
        %v6640 = vpop.f32.mrf.mxu0
        %v6641 = vpop.f32.mrf.mxu0
        %v6642 = vadd.f32 %v6122, %v6641
        %v6643 = vpop.f32.mrf.mxu0
        %6644 = vmatprep.mubr.bf16.mxu0 %v5897
        %6645 = vmatmul.mubr.bf16.gmra.mxu0 %v5896
        %v6646 = vpop.f32.mrf.mxu0
        %v6647 = vadd.f32 %v6122, %v6646
        %v6648 = vpop.f32.mrf.mxu0
        %v6649 = vpop.f32.mrf.mxu0
        %v6650 = vadd.f32 %v6122, %v6649
        %v6651 = vpop.f32.mrf.mxu0
        %6652 = vmatprep.mubr.bf16.mxu0 %v5904
        %6653 = vmatmul.mubr.bf16.gmra.mxu0 %v5903
        %v6654 = vpop.f32.mrf.mxu0
        %v6655 = vadd.f32 %v6122, %v6654
        %v6656 = vpop.f32.mrf.mxu0
        %v6657 = vpop.f32.mrf.mxu0
        %v6658 = vadd.f32 %v6122, %v6657
        %v6659 = vpop.f32.mrf.mxu0
        %6660 = vmatprep.mubr.bf16.mxu0 %v5911
        %6661 = vmatmul.mubr.bf16.gmra.mxu0 %v5910
        %v6662 = vpop.f32.mrf.mxu0
        %v6663 = vadd.f32 %v6122, %v6662
        %v6664 = vpop.f32.mrf.mxu0
        %v6665 = vpop.f32.mrf.mxu0
        %v6666 = vadd.f32 %v6122, %v6665
        %v6667 = vpop.f32.mrf.mxu0
        %6668 = vmatprep.mubr.bf16.mxu0 %v5918
        %6669 = vmatmul.mubr.bf16.gmra.mxu0 %v5917
        %v6670 = vpop.f32.mrf.mxu0
        %v6671 = vadd.f32 %v6122, %v6670
        %v6672 = vpop.f32.mrf.mxu0
        %v6673 = vpop.f32.mrf.mxu0
        %v6674 = vadd.f32 %v6122, %v6673
        %v6675 = vpop.f32.mrf.mxu0
        %6676 = vmatprep.mubr.bf16.mxu0 %v5925
        %6677 = vmatmul.mubr.bf16.gmra.mxu0 %v5924
        %v6678 = vpop.f32.mrf.mxu0
        %v6679 = vadd.f32 %v6122, %v6678
        %v6680 = vpop.f32.mrf.mxu0
        %v6681 = vpop.f32.mrf.mxu0
        %v6682 = vadd.f32 %v6122, %v6681
        %v6683 = vpop.f32.mrf.mxu0
        %6684 = vmatprep.mubr.bf16.mxu0 %v5932
        %6685 = vmatmul.mubr.bf16.gmra.mxu0 %v5931
        %v6686 = vpop.f32.mrf.mxu0
        %v6687 = vadd.f32 %v6122, %v6686
        %v6688 = vpop.f32.mrf.mxu0
        %v6689 = vpop.f32.mrf.mxu0
        %v6690 = vadd.f32 %v6122, %v6689
        %v6691 = vpop.f32.mrf.mxu0
        %6692 = vmatprep.mubr.bf16.mxu0 %v5939
        %6693 = vmatmul.mubr.bf16.gmra.mxu0 %v5938
        %v6694 = vpop.f32.mrf.mxu0
        %v6695 = vadd.f32 %v6122, %v6694
        %v6696 = vpop.f32.mrf.mxu0
        %v6697 = vpop.f32.mrf.mxu0
        %v6698 = vadd.f32 %v6122, %v6697
        %v6699 = vpop.f32.mrf.mxu0
        %6700 = vmatprep.mubr.bf16.mxu0 %v5946
        %6701 = vmatmul.mubr.bf16.gmra.mxu0 %v5945
        %v6702 = vpop.f32.mrf.mxu0
        %v6703 = vadd.f32 %v6122, %v6702
        %v6704 = vpop.f32.mrf.mxu0
        %v6705 = vpop.f32.mrf.mxu0
        %v6706 = vadd.f32 %v6122, %v6705
        %v6707 = vpop.f32.mrf.mxu0
        %6708 = vmatprep.mubr.bf16.mxu0 %v5953
        %6709 = vmatmul.mubr.bf16.gmra.mxu0 %v5952
        %v6710 = vpop.f32.mrf.mxu0
        %v6711 = vadd.f32 %v6122, %v6710
        %v6712 = vpop.f32.mrf.mxu0
        %v6713 = vpop.f32.mrf.mxu0
        %v6714 = vadd.f32 %v6122, %v6713
        %v6715 = vpop.f32.mrf.mxu0
        %6716 = vmatprep.mubr.bf16.mxu0 %v5960
        %6717 = vmatmul.mubr.bf16.gmra.mxu0 %v5959
        %v6718 = vpop.f32.mrf.mxu0
        %v6719 = vadd.f32 %v6122, %v6718
        %v6720 = vpop.f32.mrf.mxu0
        %v6721 = vpop.f32.mrf.mxu0
        %v6722 = vadd.f32 %v6122, %v6721
        %v6723 = vpop.f32.mrf.mxu0
        %6724 = vmatprep.mubr.bf16.mxu0 %v5967
        %6725 = vmatmul.mubr.bf16.gmra.mxu0 %v5966
        %v6726 = vpop.f32.mrf.mxu0
        %v6727 = vadd.f32 %v6122, %v6726
        %v6728 = vpop.f32.mrf.mxu0
        %v6729 = vpop.f32.mrf.mxu0
        %v6730 = vadd.f32 %v6122, %v6729
        %v6731 = vpop.f32.mrf.mxu0
        %6732 = vdwg.mxu0
        %6733 = vmatprep.subr.bf16.mxu0 0
        %6734 = vmatpush1.bf16.msra.mxu0 %v6435
        %6735 = vmatprep.subr.bf16.mxu0 0
        %6736 = vmatpush1.bf16.msra.mxu0 %v6434
        %6737 = vmatprep.subr.bf16.mxu0 0
        %6738 = vmatpush1.bf16.msra.mxu0 %v6433
        %6739 = vmatprep.subr.bf16.mxu0 0
        %6740 = vmatpush1.bf16.msra.mxu0 %v6432
        %6741 = vmatprep.subr.bf16.mxu0 0
        %6742 = vmatpush1.bf16.msra.mxu0 %v6431
        %6743 = vmatprep.subr.bf16.mxu0 0
        %6744 = vmatpush1.bf16.msra.mxu0 %v6430
        %6745 = vmatprep.subr.bf16.mxu0 0
        %6746 = vmatpush1.bf16.msra.mxu0 %v6429
        %6747 = vmatprep.subr.bf16.mxu0 0
        %6748 = vmatpush1.bf16.msra.mxu0 %v6428
        %6749 = vmatprep.subr.bf16.mxu0 0
        %6750 = vmatpush2.bf16.msra.mxu0 %v6443
        %6751 = vmatprep.subr.bf16.mxu0 0
        %6752 = vmatpush2.bf16.msra.mxu0 %v6442
        %6753 = vmatprep.subr.bf16.mxu0 0
        %6754 = vmatpush2.bf16.msra.mxu0 %v6441
        %6755 = vmatprep.subr.bf16.mxu0 0
        %6756 = vmatpush2.bf16.msra.mxu0 %v6440
        %6757 = vmatprep.subr.bf16.mxu0 0
        %6758 = vmatpush2.bf16.msra.mxu0 %v6439
        %6759 = vmatprep.subr.bf16.mxu0 0
        %6760 = vmatpush2.bf16.msra.mxu0 %v6438
        %6761 = vmatprep.subr.bf16.mxu0 0
        %6762 = vmatpush2.bf16.msra.mxu0 %v6437
        %6763 = vmatprep.subr.bf16.mxu0 0
        %6764 = vmatpush2.bf16.msra.mxu0 %v6436
        %6765 = vmatprep.mubr.bf16.mxu0 %v5848
        %6766 = vmatmul.mubr.bf16.gmra.mxu0 %v5847
        %v6767 = vpop.f32.mrf.mxu0
        %v6768 = vadd.f32 %v6591, %v6767
        %v6769 = vpop.f32.mrf.mxu0
        %v6770 = vpop.f32.mrf.mxu0
        %v6771 = vadd.f32 %v6594, %v6770
        %v6772 = vpop.f32.mrf.mxu0
        %6773 = vmatprep.mubr.bf16.mxu0 %v5856
        %6774 = vmatmul.mubr.bf16.gmra.mxu0 %v5848
        %v6775 = vpop.f32.mrf.mxu0
        %v6776 = vadd.f32 %v6599, %v6775
        %v6777 = vpop.f32.mrf.mxu0
        %v6778 = vpop.f32.mrf.mxu0
        %v6779 = vadd.f32 %v6602, %v6778
        %v6780 = vpop.f32.mrf.mxu0
        %6781 = vmatprep.mubr.bf16.mxu0 %v5863
        %6782 = vmatmul.mubr.bf16.gmra.mxu0 %v5856
        %v6783 = vpop.f32.mrf.mxu0
        %v6784 = vadd.f32 %v6607, %v6783
        %v6785 = vpop.f32.mrf.mxu0
        %v6786 = vpop.f32.mrf.mxu0
        %v6787 = vadd.f32 %v6610, %v6786
        %v6788 = vpop.f32.mrf.mxu0
        %6789 = vmatprep.mubr.bf16.mxu0 %v5870
        %6790 = vmatmul.mubr.bf16.gmra.mxu0 %v5863
        %v6791 = vpop.f32.mrf.mxu0
        %v6792 = vadd.f32 %v6615, %v6791
        %v6793 = vpop.f32.mrf.mxu0
        %v6794 = vpop.f32.mrf.mxu0
        %v6795 = vadd.f32 %v6618, %v6794
        %v6796 = vpop.f32.mrf.mxu0
        %6797 = vmatprep.mubr.bf16.mxu0 %v5877
        %6798 = vmatmul.mubr.bf16.gmra.mxu0 %v5870
        %v6799 = vpop.f32.mrf.mxu0
        %v6800 = vadd.f32 %v6623, %v6799
        %v6801 = vpop.f32.mrf.mxu0
        %v6802 = vpop.f32.mrf.mxu0
        %v6803 = vadd.f32 %v6626, %v6802
        %v6804 = vpop.f32.mrf.mxu0
        %6805 = vmatprep.mubr.bf16.mxu0 %v5884
        %6806 = vmatmul.mubr.bf16.gmra.mxu0 %v5877
        %v6807 = vpop.f32.mrf.mxu0
        %v6808 = vadd.f32 %v6631, %v6807
        %v6809 = vpop.f32.mrf.mxu0
        %v6810 = vpop.f32.mrf.mxu0
        %v6811 = vadd.f32 %v6634, %v6810
        %v6812 = vpop.f32.mrf.mxu0
        %6813 = vmatprep.mubr.bf16.mxu0 %v5891
        %6814 = vmatmul.mubr.bf16.gmra.mxu0 %v5884
        %v6815 = vpop.f32.mrf.mxu0
        %v6816 = vadd.f32 %v6639, %v6815
        %v6817 = vpop.f32.mrf.mxu0
        %v6818 = vpop.f32.mrf.mxu0
        %v6819 = vadd.f32 %v6642, %v6818
        %v6820 = vpop.f32.mrf.mxu0
        %6821 = vmatprep.mubr.bf16.mxu0 %v5898
        %6822 = vmatmul.mubr.bf16.gmra.mxu0 %v5891
        %v6823 = vpop.f32.mrf.mxu0
        %v6824 = vadd.f32 %v6647, %v6823
        %v6825 = vpop.f32.mrf.mxu0
        %v6826 = vpop.f32.mrf.mxu0
        %v6827 = vadd.f32 %v6650, %v6826
        %v6828 = vpop.f32.mrf.mxu0
        %6829 = vmatprep.mubr.bf16.mxu0 %v5905
        %6830 = vmatmul.mubr.bf16.gmra.mxu0 %v5898
        %v6831 = vpop.f32.mrf.mxu0
        %v6832 = vadd.f32 %v6655, %v6831
        %v6833 = vpop.f32.mrf.mxu0
        %v6834 = vpop.f32.mrf.mxu0
        %v6835 = vadd.f32 %v6658, %v6834
        %v6836 = vpop.f32.mrf.mxu0
        %6837 = vmatprep.mubr.bf16.mxu0 %v5912
        %6838 = vmatmul.mubr.bf16.gmra.mxu0 %v5905
        %v6839 = vpop.f32.mrf.mxu0
        %v6840 = vadd.f32 %v6663, %v6839
        %v6841 = vpop.f32.mrf.mxu0
        %v6842 = vpop.f32.mrf.mxu0
        %v6843 = vadd.f32 %v6666, %v6842
        %v6844 = vpop.f32.mrf.mxu0
        %6845 = vmatprep.mubr.bf16.mxu0 %v5919
        %6846 = vmatmul.mubr.bf16.gmra.mxu0 %v5912
        %v6847 = vpop.f32.mrf.mxu0
        %v6848 = vadd.f32 %v6671, %v6847
        %v6849 = vpop.f32.mrf.mxu0
        %v6850 = vpop.f32.mrf.mxu0
        %v6851 = vadd.f32 %v6674, %v6850
        %v6852 = vpop.f32.mrf.mxu0
        %6853 = vmatprep.mubr.bf16.mxu0 %v5926
        %6854 = vmatmul.mubr.bf16.gmra.mxu0 %v5919
        %v6855 = vpop.f32.mrf.mxu0
        %v6856 = vadd.f32 %v6679, %v6855
        %v6857 = vpop.f32.mrf.mxu0
        %v6858 = vpop.f32.mrf.mxu0
        %v6859 = vadd.f32 %v6682, %v6858
        %v6860 = vpop.f32.mrf.mxu0
        %6861 = vmatprep.mubr.bf16.mxu0 %v5933
        %6862 = vmatmul.mubr.bf16.gmra.mxu0 %v5926
        %v6863 = vpop.f32.mrf.mxu0
        %v6864 = vadd.f32 %v6687, %v6863
        %v6865 = vpop.f32.mrf.mxu0
        %v6866 = vpop.f32.mrf.mxu0
        %v6867 = vadd.f32 %v6690, %v6866
        %v6868 = vpop.f32.mrf.mxu0
        %6869 = vmatprep.mubr.bf16.mxu0 %v5940
        %6870 = vmatmul.mubr.bf16.gmra.mxu0 %v5933
        %v6871 = vpop.f32.mrf.mxu0
        %v6872 = vadd.f32 %v6695, %v6871
        %v6873 = vpop.f32.mrf.mxu0
        %v6874 = vpop.f32.mrf.mxu0
        %v6875 = vadd.f32 %v6698, %v6874
        %v6876 = vpop.f32.mrf.mxu0
        %6877 = vmatprep.mubr.bf16.mxu0 %v5947
        %6878 = vmatmul.mubr.bf16.gmra.mxu0 %v5940
        %v6879 = vpop.f32.mrf.mxu0
        %v6880 = vadd.f32 %v6703, %v6879
        %v6881 = vpop.f32.mrf.mxu0
        %v6882 = vpop.f32.mrf.mxu0
        %v6883 = vadd.f32 %v6706, %v6882
        %v6884 = vpop.f32.mrf.mxu0
        %6885 = vmatprep.mubr.bf16.mxu0 %v5954
        %6886 = vmatmul.mubr.bf16.gmra.mxu0 %v5947
        %v6887 = vpop.f32.mrf.mxu0
        %v6888 = vadd.f32 %v6711, %v6887
        %v6889 = vpop.f32.mrf.mxu0
        %v6890 = vpop.f32.mrf.mxu0
        %v6891 = vadd.f32 %v6714, %v6890
        %v6892 = vpop.f32.mrf.mxu0
        %6893 = vmatprep.mubr.bf16.mxu0 %v5961
        %6894 = vmatmul.mubr.bf16.gmra.mxu0 %v5954
        %v6895 = vpop.f32.mrf.mxu0
        %v6896 = vadd.f32 %v6719, %v6895
        %v6897 = vpop.f32.mrf.mxu0
        %v6898 = vpop.f32.mrf.mxu0
        %v6899 = vadd.f32 %v6722, %v6898
        %v6900 = vpop.f32.mrf.mxu0
        %6901 = vmatprep.mubr.bf16.mxu0 %v5968
        %6902 = vmatmul.mubr.bf16.gmra.mxu0 %v5961
        %v6903 = vpop.f32.mrf.mxu0
        %v6904 = vadd.f32 %v6727, %v6903
        %v6905 = vpop.f32.mrf.mxu0
        %v6906 = vpop.f32.mrf.mxu0
        %v6907 = vadd.f32 %v6730, %v6906
        %v6908 = vpop.f32.mrf.mxu0
        %6909 = vdwg.mxu0
        %6910 = vmatprep.subr.bf16.mxu0 0
        %6911 = vmatpush1.bf16.msra.mxu0 %v6451
        %6912 = vmatprep.subr.bf16.mxu0 0
        %6913 = vmatpush1.bf16.msra.mxu0 %v6450
        %6914 = vmatprep.subr.bf16.mxu0 0
        %6915 = vmatpush1.bf16.msra.mxu0 %v6449
        %6916 = vmatprep.subr.bf16.mxu0 0
        %6917 = vmatpush1.bf16.msra.mxu0 %v6448
        %6918 = vmatprep.subr.bf16.mxu0 0
        %6919 = vmatpush1.bf16.msra.mxu0 %v6447
        %6920 = vmatprep.subr.bf16.mxu0 0
        %6921 = vmatpush1.bf16.msra.mxu0 %v6446
        %6922 = vmatprep.subr.bf16.mxu0 0
        %6923 = vmatpush1.bf16.msra.mxu0 %v6445
        %6924 = vmatprep.subr.bf16.mxu0 0
        %6925 = vmatpush1.bf16.msra.mxu0 %v6444
        %6926 = vmatprep.subr.bf16.mxu0 0
        %6927 = vmatpush2.bf16.msra.mxu0 %v6459
        %6928 = vmatprep.subr.bf16.mxu0 0
        %6929 = vmatpush2.bf16.msra.mxu0 %v6458
        %6930 = vmatprep.subr.bf16.mxu0 0
        %6931 = vmatpush2.bf16.msra.mxu0 %v6457
        %6932 = vmatprep.subr.bf16.mxu0 0
        %6933 = vmatpush2.bf16.msra.mxu0 %v6456
        %6934 = vmatprep.subr.bf16.mxu0 0
        %6935 = vmatpush2.bf16.msra.mxu0 %v6455
        %6936 = vmatprep.subr.bf16.mxu0 0
        %6937 = vmatpush2.bf16.msra.mxu0 %v6454
        %6938 = vmatprep.subr.bf16.mxu0 0
        %6939 = vmatpush2.bf16.msra.mxu0 %v6453
        %6940 = vmatprep.subr.bf16.mxu0 0
        %6941 = vmatpush2.bf16.msra.mxu0 %v6452
        %6942 = vmatprep.mubr.bf16.mxu0 %v5850
        %6943 = vmatmul.mubr.bf16.gmra.mxu0 %v5849
        %v6944 = vpop.f32.mrf.mxu0
        %v6945 = vadd.f32 %v6768, %v6944
        %v6946 = vpop.f32.mrf.mxu0
        %v6947 = vpop.f32.mrf.mxu0
        %v6948 = vadd.f32 %v6771, %v6947
        %v6949 = vpop.f32.mrf.mxu0
        %6950 = vmatprep.mubr.bf16.mxu0 %v5851
        %6951 = vmatmul.mubr.bf16.gmra.mxu0 %v5857
        %v6952 = vpop.f32.mrf.mxu0
        %v6953 = vadd.f32 %v6776, %v6952
        %v6954 = vpop.f32.mrf.mxu0
        %v6955 = vpop.f32.mrf.mxu0
        %v6956 = vadd.f32 %v6779, %v6955
        %v6957 = vpop.f32.mrf.mxu0
        %6958 = vmatprep.mubr.bf16.mxu0 %v5858
        %6959 = vmatmul.mubr.bf16.gmra.mxu0 %v5864
        %v6960 = vpop.f32.mrf.mxu0
        %v6961 = vadd.f32 %v6784, %v6960
        %v6962 = vpop.f32.mrf.mxu0
        %v6963 = vpop.f32.mrf.mxu0
        %v6964 = vadd.f32 %v6787, %v6963
        %v6965 = vpop.f32.mrf.mxu0
        %6966 = vmatprep.mubr.bf16.mxu0 %v5865
        %6967 = vmatmul.mubr.bf16.gmra.mxu0 %v5871
        %v6968 = vpop.f32.mrf.mxu0
        %v6969 = vadd.f32 %v6792, %v6968
        %v6970 = vpop.f32.mrf.mxu0
        %v6971 = vpop.f32.mrf.mxu0
        %v6972 = vadd.f32 %v6795, %v6971
        %v6973 = vpop.f32.mrf.mxu0
        %6974 = vmatprep.mubr.bf16.mxu0 %v5872
        %6975 = vmatmul.mubr.bf16.gmra.mxu0 %v5878
        %v6976 = vpop.f32.mrf.mxu0
        %v6977 = vadd.f32 %v6800, %v6976
        %v6978 = vpop.f32.mrf.mxu0
        %v6979 = vpop.f32.mrf.mxu0
        %v6980 = vadd.f32 %v6803, %v6979
        %v6981 = vpop.f32.mrf.mxu0
        %6982 = vmatprep.mubr.bf16.mxu0 %v5879
        %6983 = vmatmul.mubr.bf16.gmra.mxu0 %v5885
        %v6984 = vpop.f32.mrf.mxu0
        %v6985 = vadd.f32 %v6808, %v6984
        %v6986 = vpop.f32.mrf.mxu0
        %v6987 = vpop.f32.mrf.mxu0
        %v6988 = vadd.f32 %v6811, %v6987
        %v6989 = vpop.f32.mrf.mxu0
        %6990 = vmatprep.mubr.bf16.mxu0 %v5886
        %6991 = vmatmul.mubr.bf16.gmra.mxu0 %v5892
        %v6992 = vpop.f32.mrf.mxu0
        %v6993 = vadd.f32 %v6816, %v6992
        %v6994 = vpop.f32.mrf.mxu0
        %v6995 = vpop.f32.mrf.mxu0
        %v6996 = vadd.f32 %v6819, %v6995
        %v6997 = vpop.f32.mrf.mxu0
        %6998 = vmatprep.mubr.bf16.mxu0 %v5893
        %6999 = vmatmul.mubr.bf16.gmra.mxu0 %v5899
        %v7000 = vpop.f32.mrf.mxu0
        %v7001 = vadd.f32 %v6824, %v7000
        %v7002 = vpop.f32.mrf.mxu0
        %v7003 = vpop.f32.mrf.mxu0
        %v7004 = vadd.f32 %v6827, %v7003
        %v7005 = vpop.f32.mrf.mxu0
        %7006 = vmatprep.mubr.bf16.mxu0 %v5900
        %7007 = vmatmul.mubr.bf16.gmra.mxu0 %v5906
        %v7008 = vpop.f32.mrf.mxu0
        %v7009 = vadd.f32 %v6832, %v7008
        %v7010 = vpop.f32.mrf.mxu0
        %v7011 = vpop.f32.mrf.mxu0
        %v7012 = vadd.f32 %v6835, %v7011
        %v7013 = vpop.f32.mrf.mxu0
        %7014 = vmatprep.mubr.bf16.mxu0 %v5907
        %7015 = vmatmul.mubr.bf16.gmra.mxu0 %v5913
        %v7016 = vpop.f32.mrf.mxu0
        %v7017 = vadd.f32 %v6840, %v7016
        %v7018 = vpop.f32.mrf.mxu0
        %v7019 = vpop.f32.mrf.mxu0
        %v7020 = vadd.f32 %v6843, %v7019
        %v7021 = vpop.f32.mrf.mxu0
        %7022 = vmatprep.mubr.bf16.mxu0 %v5914
        %7023 = vmatmul.mubr.bf16.gmra.mxu0 %v5920
        %v7024 = vpop.f32.mrf.mxu0
        %v7025 = vadd.f32 %v6848, %v7024
        %v7026 = vpop.f32.mrf.mxu0
        %v7027 = vpop.f32.mrf.mxu0
        %v7028 = vadd.f32 %v6851, %v7027
        %v7029 = vpop.f32.mrf.mxu0
        %7030 = vmatprep.mubr.bf16.mxu0 %v5921
        %7031 = vmatmul.mubr.bf16.gmra.mxu0 %v5927
        %v7032 = vpop.f32.mrf.mxu0
        %v7033 = vadd.f32 %v6856, %v7032
        %v7034 = vpop.f32.mrf.mxu0
        %v7035 = vpop.f32.mrf.mxu0
        %v7036 = vadd.f32 %v6859, %v7035
        %v7037 = vpop.f32.mrf.mxu0
        %7038 = vmatprep.mubr.bf16.mxu0 %v5928
        %7039 = vmatmul.mubr.bf16.gmra.mxu0 %v5934
        %v7040 = vpop.f32.mrf.mxu0
        %v7041 = vadd.f32 %v6864, %v7040
        %v7042 = vpop.f32.mrf.mxu0
        %v7043 = vpop.f32.mrf.mxu0
        %v7044 = vadd.f32 %v6867, %v7043
        %v7045 = vpop.f32.mrf.mxu0
        %7046 = vmatprep.mubr.bf16.mxu0 %v5935
        %7047 = vmatmul.mubr.bf16.gmra.mxu0 %v5941
        %v7048 = vpop.f32.mrf.mxu0
        %v7049 = vadd.f32 %v6872, %v7048
        %v7050 = vpop.f32.mrf.mxu0
        %v7051 = vpop.f32.mrf.mxu0
        %v7052 = vadd.f32 %v6875, %v7051
        %v7053 = vpop.f32.mrf.mxu0
        %7054 = vmatprep.mubr.bf16.mxu0 %v5942
        %7055 = vmatmul.mubr.bf16.gmra.mxu0 %v5948
        %v7056 = vpop.f32.mrf.mxu0
        %v7057 = vadd.f32 %v6880, %v7056
        %v7058 = vpop.f32.mrf.mxu0
        %v7059 = vpop.f32.mrf.mxu0
        %v7060 = vadd.f32 %v6883, %v7059
        %v7061 = vpop.f32.mrf.mxu0
        %7062 = vmatprep.mubr.bf16.mxu0 %v5949
        %7063 = vmatmul.mubr.bf16.gmra.mxu0 %v5955
        %v7064 = vpop.f32.mrf.mxu0
        %v7065 = vadd.f32 %v6888, %v7064
        %v7066 = vpop.f32.mrf.mxu0
        %v7067 = vpop.f32.mrf.mxu0
        %v7068 = vadd.f32 %v6891, %v7067
        %v7069 = vpop.f32.mrf.mxu0
        %7070 = vmatprep.mubr.bf16.mxu0 %v5956
        %7071 = vmatmul.mubr.bf16.gmra.mxu0 %v5962
        %v7072 = vpop.f32.mrf.mxu0
        %v7073 = vadd.f32 %v6896, %v7072
        %v7074 = vpop.f32.mrf.mxu0
        %v7075 = vpop.f32.mrf.mxu0
        %v7076 = vadd.f32 %v6899, %v7075
        %v7077 = vpop.f32.mrf.mxu0
        %7078 = vmatprep.mubr.bf16.mxu0 %v5963
        %7079 = vmatmul.mubr.bf16.gmra.mxu0 %v5969
        %v7080 = vpop.f32.mrf.mxu0
        %v7081 = vadd.f32 %v6904, %v7080
        %v7082 = vpop.f32.mrf.mxu0
        %v7083 = vpop.f32.mrf.mxu0
        %v7084 = vadd.f32 %v6907, %v7083
        %v7085 = vpop.f32.mrf.mxu0
        %7086 = vdwg.mxu0
        %7087 = vmatprep.subr.bf16.mxu0 0
        %7088 = vmatpush1.bf16.msra.mxu0 %v6467
        %7089 = vmatprep.subr.bf16.mxu0 0
        %7090 = vmatpush1.bf16.msra.mxu0 %v6466
        %7091 = vmatprep.subr.bf16.mxu0 0
        %7092 = vmatpush1.bf16.msra.mxu0 %v6465
        %7093 = vmatprep.subr.bf16.mxu0 0
        %7094 = vmatpush1.bf16.msra.mxu0 %v6464
        %7095 = vmatprep.subr.bf16.mxu0 0
        %7096 = vmatpush1.bf16.msra.mxu0 %v6463
        %7097 = vmatprep.subr.bf16.mxu0 0
        %7098 = vmatpush1.bf16.msra.mxu0 %v6462
        %7099 = vmatprep.subr.bf16.mxu0 0
        %7100 = vmatpush1.bf16.msra.mxu0 %v6461
        %7101 = vmatprep.subr.bf16.mxu0 0
        %7102 = vmatpush1.bf16.msra.mxu0 %v6460
        %7103 = vmatprep.subr.bf16.mxu0 0
        %7104 = vmatpush2.bf16.msra.mxu0 %v6475
        %7105 = vmatprep.subr.bf16.mxu0 0
        %7106 = vmatpush2.bf16.msra.mxu0 %v6474
        %7107 = vmatprep.subr.bf16.mxu0 0
        %7108 = vmatpush2.bf16.msra.mxu0 %v6473
        %7109 = vmatprep.subr.bf16.mxu0 0
        %7110 = vmatpush2.bf16.msra.mxu0 %v6472
        %7111 = vmatprep.subr.bf16.mxu0 0
        %7112 = vmatpush2.bf16.msra.mxu0 %v6471
        %7113 = vmatprep.subr.bf16.mxu0 0
        %7114 = vmatpush2.bf16.msra.mxu0 %v6470
        %7115 = vmatprep.subr.bf16.mxu0 0
        %7116 = vmatpush2.bf16.msra.mxu0 %v6469
        %7117 = vmatprep.subr.bf16.mxu0 0
        %7118 = vmatpush2.bf16.msra.mxu0 %v6468
        %7119 = vmatprep.mubr.bf16.mxu0 %v5852
        %7120 = vmatmul.mubr.bf16.gmra.mxu0 %v5851
        %v7121 = vpop.f32.mrf.mxu0
        %v7122 = vadd.f32 %v6945, %v7121
        %v7123 = vpop.f32.mrf.mxu0
        %v7124 = vpop.f32.mrf.mxu0
        %v7125 = vadd.f32 %v6948, %v7124
        %v7126 = vpop.f32.mrf.mxu0
        %7127 = vmatprep.mubr.bf16.mxu0 %v5859
        %7128 = vmatmul.mubr.bf16.gmra.mxu0 %v5858
        %v7129 = vpop.f32.mrf.mxu0
        %v7130 = vadd.f32 %v6953, %v7129
        %v7131 = vpop.f32.mrf.mxu0
        %v7132 = vpop.f32.mrf.mxu0
        %v7133 = vadd.f32 %v6956, %v7132
        %v7134 = vpop.f32.mrf.mxu0
        %7135 = vmatprep.mubr.bf16.mxu0 %v5866
        %7136 = vmatmul.mubr.bf16.gmra.mxu0 %v5865
        %v7137 = vpop.f32.mrf.mxu0
        %v7138 = vadd.f32 %v6961, %v7137
        %v7139 = vpop.f32.mrf.mxu0
        %v7140 = vpop.f32.mrf.mxu0
        %v7141 = vadd.f32 %v6964, %v7140
        %v7142 = vpop.f32.mrf.mxu0
        %7143 = vmatprep.mubr.bf16.mxu0 %v5873
        %7144 = vmatmul.mubr.bf16.gmra.mxu0 %v5872
        %v7145 = vpop.f32.mrf.mxu0
        %v7146 = vadd.f32 %v6969, %v7145
        %v7147 = vpop.f32.mrf.mxu0
        %v7148 = vpop.f32.mrf.mxu0
        %v7149 = vadd.f32 %v6972, %v7148
        %v7150 = vpop.f32.mrf.mxu0
        %7151 = vmatprep.mubr.bf16.mxu0 %v5880
        %7152 = vmatmul.mubr.bf16.gmra.mxu0 %v5879
        %v7153 = vpop.f32.mrf.mxu0
        %v7154 = vadd.f32 %v6977, %v7153
        %v7155 = vpop.f32.mrf.mxu0
        %v7156 = vpop.f32.mrf.mxu0
        %v7157 = vadd.f32 %v6980, %v7156
        %v7158 = vpop.f32.mrf.mxu0
        %7159 = vmatprep.mubr.bf16.mxu0 %v5887
        %7160 = vmatmul.mubr.bf16.gmra.mxu0 %v5886
        %v7161 = vpop.f32.mrf.mxu0
        %v7162 = vadd.f32 %v6985, %v7161
        %v7163 = vpop.f32.mrf.mxu0
        %v7164 = vpop.f32.mrf.mxu0
        %v7165 = vadd.f32 %v6988, %v7164
        %v7166 = vpop.f32.mrf.mxu0
        %7167 = vmatprep.mubr.bf16.mxu0 %v5894
        %7168 = vmatmul.mubr.bf16.gmra.mxu0 %v5893
        %v7169 = vpop.f32.mrf.mxu0
        %v7170 = vadd.f32 %v6993, %v7169
        %v7171 = vpop.f32.mrf.mxu0
        %v7172 = vpop.f32.mrf.mxu0
        %v7173 = vadd.f32 %v6996, %v7172
        %v7174 = vpop.f32.mrf.mxu0
        %7175 = vmatprep.mubr.bf16.mxu0 %v5901
        %7176 = vmatmul.mubr.bf16.gmra.mxu0 %v5900
        %v7177 = vpop.f32.mrf.mxu0
        %v7178 = vadd.f32 %v7001, %v7177
        %v7179 = vpop.f32.mrf.mxu0
        %v7180 = vpop.f32.mrf.mxu0
        %v7181 = vadd.f32 %v7004, %v7180
        %v7182 = vpop.f32.mrf.mxu0
        %7183 = vmatprep.mubr.bf16.mxu0 %v5908
        %7184 = vmatmul.mubr.bf16.gmra.mxu0 %v5907
        %v7185 = vpop.f32.mrf.mxu0
        %v7186 = vadd.f32 %v7009, %v7185
        %v7187 = vpop.f32.mrf.mxu0
        %v7188 = vpop.f32.mrf.mxu0
        %v7189 = vadd.f32 %v7012, %v7188
        %v7190 = vpop.f32.mrf.mxu0
        %7191 = vmatprep.mubr.bf16.mxu0 %v5915
        %7192 = vmatmul.mubr.bf16.gmra.mxu0 %v5914
        %v7193 = vpop.f32.mrf.mxu0
        %v7194 = vadd.f32 %v7017, %v7193
        %v7195 = vpop.f32.mrf.mxu0
        %v7196 = vpop.f32.mrf.mxu0
        %v7197 = vadd.f32 %v7020, %v7196
        %v7198 = vpop.f32.mrf.mxu0
        %7199 = vmatprep.mubr.bf16.mxu0 %v5922
        %7200 = vmatmul.mubr.bf16.gmra.mxu0 %v5921
        %v7201 = vpop.f32.mrf.mxu0
        %v7202 = vadd.f32 %v7025, %v7201
        %v7203 = vpop.f32.mrf.mxu0
        %v7204 = vpop.f32.mrf.mxu0
        %v7205 = vadd.f32 %v7028, %v7204
        %v7206 = vpop.f32.mrf.mxu0
        %7207 = vmatprep.mubr.bf16.mxu0 %v5929
        %7208 = vmatmul.mubr.bf16.gmra.mxu0 %v5928
        %v7209 = vpop.f32.mrf.mxu0
        %v7210 = vadd.f32 %v7033, %v7209
        %v7211 = vpop.f32.mrf.mxu0
        %v7212 = vpop.f32.mrf.mxu0
        %v7213 = vadd.f32 %v7036, %v7212
        %v7214 = vpop.f32.mrf.mxu0
        %7215 = vmatprep.mubr.bf16.mxu0 %v5936
        %7216 = vmatmul.mubr.bf16.gmra.mxu0 %v5935
        %v7217 = vpop.f32.mrf.mxu0
        %v7218 = vadd.f32 %v7041, %v7217
        %v7219 = vpop.f32.mrf.mxu0
        %v7220 = vpop.f32.mrf.mxu0
        %v7221 = vadd.f32 %v7044, %v7220
        %v7222 = vpop.f32.mrf.mxu0
        %7223 = vmatprep.mubr.bf16.mxu0 %v5943
        %7224 = vmatmul.mubr.bf16.gmra.mxu0 %v5942
        %v7225 = vpop.f32.mrf.mxu0
        %v7226 = vadd.f32 %v7049, %v7225
        %v7227 = vpop.f32.mrf.mxu0
        %v7228 = vpop.f32.mrf.mxu0
        %v7229 = vadd.f32 %v7052, %v7228
        %v7230 = vpop.f32.mrf.mxu0
        %7231 = vmatprep.mubr.bf16.mxu0 %v5950
        %7232 = vmatmul.mubr.bf16.gmra.mxu0 %v5949
        %v7233 = vpop.f32.mrf.mxu0
        %v7234 = vadd.f32 %v7057, %v7233
        %v7235 = vpop.f32.mrf.mxu0
        %v7236 = vpop.f32.mrf.mxu0
        %v7237 = vadd.f32 %v7060, %v7236
        %v7238 = vpop.f32.mrf.mxu0
        %7239 = vmatprep.mubr.bf16.mxu0 %v5957
        %7240 = vmatmul.mubr.bf16.gmra.mxu0 %v5956
        %v7241 = vpop.f32.mrf.mxu0
        %v7242 = vadd.f32 %v7065, %v7241
        %v7243 = vpop.f32.mrf.mxu0
        %v7244 = vpop.f32.mrf.mxu0
        %v7245 = vadd.f32 %v7068, %v7244
        %v7246 = vpop.f32.mrf.mxu0
        %7247 = vmatprep.mubr.bf16.mxu0 %v5964
        %7248 = vmatmul.mubr.bf16.gmra.mxu0 %v5963
        %v7249 = vpop.f32.mrf.mxu0
        %v7250 = vadd.f32 %v7073, %v7249
        %v7251 = vpop.f32.mrf.mxu0
        %v7252 = vpop.f32.mrf.mxu0
        %v7253 = vadd.f32 %v7076, %v7252
        %v7254 = vpop.f32.mrf.mxu0
        %7255 = vmatprep.mubr.bf16.mxu0 %v5971
        %7256 = vmatmul.mubr.bf16.gmra.mxu0 %v5970
        %v7257 = vpop.f32.mrf.mxu0
        %v7258 = vadd.f32 %v7081, %v7257
        %v7259 = vpop.f32.mrf.mxu0
        %v7260 = vpop.f32.mrf.mxu0
        %v7261 = vadd.f32 %v7084, %v7260
        %v7262 = vpop.f32.mrf.mxu0
        %7263 = vdwg.mxu0
        %7264 = vmatprep.subr.bf16.mxu0 0
        %7265 = vmatpush1.bf16.msra.mxu0 %v6483
        %7266 = vmatprep.subr.bf16.mxu0 0
        %7267 = vmatpush1.bf16.msra.mxu0 %v6482
        %7268 = vmatprep.subr.bf16.mxu0 0
        %7269 = vmatpush1.bf16.msra.mxu0 %v6481
        %7270 = vmatprep.subr.bf16.mxu0 0
        %7271 = vmatpush1.bf16.msra.mxu0 %v6480
        %7272 = vmatprep.subr.bf16.mxu0 0
        %7273 = vmatpush1.bf16.msra.mxu0 %v6479
        %7274 = vmatprep.subr.bf16.mxu0 0
        %7275 = vmatpush1.bf16.msra.mxu0 %v6478
        %7276 = vmatprep.subr.bf16.mxu0 0
        %7277 = vmatpush1.bf16.msra.mxu0 %v6477
        %7278 = vmatprep.subr.bf16.mxu0 0
        %7279 = vmatpush1.bf16.msra.mxu0 %v6476
        %7280 = vmatprep.subr.bf16.mxu0 0
        %7281 = vmatpush2.bf16.msra.mxu0 0
        %7282 = vmatprep.subr.bf16.mxu0 0
        %7283 = vmatpush2.bf16.msra.mxu0 0
        %7284 = vmatprep.subr.bf16.mxu0 0
        %7285 = vmatpush2.bf16.msra.mxu0 0
        %7286 = vmatprep.subr.bf16.mxu0 0
        %7287 = vmatpush2.bf16.msra.mxu0 0
        %7288 = vmatprep.subr.bf16.mxu0 0
        %7289 = vmatpush2.bf16.msra.mxu0 0
        %7290 = vmatprep.subr.bf16.mxu0 0
        %7291 = vmatpush2.bf16.msra.mxu0 0
        %7292 = vmatprep.subr.bf16.mxu0 0
        %7293 = vmatpush2.bf16.msra.mxu0 0
        %7294 = vmatprep.subr.bf16.mxu0 0
        %7295 = vmatpush2.bf16.msra.mxu0 0
        %7296 = vmatprep.mubr.bf16.mxu0 0
        %7297 = vmatmul.mubr.bf16.gmra.mxu0 %v5853
        %v7298 = vpop.f32.mrf.mxu0
        %v7299 = vadd.f32 %v7122, %v7298
        %v7300 = vpop.f32.mrf.mxu0
        %v7301 = vpop.f32.mrf.mxu0
        %v7302 = vadd.f32 %v7125, %v7301
        %v7303 = vpop.f32.mrf.mxu0
        %7304 = vmatprep.mubr.bf16.mxu0 0
        %7305 = vmatmul.mubr.bf16.gmra.mxu0 %v5860
        %v7306 = vpop.f32.mrf.mxu0
        %v7307 = vadd.f32 %v7130, %v7306
        %v7308 = vpop.f32.mrf.mxu0
        %v7309 = vpop.f32.mrf.mxu0
        %v7310 = vadd.f32 %v7133, %v7309
        %v7311 = vpop.f32.mrf.mxu0
        %7312 = vmatprep.mubr.bf16.mxu0 0
        %7313 = vmatmul.mubr.bf16.gmra.mxu0 %v5867
        %v7314 = vpop.f32.mrf.mxu0
        %v7315 = vadd.f32 %v7138, %v7314
        %v7316 = vpop.f32.mrf.mxu0
        %v7317 = vpop.f32.mrf.mxu0
        %v7318 = vadd.f32 %v7141, %v7317
        %v7319 = vpop.f32.mrf.mxu0
        %7320 = vmatprep.mubr.bf16.mxu0 0
        %7321 = vmatmul.mubr.bf16.gmra.mxu0 %v5874
        %v7322 = vpop.f32.mrf.mxu0
        %v7323 = vadd.f32 %v7146, %v7322
        %v7324 = vpop.f32.mrf.mxu0
        %v7325 = vpop.f32.mrf.mxu0
        %v7326 = vadd.f32 %v7149, %v7325
        %v7327 = vpop.f32.mrf.mxu0
        %7328 = vmatprep.mubr.bf16.mxu0 0
        %7329 = vmatmul.mubr.bf16.gmra.mxu0 %v5881
        %v7330 = vpop.f32.mrf.mxu0
        %v7331 = vadd.f32 %v7154, %v7330
        %v7332 = vpop.f32.mrf.mxu0
        %v7333 = vpop.f32.mrf.mxu0
        %v7334 = vadd.f32 %v7157, %v7333
        %v7335 = vpop.f32.mrf.mxu0
        %7336 = vmatprep.mubr.bf16.mxu0 0
        %7337 = vmatmul.mubr.bf16.gmra.mxu0 %v5888
        %v7338 = vpop.f32.mrf.mxu0
        %v7339 = vadd.f32 %v7162, %v7338
        %v7340 = vpop.f32.mrf.mxu0
        %v7341 = vpop.f32.mrf.mxu0
        %v7342 = vadd.f32 %v7165, %v7341
        %v7343 = vpop.f32.mrf.mxu0
        %7344 = vmatprep.mubr.bf16.mxu0 0
        %7345 = vmatmul.mubr.bf16.gmra.mxu0 %v5895
        %v7346 = vpop.f32.mrf.mxu0
        %v7347 = vadd.f32 %v7170, %v7346
        %v7348 = vpop.f32.mrf.mxu0
        %v7349 = vpop.f32.mrf.mxu0
        %v7350 = vadd.f32 %v7173, %v7349
        %v7351 = vpop.f32.mrf.mxu0
        %7352 = vmatprep.mubr.bf16.mxu0 0
        %7353 = vmatmul.mubr.bf16.gmra.mxu0 %v5902
        %v7354 = vpop.f32.mrf.mxu0
        %v7355 = vadd.f32 %v7178, %v7354
        %v7356 = vpop.f32.mrf.mxu0
        %v7357 = vpop.f32.mrf.mxu0
        %v7358 = vadd.f32 %v7181, %v7357
        %v7359 = vpop.f32.mrf.mxu0
        %7360 = vmatprep.mubr.bf16.mxu0 0
        %7361 = vmatmul.mubr.bf16.gmra.mxu0 %v5909
        %v7362 = vpop.f32.mrf.mxu0
        %v7363 = vadd.f32 %v7186, %v7362
        %v7364 = vpop.f32.mrf.mxu0
        %v7365 = vpop.f32.mrf.mxu0
        %v7366 = vadd.f32 %v7189, %v7365
        %v7367 = vpop.f32.mrf.mxu0
        %7368 = vmatprep.mubr.bf16.mxu0 0
        %7369 = vmatmul.mubr.bf16.gmra.mxu0 %v5916
        %v7370 = vpop.f32.mrf.mxu0
        %v7371 = vadd.f32 %v7194, %v7370
        %v7372 = vpop.f32.mrf.mxu0
        %v7373 = vpop.f32.mrf.mxu0
        %v7374 = vadd.f32 %v7197, %v7373
        %v7375 = vpop.f32.mrf.mxu0
        %7376 = vmatprep.mubr.bf16.mxu0 0
        %7377 = vmatmul.mubr.bf16.gmra.mxu0 %v5923
        %v7378 = vpop.f32.mrf.mxu0
        %v7379 = vadd.f32 %v7202, %v7378
        %v7380 = vpop.f32.mrf.mxu0
        %v7381 = vpop.f32.mrf.mxu0
        %v7382 = vadd.f32 %v7205, %v7381
        %v7383 = vpop.f32.mrf.mxu0
        %7384 = vmatprep.mubr.bf16.mxu0 0
        %7385 = vmatmul.mubr.bf16.gmra.mxu0 %v5930
        %v7386 = vpop.f32.mrf.mxu0
        %v7387 = vadd.f32 %v7210, %v7386
        %v7388 = vpop.f32.mrf.mxu0
        %v7389 = vpop.f32.mrf.mxu0
        %v7390 = vadd.f32 %v7213, %v7389
        %v7391 = vpop.f32.mrf.mxu0
        %7392 = vmatprep.mubr.bf16.mxu0 0
        %7393 = vmatmul.mubr.bf16.gmra.mxu0 %v5937
        %v7394 = vpop.f32.mrf.mxu0
        %v7395 = vadd.f32 %v7218, %v7394
        %v7396 = vpop.f32.mrf.mxu0
        %v7397 = vpop.f32.mrf.mxu0
        %v7398 = vadd.f32 %v7221, %v7397
        %v7399 = vpop.f32.mrf.mxu0
        %7400 = vmatprep.mubr.bf16.mxu0 0
        %7401 = vmatmul.mubr.bf16.gmra.mxu0 %v5944
        %v7402 = vpop.f32.mrf.mxu0
        %v7403 = vadd.f32 %v7226, %v7402
        %v7404 = vpop.f32.mrf.mxu0
        %v7405 = vpop.f32.mrf.mxu0
        %v7406 = vadd.f32 %v7229, %v7405
        %v7407 = vpop.f32.mrf.mxu0
        %7408 = vmatprep.mubr.bf16.mxu0 0
        %7409 = vmatmul.mubr.bf16.gmra.mxu0 %v5951
        %v7410 = vpop.f32.mrf.mxu0
        %v7411 = vadd.f32 %v7234, %v7410
        %v7412 = vpop.f32.mrf.mxu0
        %v7413 = vpop.f32.mrf.mxu0
        %v7414 = vadd.f32 %v7237, %v7413
        %v7415 = vpop.f32.mrf.mxu0
        %7416 = vmatprep.mubr.bf16.mxu0 0
        %7417 = vmatmul.mubr.bf16.gmra.mxu0 %v5958
        %v7418 = vpop.f32.mrf.mxu0
        %v7419 = vadd.f32 %v7242, %v7418
        %v7420 = vpop.f32.mrf.mxu0
        %v7421 = vpop.f32.mrf.mxu0
        %v7422 = vadd.f32 %v7245, %v7421
        %v7423 = vpop.f32.mrf.mxu0
        %7424 = vmatprep.mubr.bf16.mxu0 0
        %7425 = vmatmul.mubr.bf16.gmra.mxu0 %v5965
        %v7426 = vpop.f32.mrf.mxu0
        %v7427 = vadd.f32 %v7250, %v7426
        %v7428 = vpop.f32.mrf.mxu0
        %v7429 = vpop.f32.mrf.mxu0
        %v7430 = vadd.f32 %v7253, %v7429
        %v7431 = vpop.f32.mrf.mxu0
        %7432 = vmatprep.mubr.bf16.mxu0 0
        %7433 = vmatmul.mubr.bf16.gmra.mxu0 %v5972
        %v7434 = vpop.f32.mrf.mxu0
        %v7435 = vadd.f32 %v7258, %v7434
        %v7436 = vpop.f32.mrf.mxu0
        %v7437 = vpop.f32.mrf.mxu0
        %v7438 = vadd.f32 %v7261, %v7437
        %v7439 = vpop.f32.mrf.mxu0
        %7440 = vdwg.mxu0
        %vm7441 = vcmp.gt.f32.partialorder %v7299, 0.0
        %vm7442 = vcmp.gt.f32.partialorder %v7302, 0.0
        %vm7443 = vcmp.gt.f32.partialorder %v7307, 0.0
        %vm7444 = vcmp.gt.f32.partialorder %v7310, 0.0
        %vm7445 = vcmp.gt.f32.partialorder %v7315, 0.0
        %vm7446 = vcmp.gt.f32.partialorder %v7318, 0.0
        %vm7447 = vcmp.gt.f32.partialorder %v7323, 0.0
        %vm7448 = vcmp.gt.f32.partialorder %v7326, 0.0
        %vm7449 = vcmp.gt.f32.partialorder %v7331, 0.0
        %vm7450 = vcmp.gt.f32.partialorder %v7334, 0.0
        %vm7451 = vcmp.gt.f32.partialorder %v7339, 0.0
        %vm7452 = vcmp.gt.f32.partialorder %v7342, 0.0
        %vm7453 = vcmp.gt.f32.partialorder %v7347, 0.0
        %vm7454 = vcmp.gt.f32.partialorder %v7350, 0.0
        %vm7455 = vcmp.gt.f32.partialorder %v7355, 0.0
        %vm7456 = vcmp.gt.f32.partialorder %v7358, 0.0
        %vm7457 = vcmp.gt.f32.partialorder %v7363, 0.0
        %vm7458 = vcmp.gt.f32.partialorder %v7366, 0.0
        %vm7459 = vcmp.gt.f32.partialorder %v7371, 0.0
        %vm7460 = vcmp.gt.f32.partialorder %v7374, 0.0
        %vm7461 = vcmp.gt.f32.partialorder %v7379, 0.0
        %vm7462 = vcmp.gt.f32.partialorder %v7382, 0.0
        %vm7463 = vcmp.gt.f32.partialorder %v7387, 0.0
        %vm7464 = vcmp.gt.f32.partialorder %v7390, 0.0
        %vm7465 = vcmp.gt.f32.partialorder %v7395, 0.0
        %vm7466 = vcmp.gt.f32.partialorder %v7398, 0.0
        %vm7467 = vcmp.gt.f32.partialorder %v7403, 0.0
        %vm7468 = vcmp.gt.f32.partialorder %v7406, 0.0
        %vm7469 = vcmp.gt.f32.partialorder %v7411, 0.0
        %vm7470 = vcmp.gt.f32.partialorder %v7414, 0.0
        %vm7471 = vcmp.gt.f32.partialorder %v7419, 0.0
        %vm7472 = vcmp.gt.f32.partialorder %v7422, 0.0
        %vm7473 = vcmp.gt.f32.partialorder %v7427, 0.0
        %vm7474 = vcmp.gt.f32.partialorder %v7430, 0.0
        %vm7475 = vcmp.gt.f32.partialorder %v7435, 0.0
        %vm7476 = vcmp.gt.f32.partialorder %v7438, 0.0
        %v7477 = vmul.f32 %v7299, 0.1
        %v7478 = vmul.f32 %v7302, 0.1
        %v7479 = vmul.f32 %v7307, 0.1
        %v7480 = vmul.f32 %v7310, 0.1
        %v7481 = vmul.f32 %v7315, 0.1
        %v7482 = vmul.f32 %v7318, 0.1
        %v7483 = vmul.f32 %v7323, 0.1
        %v7484 = vmul.f32 %v7326, 0.1
        %v7485 = vmul.f32 %v7331, 0.1
        %v7486 = vmul.f32 %v7334, 0.1
        %v7487 = vmul.f32 %v7339, 0.1
        %v7488 = vmul.f32 %v7342, 0.1
        %v7489 = vmul.f32 %v7347, 0.1
        %v7490 = vmul.f32 %v7350, 0.1
        %v7491 = vmul.f32 %v7355, 0.1
        %v7492 = vmul.f32 %v7358, 0.1
        %v7493 = vmul.f32 %v7363, 0.1
        %v7494 = vmul.f32 %v7366, 0.1
        %v7495 = vmul.f32 %v7371, 0.1
        %v7496 = vmul.f32 %v7374, 0.1
        %v7497 = vmul.f32 %v7379, 0.1
        %v7498 = vmul.f32 %v7382, 0.1
        %v7499 = vmul.f32 %v7387, 0.1
        %v7500 = vmul.f32 %v7390, 0.1
        %v7501 = vmul.f32 %v7395, 0.1
        %v7502 = vmul.f32 %v7398, 0.1
        %v7503 = vmul.f32 %v7403, 0.1
        %v7504 = vmul.f32 %v7406, 0.1
        %v7505 = vmul.f32 %v7411, 0.1
        %v7506 = vmul.f32 %v7414, 0.1
        %v7507 = vmul.f32 %v7419, 0.1
        %v7508 = vmul.f32 %v7422, 0.1
        %v7509 = vmul.f32 %v7427, 0.1
        %v7510 = vmul.f32 %v7430, 0.1
        %v7511 = vmul.f32 %v7435, 0.1
        %v7512 = vmul.f32 %v7438, 0.1
        %v7513 = vsel %vm7441, %v7299, %v7477
        %v7514 = vsel %vm7442, %v7302, %v7478
        %v7515 = vsel %vm7443, %v7307, %v7479
        %v7516 = vsel %vm7444, %v7310, %v7480
        %v7517 = vsel %vm7445, %v7315, %v7481
        %v7518 = vsel %vm7446, %v7318, %v7482
        %v7519 = vsel %vm7447, %v7323, %v7483
        %v7520 = vsel %vm7448, %v7326, %v7484
        %v7521 = vsel %vm7449, %v7331, %v7485
        %v7522 = vsel %vm7450, %v7334, %v7486
        %v7523 = vsel %vm7451, %v7339, %v7487
        %v7524 = vsel %vm7452, %v7342, %v7488
        %v7525 = vsel %vm7453, %v7347, %v7489
        %v7526 = vsel %vm7454, %v7350, %v7490
        %v7527 = vsel %vm7455, %v7355, %v7491
        %v7528 = vsel %vm7456, %v7358, %v7492
        %v7529 = vsel %vm7457, %v7363, %v7493
        %v7530 = vsel %vm7458, %v7366, %v7494
        %v7531 = vsel %vm7459, %v7371, %v7495
        %v7532 = vsel %vm7460, %v7374, %v7496
        %v7533 = vsel %vm7461, %v7379, %v7497
        %v7534 = vsel %vm7462, %v7382, %v7498
        %v7535 = vsel %vm7463, %v7387, %v7499
        %v7536 = vsel %vm7464, %v7390, %v7500
        %v7537 = vsel %vm7465, %v7395, %v7501
        %v7538 = vsel %vm7466, %v7398, %v7502
        %v7539 = vsel %vm7467, %v7403, %v7503
        %v7540 = vsel %vm7468, %v7406, %v7504
        %v7541 = vsel %vm7469, %v7411, %v7505
        %v7542 = vsel %vm7470, %v7414, %v7506
        %v7543 = vsel %vm7471, %v7419, %v7507
        %v7544 = vsel %vm7472, %v7422, %v7508
        %v7545 = vsel %vm7473, %v7427, %v7509
        %v7546 = vsel %vm7474, %v7430, %v7510
        %v7547 = vsel %vm7475, %v7435, %v7511
        %v7548 = vsel %vm7476, %v7438, %v7512
        %7549 = vst [vmem:[%s475] sm:$0xff] 0.0
        %7550 = vst [vmem:[%s475 + $0x8] sm:$0xff] 0.0
        %7551 = vst [vmem:[%s475 + $0x10] sm:$0xff] 0.0
        %7552 = vst [vmem:[%s475 + $0x18] sm:$0xff] 0.0
        %7553 = vst [vmem:[%s475 + $0x20] sm:$0xff] 0.0
        %7554 = vst [vmem:[%s475 + $0x28] sm:$0xff] 0.0
        %7555 = vst [vmem:[%s475 + $0x30] sm:$0xff] 0.0
        %7556 = vst [vmem:[%s475 + $0x38] sm:$0xff] 0.0
        %7557 = vst [vmem:[%s475 + $0x40] sm:$0xff] 0.0
        %7558 = vst [vmem:[%s475 + $0x48] sm:$0xff] 0.0
        %7559 = vst [vmem:[%s475 + $0x50] sm:$0xff] 0.0
        %7560 = vst [vmem:[%s475 + $0x58] sm:$0xff] 0.0
        %7561 = vst [vmem:[%s475 + $0x60] sm:$0xff] 0.0
        %7562 = vst [vmem:[%s475 + $0x68] sm:$0xff] 0.0
        %7563 = vst [vmem:[%s475 + $0x70] sm:$0xff] 0.0
        %7564 = vst [vmem:[%s475 + $0x78] sm:$0xff] 0.0
        %7565 = vst [vmem:[%s475 + $0x80] sm:$0xff] 0.0
        %7566 = vst [vmem:[%s475 + $0x88] sm:$0xff] 0.0
        %7567 = vst [vmem:[%s475 + $0x90] sm:$0xff] 0.0
        %7568 = vst [vmem:[%s475 + $0x98] sm:$0xff] 0.0
        %7569 = vst [vmem:[%s475 + $0xa0] sm:$0xff] 0.0
        %7570 = vst [vmem:[%s475 + $0xa8] sm:$0xff] 0.0
        %7571 = vst [vmem:[%s475 + $0xb0] sm:$0xff] 0.0
        %7572 = vst [vmem:[%s475 + $0xb8] sm:$0xff] 0.0
        %7573 = vst [vmem:[%s475 + $0xc0] sm:$0xff] 0.0
        %7574 = vst [vmem:[%s475 + $0xc8] sm:$0xff] 0.0
        %7575 = vst [vmem:[%s475 + $0xd0] sm:$0xff] 0.0
        %7576 = vst [vmem:[%s475 + $0xd8] sm:$0xff] 0.0
        %7577 = vst [vmem:[%s475 + $0xe0] sm:$0xff] 0.0
        %7578 = vst [vmem:[%s475 + $0xe8] sm:$0xff] 0.0
        %7579 = vst [vmem:[%s475 + $0xf0] sm:$0xff] 0.0
        %7580 = vst [vmem:[%s475 + $0xf8] sm:$0xff] 0.0
        %7581 = vst [vmem:[%s475 + $0x100] sm:$0xff] 0.0
        %7582 = vst [vmem:[%s475 + $0x108] sm:$0xff] 0.0
        %7583 = vst [vmem:[%s475 + $0x110] sm:$0xff] 0.0
        %7584 = vst [vmem:[%s475 + $0x118] sm:$0xff] 0.0
        %7585 = vst [vmem:[%s475 + $0x120] sm:$0xff] 0.0
        %7586 = vst [vmem:[%s475 + $0x128] sm:$0xff] 0.0
        %7587 = vst [vmem:[%s475 + $0x130] sm:$0xff] 0.0
        %7588 = vst [vmem:[%s475 + $0x138] sm:$0xff] 0.0
        %7589 = vst [vmem:[%s475 + $0x140] sm:$0xff] 0.0
        %7590 = vst [vmem:[%s475 + $0x148] sm:$0xff] 0.0
        %7591 = vst [vmem:[%s475 + $0x18] sm:$0xff] %v7513
        %7592 = vst [vmem:[%s475 + $0x20] sm:$0xff] %v7514
        %7593 = vst [vmem:[%s475 + $0x28] sm:$0xff] %v7515
        %7594 = vst [vmem:[%s475 + $0x30] sm:$0xff] %v7516
        %7595 = vst [vmem:[%s475 + $0x38] sm:$0xff] %v7517
        %7596 = vst [vmem:[%s475 + $0x40] sm:$0xff] %v7518
        %7597 = vst [vmem:[%s475 + $0x48] sm:$0xff] %v7519
        %7598 = vst [vmem:[%s475 + $0x50] sm:$0xff] %v7520
        %7599 = vst [vmem:[%s475 + $0x58] sm:$0xff] %v7521
        %7600 = vst [vmem:[%s475 + $0x60] sm:$0xff] %v7522
        %7601 = vst [vmem:[%s475 + $0x68] sm:$0xff] %v7523
        %7602 = vst [vmem:[%s475 + $0x70] sm:$0xff] %v7524
        %7603 = vst [vmem:[%s475 + $0x78] sm:$0xff] %v7525
        %7604 = vst [vmem:[%s475 + $0x80] sm:$0xff] %v7526
        %7605 = vst [vmem:[%s475 + $0x88] sm:$0xff] %v7527
        %7606 = vst [vmem:[%s475 + $0x90] sm:$0xff] %v7528
        %7607 = vst [vmem:[%s475 + $0x98] sm:$0xff] %v7529
        %7608 = vst [vmem:[%s475 + $0xa0] sm:$0xff] %v7530
        %7609 = vst [vmem:[%s475 + $0xa8] sm:$0xff] %v7531
        %7610 = vst [vmem:[%s475 + $0xb0] sm:$0xff] %v7532
        %7611 = vst [vmem:[%s475 + $0xb8] sm:$0xff] %v7533
        %7612 = vst [vmem:[%s475 + $0xc0] sm:$0xff] %v7534
        %7613 = vst [vmem:[%s475 + $0xc8] sm:$0xff] %v7535
        %7614 = vst [vmem:[%s475 + $0xd0] sm:$0xff] %v7536
        %7615 = vst [vmem:[%s475 + $0xd8] sm:$0xff] %v7537
        %7616 = vst [vmem:[%s475 + $0xe0] sm:$0xff] %v7538
        %7617 = vst [vmem:[%s475 + $0xe8] sm:$0xff] %v7539
        %7618 = vst [vmem:[%s475 + $0xf0] sm:$0xff] %v7540
        %7619 = vst [vmem:[%s475 + $0xf8] sm:$0xff] %v7541
        %7620 = vst [vmem:[%s475 + $0x100] sm:$0xff] %v7542
        %7621 = vst [vmem:[%s475 + $0x108] sm:$0xff] %v7543
        %7622 = vst [vmem:[%s475 + $0x110] sm:$0xff] %v7544
        %7623 = vst [vmem:[%s475 + $0x118] sm:$0xff] %v7545
        %7624 = vst [vmem:[%s475 + $0x120] sm:$0xff] %v7546
        %7625 = vst [vmem:[%s475 + $0x128] sm:$0xff] %v7547
        %7626 = vst [vmem:[%s475 + $0x130] sm:$0xff] %v7548
        %s7627 = sand.u32 %s296, 1
        %s7628 = scalar_lea.sflag [#allocation6], %s7627
        %s7629 = sand.u32 %s296, 1
        %s7630 = smul.addr %s7629, 336
        %s7631 = scalar_lea.vmem [#allocation12], %s7630
        // Predicated region
        $region85: #{tpu_custom_call.1} parent=67 // pred_check
          %p7632 = pneg %p306
        $region86: #{tpu_custom_call.1} parent=67 // pred_check_branch
          %7634 = sbr.rel (%p7632) target = $region88
        $region87: #{tpu_custom_call.1} parent=67 // pred_region
          %s7636 = ssub.s32 5376, 5376
          %7637 = vsyncadd %s7628, %s7636
          %s7638 = smul.addr %s31, 42
          %s7639 = smul.addr %s7638, 128
          %s7640 = scalar_lea.hbm %s12, %s7639
          %s7641 = sshll.u32 %s7631, 4
          %s7642 = int_to_ptr.vmem [resolvable:$true] %s7641
          %7647 = dma.vmem_to_hbm [thread:$0]  %s7642, 5376, %s7640, %s7628, 128, 128, 8
        $region88: #{tpu_custom_call.1} parent=67 // pred_fallthru
          _
      $region68: #{tpu_custom_call.1} parent=5 // pred_fallthru
        _
      %p7648 = scmp.le.s32.totalorder 2, %s26
      // Predicated region
      $region89: #{tpu_custom_call.1} parent=5 // pred_check
        %p7649 = pneg %p7648
      $region90: #{tpu_custom_call.1} parent=5 // pred_check_branch
        %7651 = sbr.rel (%p7649) target = $region92
      $region91: #{tpu_custom_call.1} parent=5 // pred_region
        %s7652 = ssub.s32 %s26, 2
        // Predicated region
        $region93: #{tpu_custom_call.1} parent=91 // pred_check
          %p7653 = pneg %p312
        $region94: #{tpu_custom_call.1} parent=91 // pred_check_branch
          %7655 = sbr.rel (%p7653) target = $region96
        $region95: #{tpu_custom_call.1} parent=91 // pred_region
          %s7656 = sand.u32 %s297, 1
          %s7657 = scalar_lea.sflag [#allocation6], %s7656
          %s7658 = sand.u32 %s297, 1
          %s7659 = smul.addr %s7658, 336
          %s7660 = scalar_lea.vmem [#allocation12], %s7659
          %7661 = dma.done %s7657, 5376
        $region96: #{tpu_custom_call.1} parent=91 // pred_fallthru
          _
      $region92: #{tpu_custom_call.1} parent=5 // pred_fallthru
        _
    $region6: #{tpu_custom_call.1} parent=1 // loop_footer
      %s30 = sadd.s32 1, %s26
    $region7: #{tpu_custom_call.1} parent=1 // loop_footer_branch
      %25 = sbr.rel target = $region3
    $region8: #{tpu_custom_call.1} parent=1 // loop_exit
      _
    %7662 = vsyncpa [#allocation5], 1
    %s7663 = scalar_lea.sflag [#allocation5], 1
    %7664 = vsyncpa %s7663, 1
    %7665 = vsyncpa [#allocation8], 1
    %7666 = vsyncpa [#allocation11], 1
    %7667 = vsyncpa [#allocation6], 1
    %s7668 = scalar_lea.sflag [#allocation6], 1
    %7669 = vsyncpa %s7668, 1

</llo_original>
